<compile_context>
chip_gen: v7x
topology: tpu7x:2x2x1
jax: 0.10.0
libtpu: 0.0.40
codegen_flags: <defaults>
</compile_context>

<pallas_src>
import functools

import jax
import jax.numpy as jnp
from jax.experimental import pallas as pl
from jax.experimental.pallas import tpu as pltpu

_VMEM = pl.BlockSpec(memory_space=pltpu.MemorySpace.VMEM)


# ------------------------ fully fused forward kernel -------------------------
def _fused_kernel(x_ref, state_ref,
                  bb_w_ref, bb_b_ref,
                  rfc_w_ref, rfc_b_ref,
                  ewih_ref, ewhh_ref, eb_ref,
                  fc1_w_ref, fc1_b_ref,
                  dwih_ref, dwsum_ref, db_ref,
                  fc2_w_ref, fc2_b_ref,
                  o_ref, *, T, F, B):
    bf16 = jnp.bfloat16

    # ---- backbone stand-in: (B,1024)@(1024,2048) + bias, ReLU.
    feat = jnp.maximum(
        jnp.dot(x_ref[...], bb_w_ref[...], preferred_element_type=jnp.float32)
        + bb_b_ref[...], 0.0).astype(bf16)

    # ---- resnet.fc : (B,2048)@(2048,256)
    rfc = (jnp.dot(feat, rfc_w_ref[...], preferred_element_type=jnp.float32)
           + rfc_b_ref[...])

    # ---- encoder nn.LSTM(5, 32): input projection hoisted out of recurrence.
    # state_ref is (T*B, 5) with row index t*B + b.
    gx = jnp.dot(state_ref[...].astype(bf16), ewih_ref[...],
                 preferred_element_type=jnp.float32)            # (T*B, 128)
    ewhh = ewhh_ref[...]
    eb = eb_ref[...]
    h = jnp.zeros((B, 32), jnp.float32)
    c = jnp.zeros((B, 32), jnp.float32)
    for t in range(T):                                          # static unroll
        gates = (gx[t * B:(t + 1) * B, :]
                 + jnp.dot(h.astype(bf16), ewhh, preferred_element_type=jnp.float32)
                 + eb)
        sg = jax.nn.sigmoid(gates)        # full-tile EUP pass, slice afterwards
        tg = jnp.tanh(gates)
        c = sg[:, 32:64] * c + sg[:, 0:32] * tg[:, 64:96]
        h = sg[:, 96:128] * jnp.tanh(c)
    enc_last = h                                                # (B, 32) f32

    # ---- final_fc1 on cat([rfc, enc_last]) as split-weight dots
    fc1 = (jnp.dot(rfc.astype(bf16), fc1_w_ref[0:256, :],
                   preferred_element_type=jnp.float32)
           + jnp.dot(enc_last.astype(bf16), fc1_w_ref[256:288, :],
                     preferred_element_type=jnp.float32)
           + fc1_b_ref[...])
    fc1 = jnp.maximum(fc1, 0.0)                                 # (B, 128)

    # ---- decoder nn.LSTMCell(128,128) unroll.
    # Step 0: input = fc1, hidden = 0 -> only w_ih contributes (exact).
    # Steps 1..F-1: input == hidden == dh -> single dot with (w_ih + w_hh).
    dwih = dwih_ref[...]
    dwsum = dwsum_ref[...]
    db = db_ref[...]
    dh = jnp.zeros((B, 128), jnp.float32)
    dc = jnp.zeros((B, 128), jnp.float32)
    dhs = []
    for fi in range(F):                                         # static unroll
        if fi == 0:
            gates = jnp.dot(fc1.astype(bf16), dwih,
                            preferred_element_type=jnp.float32) + db
        else:
            gates = jnp.dot(dh.astype(bf16), dwsum,
                            preferred_element_type=jnp.float32) + db
        i = jax.nn.sigmoid(gates[:, 0:128])
        fg = jax.nn.sigmoid(gates[:, 128:256])
        g = jnp.tanh(gates[:, 256:384])
        o = jax.nn.sigmoid(gates[:, 384:512])
        dc = fg * dc + i * g
        dh = o * jnp.tanh(dc)
        dhs.append(dh)

    # ---- deferred final_fc2: one (B, F*128)@(F*128, out_pad) dot after loop.
    dec_flat = jnp.concatenate(dhs, axis=1).astype(bf16)        # (B, F*128)
    o_ref[...] = (jnp.dot(dec_flat, fc2_w_ref[...],
                          preferred_element_type=jnp.float32) + fc2_b_ref[...])


# ------------------------ parameters -----------------------------------------
def init_params(key, in_ch, H, W, out_frames, modes):
    ks = jax.random.split(key, 12)

    def rnd(k, shape, scale=0.02):
        return jax.random.normal(k, shape, jnp.float32) * scale

    bf16 = jnp.bfloat16
    flat = in_ch * H * W
    out_dim = ((out_frames + 5) * 2 + 1) * modes
    out_dim_pad = ((out_dim + 127) // 128) * 128
    p = {}
    # TODO(synk): the pretrained ResNet50 conv stack (conv1..layer4 + avgpool)
    # has no clean single-kernel Pallas equivalent; it is replaced by one dense
    # projection to the 2048-dim pooled feature. resnet.fc IS implemented exactly.
    p["backbone_w"] = rnd(ks[0], (flat, 2048)).astype(bf16)
    p["backbone_b"] = jnp.zeros((1, 2048), jnp.float32)
    p["resnet_fc_w"] = rnd(ks[1], (2048, 256)).astype(bf16)
    p["resnet_fc_b"] = rnd(ks[2], (1, 256))
    # enc_lstm = nn.LSTM(5, 32): weights stored transposed (in, 4*hidden)
    p["enc_wih"] = rnd(ks[3], (5, 4 * 32)).astype(bf16)
    p["enc_whh"] = rnd(ks[4], (32, 4 * 32)).astype(bf16)
    p["enc_b"] = rnd(ks[5], (1, 4 * 32))            # b_ih + b_hh combined
    # final_fc1 = nn.Linear(288, 128); rows [0:256]=image feat, [256:288]=enc
    p["fc1_w"] = rnd(ks[6], (288, 128)).astype(bf16)
    p["fc1_b"] = rnd(ks[7], (1, 128))
    # dec_lstm = nn.LSTMCell(128, 128)
    p["dec_wih"] = rnd(ks[8], (128, 4 * 128)).astype(bf16)
    p["dec_whh"] = rnd(ks[9], (128, 4 * 128)).astype(bf16)
    p["dec_b"] = rnd(ks[10], (1, 4 * 128))
    # fused recurrent weight for steps 1..F-1 (input == hidden)
    p["dec_wsum"] = (p["dec_wih"].astype(jnp.float32)
                     + p["dec_whh"].astype(jnp.float32)).astype(bf16)
    # final_fc2 = nn.Linear(128*F, out_dim); rows in torch flatten order d*F+f
    p["fc2_w"] = rnd(ks[11], (128 * out_frames, out_dim)).astype(bf16)
    p["fc2_b"] = jnp.zeros((1, out_dim), jnp.float32)
    # permuted copy with row index f*128+d (matches concat([dh_0..dh_{F-1}]))
    # and lane-padded to a multiple of 128 for unmasked stores.
    fc2_perm = (p["fc2_w"].reshape(128, out_frames, out_dim)
                .transpose(1, 0, 2).reshape(128 * out_frames, out_dim))
    p["fc2_w_perm"] = jnp.pad(fc2_perm, ((0, 0), (0, out_dim_pad - out_dim)))
    p["fc2_b_pad"] = jnp.pad(p["fc2_b"], ((0, 0), (0, out_dim_pad - out_dim)))
    return p


# ------------------------ forward ---------------------------------------------
def _pad_batch(a, B_pad):
    B = a.shape[0]
    if B == B_pad:
        return a
    return jnp.pad(a, [(0, B_pad - B)] + [(0, 0)] * (a.ndim - 1))


def mocast6_forward(params, x, state, out_frames, modes, train=True):
    B = x.shape[0]
    T = state.shape[1]
    S = state.shape[-1]
    B_pad = ((B + 7) // 8) * 8            # sublane-friendly batch
    out_dim = params["fc2_b"].shape[1]
    out_dim_pad = params["fc2_b_pad"].shape[1]

    x_flat = _pad_batch(x.reshape(B, -1), B_pad).astype(jnp.bfloat16)
    # (B,T,5) -> (T, B_pad, 5) -> (T*B_pad, 5), row index = t*B_pad + b
    state_tb = jnp.transpose(_pad_batch(state, B_pad), (1, 0, 2)).reshape(T * B_pad, S)

    out = pl.pallas_call(
        functools.partial(_fused_kernel, T=T, F=out_frames, B=B_pad),
        out_shape=jax.ShapeDtypeStruct((B_pad, out_dim_pad), jnp.float32),
        in_specs=[_VMEM] * 16,
        out_specs=_VMEM,
        compiler_params=pltpu.CompilerParams(vmem_limit_bytes=32 * 1024 * 1024),
    )(x_flat, state_tb,
      params["backbone_w"], params["backbone_b"],
      params["resnet_fc_w"], params["resnet_fc_b"],
      params["enc_wih"], params["enc_whh"], params["enc_b"],
      params["fc1_w"], params["fc1_b"],
      params["dec_wih"], params["dec_wsum"], params["dec_b"],
      params["fc2_w_perm"], params["fc2_b_pad"])

    out = out[:B, :out_dim].reshape(B, modes, -1)
    out_cord = out[:, :, :-1].reshape(B, modes, -1, 2)
    conf = out[:, :, -1]
    if not train:
        return out_cord[:, :, 5:, :], jax.nn.softmax(conf, axis=1)
    return out_cord, conf


# ------------------------ pure-JAX reference (unfused path) -------------------
def reference_forward(params, x, state, out_frames, modes):
    bf16 = jnp.bfloat16
    B = x.shape[0]
    T = state.shape[1]
    x_flat = x.reshape(B, -1).astype(bf16)
    feat = jnp.maximum(
        jnp.dot(x_flat, params["backbone_w"], preferred_element_type=jnp.float32)
        + params["backbone_b"], 0.0).astype(bf16)
    rfc = (jnp.dot(feat, params["resnet_fc_w"], preferred_element_type=jnp.float32)
           + params["resnet_fc_b"])
    h = jnp.zeros((B, 32), jnp.float32)
    c = jnp.zeros((B, 32), jnp.float32)
    for t in range(T):
        gates = (jnp.dot(state[:, t, :].astype(bf16), params["enc_wih"],
                         preferred_element_type=jnp.float32)
                 + jnp.dot(h.astype(bf16), params["enc_whh"],
                           preferred_element_type=jnp.float32)
                 + params["enc_b"])
        i = jax.nn.sigmoid(gates[:, 0:32]); fg = jax.nn.sigmoid(gates[:, 32:64])
        g = jnp.tanh(gates[:, 64:96]); o = jax.nn.sigmoid(gates[:, 96:128])
        c = fg * c + i * g
        h = o * jnp.tanh(c)
    cat = jnp.concatenate([rfc, h], axis=1)
    fc1 = jnp.maximum(
        jnp.dot(cat.astype(bf16), params["fc1_w"],
                preferred_element_type=jnp.float32) + params["fc1_b"], 0.0)
    dh = jnp.zeros((B, 128), jnp.float32)
    dc = jnp.zeros((B, 128), jnp.float32)
    inp = fc1
    dec_out = []
    for _ in range(out_frames):
        gates = (jnp.dot(inp.astype(bf16), params["dec_wih"],
                         preferred_element_type=jnp.float32)
                 + jnp.dot(dh.astype(bf16), params["dec_whh"],
                           preferred_element_type=jnp.float32)
                 + params["dec_b"])
        i = jax.nn.sigmoid(gates[:, 0:128]); fg = jax.nn.sigmoid(gates[:, 128:256])
        g = jnp.tanh(gates[:, 256:384]); o = jax.nn.sigmoid(gates[:, 384:512])
        dc = fg * dc + i * g
        dh = o * jnp.tanh(dc)
        dec_out.append(dh)
        inp = dh
    stacked = jnp.stack(dec_out, axis=2)                      # (B, 128, F)
    flat = stacked.reshape(B, 128 * out_frames)               # flatten d*F+f
    out = (jnp.dot(flat.astype(bf16), params["fc2_w"],
                   preferred_element_type=jnp.float32) + params["fc2_b"])
    out = out.reshape(B, modes, -1)
    out_cord = out[:, :, :-1].reshape(B, modes, -1, 2)
    return out_cord, out[:, :, -1]


# ------------------------ main -------------------------------------------------
if __name__ == "__main__":
    B, in_ch, H, W = 2, 4, 16, 16
    seq_len = 8
    out_frames = 6
    modes = 3

    key = jax.random.PRNGKey(0)
    kx, kst, kp = jax.random.split(key, 3)
    x = jax.random.normal(kx, (B, in_ch, H, W), jnp.float32)
    state = jax.random.normal(kst, (B, seq_len, 5), jnp.float32)   # agent states
    params = init_params(kp, in_ch, H, W, out_frames, modes)

    fwd = jax.jit(functools.partial(mocast6_forward,
                                    out_frames=out_frames, modes=modes, train=True))
    out_cord, conf = fwd(params, x, state)
    jax.block_until_ready((out_cord, conf))

    assert out_cord.shape == (B, modes, out_frames + 5, 2), out_cord.shape
    assert conf.shape == (B, modes), conf.shape

    # Cross-check the fused Pallas path (permuted+padded fc2, w_ih+w_hh fused
    # decoder weight, hoisted encoder projection, deferred fc2) against the
    # unfused pure-JAX reference with identical bf16 cast points.
    ref_cord, ref_conf = reference_forward(params, x, state, out_frames, modes)
    assert jnp.allclose(out_cord, ref_cord, rtol=2e-3, atol=2e-3)
    assert jnp.allclose(conf, ref_conf, rtol=2e-3, atol=2e-3)

    print("KERNEL_OK")
</pallas_src>

<mosaic_0001>
module attributes {stable_mosaic.version = 11 : i64} {
  func.func @_fused_kernel(%arg0: memref<8x1024xbf16, #tpu.memory_space<vmem>>, %arg1: memref<64x5xf32, #tpu.memory_space<vmem>>, %arg2: memref<1024x2048xbf16, #tpu.memory_space<vmem>>, %arg3: memref<1x2048xf32, #tpu.memory_space<vmem>>, %arg4: memref<2048x256xbf16, #tpu.memory_space<vmem>>, %arg5: memref<1x256xf32, #tpu.memory_space<vmem>>, %arg6: memref<5x128xbf16, #tpu.memory_space<vmem>>, %arg7: memref<32x128xbf16, #tpu.memory_space<vmem>>, %arg8: memref<1x128xf32, #tpu.memory_space<vmem>>, %arg9: memref<288x128xbf16, #tpu.memory_space<vmem>>, %arg10: memref<1x128xf32, #tpu.memory_space<vmem>>, %arg11: memref<128x512xbf16, #tpu.memory_space<vmem>>, %arg12: memref<128x512xbf16, #tpu.memory_space<vmem>>, %arg13: memref<1x512xf32, #tpu.memory_space<vmem>>, %arg14: memref<768x128xbf16, #tpu.memory_space<vmem>>, %arg15: memref<1x128xf32, #tpu.memory_space<vmem>>, %arg16: memref<8x128xf32, #tpu.memory_space<vmem>>) attributes {dimension_semantics = [], scalar_prefetch = 0 : i64, scratch_operands = 0 : i64, tpu.core_type = #tpu.core_type<tc>} {
    %c0 = arith.constant 0 : index
    %c0_0 = arith.constant 0 : index
    %0 = vector.load %arg0[%c0, %c0_0] : memref<8x1024xbf16, #tpu.memory_space<vmem>>, vector<8x1024xbf16>
    %c0_1 = arith.constant 0 : index
    %c0_2 = arith.constant 0 : index
    %1 = vector.load %arg2[%c0_1, %c0_2] : memref<1024x2048xbf16, #tpu.memory_space<vmem>>, vector<1024x2048xbf16>
    %cst = arith.constant dense<0.000000e+00> : vector<8x2048xf32>
    %2 = tpu.matmul %0, %1, %cst {dimension_numbers = #tpu.dot_dimension_numbers<[1], [0], [0], [1], [0, 0, 1, 1], [], []>} : vector<8x1024xbf16>, vector<1024x2048xbf16>, vector<8x2048xf32> -> vector<8x2048xf32>
    %c0_3 = arith.constant 0 : index
    %c0_4 = arith.constant 0 : index
    %3 = vector.load %arg3[%c0_3, %c0_4] : memref<1x2048xf32, #tpu.memory_space<vmem>>, vector<1x2048xf32>
    %4 = vector.broadcast %3 : vector<1x2048xf32> to vector<8x2048xf32>
    %5 = arith.addf %2, %4 : vector<8x2048xf32>
    %cst_5 = arith.constant 0.000000e+00 : f32
    %6 = vector.broadcast %cst_5 : f32 to vector<8x2048xf32>
    %7 = arith.maximumf %5, %6 : vector<8x2048xf32>
    %8 = arith.truncf %7 : vector<8x2048xf32> to vector<8x2048xbf16>
    %c0_6 = arith.constant 0 : index
    %c0_7 = arith.constant 0 : index
    %9 = vector.load %arg4[%c0_6, %c0_7] : memref<2048x256xbf16, #tpu.memory_space<vmem>>, vector<2048x256xbf16>
    %cst_8 = arith.constant dense<0.000000e+00> : vector<8x256xf32>
    %10 = tpu.matmul %8, %9, %cst_8 {dimension_numbers = #tpu.dot_dimension_numbers<[1], [0], [0], [1], [0, 0, 1, 1], [], []>} : vector<8x2048xbf16>, vector<2048x256xbf16>, vector<8x256xf32> -> vector<8x256xf32>
    %c0_9 = arith.constant 0 : index
    %c0_10 = arith.constant 0 : index
    %11 = vector.load %arg5[%c0_9, %c0_10] : memref<1x256xf32, #tpu.memory_space<vmem>>, vector<1x256xf32>
    %12 = vector.broadcast %11 : vector<1x256xf32> to vector<8x256xf32>
    %13 = arith.addf %10, %12 : vector<8x256xf32>
    %c0_11 = arith.constant 0 : index
    %c0_12 = arith.constant 0 : index
    %14 = vector.load %arg1[%c0_11, %c0_12] : memref<64x5xf32, #tpu.memory_space<vmem>>, vector<64x5xf32>
    %15 = arith.truncf %14 : vector<64x5xf32> to vector<64x5xbf16>
    %c0_13 = arith.constant 0 : index
    %c0_14 = arith.constant 0 : index
    %16 = vector.load %arg6[%c0_13, %c0_14] : memref<5x128xbf16, #tpu.memory_space<vmem>>, vector<5x128xbf16>
    %cst_15 = arith.constant dense<0.000000e+00> : vector<64x128xf32>
    %17 = tpu.matmul %15, %16, %cst_15 {dimension_numbers = #tpu.dot_dimension_numbers<[1], [0], [0], [1], [0, 0, 1, 1], [], []>} : vector<64x5xbf16>, vector<5x128xbf16>, vector<64x128xf32> -> vector<64x128xf32>
    %c0_16 = arith.constant 0 : index
    %c0_17 = arith.constant 0 : index
    %18 = vector.load %arg7[%c0_16, %c0_17] : memref<32x128xbf16, #tpu.memory_space<vmem>>, vector<32x128xbf16>
    %c0_18 = arith.constant 0 : index
    %c0_19 = arith.constant 0 : index
    %19 = vector.load %arg8[%c0_18, %c0_19] : memref<1x128xf32, #tpu.memory_space<vmem>>, vector<1x128xf32>
    %cst_20 = arith.constant 0.000000e+00 : f32
    %20 = vector.broadcast %cst_20 : f32 to vector<8x32xf32>
    %cst_21 = arith.constant 0.000000e+00 : f32
    %21 = vector.broadcast %cst_21 : f32 to vector<8x32xf32>
    %22 = vector.extract_strided_slice %17 {offsets = [0, 0], sizes = [8, 128], strides = [1, 1]} : vector<64x128xf32> to vector<8x128xf32>
    %23 = arith.truncf %20 : vector<8x32xf32> to vector<8x32xbf16>
    %cst_22 = arith.constant dense<0.000000e+00> : vector<8x128xf32>
    %24 = tpu.matmul %23, %18, %cst_22 {dimension_numbers = #tpu.dot_dimension_numbers<[1], [0], [0], [1], [0, 0, 1, 1], [], []>} : vector<8x32xbf16>, vector<32x128xbf16>, vector<8x128xf32> -> vector<8x128xf32>
    %25 = arith.addf %22, %24 : vector<8x128xf32>
    %26 = vector.broadcast %19 : vector<1x128xf32> to vector<8x128xf32>
    %27 = arith.addf %25, %26 : vector<8x128xf32>
    %28 = arith.negf %27 : vector<8x128xf32>
    %29 = math.exp %28 : vector<8x128xf32>
    %cst_23 = arith.constant 1.000000e+00 : f32
    %30 = vector.broadcast %cst_23 : f32 to vector<8x128xf32>
    %31 = arith.addf %30, %29 : vector<8x128xf32>
    %32 = arith.divf %30, %31 : vector<8x128xf32>
    %33 = math.tanh %27 : vector<8x128xf32>
    %34 = vector.extract_strided_slice %32 {offsets = [0, 32], sizes = [8, 32], strides = [1, 1]} : vector<8x128xf32> to vector<8x32xf32>
    %35 = arith.mulf %34, %21 : vector<8x32xf32>
    %36 = vector.extract_strided_slice %32 {offsets = [0, 0], sizes = [8, 32], strides = [1, 1]} : vector<8x128xf32> to vector<8x32xf32>
    %37 = vector.extract_strided_slice %33 {offsets = [0, 64], sizes = [8, 32], strides = [1, 1]} : vector<8x128xf32> to vector<8x32xf32>
    %38 = arith.mulf %36, %37 : vector<8x32xf32>
    %39 = arith.addf %35, %38 : vector<8x32xf32>
    %40 = vector.extract_strided_slice %32 {offsets = [0, 96], sizes = [8, 32], strides = [1, 1]} : vector<8x128xf32> to vector<8x32xf32>
    %41 = math.tanh %39 : vector<8x32xf32>
    %42 = arith.mulf %40, %41 : vector<8x32xf32>
    %43 = vector.extract_strided_slice %17 {offsets = [8, 0], sizes = [8, 128], strides = [1, 1]} : vector<64x128xf32> to vector<8x128xf32>
    %44 = arith.truncf %42 : vector<8x32xf32> to vector<8x32xbf16>
    %cst_24 = arith.constant dense<0.000000e+00> : vector<8x128xf32>
    %45 = tpu.matmul %44, %18, %cst_24 {dimension_numbers = #tpu.dot_dimension_numbers<[1], [0], [0], [1], [0, 0, 1, 1], [], []>} : vector<8x32xbf16>, vector<32x128xbf16>, vector<8x128xf32> -> vector<8x128xf32>
    %46 = arith.addf %43, %45 : vector<8x128xf32>
    %47 = vector.broadcast %19 : vector<1x128xf32> to vector<8x128xf32>
    %48 = arith.addf %46, %47 : vector<8x128xf32>
    %49 = arith.negf %48 : vector<8x128xf32>
    %50 = math.exp %49 : vector<8x128xf32>
    %cst_25 = arith.constant 1.000000e+00 : f32
    %51 = vector.broadcast %cst_25 : f32 to vector<8x128xf32>
    %52 = arith.addf %51, %50 : vector<8x128xf32>
    %53 = arith.divf %51, %52 : vector<8x128xf32>
    %54 = math.tanh %48 : vector<8x128xf32>
    %55 = vector.extract_strided_slice %53 {offsets = [0, 32], sizes = [8, 32], strides = [1, 1]} : vector<8x128xf32> to vector<8x32xf32>
    %56 = arith.mulf %55, %39 : vector<8x32xf32>
    %57 = vector.extract_strided_slice %53 {offsets = [0, 0], sizes = [8, 32], strides = [1, 1]} : vector<8x128xf32> to vector<8x32xf32>
    %58 = vector.extract_strided_slice %54 {offsets = [0, 64], sizes = [8, 32], strides = [1, 1]} : vector<8x128xf32> to vector<8x32xf32>
    %59 = arith.mulf %57, %58 : vector<8x32xf32>
    %60 = arith.addf %56, %59 : vector<8x32xf32>
    %61 = vector.extract_strided_slice %53 {offsets = [0, 96], sizes = [8, 32], strides = [1, 1]} : vector<8x128xf32> to vector<8x32xf32>
    %62 = math.tanh %60 : vector<8x32xf32>
    %63 = arith.mulf %61, %62 : vector<8x32xf32>
    %64 = vector.extract_strided_slice %17 {offsets = [16, 0], sizes = [8, 128], strides = [1, 1]} : vector<64x128xf32> to vector<8x128xf32>
    %65 = arith.truncf %63 : vector<8x32xf32> to vector<8x32xbf16>
    %cst_26 = arith.constant dense<0.000000e+00> : vector<8x128xf32>
    %66 = tpu.matmul %65, %18, %cst_26 {dimension_numbers = #tpu.dot_dimension_numbers<[1], [0], [0], [1], [0, 0, 1, 1], [], []>} : vector<8x32xbf16>, vector<32x128xbf16>, vector<8x128xf32> -> vector<8x128xf32>
    %67 = arith.addf %64, %66 : vector<8x128xf32>
    %68 = vector.broadcast %19 : vector<1x128xf32> to vector<8x128xf32>
    %69 = arith.addf %67, %68 : vector<8x128xf32>
    %70 = arith.negf %69 : vector<8x128xf32>
    %71 = math.exp %70 : vector<8x128xf32>
    %cst_27 = arith.constant 1.000000e+00 : f32
    %72 = vector.broadcast %cst_27 : f32 to vector<8x128xf32>
    %73 = arith.addf %72, %71 : vector<8x128xf32>
    %74 = arith.divf %72, %73 : vector<8x128xf32>
    %75 = math.tanh %69 : vector<8x128xf32>
    %76 = vector.extract_strided_slice %74 {offsets = [0, 32], sizes = [8, 32], strides = [1, 1]} : vector<8x128xf32> to vector<8x32xf32>
    %77 = arith.mulf %76, %60 : vector<8x32xf32>
    %78 = vector.extract_strided_slice %74 {offsets = [0, 0], sizes = [8, 32], strides = [1, 1]} : vector<8x128xf32> to vector<8x32xf32>
    %79 = vector.extract_strided_slice %75 {offsets = [0, 64], sizes = [8, 32], strides = [1, 1]} : vector<8x128xf32> to vector<8x32xf32>
    %80 = arith.mulf %78, %79 : vector<8x32xf32>
    %81 = arith.addf %77, %80 : vector<8x32xf32>
    %82 = vector.extract_strided_slice %74 {offsets = [0, 96], sizes = [8, 32], strides = [1, 1]} : vector<8x128xf32> to vector<8x32xf32>
    %83 = math.tanh %81 : vector<8x32xf32>
    %84 = arith.mulf %82, %83 : vector<8x32xf32>
    %85 = vector.extract_strided_slice %17 {offsets = [24, 0], sizes = [8, 128], strides = [1, 1]} : vector<64x128xf32> to vector<8x128xf32>
    %86 = arith.truncf %84 : vector<8x32xf32> to vector<8x32xbf16>
    %cst_28 = arith.constant dense<0.000000e+00> : vector<8x128xf32>
    %87 = tpu.matmul %86, %18, %cst_28 {dimension_numbers = #tpu.dot_dimension_numbers<[1], [0], [0], [1], [0, 0, 1, 1], [], []>} : vector<8x32xbf16>, vector<32x128xbf16>, vector<8x128xf32> -> vector<8x128xf32>
    %88 = arith.addf %85, %87 : vector<8x128xf32>
    %89 = vector.broadcast %19 : vector<1x128xf32> to vector<8x128xf32>
    %90 = arith.addf %88, %89 : vector<8x128xf32>
    %91 = arith.negf %90 : vector<8x128xf32>
    %92 = math.exp %91 : vector<8x128xf32>
    %cst_29 = arith.constant 1.000000e+00 : f32
    %93 = vector.broadcast %cst_29 : f32 to vector<8x128xf32>
    %94 = arith.addf %93, %92 : vector<8x128xf32>
    %95 = arith.divf %93, %94 : vector<8x128xf32>
    %96 = math.tanh %90 : vector<8x128xf32>
    %97 = vector.extract_strided_slice %95 {offsets = [0, 32], sizes = [8, 32], strides = [1, 1]} : vector<8x128xf32> to vector<8x32xf32>
    %98 = arith.mulf %97, %81 : vector<8x32xf32>
    %99 = vector.extract_strided_slice %95 {offsets = [0, 0], sizes = [8, 32], strides = [1, 1]} : vector<8x128xf32> to vector<8x32xf32>
    %100 = vector.extract_strided_slice %96 {offsets = [0, 64], sizes = [8, 32], strides = [1, 1]} : vector<8x128xf32> to vector<8x32xf32>
    %101 = arith.mulf %99, %100 : vector<8x32xf32>
    %102 = arith.addf %98, %101 : vector<8x32xf32>
    %103 = vector.extract_strided_slice %95 {offsets = [0, 96], sizes = [8, 32], strides = [1, 1]} : vector<8x128xf32> to vector<8x32xf32>
    %104 = math.tanh %102 : vector<8x32xf32>
    %105 = arith.mulf %103, %104 : vector<8x32xf32>
    %106 = vector.extract_strided_slice %17 {offsets = [32, 0], sizes = [8, 128], strides = [1, 1]} : vector<64x128xf32> to vector<8x128xf32>
    %107 = arith.truncf %105 : vector<8x32xf32> to vector<8x32xbf16>
    %cst_30 = arith.constant dense<0.000000e+00> : vector<8x128xf32>
    %108 = tpu.matmul %107, %18, %cst_30 {dimension_numbers = #tpu.dot_dimension_numbers<[1], [0], [0], [1], [0, 0, 1, 1], [], []>} : vector<8x32xbf16>, vector<32x128xbf16>, vector<8x128xf32> -> vector<8x128xf32>
    %109 = arith.addf %106, %108 : vector<8x128xf32>
    %110 = vector.broadcast %19 : vector<1x128xf32> to vector<8x128xf32>
    %111 = arith.addf %109, %110 : vector<8x128xf32>
    %112 = arith.negf %111 : vector<8x128xf32>
    %113 = math.exp %112 : vector<8x128xf32>
    %cst_31 = arith.constant 1.000000e+00 : f32
    %114 = vector.broadcast %cst_31 : f32 to vector<8x128xf32>
    %115 = arith.addf %114, %113 : vector<8x128xf32>
    %116 = arith.divf %114, %115 : vector<8x128xf32>
    %117 = math.tanh %111 : vector<8x128xf32>
    %118 = vector.extract_strided_slice %116 {offsets = [0, 32], sizes = [8, 32], strides = [1, 1]} : vector<8x128xf32> to vector<8x32xf32>
    %119 = arith.mulf %118, %102 : vector<8x32xf32>
    %120 = vector.extract_strided_slice %116 {offsets = [0, 0], sizes = [8, 32], strides = [1, 1]} : vector<8x128xf32> to vector<8x32xf32>
    %121 = vector.extract_strided_slice %117 {offsets = [0, 64], sizes = [8, 32], strides = [1, 1]} : vector<8x128xf32> to vector<8x32xf32>
    %122 = arith.mulf %120, %121 : vector<8x32xf32>
    %123 = arith.addf %119, %122 : vector<8x32xf32>
    %124 = vector.extract_strided_slice %116 {offsets = [0, 96], sizes = [8, 32], strides = [1, 1]} : vector<8x128xf32> to vector<8x32xf32>
    %125 = math.tanh %123 : vector<8x32xf32>
    %126 = arith.mulf %124, %125 : vector<8x32xf32>
    %127 = vector.extract_strided_slice %17 {offsets = [40, 0], sizes = [8, 128], strides = [1, 1]} : vector<64x128xf32> to vector<8x128xf32>
    %128 = arith.truncf %126 : vector<8x32xf32> to vector<8x32xbf16>
    %cst_32 = arith.constant dense<0.000000e+00> : vector<8x128xf32>
    %129 = tpu.matmul %128, %18, %cst_32 {dimension_numbers = #tpu.dot_dimension_numbers<[1], [0], [0], [1], [0, 0, 1, 1], [], []>} : vector<8x32xbf16>, vector<32x128xbf16>, vector<8x128xf32> -> vector<8x128xf32>
    %130 = arith.addf %127, %129 : vector<8x128xf32>
    %131 = vector.broadcast %19 : vector<1x128xf32> to vector<8x128xf32>
    %132 = arith.addf %130, %131 : vector<8x128xf32>
    %133 = arith.negf %132 : vector<8x128xf32>
    %134 = math.exp %133 : vector<8x128xf32>
    %cst_33 = arith.constant 1.000000e+00 : f32
    %135 = vector.broadcast %cst_33 : f32 to vector<8x128xf32>
    %136 = arith.addf %135, %134 : vector<8x128xf32>
    %137 = arith.divf %135, %136 : vector<8x128xf32>
    %138 = math.tanh %132 : vector<8x128xf32>
    %139 = vector.extract_strided_slice %137 {offsets = [0, 32], sizes = [8, 32], strides = [1, 1]} : vector<8x128xf32> to vector<8x32xf32>
    %140 = arith.mulf %139, %123 : vector<8x32xf32>
    %141 = vector.extract_strided_slice %137 {offsets = [0, 0], sizes = [8, 32], strides = [1, 1]} : vector<8x128xf32> to vector<8x32xf32>
    %142 = vector.extract_strided_slice %138 {offsets = [0, 64], sizes = [8, 32], strides = [1, 1]} : vector<8x128xf32> to vector<8x32xf32>
    %143 = arith.mulf %141, %142 : vector<8x32xf32>
    %144 = arith.addf %140, %143 : vector<8x32xf32>
    %145 = vector.extract_strided_slice %137 {offsets = [0, 96], sizes = [8, 32], strides = [1, 1]} : vector<8x128xf32> to vector<8x32xf32>
    %146 = math.tanh %144 : vector<8x32xf32>
    %147 = arith.mulf %145, %146 : vector<8x32xf32>
    %148 = vector.extract_strided_slice %17 {offsets = [48, 0], sizes = [8, 128], strides = [1, 1]} : vector<64x128xf32> to vector<8x128xf32>
    %149 = arith.truncf %147 : vector<8x32xf32> to vector<8x32xbf16>
    %cst_34 = arith.constant dense<0.000000e+00> : vector<8x128xf32>
    %150 = tpu.matmul %149, %18, %cst_34 {dimension_numbers = #tpu.dot_dimension_numbers<[1], [0], [0], [1], [0, 0, 1, 1], [], []>} : vector<8x32xbf16>, vector<32x128xbf16>, vector<8x128xf32> -> vector<8x128xf32>
    %151 = arith.addf %148, %150 : vector<8x128xf32>
    %152 = vector.broadcast %19 : vector<1x128xf32> to vector<8x128xf32>
    %153 = arith.addf %151, %152 : vector<8x128xf32>
    %154 = arith.negf %153 : vector<8x128xf32>
    %155 = math.exp %154 : vector<8x128xf32>
    %cst_35 = arith.constant 1.000000e+00 : f32
    %156 = vector.broadcast %cst_35 : f32 to vector<8x128xf32>
    %157 = arith.addf %156, %155 : vector<8x128xf32>
    %158 = arith.divf %156, %157 : vector<8x128xf32>
    %159 = math.tanh %153 : vector<8x128xf32>
    %160 = vector.extract_strided_slice %158 {offsets = [0, 32], sizes = [8, 32], strides = [1, 1]} : vector<8x128xf32> to vector<8x32xf32>
    %161 = arith.mulf %160, %144 : vector<8x32xf32>
    %162 = vector.extract_strided_slice %158 {offsets = [0, 0], sizes = [8, 32], strides = [1, 1]} : vector<8x128xf32> to vector<8x32xf32>
    %163 = vector.extract_strided_slice %159 {offsets = [0, 64], sizes = [8, 32], strides = [1, 1]} : vector<8x128xf32> to vector<8x32xf32>
    %164 = arith.mulf %162, %163 : vector<8x32xf32>
    %165 = arith.addf %161, %164 : vector<8x32xf32>
    %166 = vector.extract_strided_slice %158 {offsets = [0, 96], sizes = [8, 32], strides = [1, 1]} : vector<8x128xf32> to vector<8x32xf32>
    %167 = math.tanh %165 : vector<8x32xf32>
    %168 = arith.mulf %166, %167 : vector<8x32xf32>
    %169 = vector.extract_strided_slice %17 {offsets = [56, 0], sizes = [8, 128], strides = [1, 1]} : vector<64x128xf32> to vector<8x128xf32>
    %170 = arith.truncf %168 : vector<8x32xf32> to vector<8x32xbf16>
    %cst_36 = arith.constant dense<0.000000e+00> : vector<8x128xf32>
    %171 = tpu.matmul %170, %18, %cst_36 {dimension_numbers = #tpu.dot_dimension_numbers<[1], [0], [0], [1], [0, 0, 1, 1], [], []>} : vector<8x32xbf16>, vector<32x128xbf16>, vector<8x128xf32> -> vector<8x128xf32>
    %172 = arith.addf %169, %171 : vector<8x128xf32>
    %173 = vector.broadcast %19 : vector<1x128xf32> to vector<8x128xf32>
    %174 = arith.addf %172, %173 : vector<8x128xf32>
    %175 = arith.negf %174 : vector<8x128xf32>
    %176 = math.exp %175 : vector<8x128xf32>
    %cst_37 = arith.constant 1.000000e+00 : f32
    %177 = vector.broadcast %cst_37 : f32 to vector<8x128xf32>
    %178 = arith.addf %177, %176 : vector<8x128xf32>
    %179 = arith.divf %177, %178 : vector<8x128xf32>
    %180 = math.tanh %174 : vector<8x128xf32>
    %181 = vector.extract_strided_slice %179 {offsets = [0, 32], sizes = [8, 32], strides = [1, 1]} : vector<8x128xf32> to vector<8x32xf32>
    %182 = arith.mulf %181, %165 : vector<8x32xf32>
    %183 = vector.extract_strided_slice %179 {offsets = [0, 0], sizes = [8, 32], strides = [1, 1]} : vector<8x128xf32> to vector<8x32xf32>
    %184 = vector.extract_strided_slice %180 {offsets = [0, 64], sizes = [8, 32], strides = [1, 1]} : vector<8x128xf32> to vector<8x32xf32>
    %185 = arith.mulf %183, %184 : vector<8x32xf32>
    %186 = arith.addf %182, %185 : vector<8x32xf32>
    %187 = vector.extract_strided_slice %179 {offsets = [0, 96], sizes = [8, 32], strides = [1, 1]} : vector<8x128xf32> to vector<8x32xf32>
    %188 = math.tanh %186 : vector<8x32xf32>
    %189 = arith.mulf %187, %188 : vector<8x32xf32>
    %190 = arith.truncf %13 : vector<8x256xf32> to vector<8x256xbf16>
    %c0_38 = arith.constant 0 : index
    %c0_39 = arith.constant 0 : index
    %191 = vector.load %arg9[%c0_38, %c0_39] : memref<288x128xbf16, #tpu.memory_space<vmem>>, vector<256x128xbf16>
    %cst_40 = arith.constant dense<0.000000e+00> : vector<8x128xf32>
    %192 = tpu.matmul %190, %191, %cst_40 {dimension_numbers = #tpu.dot_dimension_numbers<[1], [0], [0], [1], [0, 0, 1, 1], [], []>} : vector<8x256xbf16>, vector<256x128xbf16>, vector<8x128xf32> -> vector<8x128xf32>
    %193 = arith.truncf %189 : vector<8x32xf32> to vector<8x32xbf16>
    %c256 = arith.constant 256 : index
    %c0_41 = arith.constant 0 : index
    %194 = vector.load %arg9[%c256, %c0_41] : memref<288x128xbf16, #tpu.memory_space<vmem>>, vector<32x128xbf16>
    %cst_42 = arith.constant dense<0.000000e+00> : vector<8x128xf32>
    %195 = tpu.matmul %193, %194, %cst_42 {dimension_numbers = #tpu.dot_dimension_numbers<[1], [0], [0], [1], [0, 0, 1, 1], [], []>} : vector<8x32xbf16>, vector<32x128xbf16>, vector<8x128xf32> -> vector<8x128xf32>
    %196 = arith.addf %192, %195 : vector<8x128xf32>
    %c0_43 = arith.constant 0 : index
    %c0_44 = arith.constant 0 : index
    %197 = vector.load %arg10[%c0_43, %c0_44] : memref<1x128xf32, #tpu.memory_space<vmem>>, vector<1x128xf32>
    %198 = vector.broadcast %197 : vector<1x128xf32> to vector<8x128xf32>
    %199 = arith.addf %196, %198 : vector<8x128xf32>
    %cst_45 = arith.constant 0.000000e+00 : f32
    %200 = vector.broadcast %cst_45 : f32 to vector<8x128xf32>
    %201 = arith.maximumf %199, %200 : vector<8x128xf32>
    %c0_46 = arith.constant 0 : index
    %c0_47 = arith.constant 0 : index
    %202 = vector.load %arg11[%c0_46, %c0_47] : memref<128x512xbf16, #tpu.memory_space<vmem>>, vector<128x512xbf16>
    %c0_48 = arith.constant 0 : index
    %c0_49 = arith.constant 0 : index
    %203 = vector.load %arg12[%c0_48, %c0_49] : memref<128x512xbf16, #tpu.memory_space<vmem>>, vector<128x512xbf16>
    %c0_50 = arith.constant 0 : index
    %c0_51 = arith.constant 0 : index
    %204 = vector.load %arg13[%c0_50, %c0_51] : memref<1x512xf32, #tpu.memory_space<vmem>>, vector<1x512xf32>
    %cst_52 = arith.constant 0.000000e+00 : f32
    %205 = vector.broadcast %cst_52 : f32 to vector<8x128xf32>
    %206 = arith.truncf %201 : vector<8x128xf32> to vector<8x128xbf16>
    %cst_53 = arith.constant dense<0.000000e+00> : vector<8x512xf32>
    %207 = tpu.matmul %206, %202, %cst_53 {dimension_numbers = #tpu.dot_dimension_numbers<[1], [0], [0], [1], [0, 0, 1, 1], [], []>} : vector<8x128xbf16>, vector<128x512xbf16>, vector<8x512xf32> -> vector<8x512xf32>
    %208 = vector.broadcast %204 : vector<1x512xf32> to vector<8x512xf32>
    %209 = arith.addf %207, %208 : vector<8x512xf32>
    %210 = vector.extract_strided_slice %209 {offsets = [0, 0], sizes = [8, 128], strides = [1, 1]} : vector<8x512xf32> to vector<8x128xf32>
    %211 = arith.negf %210 : vector<8x128xf32>
    %212 = math.exp %211 : vector<8x128xf32>
    %cst_54 = arith.constant 1.000000e+00 : f32
    %213 = vector.broadcast %cst_54 : f32 to vector<8x128xf32>
    %214 = arith.addf %213, %212 : vector<8x128xf32>
    %215 = arith.divf %213, %214 : vector<8x128xf32>
    %216 = vector.extract_strided_slice %209 {offsets = [0, 128], sizes = [8, 128], strides = [1, 1]} : vector<8x512xf32> to vector<8x128xf32>
    %217 = arith.negf %216 : vector<8x128xf32>
    %218 = math.exp %217 : vector<8x128xf32>
    %cst_55 = arith.constant 1.000000e+00 : f32
    %219 = vector.broadcast %cst_55 : f32 to vector<8x128xf32>
    %220 = arith.addf %219, %218 : vector<8x128xf32>
    %221 = arith.divf %219, %220 : vector<8x128xf32>
    %222 = vector.extract_strided_slice %209 {offsets = [0, 256], sizes = [8, 128], strides = [1, 1]} : vector<8x512xf32> to vector<8x128xf32>
    %223 = math.tanh %222 : vector<8x128xf32>
    %224 = vector.extract_strided_slice %209 {offsets = [0, 384], sizes = [8, 128], strides = [1, 1]} : vector<8x512xf32> to vector<8x128xf32>
    %225 = arith.negf %224 : vector<8x128xf32>
    %226 = math.exp %225 : vector<8x128xf32>
    %cst_56 = arith.constant 1.000000e+00 : f32
    %227 = vector.broadcast %cst_56 : f32 to vector<8x128xf32>
    %228 = arith.addf %227, %226 : vector<8x128xf32>
    %229 = arith.divf %227, %228 : vector<8x128xf32>
    %230 = arith.mulf %221, %205 : vector<8x128xf32>
    %231 = arith.mulf %215, %223 : vector<8x128xf32>
    %232 = arith.addf %230, %231 : vector<8x128xf32>
    %233 = math.tanh %232 : vector<8x128xf32>
    %234 = arith.mulf %229, %233 : vector<8x128xf32>
    %235 = arith.truncf %234 : vector<8x128xf32> to vector<8x128xbf16>
    %cst_57 = arith.constant dense<0.000000e+00> : vector<8x512xf32>
    %236 = tpu.matmul %235, %203, %cst_57 {dimension_numbers = #tpu.dot_dimension_numbers<[1], [0], [0], [1], [0, 0, 1, 1], [], []>} : vector<8x128xbf16>, vector<128x512xbf16>, vector<8x512xf32> -> vector<8x512xf32>
    %237 = vector.broadcast %204 : vector<1x512xf32> to vector<8x512xf32>
    %238 = arith.addf %236, %237 : vector<8x512xf32>
    %239 = vector.extract_strided_slice %238 {offsets = [0, 0], sizes = [8, 128], strides = [1, 1]} : vector<8x512xf32> to vector<8x128xf32>
    %240 = arith.negf %239 : vector<8x128xf32>
    %241 = math.exp %240 : vector<8x128xf32>
    %cst_58 = arith.constant 1.000000e+00 : f32
    %242 = vector.broadcast %cst_58 : f32 to vector<8x128xf32>
    %243 = arith.addf %242, %241 : vector<8x128xf32>
    %244 = arith.divf %242, %243 : vector<8x128xf32>
    %245 = vector.extract_strided_slice %238 {offsets = [0, 128], sizes = [8, 128], strides = [1, 1]} : vector<8x512xf32> to vector<8x128xf32>
    %246 = arith.negf %245 : vector<8x128xf32>
    %247 = math.exp %246 : vector<8x128xf32>
    %cst_59 = arith.constant 1.000000e+00 : f32
    %248 = vector.broadcast %cst_59 : f32 to vector<8x128xf32>
    %249 = arith.addf %248, %247 : vector<8x128xf32>
    %250 = arith.divf %248, %249 : vector<8x128xf32>
    %251 = vector.extract_strided_slice %238 {offsets = [0, 256], sizes = [8, 128], strides = [1, 1]} : vector<8x512xf32> to vector<8x128xf32>
    %252 = math.tanh %251 : vector<8x128xf32>
    %253 = vector.extract_strided_slice %238 {offsets = [0, 384], sizes = [8, 128], strides = [1, 1]} : vector<8x512xf32> to vector<8x128xf32>
    %254 = arith.negf %253 : vector<8x128xf32>
    %255 = math.exp %254 : vector<8x128xf32>
    %cst_60 = arith.constant 1.000000e+00 : f32
    %256 = vector.broadcast %cst_60 : f32 to vector<8x128xf32>
    %257 = arith.addf %256, %255 : vector<8x128xf32>
    %258 = arith.divf %256, %257 : vector<8x128xf32>
    %259 = arith.mulf %250, %232 : vector<8x128xf32>
    %260 = arith.mulf %244, %252 : vector<8x128xf32>
    %261 = arith.addf %259, %260 : vector<8x128xf32>
    %262 = math.tanh %261 : vector<8x128xf32>
    %263 = arith.mulf %258, %262 : vector<8x128xf32>
    %264 = arith.truncf %263 : vector<8x128xf32> to vector<8x128xbf16>
    %cst_61 = arith.constant dense<0.000000e+00> : vector<8x512xf32>
    %265 = tpu.matmul %264, %203, %cst_61 {dimension_numbers = #tpu.dot_dimension_numbers<[1], [0], [0], [1], [0, 0, 1, 1], [], []>} : vector<8x128xbf16>, vector<128x512xbf16>, vector<8x512xf32> -> vector<8x512xf32>
    %266 = vector.broadcast %204 : vector<1x512xf32> to vector<8x512xf32>
    %267 = arith.addf %265, %266 : vector<8x512xf32>
    %268 = vector.extract_strided_slice %267 {offsets = [0, 0], sizes = [8, 128], strides = [1, 1]} : vector<8x512xf32> to vector<8x128xf32>
    %269 = arith.negf %268 : vector<8x128xf32>
    %270 = math.exp %269 : vector<8x128xf32>
    %cst_62 = arith.constant 1.000000e+00 : f32
    %271 = vector.broadcast %cst_62 : f32 to vector<8x128xf32>
    %272 = arith.addf %271, %270 : vector<8x128xf32>
    %273 = arith.divf %271, %272 : vector<8x128xf32>
    %274 = vector.extract_strided_slice %267 {offsets = [0, 128], sizes = [8, 128], strides = [1, 1]} : vector<8x512xf32> to vector<8x128xf32>
    %275 = arith.negf %274 : vector<8x128xf32>
    %276 = math.exp %275 : vector<8x128xf32>
    %cst_63 = arith.constant 1.000000e+00 : f32
    %277 = vector.broadcast %cst_63 : f32 to vector<8x128xf32>
    %278 = arith.addf %277, %276 : vector<8x128xf32>
    %279 = arith.divf %277, %278 : vector<8x128xf32>
    %280 = vector.extract_strided_slice %267 {offsets = [0, 256], sizes = [8, 128], strides = [1, 1]} : vector<8x512xf32> to vector<8x128xf32>
    %281 = math.tanh %280 : vector<8x128xf32>
    %282 = vector.extract_strided_slice %267 {offsets = [0, 384], sizes = [8, 128], strides = [1, 1]} : vector<8x512xf32> to vector<8x128xf32>
    %283 = arith.negf %282 : vector<8x128xf32>
    %284 = math.exp %283 : vector<8x128xf32>
    %cst_64 = arith.constant 1.000000e+00 : f32
    %285 = vector.broadcast %cst_64 : f32 to vector<8x128xf32>
    %286 = arith.addf %285, %284 : vector<8x128xf32>
    %287 = arith.divf %285, %286 : vector<8x128xf32>
    %288 = arith.mulf %279, %261 : vector<8x128xf32>
    %289 = arith.mulf %273, %281 : vector<8x128xf32>
    %290 = arith.addf %288, %289 : vector<8x128xf32>
    %291 = math.tanh %290 : vector<8x128xf32>
    %292 = arith.mulf %287, %291 : vector<8x128xf32>
    %293 = arith.truncf %292 : vector<8x128xf32> to vector<8x128xbf16>
    %cst_65 = arith.constant dense<0.000000e+00> : vector<8x512xf32>
    %294 = tpu.matmul %293, %203, %cst_65 {dimension_numbers = #tpu.dot_dimension_numbers<[1], [0], [0], [1], [0, 0, 1, 1], [], []>} : vector<8x128xbf16>, vector<128x512xbf16>, vector<8x512xf32> -> vector<8x512xf32>
    %295 = vector.broadcast %204 : vector<1x512xf32> to vector<8x512xf32>
    %296 = arith.addf %294, %295 : vector<8x512xf32>
    %297 = vector.extract_strided_slice %296 {offsets = [0, 0], sizes = [8, 128], strides = [1, 1]} : vector<8x512xf32> to vector<8x128xf32>
    %298 = arith.negf %297 : vector<8x128xf32>
    %299 = math.exp %298 : vector<8x128xf32>
    %cst_66 = arith.constant 1.000000e+00 : f32
    %300 = vector.broadcast %cst_66 : f32 to vector<8x128xf32>
    %301 = arith.addf %300, %299 : vector<8x128xf32>
    %302 = arith.divf %300, %301 : vector<8x128xf32>
    %303 = vector.extract_strided_slice %296 {offsets = [0, 128], sizes = [8, 128], strides = [1, 1]} : vector<8x512xf32> to vector<8x128xf32>
    %304 = arith.negf %303 : vector<8x128xf32>
    %305 = math.exp %304 : vector<8x128xf32>
    %cst_67 = arith.constant 1.000000e+00 : f32
    %306 = vector.broadcast %cst_67 : f32 to vector<8x128xf32>
    %307 = arith.addf %306, %305 : vector<8x128xf32>
    %308 = arith.divf %306, %307 : vector<8x128xf32>
    %309 = vector.extract_strided_slice %296 {offsets = [0, 256], sizes = [8, 128], strides = [1, 1]} : vector<8x512xf32> to vector<8x128xf32>
    %310 = math.tanh %309 : vector<8x128xf32>
    %311 = vector.extract_strided_slice %296 {offsets = [0, 384], sizes = [8, 128], strides = [1, 1]} : vector<8x512xf32> to vector<8x128xf32>
    %312 = arith.negf %311 : vector<8x128xf32>
    %313 = math.exp %312 : vector<8x128xf32>
    %cst_68 = arith.constant 1.000000e+00 : f32
    %314 = vector.broadcast %cst_68 : f32 to vector<8x128xf32>
    %315 = arith.addf %314, %313 : vector<8x128xf32>
    %316 = arith.divf %314, %315 : vector<8x128xf32>
    %317 = arith.mulf %308, %290 : vector<8x128xf32>
    %318 = arith.mulf %302, %310 : vector<8x128xf32>
    %319 = arith.addf %317, %318 : vector<8x128xf32>
    %320 = math.tanh %319 : vector<8x128xf32>
    %321 = arith.mulf %316, %320 : vector<8x128xf32>
    %322 = arith.truncf %321 : vector<8x128xf32> to vector<8x128xbf16>
    %cst_69 = arith.constant dense<0.000000e+00> : vector<8x512xf32>
    %323 = tpu.matmul %322, %203, %cst_69 {dimension_numbers = #tpu.dot_dimension_numbers<[1], [0], [0], [1], [0, 0, 1, 1], [], []>} : vector<8x128xbf16>, vector<128x512xbf16>, vector<8x512xf32> -> vector<8x512xf32>
    %324 = vector.broadcast %204 : vector<1x512xf32> to vector<8x512xf32>
    %325 = arith.addf %323, %324 : vector<8x512xf32>
    %326 = vector.extract_strided_slice %325 {offsets = [0, 0], sizes = [8, 128], strides = [1, 1]} : vector<8x512xf32> to vector<8x128xf32>
    %327 = arith.negf %326 : vector<8x128xf32>
    %328 = math.exp %327 : vector<8x128xf32>
    %cst_70 = arith.constant 1.000000e+00 : f32
    %329 = vector.broadcast %cst_70 : f32 to vector<8x128xf32>
    %330 = arith.addf %329, %328 : vector<8x128xf32>
    %331 = arith.divf %329, %330 : vector<8x128xf32>
    %332 = vector.extract_strided_slice %325 {offsets = [0, 128], sizes = [8, 128], strides = [1, 1]} : vector<8x512xf32> to vector<8x128xf32>
    %333 = arith.negf %332 : vector<8x128xf32>
    %334 = math.exp %333 : vector<8x128xf32>
    %cst_71 = arith.constant 1.000000e+00 : f32
    %335 = vector.broadcast %cst_71 : f32 to vector<8x128xf32>
    %336 = arith.addf %335, %334 : vector<8x128xf32>
    %337 = arith.divf %335, %336 : vector<8x128xf32>
    %338 = vector.extract_strided_slice %325 {offsets = [0, 256], sizes = [8, 128], strides = [1, 1]} : vector<8x512xf32> to vector<8x128xf32>
    %339 = math.tanh %338 : vector<8x128xf32>
    %340 = vector.extract_strided_slice %325 {offsets = [0, 384], sizes = [8, 128], strides = [1, 1]} : vector<8x512xf32> to vector<8x128xf32>
    %341 = arith.negf %340 : vector<8x128xf32>
    %342 = math.exp %341 : vector<8x128xf32>
    %cst_72 = arith.constant 1.000000e+00 : f32
    %343 = vector.broadcast %cst_72 : f32 to vector<8x128xf32>
    %344 = arith.addf %343, %342 : vector<8x128xf32>
    %345 = arith.divf %343, %344 : vector<8x128xf32>
    %346 = arith.mulf %337, %319 : vector<8x128xf32>
    %347 = arith.mulf %331, %339 : vector<8x128xf32>
    %348 = arith.addf %346, %347 : vector<8x128xf32>
    %349 = math.tanh %348 : vector<8x128xf32>
    %350 = arith.mulf %345, %349 : vector<8x128xf32>
    %351 = arith.truncf %350 : vector<8x128xf32> to vector<8x128xbf16>
    %cst_73 = arith.constant dense<0.000000e+00> : vector<8x512xf32>
    %352 = tpu.matmul %351, %203, %cst_73 {dimension_numbers = #tpu.dot_dimension_numbers<[1], [0], [0], [1], [0, 0, 1, 1], [], []>} : vector<8x128xbf16>, vector<128x512xbf16>, vector<8x512xf32> -> vector<8x512xf32>
    %353 = vector.broadcast %204 : vector<1x512xf32> to vector<8x512xf32>
    %354 = arith.addf %352, %353 : vector<8x512xf32>
    %355 = vector.extract_strided_slice %354 {offsets = [0, 0], sizes = [8, 128], strides = [1, 1]} : vector<8x512xf32> to vector<8x128xf32>
    %356 = arith.negf %355 : vector<8x128xf32>
    %357 = math.exp %356 : vector<8x128xf32>
    %cst_74 = arith.constant 1.000000e+00 : f32
    %358 = vector.broadcast %cst_74 : f32 to vector<8x128xf32>
    %359 = arith.addf %358, %357 : vector<8x128xf32>
    %360 = arith.divf %358, %359 : vector<8x128xf32>
    %361 = vector.extract_strided_slice %354 {offsets = [0, 128], sizes = [8, 128], strides = [1, 1]} : vector<8x512xf32> to vector<8x128xf32>
    %362 = arith.negf %361 : vector<8x128xf32>
    %363 = math.exp %362 : vector<8x128xf32>
    %cst_75 = arith.constant 1.000000e+00 : f32
    %364 = vector.broadcast %cst_75 : f32 to vector<8x128xf32>
    %365 = arith.addf %364, %363 : vector<8x128xf32>
    %366 = arith.divf %364, %365 : vector<8x128xf32>
    %367 = vector.extract_strided_slice %354 {offsets = [0, 256], sizes = [8, 128], strides = [1, 1]} : vector<8x512xf32> to vector<8x128xf32>
    %368 = math.tanh %367 : vector<8x128xf32>
    %369 = vector.extract_strided_slice %354 {offsets = [0, 384], sizes = [8, 128], strides = [1, 1]} : vector<8x512xf32> to vector<8x128xf32>
    %370 = arith.negf %369 : vector<8x128xf32>
    %371 = math.exp %370 : vector<8x128xf32>
    %cst_76 = arith.constant 1.000000e+00 : f32
    %372 = vector.broadcast %cst_76 : f32 to vector<8x128xf32>
    %373 = arith.addf %372, %371 : vector<8x128xf32>
    %374 = arith.divf %372, %373 : vector<8x128xf32>
    %375 = arith.mulf %366, %348 : vector<8x128xf32>
    %376 = arith.mulf %360, %368 : vector<8x128xf32>
    %377 = arith.addf %375, %376 : vector<8x128xf32>
    %378 = math.tanh %377 : vector<8x128xf32>
    %379 = arith.mulf %374, %378 : vector<8x128xf32>
    %380 = tpu.concatenate %234, %263, %292, %321, %350, %379 in 1 : vector<8x128xf32>, vector<8x128xf32>, vector<8x128xf32>, vector<8x128xf32>, vector<8x128xf32>, vector<8x128xf32> -> vector<8x768xf32>
    %381 = arith.truncf %380 : vector<8x768xf32> to vector<8x768xbf16>
    %c0_77 = arith.constant 0 : index
    %c0_78 = arith.constant 0 : index
    %382 = vector.load %arg14[%c0_77, %c0_78] : memref<768x128xbf16, #tpu.memory_space<vmem>>, vector<768x128xbf16>
    %cst_79 = arith.constant dense<0.000000e+00> : vector<8x128xf32>
    %383 = tpu.matmul %381, %382, %cst_79 {dimension_numbers = #tpu.dot_dimension_numbers<[1], [0], [0], [1], [0, 0, 1, 1], [], []>} : vector<8x768xbf16>, vector<768x128xbf16>, vector<8x128xf32> -> vector<8x128xf32>
    %c0_80 = arith.constant 0 : index
    %c0_81 = arith.constant 0 : index
    %384 = vector.load %arg15[%c0_80, %c0_81] : memref<1x128xf32, #tpu.memory_space<vmem>>, vector<1x128xf32>
    %385 = vector.broadcast %384 : vector<1x128xf32> to vector<8x128xf32>
    %386 = arith.addf %383, %385 : vector<8x128xf32>
    %c0_82 = arith.constant 0 : index
    %c0_83 = arith.constant 0 : index
    %387 = vector.load %arg16[%c0_82, %c0_83] : memref<8x128xf32, #tpu.memory_space<vmem>>, vector<8x128xf32>
    tpu.vector_store %arg16[%c0_82, %c0_83], %386 {strides = array<i32>} : memref<8x128xf32, #tpu.memory_space<vmem>>, vector<8x128xf32>,
    return
  }
}

</mosaic_0001>

<llo_original>
// kernel: mocast6_forward.1
$region0: #{mocast6_forward.1}
  #allocation0 [shape = 'u32[]', space=smem, size = 0x4, offset = 0x4, fixed_abs, tag = 'smem constant byte address 0x4 - core index']
  #allocation1 [shape = 'u32[144,128]{1,0:T(1,128)}', space=vmem, size = 0x12000, scoped, tag = 'internal scratch']
  %s0 = inlined_call_operand.vmem [shape: bf16[8,1024], index: 0, kind: input, shape index: {}]
  %s1 = inlined_call_operand.vmem [shape: f32[64,5], index: 1, kind: input, shape index: {}]
  %s2 = inlined_call_operand.hbm [shape: bf16[1024,2048], index: 2, kind: input, shape index: {}]
  %s3 = inlined_call_operand.hbm [shape: f32[1,2048], index: 3, kind: input, shape index: {}]
  %s4 = inlined_call_operand.hbm [shape: bf16[2048,256], index: 4, kind: input, shape index: {}]
  %s5 = inlined_call_operand.hbm [shape: f32[1,256], index: 5, kind: input, shape index: {}]
  %s6 = inlined_call_operand.hbm [shape: bf16[5,128], index: 6, kind: input, shape index: {}]
  %s7 = inlined_call_operand.hbm [shape: bf16[32,128], index: 7, kind: input, shape index: {}]
  %s8 = inlined_call_operand.hbm [shape: f32[1,128], index: 8, kind: input, shape index: {}]
  %s9 = inlined_call_operand.hbm [shape: bf16[288,128], index: 9, kind: input, shape index: {}]
  %s10 = inlined_call_operand.hbm [shape: f32[1,128], index: 10, kind: input, shape index: {}]
  %s11 = inlined_call_operand.hbm [shape: bf16[128,512], index: 11, kind: input, shape index: {}]
  %s12 = inlined_call_operand.hbm [shape: bf16[128,512], index: 12, kind: input, shape index: {}]
  %s13 = inlined_call_operand.hbm [shape: f32[1,512], index: 13, kind: input, shape index: {}]
  %s14 = inlined_call_operand.hbm [shape: bf16[768,128], index: 14, kind: input, shape index: {}]
  %s15 = inlined_call_operand.hbm [shape: f32[1,128], index: 15, kind: input, shape index: {}]
  %s16 = inlined_call_operand.vmem [shape: f32[8,128], index: 16, kind: output, shape index: {}]
  %s17 = sld [smem:[#allocation0]]
  $region130: #{mocast6_forward.1} parent=0
    _
  %s19 = ssub.s32 1, %s17
  %s20 = scalar_select 0, %s19, %s17
  $region1: #{mocast6_forward.1} parent=0
    #allocation2 [shape = 'u8[4194304]{0}', space=vmem, size = 0x400000, scoped, tag = 'input window, operand 2, single buffered']
    #allocation3 [shape = 's32[1]{0}', space=sflag, size = 0x4, scoped, tag = 'scoped memory for mocast6_forward.1']
    #allocation4 [shape = 'u8[8192]{0}', space=vmem, size = 0x2000, scoped, tag = 'input window, operand 3, single buffered']
    #allocation5 [shape = 's32[1]{0}', space=sflag, size = 0x4, scoped, tag = 'scoped memory for mocast6_forward.1']
    #allocation6 [shape = 'u8[1048576]{0}', space=vmem, size = 0x100000, scoped, tag = 'input window, operand 4, single buffered']
    #allocation7 [shape = 'u8[1024]{0}', space=vmem, size = 0x400, scoped, tag = 'input window, operand 5, single buffered']
    #allocation8 [shape = 's32[1]{0}', space=sflag, size = 0x4, scoped, tag = 'scoped memory for mocast6_forward.1']
    #allocation9 [shape = 'u8[2048]{0}', space=vmem, size = 0x800, scoped, tag = 'input window, operand 6, single buffered']
    #allocation10 [shape = 'u8[8192]{0}', space=vmem, size = 0x2000, scoped, tag = 'input window, operand 7, single buffered']
    #allocation11 [shape = 's32[1]{0}', space=sflag, size = 0x4, scoped, tag = 'scoped memory for mocast6_forward.1']
    #allocation12 [shape = 'u8[512]{0}', space=vmem, size = 0x400, scoped, tag = 'input window, operand 8, single buffered']
    #allocation13 [shape = 'u8[73728]{0}', space=vmem, size = 0x12000, scoped, tag = 'input window, operand 9, single buffered']
    #allocation14 [shape = 's32[1]{0}', space=sflag, size = 0x4, scoped, tag = 'scoped memory for mocast6_forward.1']
    #allocation15 [shape = 'u8[512]{0}', space=vmem, size = 0x400, scoped, tag = 'input window, operand 10, single buffered']
    #allocation16 [shape = 'u8[131072]{0}', space=vmem, size = 0x20000, scoped, tag = 'input window, operand 11, single buffered']
    #allocation17 [shape = 's32[1]{0}', space=sflag, size = 0x4, scoped, tag = 'scoped memory for mocast6_forward.1']
    #allocation18 [shape = 'u8[131072]{0}', space=vmem, size = 0x20000, scoped, tag = 'input window, operand 12, single buffered']
    #allocation19 [shape = 'u8[2048]{0}', space=vmem, size = 0x800, scoped, tag = 'input window, operand 13, single buffered']
    #allocation20 [shape = 's32[1]{0}', space=sflag, size = 0x4, scoped, tag = 'scoped memory for mocast6_forward.1']
    #allocation21 [shape = 'u8[196608]{0}', space=vmem, size = 0x30000, scoped, tag = 'input window, operand 14, single buffered']
    #allocation22 [shape = 'u8[512]{0}', space=vmem, size = 0x400, scoped, tag = 'input window, operand 15, single buffered']
    #allocation23 [shape = 's32[1]{0}', space=sflag, size = 0x4, scoped, tag = 'scoped memory for mocast6_forward.1']
    %21 = vsyncpa [#allocation3], 0
    %22 = vsyncpa [#allocation5], 0
    %23 = vsyncpa [#allocation8], 0
    %24 = vsyncpa [#allocation11], 0
    %25 = vsyncpa [#allocation14], 0
    %26 = vsyncpa [#allocation17], 0
    %27 = vsyncpa [#allocation20], 0
    %28 = vsyncpa [#allocation23], 0
    // Predicated region
    $region2: #{mocast6_forward.1} parent=1 // pred_check
      _
    $region3: #{mocast6_forward.1} parent=1 // pred_check_branch
      %30 = sbr.rel (0) target = $region5
    $region4: #{mocast6_forward.1} parent=1 // pred_region
      _
    $region5: #{mocast6_forward.1} parent=1 // pred_fallthru
      _
    // Predicated region
    $region6: #{mocast6_forward.1} parent=1 // pred_check
      _
    $region7: #{mocast6_forward.1} parent=1 // pred_check_branch
      %32 = sbr.rel (0) target = $region9
    $region8: #{mocast6_forward.1} parent=1 // pred_region
      _
    $region9: #{mocast6_forward.1} parent=1 // pred_fallthru
      _
    // Predicated region
    $region10: #{mocast6_forward.1} parent=1 // pred_check
      _
    $region11: #{mocast6_forward.1} parent=1 // pred_check_branch
      %34 = sbr.rel (0) target = $region13
    $region12: #{mocast6_forward.1} parent=1 // pred_region
      %s36 = ssub.s32 131072, 131072
      %37 = vsyncadd [#allocation3], %s36
      %s38 = sshll.u32 [#allocation2], 4
      %s39 = int_to_ptr.vmem [resolvable:$true] %s38
      %44 = dma.hbm_to_vmem [thread:$0]  %s2, 131072, %s39, [#allocation3], 1024, 1024, 64
    $region13: #{mocast6_forward.1} parent=1 // pred_fallthru
      _
    // Predicated region
    $region14: #{mocast6_forward.1} parent=1 // pred_check
      _
    $region15: #{mocast6_forward.1} parent=1 // pred_check_branch
      %46 = sbr.rel (0) target = $region17
    $region16: #{mocast6_forward.1} parent=1 // pred_region
      %s48 = ssub.s32 256, 256
      %49 = vsyncadd [#allocation5], %s48
      %s51 = sshll.u32 [#allocation4], 4
      %s52 = int_to_ptr.vmem [resolvable:$true] %s51
      %54 = dma.hbm_to_vmem [thread:$0]  %s3, 256, %s52, [#allocation5]
    $region17: #{mocast6_forward.1} parent=1 // pred_fallthru
      _
    // Predicated region
    $region18: #{mocast6_forward.1} parent=1 // pred_check
      _
    $region19: #{mocast6_forward.1} parent=1 // pred_check_branch
      %56 = sbr.rel (0) target = $region21
    $region20: #{mocast6_forward.1} parent=1 // pred_region
      %s58 = ssub.s32 32768, 32768
      %59 = vsyncadd [#allocation5], %s58
      %s60 = sshll.u32 [#allocation6], 4
      %s61 = int_to_ptr.vmem [resolvable:$true] %s60
      %66 = dma.hbm_to_vmem [thread:$0]  %s4, 32768, %s61, [#allocation5], 128, 128, 8
    $region21: #{mocast6_forward.1} parent=1 // pred_fallthru
      _
    // Predicated region
    $region22: #{mocast6_forward.1} parent=1 // pred_check
      _
    $region23: #{mocast6_forward.1} parent=1 // pred_check_branch
      %68 = sbr.rel (0) target = $region25
    $region24: #{mocast6_forward.1} parent=1 // pred_region
      %s70 = ssub.s32 32, 32
      %71 = vsyncadd [#allocation8], %s70
      %s73 = sshll.u32 [#allocation7], 4
      %s74 = int_to_ptr.vmem [resolvable:$true] %s73
      %76 = dma.hbm_to_vmem [thread:$0]  %s5, 32, %s74, [#allocation8]
    $region25: #{mocast6_forward.1} parent=1 // pred_fallthru
      _
    // Predicated region
    $region26: #{mocast6_forward.1} parent=1 // pred_check
      _
    $region27: #{mocast6_forward.1} parent=1 // pred_check_branch
      %78 = sbr.rel (0) target = $region29
    $region28: #{mocast6_forward.1} parent=1 // pred_region
      %s80 = ssub.s32 64, 64
      %81 = vsyncadd [#allocation8], %s80
      %s83 = sshll.u32 [#allocation9], 4
      %s84 = int_to_ptr.vmem [resolvable:$true] %s83
      %86 = dma.hbm_to_vmem [thread:$0]  %s6, 64, %s84, [#allocation8]
    $region29: #{mocast6_forward.1} parent=1 // pred_fallthru
      _
    // Predicated region
    $region30: #{mocast6_forward.1} parent=1 // pred_check
      _
    $region31: #{mocast6_forward.1} parent=1 // pred_check_branch
      %88 = sbr.rel (0) target = $region33
    $region32: #{mocast6_forward.1} parent=1 // pred_region
      %s90 = ssub.s32 256, 256
      %91 = vsyncadd [#allocation11], %s90
      %s92 = sshll.u32 [#allocation10], 4
      %s93 = int_to_ptr.vmem [resolvable:$true] %s92
      %98 = dma.hbm_to_vmem [thread:$0]  %s7, 256, %s93, [#allocation11], 64, 64, 4
    $region33: #{mocast6_forward.1} parent=1 // pred_fallthru
      _
    // Predicated region
    $region34: #{mocast6_forward.1} parent=1 // pred_check
      _
    $region35: #{mocast6_forward.1} parent=1 // pred_check_branch
      %100 = sbr.rel (0) target = $region37
    $region36: #{mocast6_forward.1} parent=1 // pred_region
      %s102 = ssub.s32 16, 16
      %103 = vsyncadd [#allocation11], %s102
      %s105 = sshll.u32 [#allocation12], 4
      %s106 = int_to_ptr.vmem [resolvable:$true] %s105
      %108 = dma.hbm_to_vmem [thread:$0]  %s8, 16, %s106, [#allocation11]
    $region37: #{mocast6_forward.1} parent=1 // pred_fallthru
      _
    // Predicated region
    $region38: #{mocast6_forward.1} parent=1 // pred_check
      _
    $region39: #{mocast6_forward.1} parent=1 // pred_check_branch
      %110 = sbr.rel (0) target = $region41
    $region40: #{mocast6_forward.1} parent=1 // pred_region
      %s112 = ssub.s32 2304, 2304
      %113 = vsyncadd [#allocation14], %s112
      %s114 = sshll.u32 [#allocation13], 4
      %s115 = int_to_ptr.vmem [resolvable:$true] %s114
      %120 = dma.hbm_to_vmem [thread:$0]  %s9, 2304, %s115, [#allocation14], 64, 64, 4
    $region41: #{mocast6_forward.1} parent=1 // pred_fallthru
      _
    // Predicated region
    $region42: #{mocast6_forward.1} parent=1 // pred_check
      _
    $region43: #{mocast6_forward.1} parent=1 // pred_check_branch
      %122 = sbr.rel (0) target = $region45
    $region44: #{mocast6_forward.1} parent=1 // pred_region
      %s124 = ssub.s32 16, 16
      %125 = vsyncadd [#allocation14], %s124
      %s127 = sshll.u32 [#allocation15], 4
      %s128 = int_to_ptr.vmem [resolvable:$true] %s127
      %130 = dma.hbm_to_vmem [thread:$0]  %s10, 16, %s128, [#allocation14]
    $region45: #{mocast6_forward.1} parent=1 // pred_fallthru
      _
    // Predicated region
    $region46: #{mocast6_forward.1} parent=1 // pred_check
      _
    $region47: #{mocast6_forward.1} parent=1 // pred_check_branch
      %132 = sbr.rel (0) target = $region49
    $region48: #{mocast6_forward.1} parent=1 // pred_region
      %s134 = ssub.s32 4096, 4096
      %135 = vsyncadd [#allocation17], %s134
      %s136 = sshll.u32 [#allocation16], 4
      %s137 = int_to_ptr.vmem [resolvable:$true] %s136
      %142 = dma.hbm_to_vmem [thread:$0]  %s11, 4096, %s137, [#allocation17], 256, 256, 16
    $region49: #{mocast6_forward.1} parent=1 // pred_fallthru
      _
    // Predicated region
    $region50: #{mocast6_forward.1} parent=1 // pred_check
      _
    $region51: #{mocast6_forward.1} parent=1 // pred_check_branch
      %144 = sbr.rel (0) target = $region53
    $region52: #{mocast6_forward.1} parent=1 // pred_region
      %s146 = ssub.s32 4096, 4096
      %147 = vsyncadd [#allocation17], %s146
      %s148 = sshll.u32 [#allocation18], 4
      %s149 = int_to_ptr.vmem [resolvable:$true] %s148
      %154 = dma.hbm_to_vmem [thread:$0]  %s12, 4096, %s149, [#allocation17], 256, 256, 16
    $region53: #{mocast6_forward.1} parent=1 // pred_fallthru
      _
    // Predicated region
    $region54: #{mocast6_forward.1} parent=1 // pred_check
      _
    $region55: #{mocast6_forward.1} parent=1 // pred_check_branch
      %156 = sbr.rel (0) target = $region57
    $region56: #{mocast6_forward.1} parent=1 // pred_region
      %s158 = ssub.s32 64, 64
      %159 = vsyncadd [#allocation20], %s158
      %s161 = sshll.u32 [#allocation19], 4
      %s162 = int_to_ptr.vmem [resolvable:$true] %s161
      %164 = dma.hbm_to_vmem [thread:$0]  %s13, 64, %s162, [#allocation20]
    $region57: #{mocast6_forward.1} parent=1 // pred_fallthru
      _
    // Predicated region
    $region58: #{mocast6_forward.1} parent=1 // pred_check
      _
    $region59: #{mocast6_forward.1} parent=1 // pred_check_branch
      %166 = sbr.rel (0) target = $region61
    $region60: #{mocast6_forward.1} parent=1 // pred_region
      %s168 = ssub.s32 6144, 6144
      %169 = vsyncadd [#allocation20], %s168
      %s170 = sshll.u32 [#allocation21], 4
      %s171 = int_to_ptr.vmem [resolvable:$true] %s170
      %176 = dma.hbm_to_vmem [thread:$0]  %s14, 6144, %s171, [#allocation20], 64, 64, 4
    $region61: #{mocast6_forward.1} parent=1 // pred_fallthru
      _
    // Predicated region
    $region62: #{mocast6_forward.1} parent=1 // pred_check
      _
    $region63: #{mocast6_forward.1} parent=1 // pred_check_branch
      %178 = sbr.rel (0) target = $region65
    $region64: #{mocast6_forward.1} parent=1 // pred_region
      %s180 = ssub.s32 16, 16
      %181 = vsyncadd [#allocation23], %s180
      %s183 = sshll.u32 [#allocation22], 4
      %s184 = int_to_ptr.vmem [resolvable:$true] %s183
      %186 = dma.hbm_to_vmem [thread:$0]  %s15, 16, %s184, [#allocation23]
    $region65: #{mocast6_forward.1} parent=1 // pred_fallthru
      _
    // Predicated region
    $region66: #{mocast6_forward.1} parent=1 // pred_check
      _
    $region67: #{mocast6_forward.1} parent=1 // pred_check_branch
      %188 = sbr.rel (0) target = $region69
    $region68: #{mocast6_forward.1} parent=1 // pred_region
      %189 = dma.done [#allocation3], 131072
    $region69: #{mocast6_forward.1} parent=1 // pred_fallthru
      _
    // Predicated region
    $region70: #{mocast6_forward.1} parent=1 // pred_check
      _
    $region71: #{mocast6_forward.1} parent=1 // pred_check_branch
      %191 = sbr.rel (0) target = $region73
    $region72: #{mocast6_forward.1} parent=1 // pred_region
      %192 = dma.done [#allocation5], 256
    $region73: #{mocast6_forward.1} parent=1 // pred_fallthru
      _
    // Predicated region
    $region74: #{mocast6_forward.1} parent=1 // pred_check
      _
    $region75: #{mocast6_forward.1} parent=1 // pred_check_branch
      %194 = sbr.rel (0) target = $region77
    $region76: #{mocast6_forward.1} parent=1 // pred_region
      %195 = dma.done [#allocation5], 32768
    $region77: #{mocast6_forward.1} parent=1 // pred_fallthru
      _
    // Predicated region
    $region78: #{mocast6_forward.1} parent=1 // pred_check
      _
    $region79: #{mocast6_forward.1} parent=1 // pred_check_branch
      %197 = sbr.rel (0) target = $region81
    $region80: #{mocast6_forward.1} parent=1 // pred_region
      %198 = dma.done [#allocation8], 32
    $region81: #{mocast6_forward.1} parent=1 // pred_fallthru
      _
    // Predicated region
    $region82: #{mocast6_forward.1} parent=1 // pred_check
      _
    $region83: #{mocast6_forward.1} parent=1 // pred_check_branch
      %200 = sbr.rel (0) target = $region85
    $region84: #{mocast6_forward.1} parent=1 // pred_region
      %201 = dma.done [#allocation8], 64
    $region85: #{mocast6_forward.1} parent=1 // pred_fallthru
      _
    // Predicated region
    $region86: #{mocast6_forward.1} parent=1 // pred_check
      _
    $region87: #{mocast6_forward.1} parent=1 // pred_check_branch
      %203 = sbr.rel (0) target = $region89
    $region88: #{mocast6_forward.1} parent=1 // pred_region
      %204 = dma.done [#allocation11], 256
    $region89: #{mocast6_forward.1} parent=1 // pred_fallthru
      _
    // Predicated region
    $region90: #{mocast6_forward.1} parent=1 // pred_check
      _
    $region91: #{mocast6_forward.1} parent=1 // pred_check_branch
      %206 = sbr.rel (0) target = $region93
    $region92: #{mocast6_forward.1} parent=1 // pred_region
      %207 = dma.done [#allocation11], 16
    $region93: #{mocast6_forward.1} parent=1 // pred_fallthru
      _
    // Predicated region
    $region94: #{mocast6_forward.1} parent=1 // pred_check
      _
    $region95: #{mocast6_forward.1} parent=1 // pred_check_branch
      %209 = sbr.rel (0) target = $region97
    $region96: #{mocast6_forward.1} parent=1 // pred_region
      %210 = dma.done [#allocation14], 2304
    $region97: #{mocast6_forward.1} parent=1 // pred_fallthru
      _
    // Predicated region
    $region98: #{mocast6_forward.1} parent=1 // pred_check
      _
    $region99: #{mocast6_forward.1} parent=1 // pred_check_branch
      %212 = sbr.rel (0) target = $region101
    $region100: #{mocast6_forward.1} parent=1 // pred_region
      %213 = dma.done [#allocation14], 16
    $region101: #{mocast6_forward.1} parent=1 // pred_fallthru
      _
    // Predicated region
    $region102: #{mocast6_forward.1} parent=1 // pred_check
      _
    $region103: #{mocast6_forward.1} parent=1 // pred_check_branch
      %215 = sbr.rel (0) target = $region105
    $region104: #{mocast6_forward.1} parent=1 // pred_region
      %216 = dma.done [#allocation17], 4096
    $region105: #{mocast6_forward.1} parent=1 // pred_fallthru
      _
    // Predicated region
    $region106: #{mocast6_forward.1} parent=1 // pred_check
      _
    $region107: #{mocast6_forward.1} parent=1 // pred_check_branch
      %218 = sbr.rel (0) target = $region109
    $region108: #{mocast6_forward.1} parent=1 // pred_region
      %219 = dma.done [#allocation17], 4096
    $region109: #{mocast6_forward.1} parent=1 // pred_fallthru
      _
    // Predicated region
    $region110: #{mocast6_forward.1} parent=1 // pred_check
      _
    $region111: #{mocast6_forward.1} parent=1 // pred_check_branch
      %221 = sbr.rel (0) target = $region113
    $region112: #{mocast6_forward.1} parent=1 // pred_region
      %222 = dma.done [#allocation20], 64
    $region113: #{mocast6_forward.1} parent=1 // pred_fallthru
      _
    // Predicated region
    $region114: #{mocast6_forward.1} parent=1 // pred_check
      _
    $region115: #{mocast6_forward.1} parent=1 // pred_check_branch
      %224 = sbr.rel (0) target = $region117
    $region116: #{mocast6_forward.1} parent=1 // pred_region
      %225 = dma.done [#allocation20], 6144
    $region117: #{mocast6_forward.1} parent=1 // pred_fallthru
      _
    // Predicated region
    $region118: #{mocast6_forward.1} parent=1 // pred_check
      _
    $region119: #{mocast6_forward.1} parent=1 // pred_check_branch
      %227 = sbr.rel (0) target = $region121
    $region120: #{mocast6_forward.1} parent=1 // pred_region
      %228 = dma.done [#allocation23], 16
    $region121: #{mocast6_forward.1} parent=1 // pred_fallthru
      _
    %v230 = vld [vmem:[%s0] sm:$0xff]
    %v231 = vld [vmem:[%s0 + $0x8] sm:$0xff]
    %v232 = vld [vmem:[%s0 + $0x10] sm:$0xff]
    %v233 = vld [vmem:[%s0 + $0x18] sm:$0xff]
    %v234 = vld [vmem:[#allocation2] sm:$0xff]
    %v235 = vld [vmem:[#allocation2 + $0x8] sm:$0xff]
    %v236 = vld [vmem:[#allocation2 + $0x10] sm:$0xff]
    %v237 = vld [vmem:[#allocation2 + $0x18] sm:$0xff]
    %v238 = vld [vmem:[#allocation2 + $0x20] sm:$0xff]
    %v239 = vld [vmem:[#allocation2 + $0x28] sm:$0xff]
    %v240 = vld [vmem:[#allocation2 + $0x30] sm:$0xff]
    %v241 = vld [vmem:[#allocation2 + $0x38] sm:$0xff]
    %v242 = vld [vmem:[#allocation2 + $0x40] sm:$0xff]
    %v243 = vld [vmem:[#allocation2 + $0x48] sm:$0xff]
    %v244 = vld [vmem:[#allocation2 + $0x50] sm:$0xff]
    %v245 = vld [vmem:[#allocation2 + $0x58] sm:$0xff]
    %v246 = vld [vmem:[#allocation2 + $0x60] sm:$0xff]
    %v247 = vld [vmem:[#allocation2 + $0x68] sm:$0xff]
    %v248 = vld [vmem:[#allocation2 + $0x70] sm:$0xff]
    %v249 = vld [vmem:[#allocation2 + $0x78] sm:$0xff]
    %v250 = vld [vmem:[#allocation2 + $0x80] sm:$0xff]
    %v251 = vld [vmem:[#allocation2 + $0x88] sm:$0xff]
    %v252 = vld [vmem:[#allocation2 + $0x90] sm:$0xff]
    %v253 = vld [vmem:[#allocation2 + $0x98] sm:$0xff]
    %v254 = vld [vmem:[#allocation2 + $0xa0] sm:$0xff]
    %v255 = vld [vmem:[#allocation2 + $0xa8] sm:$0xff]
    %v256 = vld [vmem:[#allocation2 + $0xb0] sm:$0xff]
    %v257 = vld [vmem:[#allocation2 + $0xb8] sm:$0xff]
    %v258 = vld [vmem:[#allocation2 + $0xc0] sm:$0xff]
    %v259 = vld [vmem:[#allocation2 + $0xc8] sm:$0xff]
    %v260 = vld [vmem:[#allocation2 + $0xd0] sm:$0xff]
    %v261 = vld [vmem:[#allocation2 + $0xd8] sm:$0xff]
    %v262 = vld [vmem:[#allocation2 + $0xe0] sm:$0xff]
    %v263 = vld [vmem:[#allocation2 + $0xe8] sm:$0xff]
    %v264 = vld [vmem:[#allocation2 + $0xf0] sm:$0xff]
    %v265 = vld [vmem:[#allocation2 + $0xf8] sm:$0xff]
    %v266 = vld [vmem:[#allocation2 + $0x100] sm:$0xff]
    %v267 = vld [vmem:[#allocation2 + $0x108] sm:$0xff]
    %v268 = vld [vmem:[#allocation2 + $0x110] sm:$0xff]
    %v269 = vld [vmem:[#allocation2 + $0x118] sm:$0xff]
    %v270 = vld [vmem:[#allocation2 + $0x120] sm:$0xff]
    %v271 = vld [vmem:[#allocation2 + $0x128] sm:$0xff]
    %v272 = vld [vmem:[#allocation2 + $0x130] sm:$0xff]
    %v273 = vld [vmem:[#allocation2 + $0x138] sm:$0xff]
    %v274 = vld [vmem:[#allocation2 + $0x140] sm:$0xff]
    %v275 = vld [vmem:[#allocation2 + $0x148] sm:$0xff]
    %v276 = vld [vmem:[#allocation2 + $0x150] sm:$0xff]
    %v277 = vld [vmem:[#allocation2 + $0x158] sm:$0xff]
    %v278 = vld [vmem:[#allocation2 + $0x160] sm:$0xff]
    %v279 = vld [vmem:[#allocation2 + $0x168] sm:$0xff]
    %v280 = vld [vmem:[#allocation2 + $0x170] sm:$0xff]
    %v281 = vld [vmem:[#allocation2 + $0x178] sm:$0xff]
    %v282 = vld [vmem:[#allocation2 + $0x180] sm:$0xff]
    %v283 = vld [vmem:[#allocation2 + $0x188] sm:$0xff]
    %v284 = vld [vmem:[#allocation2 + $0x190] sm:$0xff]
    %v285 = vld [vmem:[#allocation2 + $0x198] sm:$0xff]
    %v286 = vld [vmem:[#allocation2 + $0x1a0] sm:$0xff]
    %v287 = vld [vmem:[#allocation2 + $0x1a8] sm:$0xff]
    %v288 = vld [vmem:[#allocation2 + $0x1b0] sm:$0xff]
    %v289 = vld [vmem:[#allocation2 + $0x1b8] sm:$0xff]
    %v290 = vld [vmem:[#allocation2 + $0x1c0] sm:$0xff]
    %v291 = vld [vmem:[#allocation2 + $0x1c8] sm:$0xff]
    %v292 = vld [vmem:[#allocation2 + $0x1d0] sm:$0xff]
    %v293 = vld [vmem:[#allocation2 + $0x1d8] sm:$0xff]
    %v294 = vld [vmem:[#allocation2 + $0x1e0] sm:$0xff]
    %v295 = vld [vmem:[#allocation2 + $0x1e8] sm:$0xff]
    %v296 = vld [vmem:[#allocation2 + $0x1f0] sm:$0xff]
    %v297 = vld [vmem:[#allocation2 + $0x1f8] sm:$0xff]
    %v298 = vld [vmem:[#allocation2 + $0x200] sm:$0xff]
    %v299 = vld [vmem:[#allocation2 + $0x208] sm:$0xff]
    %v300 = vld [vmem:[#allocation2 + $0x210] sm:$0xff]
    %v301 = vld [vmem:[#allocation2 + $0x218] sm:$0xff]
    %v302 = vld [vmem:[#allocation2 + $0x220] sm:$0xff]
    %v303 = vld [vmem:[#allocation2 + $0x228] sm:$0xff]
    %v304 = vld [vmem:[#allocation2 + $0x230] sm:$0xff]
    %v305 = vld [vmem:[#allocation2 + $0x238] sm:$0xff]
    %v306 = vld [vmem:[#allocation2 + $0x240] sm:$0xff]
    %v307 = vld [vmem:[#allocation2 + $0x248] sm:$0xff]
    %v308 = vld [vmem:[#allocation2 + $0x250] sm:$0xff]
    %v309 = vld [vmem:[#allocation2 + $0x258] sm:$0xff]
    %v310 = vld [vmem:[#allocation2 + $0x260] sm:$0xff]
    %v311 = vld [vmem:[#allocation2 + $0x268] sm:$0xff]
    %v312 = vld [vmem:[#allocation2 + $0x270] sm:$0xff]
    %v313 = vld [vmem:[#allocation2 + $0x278] sm:$0xff]
    %v314 = vld [vmem:[#allocation2 + $0x280] sm:$0xff]
    %v315 = vld [vmem:[#allocation2 + $0x288] sm:$0xff]
    %v316 = vld [vmem:[#allocation2 + $0x290] sm:$0xff]
    %v317 = vld [vmem:[#allocation2 + $0x298] sm:$0xff]
    %v318 = vld [vmem:[#allocation2 + $0x2a0] sm:$0xff]
    %v319 = vld [vmem:[#allocation2 + $0x2a8] sm:$0xff]
    %v320 = vld [vmem:[#allocation2 + $0x2b0] sm:$0xff]
    %v321 = vld [vmem:[#allocation2 + $0x2b8] sm:$0xff]
    %v322 = vld [vmem:[#allocation2 + $0x2c0] sm:$0xff]
    %v323 = vld [vmem:[#allocation2 + $0x2c8] sm:$0xff]
    %v324 = vld [vmem:[#allocation2 + $0x2d0] sm:$0xff]
    %v325 = vld [vmem:[#allocation2 + $0x2d8] sm:$0xff]
    %v326 = vld [vmem:[#allocation2 + $0x2e0] sm:$0xff]
    %v327 = vld [vmem:[#allocation2 + $0x2e8] sm:$0xff]
    %v328 = vld [vmem:[#allocation2 + $0x2f0] sm:$0xff]
    %v329 = vld [vmem:[#allocation2 + $0x2f8] sm:$0xff]
    %v330 = vld [vmem:[#allocation2 + $0x300] sm:$0xff]
    %v331 = vld [vmem:[#allocation2 + $0x308] sm:$0xff]
    %v332 = vld [vmem:[#allocation2 + $0x310] sm:$0xff]
    %v333 = vld [vmem:[#allocation2 + $0x318] sm:$0xff]
    %v334 = vld [vmem:[#allocation2 + $0x320] sm:$0xff]
    %v335 = vld [vmem:[#allocation2 + $0x328] sm:$0xff]
    %v336 = vld [vmem:[#allocation2 + $0x330] sm:$0xff]
    %v337 = vld [vmem:[#allocation2 + $0x338] sm:$0xff]
    %v338 = vld [vmem:[#allocation2 + $0x340] sm:$0xff]
    %v339 = vld [vmem:[#allocation2 + $0x348] sm:$0xff]
    %v340 = vld [vmem:[#allocation2 + $0x350] sm:$0xff]
    %v341 = vld [vmem:[#allocation2 + $0x358] sm:$0xff]
    %v342 = vld [vmem:[#allocation2 + $0x360] sm:$0xff]
    %v343 = vld [vmem:[#allocation2 + $0x368] sm:$0xff]
    %v344 = vld [vmem:[#allocation2 + $0x370] sm:$0xff]
    %v345 = vld [vmem:[#allocation2 + $0x378] sm:$0xff]
    %v346 = vld [vmem:[#allocation2 + $0x380] sm:$0xff]
    %v347 = vld [vmem:[#allocation2 + $0x388] sm:$0xff]
    %v348 = vld [vmem:[#allocation2 + $0x390] sm:$0xff]
    %v349 = vld [vmem:[#allocation2 + $0x398] sm:$0xff]
    %v350 = vld [vmem:[#allocation2 + $0x3a0] sm:$0xff]
    %v351 = vld [vmem:[#allocation2 + $0x3a8] sm:$0xff]
    %v352 = vld [vmem:[#allocation2 + $0x3b0] sm:$0xff]
    %v353 = vld [vmem:[#allocation2 + $0x3b8] sm:$0xff]
    %v354 = vld [vmem:[#allocation2 + $0x3c0] sm:$0xff]
    %v355 = vld [vmem:[#allocation2 + $0x3c8] sm:$0xff]
    %v356 = vld [vmem:[#allocation2 + $0x3d0] sm:$0xff]
    %v357 = vld [vmem:[#allocation2 + $0x3d8] sm:$0xff]
    %v358 = vld [vmem:[#allocation2 + $0x3e0] sm:$0xff]
    %v359 = vld [vmem:[#allocation2 + $0x3e8] sm:$0xff]
    %v360 = vld [vmem:[#allocation2 + $0x3f0] sm:$0xff]
    %v361 = vld [vmem:[#allocation2 + $0x3f8] sm:$0xff]
    %v362 = vld [vmem:[#allocation2 + $0x400] sm:$0xff]
    %v363 = vld [vmem:[#allocation2 + $0x408] sm:$0xff]
    %v364 = vld [vmem:[#allocation2 + $0x410] sm:$0xff]
    %v365 = vld [vmem:[#allocation2 + $0x418] sm:$0xff]
    %v366 = vld [vmem:[#allocation2 + $0x420] sm:$0xff]
    %v367 = vld [vmem:[#allocation2 + $0x428] sm:$0xff]
    %v368 = vld [vmem:[#allocation2 + $0x430] sm:$0xff]
    %v369 = vld [vmem:[#allocation2 + $0x438] sm:$0xff]
    %v370 = vld [vmem:[#allocation2 + $0x440] sm:$0xff]
    %v371 = vld [vmem:[#allocation2 + $0x448] sm:$0xff]
    %v372 = vld [vmem:[#allocation2 + $0x450] sm:$0xff]
    %v373 = vld [vmem:[#allocation2 + $0x458] sm:$0xff]
    %v374 = vld [vmem:[#allocation2 + $0x460] sm:$0xff]
    %v375 = vld [vmem:[#allocation2 + $0x468] sm:$0xff]
    %v376 = vld [vmem:[#allocation2 + $0x470] sm:$0xff]
    %v377 = vld [vmem:[#allocation2 + $0x478] sm:$0xff]
    %v378 = vld [vmem:[#allocation2 + $0x480] sm:$0xff]
    %v379 = vld [vmem:[#allocation2 + $0x488] sm:$0xff]
    %v380 = vld [vmem:[#allocation2 + $0x490] sm:$0xff]
    %v381 = vld [vmem:[#allocation2 + $0x498] sm:$0xff]
    %v382 = vld [vmem:[#allocation2 + $0x4a0] sm:$0xff]
    %v383 = vld [vmem:[#allocation2 + $0x4a8] sm:$0xff]
    %v384 = vld [vmem:[#allocation2 + $0x4b0] sm:$0xff]
    %v385 = vld [vmem:[#allocation2 + $0x4b8] sm:$0xff]
    %v386 = vld [vmem:[#allocation2 + $0x4c0] sm:$0xff]
    %v387 = vld [vmem:[#allocation2 + $0x4c8] sm:$0xff]
    %v388 = vld [vmem:[#allocation2 + $0x4d0] sm:$0xff]
    %v389 = vld [vmem:[#allocation2 + $0x4d8] sm:$0xff]
    %v390 = vld [vmem:[#allocation2 + $0x4e0] sm:$0xff]
    %v391 = vld [vmem:[#allocation2 + $0x4e8] sm:$0xff]
    %v392 = vld [vmem:[#allocation2 + $0x4f0] sm:$0xff]
    %v393 = vld [vmem:[#allocation2 + $0x4f8] sm:$0xff]
    %v394 = vld [vmem:[#allocation2 + $0x500] sm:$0xff]
    %v395 = vld [vmem:[#allocation2 + $0x508] sm:$0xff]
    %v396 = vld [vmem:[#allocation2 + $0x510] sm:$0xff]
    %v397 = vld [vmem:[#allocation2 + $0x518] sm:$0xff]
    %v398 = vld [vmem:[#allocation2 + $0x520] sm:$0xff]
    %v399 = vld [vmem:[#allocation2 + $0x528] sm:$0xff]
    %v400 = vld [vmem:[#allocation2 + $0x530] sm:$0xff]
    %v401 = vld [vmem:[#allocation2 + $0x538] sm:$0xff]
    %v402 = vld [vmem:[#allocation2 + $0x540] sm:$0xff]
    %v403 = vld [vmem:[#allocation2 + $0x548] sm:$0xff]
    %v404 = vld [vmem:[#allocation2 + $0x550] sm:$0xff]
    %v405 = vld [vmem:[#allocation2 + $0x558] sm:$0xff]
    %v406 = vld [vmem:[#allocation2 + $0x560] sm:$0xff]
    %v407 = vld [vmem:[#allocation2 + $0x568] sm:$0xff]
    %v408 = vld [vmem:[#allocation2 + $0x570] sm:$0xff]
    %v409 = vld [vmem:[#allocation2 + $0x578] sm:$0xff]
    %v410 = vld [vmem:[#allocation2 + $0x580] sm:$0xff]
    %v411 = vld [vmem:[#allocation2 + $0x588] sm:$0xff]
    %v412 = vld [vmem:[#allocation2 + $0x590] sm:$0xff]
    %v413 = vld [vmem:[#allocation2 + $0x598] sm:$0xff]
    %v414 = vld [vmem:[#allocation2 + $0x5a0] sm:$0xff]
    %v415 = vld [vmem:[#allocation2 + $0x5a8] sm:$0xff]
    %v416 = vld [vmem:[#allocation2 + $0x5b0] sm:$0xff]
    %v417 = vld [vmem:[#allocation2 + $0x5b8] sm:$0xff]
    %v418 = vld [vmem:[#allocation2 + $0x5c0] sm:$0xff]
    %v419 = vld [vmem:[#allocation2 + $0x5c8] sm:$0xff]
    %v420 = vld [vmem:[#allocation2 + $0x5d0] sm:$0xff]
    %v421 = vld [vmem:[#allocation2 + $0x5d8] sm:$0xff]
    %v422 = vld [vmem:[#allocation2 + $0x5e0] sm:$0xff]
    %v423 = vld [vmem:[#allocation2 + $0x5e8] sm:$0xff]
    %v424 = vld [vmem:[#allocation2 + $0x5f0] sm:$0xff]
    %v425 = vld [vmem:[#allocation2 + $0x5f8] sm:$0xff]
    %v426 = vld [vmem:[#allocation2 + $0x600] sm:$0xff]
    %v427 = vld [vmem:[#allocation2 + $0x608] sm:$0xff]
    %v428 = vld [vmem:[#allocation2 + $0x610] sm:$0xff]
    %v429 = vld [vmem:[#allocation2 + $0x618] sm:$0xff]
    %v430 = vld [vmem:[#allocation2 + $0x620] sm:$0xff]
    %v431 = vld [vmem:[#allocation2 + $0x628] sm:$0xff]
    %v432 = vld [vmem:[#allocation2 + $0x630] sm:$0xff]
    %v433 = vld [vmem:[#allocation2 + $0x638] sm:$0xff]
    %v434 = vld [vmem:[#allocation2 + $0x640] sm:$0xff]
    %v435 = vld [vmem:[#allocation2 + $0x648] sm:$0xff]
    %v436 = vld [vmem:[#allocation2 + $0x650] sm:$0xff]
    %v437 = vld [vmem:[#allocation2 + $0x658] sm:$0xff]
    %v438 = vld [vmem:[#allocation2 + $0x660] sm:$0xff]
    %v439 = vld [vmem:[#allocation2 + $0x668] sm:$0xff]
    %v440 = vld [vmem:[#allocation2 + $0x670] sm:$0xff]
    %v441 = vld [vmem:[#allocation2 + $0x678] sm:$0xff]
    %v442 = vld [vmem:[#allocation2 + $0x680] sm:$0xff]
    %v443 = vld [vmem:[#allocation2 + $0x688] sm:$0xff]
    %v444 = vld [vmem:[#allocation2 + $0x690] sm:$0xff]
    %v445 = vld [vmem:[#allocation2 + $0x698] sm:$0xff]
    %v446 = vld [vmem:[#allocation2 + $0x6a0] sm:$0xff]
    %v447 = vld [vmem:[#allocation2 + $0x6a8] sm:$0xff]
    %v448 = vld [vmem:[#allocation2 + $0x6b0] sm:$0xff]
    %v449 = vld [vmem:[#allocation2 + $0x6b8] sm:$0xff]
    %v450 = vld [vmem:[#allocation2 + $0x6c0] sm:$0xff]
    %v451 = vld [vmem:[#allocation2 + $0x6c8] sm:$0xff]
    %v452 = vld [vmem:[#allocation2 + $0x6d0] sm:$0xff]
    %v453 = vld [vmem:[#allocation2 + $0x6d8] sm:$0xff]
    %v454 = vld [vmem:[#allocation2 + $0x6e0] sm:$0xff]
    %v455 = vld [vmem:[#allocation2 + $0x6e8] sm:$0xff]
    %v456 = vld [vmem:[#allocation2 + $0x6f0] sm:$0xff]
    %v457 = vld [vmem:[#allocation2 + $0x6f8] sm:$0xff]
    %v458 = vld [vmem:[#allocation2 + $0x700] sm:$0xff]
    %v459 = vld [vmem:[#allocation2 + $0x708] sm:$0xff]
    %v460 = vld [vmem:[#allocation2 + $0x710] sm:$0xff]
    %v461 = vld [vmem:[#allocation2 + $0x718] sm:$0xff]
    %v462 = vld [vmem:[#allocation2 + $0x720] sm:$0xff]
    %v463 = vld [vmem:[#allocation2 + $0x728] sm:$0xff]
    %v464 = vld [vmem:[#allocation2 + $0x730] sm:$0xff]
    %v465 = vld [vmem:[#allocation2 + $0x738] sm:$0xff]
    %v466 = vld [vmem:[#allocation2 + $0x740] sm:$0xff]
    %v467 = vld [vmem:[#allocation2 + $0x748] sm:$0xff]
    %v468 = vld [vmem:[#allocation2 + $0x750] sm:$0xff]
    %v469 = vld [vmem:[#allocation2 + $0x758] sm:$0xff]
    %v470 = vld [vmem:[#allocation2 + $0x760] sm:$0xff]
    %v471 = vld [vmem:[#allocation2 + $0x768] sm:$0xff]
    %v472 = vld [vmem:[#allocation2 + $0x770] sm:$0xff]
    %v473 = vld [vmem:[#allocation2 + $0x778] sm:$0xff]
    %v474 = vld [vmem:[#allocation2 + $0x780] sm:$0xff]
    %v475 = vld [vmem:[#allocation2 + $0x788] sm:$0xff]
    %v476 = vld [vmem:[#allocation2 + $0x790] sm:$0xff]
    %v477 = vld [vmem:[#allocation2 + $0x798] sm:$0xff]
    %v478 = vld [vmem:[#allocation2 + $0x7a0] sm:$0xff]
    %v479 = vld [vmem:[#allocation2 + $0x7a8] sm:$0xff]
    %v480 = vld [vmem:[#allocation2 + $0x7b0] sm:$0xff]
    %v481 = vld [vmem:[#allocation2 + $0x7b8] sm:$0xff]
    %v482 = vld [vmem:[#allocation2 + $0x7c0] sm:$0xff]
    %v483 = vld [vmem:[#allocation2 + $0x7c8] sm:$0xff]
    %v484 = vld [vmem:[#allocation2 + $0x7d0] sm:$0xff]
    %v485 = vld [vmem:[#allocation2 + $0x7d8] sm:$0xff]
    %v486 = vld [vmem:[#allocation2 + $0x7e0] sm:$0xff]
    %v487 = vld [vmem:[#allocation2 + $0x7e8] sm:$0xff]
    %v488 = vld [vmem:[#allocation2 + $0x7f0] sm:$0xff]
    %v489 = vld [vmem:[#allocation2 + $0x7f8] sm:$0xff]
    %v490 = vld [vmem:[#allocation2 + $0x800] sm:$0xff]
    %v491 = vld [vmem:[#allocation2 + $0x808] sm:$0xff]
    %v492 = vld [vmem:[#allocation2 + $0x810] sm:$0xff]
    %v493 = vld [vmem:[#allocation2 + $0x818] sm:$0xff]
    %v494 = vld [vmem:[#allocation2 + $0x820] sm:$0xff]
    %v495 = vld [vmem:[#allocation2 + $0x828] sm:$0xff]
    %v496 = vld [vmem:[#allocation2 + $0x830] sm:$0xff]
    %v497 = vld [vmem:[#allocation2 + $0x838] sm:$0xff]
    %v498 = vld [vmem:[#allocation2 + $0x840] sm:$0xff]
    %v499 = vld [vmem:[#allocation2 + $0x848] sm:$0xff]
    %v500 = vld [vmem:[#allocation2 + $0x850] sm:$0xff]
    %v501 = vld [vmem:[#allocation2 + $0x858] sm:$0xff]
    %v502 = vld [vmem:[#allocation2 + $0x860] sm:$0xff]
    %v503 = vld [vmem:[#allocation2 + $0x868] sm:$0xff]
    %v504 = vld [vmem:[#allocation2 + $0x870] sm:$0xff]
    %v505 = vld [vmem:[#allocation2 + $0x878] sm:$0xff]
    %v506 = vld [vmem:[#allocation2 + $0x880] sm:$0xff]
    %v507 = vld [vmem:[#allocation2 + $0x888] sm:$0xff]
    %v508 = vld [vmem:[#allocation2 + $0x890] sm:$0xff]
    %v509 = vld [vmem:[#allocation2 + $0x898] sm:$0xff]
    %v510 = vld [vmem:[#allocation2 + $0x8a0] sm:$0xff]
    %v511 = vld [vmem:[#allocation2 + $0x8a8] sm:$0xff]
    %v512 = vld [vmem:[#allocation2 + $0x8b0] sm:$0xff]
    %v513 = vld [vmem:[#allocation2 + $0x8b8] sm:$0xff]
    %v514 = vld [vmem:[#allocation2 + $0x8c0] sm:$0xff]
    %v515 = vld [vmem:[#allocation2 + $0x8c8] sm:$0xff]
    %v516 = vld [vmem:[#allocation2 + $0x8d0] sm:$0xff]
    %v517 = vld [vmem:[#allocation2 + $0x8d8] sm:$0xff]
    %v518 = vld [vmem:[#allocation2 + $0x8e0] sm:$0xff]
    %v519 = vld [vmem:[#allocation2 + $0x8e8] sm:$0xff]
    %v520 = vld [vmem:[#allocation2 + $0x8f0] sm:$0xff]
    %v521 = vld [vmem:[#allocation2 + $0x8f8] sm:$0xff]
    %v522 = vld [vmem:[#allocation2 + $0x900] sm:$0xff]
    %v523 = vld [vmem:[#allocation2 + $0x908] sm:$0xff]
    %v524 = vld [vmem:[#allocation2 + $0x910] sm:$0xff]
    %v525 = vld [vmem:[#allocation2 + $0x918] sm:$0xff]
    %v526 = vld [vmem:[#allocation2 + $0x920] sm:$0xff]
    %v527 = vld [vmem:[#allocation2 + $0x928] sm:$0xff]
    %v528 = vld [vmem:[#allocation2 + $0x930] sm:$0xff]
    %v529 = vld [vmem:[#allocation2 + $0x938] sm:$0xff]
    %v530 = vld [vmem:[#allocation2 + $0x940] sm:$0xff]
    %v531 = vld [vmem:[#allocation2 + $0x948] sm:$0xff]
    %v532 = vld [vmem:[#allocation2 + $0x950] sm:$0xff]
    %v533 = vld [vmem:[#allocation2 + $0x958] sm:$0xff]
    %v534 = vld [vmem:[#allocation2 + $0x960] sm:$0xff]
    %v535 = vld [vmem:[#allocation2 + $0x968] sm:$0xff]
    %v536 = vld [vmem:[#allocation2 + $0x970] sm:$0xff]
    %v537 = vld [vmem:[#allocation2 + $0x978] sm:$0xff]
    %v538 = vld [vmem:[#allocation2 + $0x980] sm:$0xff]
    %v539 = vld [vmem:[#allocation2 + $0x988] sm:$0xff]
    %v540 = vld [vmem:[#allocation2 + $0x990] sm:$0xff]
    %v541 = vld [vmem:[#allocation2 + $0x998] sm:$0xff]
    %v542 = vld [vmem:[#allocation2 + $0x9a0] sm:$0xff]
    %v543 = vld [vmem:[#allocation2 + $0x9a8] sm:$0xff]
    %v544 = vld [vmem:[#allocation2 + $0x9b0] sm:$0xff]
    %v545 = vld [vmem:[#allocation2 + $0x9b8] sm:$0xff]
    %v546 = vld [vmem:[#allocation2 + $0x9c0] sm:$0xff]
    %v547 = vld [vmem:[#allocation2 + $0x9c8] sm:$0xff]
    %v548 = vld [vmem:[#allocation2 + $0x9d0] sm:$0xff]
    %v549 = vld [vmem:[#allocation2 + $0x9d8] sm:$0xff]
    %v550 = vld [vmem:[#allocation2 + $0x9e0] sm:$0xff]
    %v551 = vld [vmem:[#allocation2 + $0x9e8] sm:$0xff]
    %v552 = vld [vmem:[#allocation2 + $0x9f0] sm:$0xff]
    %v553 = vld [vmem:[#allocation2 + $0x9f8] sm:$0xff]
    %v554 = vld [vmem:[#allocation2 + $0xa00] sm:$0xff]
    %v555 = vld [vmem:[#allocation2 + $0xa08] sm:$0xff]
    %v556 = vld [vmem:[#allocation2 + $0xa10] sm:$0xff]
    %v557 = vld [vmem:[#allocation2 + $0xa18] sm:$0xff]
    %v558 = vld [vmem:[#allocation2 + $0xa20] sm:$0xff]
    %v559 = vld [vmem:[#allocation2 + $0xa28] sm:$0xff]
    %v560 = vld [vmem:[#allocation2 + $0xa30] sm:$0xff]
    %v561 = vld [vmem:[#allocation2 + $0xa38] sm:$0xff]
    %v562 = vld [vmem:[#allocation2 + $0xa40] sm:$0xff]
    %v563 = vld [vmem:[#allocation2 + $0xa48] sm:$0xff]
    %v564 = vld [vmem:[#allocation2 + $0xa50] sm:$0xff]
    %v565 = vld [vmem:[#allocation2 + $0xa58] sm:$0xff]
    %v566 = vld [vmem:[#allocation2 + $0xa60] sm:$0xff]
    %v567 = vld [vmem:[#allocation2 + $0xa68] sm:$0xff]
    %v568 = vld [vmem:[#allocation2 + $0xa70] sm:$0xff]
    %v569 = vld [vmem:[#allocation2 + $0xa78] sm:$0xff]
    %v570 = vld [vmem:[#allocation2 + $0xa80] sm:$0xff]
    %v571 = vld [vmem:[#allocation2 + $0xa88] sm:$0xff]
    %v572 = vld [vmem:[#allocation2 + $0xa90] sm:$0xff]
    %v573 = vld [vmem:[#allocation2 + $0xa98] sm:$0xff]
    %v574 = vld [vmem:[#allocation2 + $0xaa0] sm:$0xff]
    %v575 = vld [vmem:[#allocation2 + $0xaa8] sm:$0xff]
    %v576 = vld [vmem:[#allocation2 + $0xab0] sm:$0xff]
    %v577 = vld [vmem:[#allocation2 + $0xab8] sm:$0xff]
    %v578 = vld [vmem:[#allocation2 + $0xac0] sm:$0xff]
    %v579 = vld [vmem:[#allocation2 + $0xac8] sm:$0xff]
    %v580 = vld [vmem:[#allocation2 + $0xad0] sm:$0xff]
    %v581 = vld [vmem:[#allocation2 + $0xad8] sm:$0xff]
    %v582 = vld [vmem:[#allocation2 + $0xae0] sm:$0xff]
    %v583 = vld [vmem:[#allocation2 + $0xae8] sm:$0xff]
    %v584 = vld [vmem:[#allocation2 + $0xaf0] sm:$0xff]
    %v585 = vld [vmem:[#allocation2 + $0xaf8] sm:$0xff]
    %v586 = vld [vmem:[#allocation2 + $0xb00] sm:$0xff]
    %v587 = vld [vmem:[#allocation2 + $0xb08] sm:$0xff]
    %v588 = vld [vmem:[#allocation2 + $0xb10] sm:$0xff]
    %v589 = vld [vmem:[#allocation2 + $0xb18] sm:$0xff]
    %v590 = vld [vmem:[#allocation2 + $0xb20] sm:$0xff]
    %v591 = vld [vmem:[#allocation2 + $0xb28] sm:$0xff]
    %v592 = vld [vmem:[#allocation2 + $0xb30] sm:$0xff]
    %v593 = vld [vmem:[#allocation2 + $0xb38] sm:$0xff]
    %v594 = vld [vmem:[#allocation2 + $0xb40] sm:$0xff]
    %v595 = vld [vmem:[#allocation2 + $0xb48] sm:$0xff]
    %v596 = vld [vmem:[#allocation2 + $0xb50] sm:$0xff]
    %v597 = vld [vmem:[#allocation2 + $0xb58] sm:$0xff]
    %v598 = vld [vmem:[#allocation2 + $0xb60] sm:$0xff]
    %v599 = vld [vmem:[#allocation2 + $0xb68] sm:$0xff]
    %v600 = vld [vmem:[#allocation2 + $0xb70] sm:$0xff]
    %v601 = vld [vmem:[#allocation2 + $0xb78] sm:$0xff]
    %v602 = vld [vmem:[#allocation2 + $0xb80] sm:$0xff]
    %v603 = vld [vmem:[#allocation2 + $0xb88] sm:$0xff]
    %v604 = vld [vmem:[#allocation2 + $0xb90] sm:$0xff]
    %v605 = vld [vmem:[#allocation2 + $0xb98] sm:$0xff]
    %v606 = vld [vmem:[#allocation2 + $0xba0] sm:$0xff]
    %v607 = vld [vmem:[#allocation2 + $0xba8] sm:$0xff]
    %v608 = vld [vmem:[#allocation2 + $0xbb0] sm:$0xff]
    %v609 = vld [vmem:[#allocation2 + $0xbb8] sm:$0xff]
    %v610 = vld [vmem:[#allocation2 + $0xbc0] sm:$0xff]
    %v611 = vld [vmem:[#allocation2 + $0xbc8] sm:$0xff]
    %v612 = vld [vmem:[#allocation2 + $0xbd0] sm:$0xff]
    %v613 = vld [vmem:[#allocation2 + $0xbd8] sm:$0xff]
    %v614 = vld [vmem:[#allocation2 + $0xbe0] sm:$0xff]
    %v615 = vld [vmem:[#allocation2 + $0xbe8] sm:$0xff]
    %v616 = vld [vmem:[#allocation2 + $0xbf0] sm:$0xff]
    %v617 = vld [vmem:[#allocation2 + $0xbf8] sm:$0xff]
    %v618 = vld [vmem:[#allocation2 + $0xc00] sm:$0xff]
    %v619 = vld [vmem:[#allocation2 + $0xc08] sm:$0xff]
    %v620 = vld [vmem:[#allocation2 + $0xc10] sm:$0xff]
    %v621 = vld [vmem:[#allocation2 + $0xc18] sm:$0xff]
    %v622 = vld [vmem:[#allocation2 + $0xc20] sm:$0xff]
    %v623 = vld [vmem:[#allocation2 + $0xc28] sm:$0xff]
    %v624 = vld [vmem:[#allocation2 + $0xc30] sm:$0xff]
    %v625 = vld [vmem:[#allocation2 + $0xc38] sm:$0xff]
    %v626 = vld [vmem:[#allocation2 + $0xc40] sm:$0xff]
    %v627 = vld [vmem:[#allocation2 + $0xc48] sm:$0xff]
    %v628 = vld [vmem:[#allocation2 + $0xc50] sm:$0xff]
    %v629 = vld [vmem:[#allocation2 + $0xc58] sm:$0xff]
    %v630 = vld [vmem:[#allocation2 + $0xc60] sm:$0xff]
    %v631 = vld [vmem:[#allocation2 + $0xc68] sm:$0xff]
    %v632 = vld [vmem:[#allocation2 + $0xc70] sm:$0xff]
    %v633 = vld [vmem:[#allocation2 + $0xc78] sm:$0xff]
    %v634 = vld [vmem:[#allocation2 + $0xc80] sm:$0xff]
    %v635 = vld [vmem:[#allocation2 + $0xc88] sm:$0xff]
    %v636 = vld [vmem:[#allocation2 + $0xc90] sm:$0xff]
    %v637 = vld [vmem:[#allocation2 + $0xc98] sm:$0xff]
    %v638 = vld [vmem:[#allocation2 + $0xca0] sm:$0xff]
    %v639 = vld [vmem:[#allocation2 + $0xca8] sm:$0xff]
    %v640 = vld [vmem:[#allocation2 + $0xcb0] sm:$0xff]
    %v641 = vld [vmem:[#allocation2 + $0xcb8] sm:$0xff]
    %v642 = vld [vmem:[#allocation2 + $0xcc0] sm:$0xff]
    %v643 = vld [vmem:[#allocation2 + $0xcc8] sm:$0xff]
    %v644 = vld [vmem:[#allocation2 + $0xcd0] sm:$0xff]
    %v645 = vld [vmem:[#allocation2 + $0xcd8] sm:$0xff]
    %v646 = vld [vmem:[#allocation2 + $0xce0] sm:$0xff]
    %v647 = vld [vmem:[#allocation2 + $0xce8] sm:$0xff]
    %v648 = vld [vmem:[#allocation2 + $0xcf0] sm:$0xff]
    %v649 = vld [vmem:[#allocation2 + $0xcf8] sm:$0xff]
    %v650 = vld [vmem:[#allocation2 + $0xd00] sm:$0xff]
    %v651 = vld [vmem:[#allocation2 + $0xd08] sm:$0xff]
    %v652 = vld [vmem:[#allocation2 + $0xd10] sm:$0xff]
    %v653 = vld [vmem:[#allocation2 + $0xd18] sm:$0xff]
    %v654 = vld [vmem:[#allocation2 + $0xd20] sm:$0xff]
    %v655 = vld [vmem:[#allocation2 + $0xd28] sm:$0xff]
    %v656 = vld [vmem:[#allocation2 + $0xd30] sm:$0xff]
    %v657 = vld [vmem:[#allocation2 + $0xd38] sm:$0xff]
    %v658 = vld [vmem:[#allocation2 + $0xd40] sm:$0xff]
    %v659 = vld [vmem:[#allocation2 + $0xd48] sm:$0xff]
    %v660 = vld [vmem:[#allocation2 + $0xd50] sm:$0xff]
    %v661 = vld [vmem:[#allocation2 + $0xd58] sm:$0xff]
    %v662 = vld [vmem:[#allocation2 + $0xd60] sm:$0xff]
    %v663 = vld [vmem:[#allocation2 + $0xd68] sm:$0xff]
    %v664 = vld [vmem:[#allocation2 + $0xd70] sm:$0xff]
    %v665 = vld [vmem:[#allocation2 + $0xd78] sm:$0xff]
    %v666 = vld [vmem:[#allocation2 + $0xd80] sm:$0xff]
    %v667 = vld [vmem:[#allocation2 + $0xd88] sm:$0xff]
    %v668 = vld [vmem:[#allocation2 + $0xd90] sm:$0xff]
    %v669 = vld [vmem:[#allocation2 + $0xd98] sm:$0xff]
    %v670 = vld [vmem:[#allocation2 + $0xda0] sm:$0xff]
    %v671 = vld [vmem:[#allocation2 + $0xda8] sm:$0xff]
    %v672 = vld [vmem:[#allocation2 + $0xdb0] sm:$0xff]
    %v673 = vld [vmem:[#allocation2 + $0xdb8] sm:$0xff]
    %v674 = vld [vmem:[#allocation2 + $0xdc0] sm:$0xff]
    %v675 = vld [vmem:[#allocation2 + $0xdc8] sm:$0xff]
    %v676 = vld [vmem:[#allocation2 + $0xdd0] sm:$0xff]
    %v677 = vld [vmem:[#allocation2 + $0xdd8] sm:$0xff]
    %v678 = vld [vmem:[#allocation2 + $0xde0] sm:$0xff]
    %v679 = vld [vmem:[#allocation2 + $0xde8] sm:$0xff]
    %v680 = vld [vmem:[#allocation2 + $0xdf0] sm:$0xff]
    %v681 = vld [vmem:[#allocation2 + $0xdf8] sm:$0xff]
    %v682 = vld [vmem:[#allocation2 + $0xe00] sm:$0xff]
    %v683 = vld [vmem:[#allocation2 + $0xe08] sm:$0xff]
    %v684 = vld [vmem:[#allocation2 + $0xe10] sm:$0xff]
    %v685 = vld [vmem:[#allocation2 + $0xe18] sm:$0xff]
    %v686 = vld [vmem:[#allocation2 + $0xe20] sm:$0xff]
    %v687 = vld [vmem:[#allocation2 + $0xe28] sm:$0xff]
    %v688 = vld [vmem:[#allocation2 + $0xe30] sm:$0xff]
    %v689 = vld [vmem:[#allocation2 + $0xe38] sm:$0xff]
    %v690 = vld [vmem:[#allocation2 + $0xe40] sm:$0xff]
    %v691 = vld [vmem:[#allocation2 + $0xe48] sm:$0xff]
    %v692 = vld [vmem:[#allocation2 + $0xe50] sm:$0xff]
    %v693 = vld [vmem:[#allocation2 + $0xe58] sm:$0xff]
    %v694 = vld [vmem:[#allocation2 + $0xe60] sm:$0xff]
    %v695 = vld [vmem:[#allocation2 + $0xe68] sm:$0xff]
    %v696 = vld [vmem:[#allocation2 + $0xe70] sm:$0xff]
    %v697 = vld [vmem:[#allocation2 + $0xe78] sm:$0xff]
    %v698 = vld [vmem:[#allocation2 + $0xe80] sm:$0xff]
    %v699 = vld [vmem:[#allocation2 + $0xe88] sm:$0xff]
    %v700 = vld [vmem:[#allocation2 + $0xe90] sm:$0xff]
    %v701 = vld [vmem:[#allocation2 + $0xe98] sm:$0xff]
    %v702 = vld [vmem:[#allocation2 + $0xea0] sm:$0xff]
    %v703 = vld [vmem:[#allocation2 + $0xea8] sm:$0xff]
    %v704 = vld [vmem:[#allocation2 + $0xeb0] sm:$0xff]
    %v705 = vld [vmem:[#allocation2 + $0xeb8] sm:$0xff]
    %v706 = vld [vmem:[#allocation2 + $0xec0] sm:$0xff]
    %v707 = vld [vmem:[#allocation2 + $0xec8] sm:$0xff]
    %v708 = vld [vmem:[#allocation2 + $0xed0] sm:$0xff]
    %v709 = vld [vmem:[#allocation2 + $0xed8] sm:$0xff]
    %v710 = vld [vmem:[#allocation2 + $0xee0] sm:$0xff]
    %v711 = vld [vmem:[#allocation2 + $0xee8] sm:$0xff]
    %v712 = vld [vmem:[#allocation2 + $0xef0] sm:$0xff]
    %v713 = vld [vmem:[#allocation2 + $0xef8] sm:$0xff]
    %v714 = vld [vmem:[#allocation2 + $0xf00] sm:$0xff]
    %v715 = vld [vmem:[#allocation2 + $0xf08] sm:$0xff]
    %v716 = vld [vmem:[#allocation2 + $0xf10] sm:$0xff]
    %v717 = vld [vmem:[#allocation2 + $0xf18] sm:$0xff]
    %v718 = vld [vmem:[#allocation2 + $0xf20] sm:$0xff]
    %v719 = vld [vmem:[#allocation2 + $0xf28] sm:$0xff]
    %v720 = vld [vmem:[#allocation2 + $0xf30] sm:$0xff]
    %v721 = vld [vmem:[#allocation2 + $0xf38] sm:$0xff]
    %v722 = vld [vmem:[#allocation2 + $0xf40] sm:$0xff]
    %v723 = vld [vmem:[#allocation2 + $0xf48] sm:$0xff]
    %v724 = vld [vmem:[#allocation2 + $0xf50] sm:$0xff]
    %v725 = vld [vmem:[#allocation2 + $0xf58] sm:$0xff]
    %v726 = vld [vmem:[#allocation2 + $0xf60] sm:$0xff]
    %v727 = vld [vmem:[#allocation2 + $0xf68] sm:$0xff]
    %v728 = vld [vmem:[#allocation2 + $0xf70] sm:$0xff]
    %v729 = vld [vmem:[#allocation2 + $0xf78] sm:$0xff]
    %v730 = vld [vmem:[#allocation2 + $0xf80] sm:$0xff]
    %v731 = vld [vmem:[#allocation2 + $0xf88] sm:$0xff]
    %v732 = vld [vmem:[#allocation2 + $0xf90] sm:$0xff]
    %v733 = vld [vmem:[#allocation2 + $0xf98] sm:$0xff]
    %v734 = vld [vmem:[#allocation2 + $0xfa0] sm:$0xff]
    %v735 = vld [vmem:[#allocation2 + $0xfa8] sm:$0xff]
    %v736 = vld [vmem:[#allocation2 + $0xfb0] sm:$0xff]
    %v737 = vld [vmem:[#allocation2 + $0xfb8] sm:$0xff]
    %v738 = vld [vmem:[#allocation2 + $0xfc0] sm:$0xff]
    %v739 = vld [vmem:[#allocation2 + $0xfc8] sm:$0xff]
    %v740 = vld [vmem:[#allocation2 + $0xfd0] sm:$0xff]
    %v741 = vld [vmem:[#allocation2 + $0xfd8] sm:$0xff]
    %v742 = vld [vmem:[#allocation2 + $0xfe0] sm:$0xff]
    %v743 = vld [vmem:[#allocation2 + $0xfe8] sm:$0xff]
    %v744 = vld [vmem:[#allocation2 + $0xff0] sm:$0xff]
    %v745 = vld [vmem:[#allocation2 + $0xff8] sm:$0xff]
    %v746 = vld [vmem:[#allocation2 + $0x1000] sm:$0xff]
    %v747 = vld [vmem:[#allocation2 + $0x1008] sm:$0xff]
    %v748 = vld [vmem:[#allocation2 + $0x1010] sm:$0xff]
    %v749 = vld [vmem:[#allocation2 + $0x1018] sm:$0xff]
    %v750 = vld [vmem:[#allocation2 + $0x1020] sm:$0xff]
    %v751 = vld [vmem:[#allocation2 + $0x1028] sm:$0xff]
    %v752 = vld [vmem:[#allocation2 + $0x1030] sm:$0xff]
    %v753 = vld [vmem:[#allocation2 + $0x1038] sm:$0xff]
    %v754 = vld [vmem:[#allocation2 + $0x1040] sm:$0xff]
    %v755 = vld [vmem:[#allocation2 + $0x1048] sm:$0xff]
    %v756 = vld [vmem:[#allocation2 + $0x1050] sm:$0xff]
    %v757 = vld [vmem:[#allocation2 + $0x1058] sm:$0xff]
    %v758 = vld [vmem:[#allocation2 + $0x1060] sm:$0xff]
    %v759 = vld [vmem:[#allocation2 + $0x1068] sm:$0xff]
    %v760 = vld [vmem:[#allocation2 + $0x1070] sm:$0xff]
    %v761 = vld [vmem:[#allocation2 + $0x1078] sm:$0xff]
    %v762 = vld [vmem:[#allocation2 + $0x1080] sm:$0xff]
    %v763 = vld [vmem:[#allocation2 + $0x1088] sm:$0xff]
    %v764 = vld [vmem:[#allocation2 + $0x1090] sm:$0xff]
    %v765 = vld [vmem:[#allocation2 + $0x1098] sm:$0xff]
    %v766 = vld [vmem:[#allocation2 + $0x10a0] sm:$0xff]
    %v767 = vld [vmem:[#allocation2 + $0x10a8] sm:$0xff]
    %v768 = vld [vmem:[#allocation2 + $0x10b0] sm:$0xff]
    %v769 = vld [vmem:[#allocation2 + $0x10b8] sm:$0xff]
    %v770 = vld [vmem:[#allocation2 + $0x10c0] sm:$0xff]
    %v771 = vld [vmem:[#allocation2 + $0x10c8] sm:$0xff]
    %v772 = vld [vmem:[#allocation2 + $0x10d0] sm:$0xff]
    %v773 = vld [vmem:[#allocation2 + $0x10d8] sm:$0xff]
    %v774 = vld [vmem:[#allocation2 + $0x10e0] sm:$0xff]
    %v775 = vld [vmem:[#allocation2 + $0x10e8] sm:$0xff]
    %v776 = vld [vmem:[#allocation2 + $0x10f0] sm:$0xff]
    %v777 = vld [vmem:[#allocation2 + $0x10f8] sm:$0xff]
    %v778 = vld [vmem:[#allocation2 + $0x1100] sm:$0xff]
    %v779 = vld [vmem:[#allocation2 + $0x1108] sm:$0xff]
    %v780 = vld [vmem:[#allocation2 + $0x1110] sm:$0xff]
    %v781 = vld [vmem:[#allocation2 + $0x1118] sm:$0xff]
    %v782 = vld [vmem:[#allocation2 + $0x1120] sm:$0xff]
    %v783 = vld [vmem:[#allocation2 + $0x1128] sm:$0xff]
    %v784 = vld [vmem:[#allocation2 + $0x1130] sm:$0xff]
    %v785 = vld [vmem:[#allocation2 + $0x1138] sm:$0xff]
    %v786 = vld [vmem:[#allocation2 + $0x1140] sm:$0xff]
    %v787 = vld [vmem:[#allocation2 + $0x1148] sm:$0xff]
    %v788 = vld [vmem:[#allocation2 + $0x1150] sm:$0xff]
    %v789 = vld [vmem:[#allocation2 + $0x1158] sm:$0xff]
    %v790 = vld [vmem:[#allocation2 + $0x1160] sm:$0xff]
    %v791 = vld [vmem:[#allocation2 + $0x1168] sm:$0xff]
    %v792 = vld [vmem:[#allocation2 + $0x1170] sm:$0xff]
    %v793 = vld [vmem:[#allocation2 + $0x1178] sm:$0xff]
    %v794 = vld [vmem:[#allocation2 + $0x1180] sm:$0xff]
    %v795 = vld [vmem:[#allocation2 + $0x1188] sm:$0xff]
    %v796 = vld [vmem:[#allocation2 + $0x1190] sm:$0xff]
    %v797 = vld [vmem:[#allocation2 + $0x1198] sm:$0xff]
    %v798 = vld [vmem:[#allocation2 + $0x11a0] sm:$0xff]
    %v799 = vld [vmem:[#allocation2 + $0x11a8] sm:$0xff]
    %v800 = vld [vmem:[#allocation2 + $0x11b0] sm:$0xff]
    %v801 = vld [vmem:[#allocation2 + $0x11b8] sm:$0xff]
    %v802 = vld [vmem:[#allocation2 + $0x11c0] sm:$0xff]
    %v803 = vld [vmem:[#allocation2 + $0x11c8] sm:$0xff]
    %v804 = vld [vmem:[#allocation2 + $0x11d0] sm:$0xff]
    %v805 = vld [vmem:[#allocation2 + $0x11d8] sm:$0xff]
    %v806 = vld [vmem:[#allocation2 + $0x11e0] sm:$0xff]
    %v807 = vld [vmem:[#allocation2 + $0x11e8] sm:$0xff]
    %v808 = vld [vmem:[#allocation2 + $0x11f0] sm:$0xff]
    %v809 = vld [vmem:[#allocation2 + $0x11f8] sm:$0xff]
    %v810 = vld [vmem:[#allocation2 + $0x1200] sm:$0xff]
    %v811 = vld [vmem:[#allocation2 + $0x1208] sm:$0xff]
    %v812 = vld [vmem:[#allocation2 + $0x1210] sm:$0xff]
    %v813 = vld [vmem:[#allocation2 + $0x1218] sm:$0xff]
    %v814 = vld [vmem:[#allocation2 + $0x1220] sm:$0xff]
    %v815 = vld [vmem:[#allocation2 + $0x1228] sm:$0xff]
    %v816 = vld [vmem:[#allocation2 + $0x1230] sm:$0xff]
    %v817 = vld [vmem:[#allocation2 + $0x1238] sm:$0xff]
    %v818 = vld [vmem:[#allocation2 + $0x1240] sm:$0xff]
    %v819 = vld [vmem:[#allocation2 + $0x1248] sm:$0xff]
    %v820 = vld [vmem:[#allocation2 + $0x1250] sm:$0xff]
    %v821 = vld [vmem:[#allocation2 + $0x1258] sm:$0xff]
    %v822 = vld [vmem:[#allocation2 + $0x1260] sm:$0xff]
    %v823 = vld [vmem:[#allocation2 + $0x1268] sm:$0xff]
    %v824 = vld [vmem:[#allocation2 + $0x1270] sm:$0xff]
    %v825 = vld [vmem:[#allocation2 + $0x1278] sm:$0xff]
    %v826 = vld [vmem:[#allocation2 + $0x1280] sm:$0xff]
    %v827 = vld [vmem:[#allocation2 + $0x1288] sm:$0xff]
    %v828 = vld [vmem:[#allocation2 + $0x1290] sm:$0xff]
    %v829 = vld [vmem:[#allocation2 + $0x1298] sm:$0xff]
    %v830 = vld [vmem:[#allocation2 + $0x12a0] sm:$0xff]
    %v831 = vld [vmem:[#allocation2 + $0x12a8] sm:$0xff]
    %v832 = vld [vmem:[#allocation2 + $0x12b0] sm:$0xff]
    %v833 = vld [vmem:[#allocation2 + $0x12b8] sm:$0xff]
    %v834 = vld [vmem:[#allocation2 + $0x12c0] sm:$0xff]
    %v835 = vld [vmem:[#allocation2 + $0x12c8] sm:$0xff]
    %v836 = vld [vmem:[#allocation2 + $0x12d0] sm:$0xff]
    %v837 = vld [vmem:[#allocation2 + $0x12d8] sm:$0xff]
    %v838 = vld [vmem:[#allocation2 + $0x12e0] sm:$0xff]
    %v839 = vld [vmem:[#allocation2 + $0x12e8] sm:$0xff]
    %v840 = vld [vmem:[#allocation2 + $0x12f0] sm:$0xff]
    %v841 = vld [vmem:[#allocation2 + $0x12f8] sm:$0xff]
    %v842 = vld [vmem:[#allocation2 + $0x1300] sm:$0xff]
    %v843 = vld [vmem:[#allocation2 + $0x1308] sm:$0xff]
    %v844 = vld [vmem:[#allocation2 + $0x1310] sm:$0xff]
    %v845 = vld [vmem:[#allocation2 + $0x1318] sm:$0xff]
    %v846 = vld [vmem:[#allocation2 + $0x1320] sm:$0xff]
    %v847 = vld [vmem:[#allocation2 + $0x1328] sm:$0xff]
    %v848 = vld [vmem:[#allocation2 + $0x1330] sm:$0xff]
    %v849 = vld [vmem:[#allocation2 + $0x1338] sm:$0xff]
    %v850 = vld [vmem:[#allocation2 + $0x1340] sm:$0xff]
    %v851 = vld [vmem:[#allocation2 + $0x1348] sm:$0xff]
    %v852 = vld [vmem:[#allocation2 + $0x1350] sm:$0xff]
    %v853 = vld [vmem:[#allocation2 + $0x1358] sm:$0xff]
    %v854 = vld [vmem:[#allocation2 + $0x1360] sm:$0xff]
    %v855 = vld [vmem:[#allocation2 + $0x1368] sm:$0xff]
    %v856 = vld [vmem:[#allocation2 + $0x1370] sm:$0xff]
    %v857 = vld [vmem:[#allocation2 + $0x1378] sm:$0xff]
    %v858 = vld [vmem:[#allocation2 + $0x1380] sm:$0xff]
    %v859 = vld [vmem:[#allocation2 + $0x1388] sm:$0xff]
    %v860 = vld [vmem:[#allocation2 + $0x1390] sm:$0xff]
    %v861 = vld [vmem:[#allocation2 + $0x1398] sm:$0xff]
    %v862 = vld [vmem:[#allocation2 + $0x13a0] sm:$0xff]
    %v863 = vld [vmem:[#allocation2 + $0x13a8] sm:$0xff]
    %v864 = vld [vmem:[#allocation2 + $0x13b0] sm:$0xff]
    %v865 = vld [vmem:[#allocation2 + $0x13b8] sm:$0xff]
    %v866 = vld [vmem:[#allocation2 + $0x13c0] sm:$0xff]
    %v867 = vld [vmem:[#allocation2 + $0x13c8] sm:$0xff]
    %v868 = vld [vmem:[#allocation2 + $0x13d0] sm:$0xff]
    %v869 = vld [vmem:[#allocation2 + $0x13d8] sm:$0xff]
    %v870 = vld [vmem:[#allocation2 + $0x13e0] sm:$0xff]
    %v871 = vld [vmem:[#allocation2 + $0x13e8] sm:$0xff]
    %v872 = vld [vmem:[#allocation2 + $0x13f0] sm:$0xff]
    %v873 = vld [vmem:[#allocation2 + $0x13f8] sm:$0xff]
    %v874 = vld [vmem:[#allocation2 + $0x1400] sm:$0xff]
    %v875 = vld [vmem:[#allocation2 + $0x1408] sm:$0xff]
    %v876 = vld [vmem:[#allocation2 + $0x1410] sm:$0xff]
    %v877 = vld [vmem:[#allocation2 + $0x1418] sm:$0xff]
    %v878 = vld [vmem:[#allocation2 + $0x1420] sm:$0xff]
    %v879 = vld [vmem:[#allocation2 + $0x1428] sm:$0xff]
    %v880 = vld [vmem:[#allocation2 + $0x1430] sm:$0xff]
    %v881 = vld [vmem:[#allocation2 + $0x1438] sm:$0xff]
    %v882 = vld [vmem:[#allocation2 + $0x1440] sm:$0xff]
    %v883 = vld [vmem:[#allocation2 + $0x1448] sm:$0xff]
    %v884 = vld [vmem:[#allocation2 + $0x1450] sm:$0xff]
    %v885 = vld [vmem:[#allocation2 + $0x1458] sm:$0xff]
    %v886 = vld [vmem:[#allocation2 + $0x1460] sm:$0xff]
    %v887 = vld [vmem:[#allocation2 + $0x1468] sm:$0xff]
    %v888 = vld [vmem:[#allocation2 + $0x1470] sm:$0xff]
    %v889 = vld [vmem:[#allocation2 + $0x1478] sm:$0xff]
    %v890 = vld [vmem:[#allocation2 + $0x1480] sm:$0xff]
    %v891 = vld [vmem:[#allocation2 + $0x1488] sm:$0xff]
    %v892 = vld [vmem:[#allocation2 + $0x1490] sm:$0xff]
    %v893 = vld [vmem:[#allocation2 + $0x1498] sm:$0xff]
    %v894 = vld [vmem:[#allocation2 + $0x14a0] sm:$0xff]
    %v895 = vld [vmem:[#allocation2 + $0x14a8] sm:$0xff]
    %v896 = vld [vmem:[#allocation2 + $0x14b0] sm:$0xff]
    %v897 = vld [vmem:[#allocation2 + $0x14b8] sm:$0xff]
    %v898 = vld [vmem:[#allocation2 + $0x14c0] sm:$0xff]
    %v899 = vld [vmem:[#allocation2 + $0x14c8] sm:$0xff]
    %v900 = vld [vmem:[#allocation2 + $0x14d0] sm:$0xff]
    %v901 = vld [vmem:[#allocation2 + $0x14d8] sm:$0xff]
    %v902 = vld [vmem:[#allocation2 + $0x14e0] sm:$0xff]
    %v903 = vld [vmem:[#allocation2 + $0x14e8] sm:$0xff]
    %v904 = vld [vmem:[#allocation2 + $0x14f0] sm:$0xff]
    %v905 = vld [vmem:[#allocation2 + $0x14f8] sm:$0xff]
    %v906 = vld [vmem:[#allocation2 + $0x1500] sm:$0xff]
    %v907 = vld [vmem:[#allocation2 + $0x1508] sm:$0xff]
    %v908 = vld [vmem:[#allocation2 + $0x1510] sm:$0xff]
    %v909 = vld [vmem:[#allocation2 + $0x1518] sm:$0xff]
    %v910 = vld [vmem:[#allocation2 + $0x1520] sm:$0xff]
    %v911 = vld [vmem:[#allocation2 + $0x1528] sm:$0xff]
    %v912 = vld [vmem:[#allocation2 + $0x1530] sm:$0xff]
    %v913 = vld [vmem:[#allocation2 + $0x1538] sm:$0xff]
    %v914 = vld [vmem:[#allocation2 + $0x1540] sm:$0xff]
    %v915 = vld [vmem:[#allocation2 + $0x1548] sm:$0xff]
    %v916 = vld [vmem:[#allocation2 + $0x1550] sm:$0xff]
    %v917 = vld [vmem:[#allocation2 + $0x1558] sm:$0xff]
    %v918 = vld [vmem:[#allocation2 + $0x1560] sm:$0xff]
    %v919 = vld [vmem:[#allocation2 + $0x1568] sm:$0xff]
    %v920 = vld [vmem:[#allocation2 + $0x1570] sm:$0xff]
    %v921 = vld [vmem:[#allocation2 + $0x1578] sm:$0xff]
    %v922 = vld [vmem:[#allocation2 + $0x1580] sm:$0xff]
    %v923 = vld [vmem:[#allocation2 + $0x1588] sm:$0xff]
    %v924 = vld [vmem:[#allocation2 + $0x1590] sm:$0xff]
    %v925 = vld [vmem:[#allocation2 + $0x1598] sm:$0xff]
    %v926 = vld [vmem:[#allocation2 + $0x15a0] sm:$0xff]
    %v927 = vld [vmem:[#allocation2 + $0x15a8] sm:$0xff]
    %v928 = vld [vmem:[#allocation2 + $0x15b0] sm:$0xff]
    %v929 = vld [vmem:[#allocation2 + $0x15b8] sm:$0xff]
    %v930 = vld [vmem:[#allocation2 + $0x15c0] sm:$0xff]
    %v931 = vld [vmem:[#allocation2 + $0x15c8] sm:$0xff]
    %v932 = vld [vmem:[#allocation2 + $0x15d0] sm:$0xff]
    %v933 = vld [vmem:[#allocation2 + $0x15d8] sm:$0xff]
    %v934 = vld [vmem:[#allocation2 + $0x15e0] sm:$0xff]
    %v935 = vld [vmem:[#allocation2 + $0x15e8] sm:$0xff]
    %v936 = vld [vmem:[#allocation2 + $0x15f0] sm:$0xff]
    %v937 = vld [vmem:[#allocation2 + $0x15f8] sm:$0xff]
    %v938 = vld [vmem:[#allocation2 + $0x1600] sm:$0xff]
    %v939 = vld [vmem:[#allocation2 + $0x1608] sm:$0xff]
    %v940 = vld [vmem:[#allocation2 + $0x1610] sm:$0xff]
    %v941 = vld [vmem:[#allocation2 + $0x1618] sm:$0xff]
    %v942 = vld [vmem:[#allocation2 + $0x1620] sm:$0xff]
    %v943 = vld [vmem:[#allocation2 + $0x1628] sm:$0xff]
    %v944 = vld [vmem:[#allocation2 + $0x1630] sm:$0xff]
    %v945 = vld [vmem:[#allocation2 + $0x1638] sm:$0xff]
    %v946 = vld [vmem:[#allocation2 + $0x1640] sm:$0xff]
    %v947 = vld [vmem:[#allocation2 + $0x1648] sm:$0xff]
    %v948 = vld [vmem:[#allocation2 + $0x1650] sm:$0xff]
    %v949 = vld [vmem:[#allocation2 + $0x1658] sm:$0xff]
    %v950 = vld [vmem:[#allocation2 + $0x1660] sm:$0xff]
    %v951 = vld [vmem:[#allocation2 + $0x1668] sm:$0xff]
    %v952 = vld [vmem:[#allocation2 + $0x1670] sm:$0xff]
    %v953 = vld [vmem:[#allocation2 + $0x1678] sm:$0xff]
    %v954 = vld [vmem:[#allocation2 + $0x1680] sm:$0xff]
    %v955 = vld [vmem:[#allocation2 + $0x1688] sm:$0xff]
    %v956 = vld [vmem:[#allocation2 + $0x1690] sm:$0xff]
    %v957 = vld [vmem:[#allocation2 + $0x1698] sm:$0xff]
    %v958 = vld [vmem:[#allocation2 + $0x16a0] sm:$0xff]
    %v959 = vld [vmem:[#allocation2 + $0x16a8] sm:$0xff]
    %v960 = vld [vmem:[#allocation2 + $0x16b0] sm:$0xff]
    %v961 = vld [vmem:[#allocation2 + $0x16b8] sm:$0xff]
    %v962 = vld [vmem:[#allocation2 + $0x16c0] sm:$0xff]
    %v963 = vld [vmem:[#allocation2 + $0x16c8] sm:$0xff]
    %v964 = vld [vmem:[#allocation2 + $0x16d0] sm:$0xff]
    %v965 = vld [vmem:[#allocation2 + $0x16d8] sm:$0xff]
    %v966 = vld [vmem:[#allocation2 + $0x16e0] sm:$0xff]
    %v967 = vld [vmem:[#allocation2 + $0x16e8] sm:$0xff]
    %v968 = vld [vmem:[#allocation2 + $0x16f0] sm:$0xff]
    %v969 = vld [vmem:[#allocation2 + $0x16f8] sm:$0xff]
    %v970 = vld [vmem:[#allocation2 + $0x1700] sm:$0xff]
    %v971 = vld [vmem:[#allocation2 + $0x1708] sm:$0xff]
    %v972 = vld [vmem:[#allocation2 + $0x1710] sm:$0xff]
    %v973 = vld [vmem:[#allocation2 + $0x1718] sm:$0xff]
    %v974 = vld [vmem:[#allocation2 + $0x1720] sm:$0xff]
    %v975 = vld [vmem:[#allocation2 + $0x1728] sm:$0xff]
    %v976 = vld [vmem:[#allocation2 + $0x1730] sm:$0xff]
    %v977 = vld [vmem:[#allocation2 + $0x1738] sm:$0xff]
    %v978 = vld [vmem:[#allocation2 + $0x1740] sm:$0xff]
    %v979 = vld [vmem:[#allocation2 + $0x1748] sm:$0xff]
    %v980 = vld [vmem:[#allocation2 + $0x1750] sm:$0xff]
    %v981 = vld [vmem:[#allocation2 + $0x1758] sm:$0xff]
    %v982 = vld [vmem:[#allocation2 + $0x1760] sm:$0xff]
    %v983 = vld [vmem:[#allocation2 + $0x1768] sm:$0xff]
    %v984 = vld [vmem:[#allocation2 + $0x1770] sm:$0xff]
    %v985 = vld [vmem:[#allocation2 + $0x1778] sm:$0xff]
    %v986 = vld [vmem:[#allocation2 + $0x1780] sm:$0xff]
    %v987 = vld [vmem:[#allocation2 + $0x1788] sm:$0xff]
    %v988 = vld [vmem:[#allocation2 + $0x1790] sm:$0xff]
    %v989 = vld [vmem:[#allocation2 + $0x1798] sm:$0xff]
    %v990 = vld [vmem:[#allocation2 + $0x17a0] sm:$0xff]
    %v991 = vld [vmem:[#allocation2 + $0x17a8] sm:$0xff]
    %v992 = vld [vmem:[#allocation2 + $0x17b0] sm:$0xff]
    %v993 = vld [vmem:[#allocation2 + $0x17b8] sm:$0xff]
    %v994 = vld [vmem:[#allocation2 + $0x17c0] sm:$0xff]
    %v995 = vld [vmem:[#allocation2 + $0x17c8] sm:$0xff]
    %v996 = vld [vmem:[#allocation2 + $0x17d0] sm:$0xff]
    %v997 = vld [vmem:[#allocation2 + $0x17d8] sm:$0xff]
    %v998 = vld [vmem:[#allocation2 + $0x17e0] sm:$0xff]
    %v999 = vld [vmem:[#allocation2 + $0x17e8] sm:$0xff]
    %v1000 = vld [vmem:[#allocation2 + $0x17f0] sm:$0xff]
    %v1001 = vld [vmem:[#allocation2 + $0x17f8] sm:$0xff]
    %v1002 = vld [vmem:[#allocation2 + $0x1800] sm:$0xff]
    %v1003 = vld [vmem:[#allocation2 + $0x1808] sm:$0xff]
    %v1004 = vld [vmem:[#allocation2 + $0x1810] sm:$0xff]
    %v1005 = vld [vmem:[#allocation2 + $0x1818] sm:$0xff]
    %v1006 = vld [vmem:[#allocation2 + $0x1820] sm:$0xff]
    %v1007 = vld [vmem:[#allocation2 + $0x1828] sm:$0xff]
    %v1008 = vld [vmem:[#allocation2 + $0x1830] sm:$0xff]
    %v1009 = vld [vmem:[#allocation2 + $0x1838] sm:$0xff]
    %v1010 = vld [vmem:[#allocation2 + $0x1840] sm:$0xff]
    %v1011 = vld [vmem:[#allocation2 + $0x1848] sm:$0xff]
    %v1012 = vld [vmem:[#allocation2 + $0x1850] sm:$0xff]
    %v1013 = vld [vmem:[#allocation2 + $0x1858] sm:$0xff]
    %v1014 = vld [vmem:[#allocation2 + $0x1860] sm:$0xff]
    %v1015 = vld [vmem:[#allocation2 + $0x1868] sm:$0xff]
    %v1016 = vld [vmem:[#allocation2 + $0x1870] sm:$0xff]
    %v1017 = vld [vmem:[#allocation2 + $0x1878] sm:$0xff]
    %v1018 = vld [vmem:[#allocation2 + $0x1880] sm:$0xff]
    %v1019 = vld [vmem:[#allocation2 + $0x1888] sm:$0xff]
    %v1020 = vld [vmem:[#allocation2 + $0x1890] sm:$0xff]
    %v1021 = vld [vmem:[#allocation2 + $0x1898] sm:$0xff]
    %v1022 = vld [vmem:[#allocation2 + $0x18a0] sm:$0xff]
    %v1023 = vld [vmem:[#allocation2 + $0x18a8] sm:$0xff]
    %v1024 = vld [vmem:[#allocation2 + $0x18b0] sm:$0xff]
    %v1025 = vld [vmem:[#allocation2 + $0x18b8] sm:$0xff]
    %v1026 = vld [vmem:[#allocation2 + $0x18c0] sm:$0xff]
    %v1027 = vld [vmem:[#allocation2 + $0x18c8] sm:$0xff]
    %v1028 = vld [vmem:[#allocation2 + $0x18d0] sm:$0xff]
    %v1029 = vld [vmem:[#allocation2 + $0x18d8] sm:$0xff]
    %v1030 = vld [vmem:[#allocation2 + $0x18e0] sm:$0xff]
    %v1031 = vld [vmem:[#allocation2 + $0x18e8] sm:$0xff]
    %v1032 = vld [vmem:[#allocation2 + $0x18f0] sm:$0xff]
    %v1033 = vld [vmem:[#allocation2 + $0x18f8] sm:$0xff]
    %v1034 = vld [vmem:[#allocation2 + $0x1900] sm:$0xff]
    %v1035 = vld [vmem:[#allocation2 + $0x1908] sm:$0xff]
    %v1036 = vld [vmem:[#allocation2 + $0x1910] sm:$0xff]
    %v1037 = vld [vmem:[#allocation2 + $0x1918] sm:$0xff]
    %v1038 = vld [vmem:[#allocation2 + $0x1920] sm:$0xff]
    %v1039 = vld [vmem:[#allocation2 + $0x1928] sm:$0xff]
    %v1040 = vld [vmem:[#allocation2 + $0x1930] sm:$0xff]
    %v1041 = vld [vmem:[#allocation2 + $0x1938] sm:$0xff]
    %v1042 = vld [vmem:[#allocation2 + $0x1940] sm:$0xff]
    %v1043 = vld [vmem:[#allocation2 + $0x1948] sm:$0xff]
    %v1044 = vld [vmem:[#allocation2 + $0x1950] sm:$0xff]
    %v1045 = vld [vmem:[#allocation2 + $0x1958] sm:$0xff]
    %v1046 = vld [vmem:[#allocation2 + $0x1960] sm:$0xff]
    %v1047 = vld [vmem:[#allocation2 + $0x1968] sm:$0xff]
    %v1048 = vld [vmem:[#allocation2 + $0x1970] sm:$0xff]
    %v1049 = vld [vmem:[#allocation2 + $0x1978] sm:$0xff]
    %v1050 = vld [vmem:[#allocation2 + $0x1980] sm:$0xff]
    %v1051 = vld [vmem:[#allocation2 + $0x1988] sm:$0xff]
    %v1052 = vld [vmem:[#allocation2 + $0x1990] sm:$0xff]
    %v1053 = vld [vmem:[#allocation2 + $0x1998] sm:$0xff]
    %v1054 = vld [vmem:[#allocation2 + $0x19a0] sm:$0xff]
    %v1055 = vld [vmem:[#allocation2 + $0x19a8] sm:$0xff]
    %v1056 = vld [vmem:[#allocation2 + $0x19b0] sm:$0xff]
    %v1057 = vld [vmem:[#allocation2 + $0x19b8] sm:$0xff]
    %v1058 = vld [vmem:[#allocation2 + $0x19c0] sm:$0xff]
    %v1059 = vld [vmem:[#allocation2 + $0x19c8] sm:$0xff]
    %v1060 = vld [vmem:[#allocation2 + $0x19d0] sm:$0xff]
    %v1061 = vld [vmem:[#allocation2 + $0x19d8] sm:$0xff]
    %v1062 = vld [vmem:[#allocation2 + $0x19e0] sm:$0xff]
    %v1063 = vld [vmem:[#allocation2 + $0x19e8] sm:$0xff]
    %v1064 = vld [vmem:[#allocation2 + $0x19f0] sm:$0xff]
    %v1065 = vld [vmem:[#allocation2 + $0x19f8] sm:$0xff]
    %v1066 = vld [vmem:[#allocation2 + $0x1a00] sm:$0xff]
    %v1067 = vld [vmem:[#allocation2 + $0x1a08] sm:$0xff]
    %v1068 = vld [vmem:[#allocation2 + $0x1a10] sm:$0xff]
    %v1069 = vld [vmem:[#allocation2 + $0x1a18] sm:$0xff]
    %v1070 = vld [vmem:[#allocation2 + $0x1a20] sm:$0xff]
    %v1071 = vld [vmem:[#allocation2 + $0x1a28] sm:$0xff]
    %v1072 = vld [vmem:[#allocation2 + $0x1a30] sm:$0xff]
    %v1073 = vld [vmem:[#allocation2 + $0x1a38] sm:$0xff]
    %v1074 = vld [vmem:[#allocation2 + $0x1a40] sm:$0xff]
    %v1075 = vld [vmem:[#allocation2 + $0x1a48] sm:$0xff]
    %v1076 = vld [vmem:[#allocation2 + $0x1a50] sm:$0xff]
    %v1077 = vld [vmem:[#allocation2 + $0x1a58] sm:$0xff]
    %v1078 = vld [vmem:[#allocation2 + $0x1a60] sm:$0xff]
    %v1079 = vld [vmem:[#allocation2 + $0x1a68] sm:$0xff]
    %v1080 = vld [vmem:[#allocation2 + $0x1a70] sm:$0xff]
    %v1081 = vld [vmem:[#allocation2 + $0x1a78] sm:$0xff]
    %v1082 = vld [vmem:[#allocation2 + $0x1a80] sm:$0xff]
    %v1083 = vld [vmem:[#allocation2 + $0x1a88] sm:$0xff]
    %v1084 = vld [vmem:[#allocation2 + $0x1a90] sm:$0xff]
    %v1085 = vld [vmem:[#allocation2 + $0x1a98] sm:$0xff]
    %v1086 = vld [vmem:[#allocation2 + $0x1aa0] sm:$0xff]
    %v1087 = vld [vmem:[#allocation2 + $0x1aa8] sm:$0xff]
    %v1088 = vld [vmem:[#allocation2 + $0x1ab0] sm:$0xff]
    %v1089 = vld [vmem:[#allocation2 + $0x1ab8] sm:$0xff]
    %v1090 = vld [vmem:[#allocation2 + $0x1ac0] sm:$0xff]
    %v1091 = vld [vmem:[#allocation2 + $0x1ac8] sm:$0xff]
    %v1092 = vld [vmem:[#allocation2 + $0x1ad0] sm:$0xff]
    %v1093 = vld [vmem:[#allocation2 + $0x1ad8] sm:$0xff]
    %v1094 = vld [vmem:[#allocation2 + $0x1ae0] sm:$0xff]
    %v1095 = vld [vmem:[#allocation2 + $0x1ae8] sm:$0xff]
    %v1096 = vld [vmem:[#allocation2 + $0x1af0] sm:$0xff]
    %v1097 = vld [vmem:[#allocation2 + $0x1af8] sm:$0xff]
    %v1098 = vld [vmem:[#allocation2 + $0x1b00] sm:$0xff]
    %v1099 = vld [vmem:[#allocation2 + $0x1b08] sm:$0xff]
    %v1100 = vld [vmem:[#allocation2 + $0x1b10] sm:$0xff]
    %v1101 = vld [vmem:[#allocation2 + $0x1b18] sm:$0xff]
    %v1102 = vld [vmem:[#allocation2 + $0x1b20] sm:$0xff]
    %v1103 = vld [vmem:[#allocation2 + $0x1b28] sm:$0xff]
    %v1104 = vld [vmem:[#allocation2 + $0x1b30] sm:$0xff]
    %v1105 = vld [vmem:[#allocation2 + $0x1b38] sm:$0xff]
    %v1106 = vld [vmem:[#allocation2 + $0x1b40] sm:$0xff]
    %v1107 = vld [vmem:[#allocation2 + $0x1b48] sm:$0xff]
    %v1108 = vld [vmem:[#allocation2 + $0x1b50] sm:$0xff]
    %v1109 = vld [vmem:[#allocation2 + $0x1b58] sm:$0xff]
    %v1110 = vld [vmem:[#allocation2 + $0x1b60] sm:$0xff]
    %v1111 = vld [vmem:[#allocation2 + $0x1b68] sm:$0xff]
    %v1112 = vld [vmem:[#allocation2 + $0x1b70] sm:$0xff]
    %v1113 = vld [vmem:[#allocation2 + $0x1b78] sm:$0xff]
    %v1114 = vld [vmem:[#allocation2 + $0x1b80] sm:$0xff]
    %v1115 = vld [vmem:[#allocation2 + $0x1b88] sm:$0xff]
    %v1116 = vld [vmem:[#allocation2 + $0x1b90] sm:$0xff]
    %v1117 = vld [vmem:[#allocation2 + $0x1b98] sm:$0xff]
    %v1118 = vld [vmem:[#allocation2 + $0x1ba0] sm:$0xff]
    %v1119 = vld [vmem:[#allocation2 + $0x1ba8] sm:$0xff]
    %v1120 = vld [vmem:[#allocation2 + $0x1bb0] sm:$0xff]
    %v1121 = vld [vmem:[#allocation2 + $0x1bb8] sm:$0xff]
    %v1122 = vld [vmem:[#allocation2 + $0x1bc0] sm:$0xff]
    %v1123 = vld [vmem:[#allocation2 + $0x1bc8] sm:$0xff]
    %v1124 = vld [vmem:[#allocation2 + $0x1bd0] sm:$0xff]
    %v1125 = vld [vmem:[#allocation2 + $0x1bd8] sm:$0xff]
    %v1126 = vld [vmem:[#allocation2 + $0x1be0] sm:$0xff]
    %v1127 = vld [vmem:[#allocation2 + $0x1be8] sm:$0xff]
    %v1128 = vld [vmem:[#allocation2 + $0x1bf0] sm:$0xff]
    %v1129 = vld [vmem:[#allocation2 + $0x1bf8] sm:$0xff]
    %v1130 = vld [vmem:[#allocation2 + $0x1c00] sm:$0xff]
    %v1131 = vld [vmem:[#allocation2 + $0x1c08] sm:$0xff]
    %v1132 = vld [vmem:[#allocation2 + $0x1c10] sm:$0xff]
    %v1133 = vld [vmem:[#allocation2 + $0x1c18] sm:$0xff]
    %v1134 = vld [vmem:[#allocation2 + $0x1c20] sm:$0xff]
    %v1135 = vld [vmem:[#allocation2 + $0x1c28] sm:$0xff]
    %v1136 = vld [vmem:[#allocation2 + $0x1c30] sm:$0xff]
    %v1137 = vld [vmem:[#allocation2 + $0x1c38] sm:$0xff]
    %v1138 = vld [vmem:[#allocation2 + $0x1c40] sm:$0xff]
    %v1139 = vld [vmem:[#allocation2 + $0x1c48] sm:$0xff]
    %v1140 = vld [vmem:[#allocation2 + $0x1c50] sm:$0xff]
    %v1141 = vld [vmem:[#allocation2 + $0x1c58] sm:$0xff]
    %v1142 = vld [vmem:[#allocation2 + $0x1c60] sm:$0xff]
    %v1143 = vld [vmem:[#allocation2 + $0x1c68] sm:$0xff]
    %v1144 = vld [vmem:[#allocation2 + $0x1c70] sm:$0xff]
    %v1145 = vld [vmem:[#allocation2 + $0x1c78] sm:$0xff]
    %v1146 = vld [vmem:[#allocation2 + $0x1c80] sm:$0xff]
    %v1147 = vld [vmem:[#allocation2 + $0x1c88] sm:$0xff]
    %v1148 = vld [vmem:[#allocation2 + $0x1c90] sm:$0xff]
    %v1149 = vld [vmem:[#allocation2 + $0x1c98] sm:$0xff]
    %v1150 = vld [vmem:[#allocation2 + $0x1ca0] sm:$0xff]
    %v1151 = vld [vmem:[#allocation2 + $0x1ca8] sm:$0xff]
    %v1152 = vld [vmem:[#allocation2 + $0x1cb0] sm:$0xff]
    %v1153 = vld [vmem:[#allocation2 + $0x1cb8] sm:$0xff]
    %v1154 = vld [vmem:[#allocation2 + $0x1cc0] sm:$0xff]
    %v1155 = vld [vmem:[#allocation2 + $0x1cc8] sm:$0xff]
    %v1156 = vld [vmem:[#allocation2 + $0x1cd0] sm:$0xff]
    %v1157 = vld [vmem:[#allocation2 + $0x1cd8] sm:$0xff]
    %v1158 = vld [vmem:[#allocation2 + $0x1ce0] sm:$0xff]
    %v1159 = vld [vmem:[#allocation2 + $0x1ce8] sm:$0xff]
    %v1160 = vld [vmem:[#allocation2 + $0x1cf0] sm:$0xff]
    %v1161 = vld [vmem:[#allocation2 + $0x1cf8] sm:$0xff]
    %v1162 = vld [vmem:[#allocation2 + $0x1d00] sm:$0xff]
    %v1163 = vld [vmem:[#allocation2 + $0x1d08] sm:$0xff]
    %v1164 = vld [vmem:[#allocation2 + $0x1d10] sm:$0xff]
    %v1165 = vld [vmem:[#allocation2 + $0x1d18] sm:$0xff]
    %v1166 = vld [vmem:[#allocation2 + $0x1d20] sm:$0xff]
    %v1167 = vld [vmem:[#allocation2 + $0x1d28] sm:$0xff]
    %v1168 = vld [vmem:[#allocation2 + $0x1d30] sm:$0xff]
    %v1169 = vld [vmem:[#allocation2 + $0x1d38] sm:$0xff]
    %v1170 = vld [vmem:[#allocation2 + $0x1d40] sm:$0xff]
    %v1171 = vld [vmem:[#allocation2 + $0x1d48] sm:$0xff]
    %v1172 = vld [vmem:[#allocation2 + $0x1d50] sm:$0xff]
    %v1173 = vld [vmem:[#allocation2 + $0x1d58] sm:$0xff]
    %v1174 = vld [vmem:[#allocation2 + $0x1d60] sm:$0xff]
    %v1175 = vld [vmem:[#allocation2 + $0x1d68] sm:$0xff]
    %v1176 = vld [vmem:[#allocation2 + $0x1d70] sm:$0xff]
    %v1177 = vld [vmem:[#allocation2 + $0x1d78] sm:$0xff]
    %v1178 = vld [vmem:[#allocation2 + $0x1d80] sm:$0xff]
    %v1179 = vld [vmem:[#allocation2 + $0x1d88] sm:$0xff]
    %v1180 = vld [vmem:[#allocation2 + $0x1d90] sm:$0xff]
    %v1181 = vld [vmem:[#allocation2 + $0x1d98] sm:$0xff]
    %v1182 = vld [vmem:[#allocation2 + $0x1da0] sm:$0xff]
    %v1183 = vld [vmem:[#allocation2 + $0x1da8] sm:$0xff]
    %v1184 = vld [vmem:[#allocation2 + $0x1db0] sm:$0xff]
    %v1185 = vld [vmem:[#allocation2 + $0x1db8] sm:$0xff]
    %v1186 = vld [vmem:[#allocation2 + $0x1dc0] sm:$0xff]
    %v1187 = vld [vmem:[#allocation2 + $0x1dc8] sm:$0xff]
    %v1188 = vld [vmem:[#allocation2 + $0x1dd0] sm:$0xff]
    %v1189 = vld [vmem:[#allocation2 + $0x1dd8] sm:$0xff]
    %v1190 = vld [vmem:[#allocation2 + $0x1de0] sm:$0xff]
    %v1191 = vld [vmem:[#allocation2 + $0x1de8] sm:$0xff]
    %v1192 = vld [vmem:[#allocation2 + $0x1df0] sm:$0xff]
    %v1193 = vld [vmem:[#allocation2 + $0x1df8] sm:$0xff]
    %v1194 = vld [vmem:[#allocation2 + $0x1e00] sm:$0xff]
    %v1195 = vld [vmem:[#allocation2 + $0x1e08] sm:$0xff]
    %v1196 = vld [vmem:[#allocation2 + $0x1e10] sm:$0xff]
    %v1197 = vld [vmem:[#allocation2 + $0x1e18] sm:$0xff]
    %v1198 = vld [vmem:[#allocation2 + $0x1e20] sm:$0xff]
    %v1199 = vld [vmem:[#allocation2 + $0x1e28] sm:$0xff]
    %v1200 = vld [vmem:[#allocation2 + $0x1e30] sm:$0xff]
    %v1201 = vld [vmem:[#allocation2 + $0x1e38] sm:$0xff]
    %v1202 = vld [vmem:[#allocation2 + $0x1e40] sm:$0xff]
    %v1203 = vld [vmem:[#allocation2 + $0x1e48] sm:$0xff]
    %v1204 = vld [vmem:[#allocation2 + $0x1e50] sm:$0xff]
    %v1205 = vld [vmem:[#allocation2 + $0x1e58] sm:$0xff]
    %v1206 = vld [vmem:[#allocation2 + $0x1e60] sm:$0xff]
    %v1207 = vld [vmem:[#allocation2 + $0x1e68] sm:$0xff]
    %v1208 = vld [vmem:[#allocation2 + $0x1e70] sm:$0xff]
    %v1209 = vld [vmem:[#allocation2 + $0x1e78] sm:$0xff]
    %v1210 = vld [vmem:[#allocation2 + $0x1e80] sm:$0xff]
    %v1211 = vld [vmem:[#allocation2 + $0x1e88] sm:$0xff]
    %v1212 = vld [vmem:[#allocation2 + $0x1e90] sm:$0xff]
    %v1213 = vld [vmem:[#allocation2 + $0x1e98] sm:$0xff]
    %v1214 = vld [vmem:[#allocation2 + $0x1ea0] sm:$0xff]
    %v1215 = vld [vmem:[#allocation2 + $0x1ea8] sm:$0xff]
    %v1216 = vld [vmem:[#allocation2 + $0x1eb0] sm:$0xff]
    %v1217 = vld [vmem:[#allocation2 + $0x1eb8] sm:$0xff]
    %v1218 = vld [vmem:[#allocation2 + $0x1ec0] sm:$0xff]
    %v1219 = vld [vmem:[#allocation2 + $0x1ec8] sm:$0xff]
    %v1220 = vld [vmem:[#allocation2 + $0x1ed0] sm:$0xff]
    %v1221 = vld [vmem:[#allocation2 + $0x1ed8] sm:$0xff]
    %v1222 = vld [vmem:[#allocation2 + $0x1ee0] sm:$0xff]
    %v1223 = vld [vmem:[#allocation2 + $0x1ee8] sm:$0xff]
    %v1224 = vld [vmem:[#allocation2 + $0x1ef0] sm:$0xff]
    %v1225 = vld [vmem:[#allocation2 + $0x1ef8] sm:$0xff]
    %v1226 = vld [vmem:[#allocation2 + $0x1f00] sm:$0xff]
    %v1227 = vld [vmem:[#allocation2 + $0x1f08] sm:$0xff]
    %v1228 = vld [vmem:[#allocation2 + $0x1f10] sm:$0xff]
    %v1229 = vld [vmem:[#allocation2 + $0x1f18] sm:$0xff]
    %v1230 = vld [vmem:[#allocation2 + $0x1f20] sm:$0xff]
    %v1231 = vld [vmem:[#allocation2 + $0x1f28] sm:$0xff]
    %v1232 = vld [vmem:[#allocation2 + $0x1f30] sm:$0xff]
    %v1233 = vld [vmem:[#allocation2 + $0x1f38] sm:$0xff]
    %v1234 = vld [vmem:[#allocation2 + $0x1f40] sm:$0xff]
    %v1235 = vld [vmem:[#allocation2 + $0x1f48] sm:$0xff]
    %v1236 = vld [vmem:[#allocation2 + $0x1f50] sm:$0xff]
    %v1237 = vld [vmem:[#allocation2 + $0x1f58] sm:$0xff]
    %v1238 = vld [vmem:[#allocation2 + $0x1f60] sm:$0xff]
    %v1239 = vld [vmem:[#allocation2 + $0x1f68] sm:$0xff]
    %v1240 = vld [vmem:[#allocation2 + $0x1f70] sm:$0xff]
    %v1241 = vld [vmem:[#allocation2 + $0x1f78] sm:$0xff]
    %v1242 = vld [vmem:[#allocation2 + $0x1f80] sm:$0xff]
    %v1243 = vld [vmem:[#allocation2 + $0x1f88] sm:$0xff]
    %v1244 = vld [vmem:[#allocation2 + $0x1f90] sm:$0xff]
    %v1245 = vld [vmem:[#allocation2 + $0x1f98] sm:$0xff]
    %v1246 = vld [vmem:[#allocation2 + $0x1fa0] sm:$0xff]
    %v1247 = vld [vmem:[#allocation2 + $0x1fa8] sm:$0xff]
    %v1248 = vld [vmem:[#allocation2 + $0x1fb0] sm:$0xff]
    %v1249 = vld [vmem:[#allocation2 + $0x1fb8] sm:$0xff]
    %v1250 = vld [vmem:[#allocation2 + $0x1fc0] sm:$0xff]
    %v1251 = vld [vmem:[#allocation2 + $0x1fc8] sm:$0xff]
    %v1252 = vld [vmem:[#allocation2 + $0x1fd0] sm:$0xff]
    %v1253 = vld [vmem:[#allocation2 + $0x1fd8] sm:$0xff]
    %v1254 = vld [vmem:[#allocation2 + $0x1fe0] sm:$0xff]
    %v1255 = vld [vmem:[#allocation2 + $0x1fe8] sm:$0xff]
    %v1256 = vld [vmem:[#allocation2 + $0x1ff0] sm:$0xff]
    %v1257 = vld [vmem:[#allocation2 + $0x1ff8] sm:$0xff]
    %v1258 = vld [vmem:[#allocation4] sm:$0xff]
    %v1259 = vld [vmem:[#allocation4 + $0x8] sm:$0xff]
    %v1262 = vlaneseq
    %v1263 = vshrl.u32 %v1262, 7
    %v1264 = vsub.s32 0, %v1263
    %v1265 = vrot.slane %v1258, %v1264
    %v1266 = vlaneseq
    %v1267 = vshrl.u32 %v1266, 7
    %v1268 = vsub.s32 1, %v1267
    %v1269 = vrot.slane %v1258, %v1268
    %v1270 = vlaneseq
    %v1271 = vshrl.u32 %v1270, 7
    %v1272 = vsub.s32 2, %v1271
    %v1273 = vrot.slane %v1258, %v1272
    %v1274 = vlaneseq
    %v1275 = vshrl.u32 %v1274, 7
    %v1276 = vsub.s32 3, %v1275
    %v1277 = vrot.slane %v1258, %v1276
    %v1278 = vlaneseq
    %v1279 = vshrl.u32 %v1278, 7
    %v1280 = vsub.s32 4, %v1279
    %v1281 = vrot.slane %v1258, %v1280
    %v1282 = vlaneseq
    %v1283 = vshrl.u32 %v1282, 7
    %v1284 = vsub.s32 5, %v1283
    %v1285 = vrot.slane %v1258, %v1284
    %v1286 = vlaneseq
    %v1287 = vshrl.u32 %v1286, 7
    %v1288 = vsub.s32 6, %v1287
    %v1289 = vrot.slane %v1258, %v1288
    %v1290 = vlaneseq
    %v1291 = vshrl.u32 %v1290, 7
    %v1292 = vsub.s32 7, %v1291
    %v1293 = vrot.slane %v1258, %v1292
    %v1294 = vlaneseq
    %v1295 = vshrl.u32 %v1294, 7
    %v1296 = vsub.s32 0, %v1295
    %v1297 = vrot.slane %v1259, %v1296
    %v1298 = vlaneseq
    %v1299 = vshrl.u32 %v1298, 7
    %v1300 = vsub.s32 1, %v1299
    %v1301 = vrot.slane %v1259, %v1300
    %v1302 = vlaneseq
    %v1303 = vshrl.u32 %v1302, 7
    %v1304 = vsub.s32 2, %v1303
    %v1305 = vrot.slane %v1259, %v1304
    %v1306 = vlaneseq
    %v1307 = vshrl.u32 %v1306, 7
    %v1308 = vsub.s32 3, %v1307
    %v1309 = vrot.slane %v1259, %v1308
    %v1310 = vlaneseq
    %v1311 = vshrl.u32 %v1310, 7
    %v1312 = vsub.s32 4, %v1311
    %v1313 = vrot.slane %v1259, %v1312
    %v1314 = vlaneseq
    %v1315 = vshrl.u32 %v1314, 7
    %v1316 = vsub.s32 5, %v1315
    %v1317 = vrot.slane %v1259, %v1316
    %v1318 = vlaneseq
    %v1319 = vshrl.u32 %v1318, 7
    %v1320 = vsub.s32 6, %v1319
    %v1321 = vrot.slane %v1259, %v1320
    %v1322 = vlaneseq
    %v1323 = vshrl.u32 %v1322, 7
    %v1324 = vsub.s32 7, %v1323
    %v1325 = vrot.slane %v1259, %v1324
    %v1346 = vunpack.c.l.b16 %v230
    %v1347 = vunpack.c.h.b16 %v230
    %v1348 = vunpack.c.l.b16 %v231
    %v1349 = vunpack.c.h.b16 %v231
    %v1350 = vunpack.c.l.b16 %v232
    %v1351 = vunpack.c.h.b16 %v232
    %v1352 = vunpack.c.l.b16 %v233
    %v1353 = vunpack.c.h.b16 %v233
    %v1354 = vpack.c.b16 %v1346, %v1346
    %v1355 = vpack.c.b16 %v1347, %v1347
    %v1356 = vpack.c.b16 %v1348, %v1348
    %v1357 = vpack.c.b16 %v1349, %v1349
    %v1358 = vpack.c.b16 %v1350, %v1350
    %v1359 = vpack.c.b16 %v1351, %v1351
    %v1360 = vpack.c.b16 %v1352, %v1352
    %v1361 = vpack.c.b16 %v1353, %v1353
    %v2394 = vunpack.c.l.b16 %v234
    %v2395 = vunpack.c.h.b16 %v234
    %v2396 = vunpack.c.l.b16 %v235
    %v2397 = vunpack.c.h.b16 %v235
    %v2398 = vunpack.c.l.b16 %v236
    %v2399 = vunpack.c.h.b16 %v236
    %v2400 = vunpack.c.l.b16 %v237
    %v2401 = vunpack.c.h.b16 %v237
    %v2402 = vunpack.c.l.b16 %v238
    %v2403 = vunpack.c.h.b16 %v238
    %v2404 = vunpack.c.l.b16 %v239
    %v2405 = vunpack.c.h.b16 %v239
    %v2406 = vunpack.c.l.b16 %v240
    %v2407 = vunpack.c.h.b16 %v240
    %v2408 = vunpack.c.l.b16 %v241
    %v2409 = vunpack.c.h.b16 %v241
    %v2410 = vunpack.c.l.b16 %v242
    %v2411 = vunpack.c.h.b16 %v242
    %v2412 = vunpack.c.l.b16 %v243
    %v2413 = vunpack.c.h.b16 %v243
    %v2414 = vunpack.c.l.b16 %v244
    %v2415 = vunpack.c.h.b16 %v244
    %v2416 = vunpack.c.l.b16 %v245
    %v2417 = vunpack.c.h.b16 %v245
    %v2418 = vunpack.c.l.b16 %v246
    %v2419 = vunpack.c.h.b16 %v246
    %v2420 = vunpack.c.l.b16 %v247
    %v2421 = vunpack.c.h.b16 %v247
    %v2422 = vunpack.c.l.b16 %v248
    %v2423 = vunpack.c.h.b16 %v248
    %v2424 = vunpack.c.l.b16 %v249
    %v2425 = vunpack.c.h.b16 %v249
    %v2426 = vunpack.c.l.b16 %v250
    %v2427 = vunpack.c.h.b16 %v250
    %v2428 = vunpack.c.l.b16 %v251
    %v2429 = vunpack.c.h.b16 %v251
    %v2430 = vunpack.c.l.b16 %v252
    %v2431 = vunpack.c.h.b16 %v252
    %v2432 = vunpack.c.l.b16 %v253
    %v2433 = vunpack.c.h.b16 %v253
    %v2434 = vunpack.c.l.b16 %v254
    %v2435 = vunpack.c.h.b16 %v254
    %v2436 = vunpack.c.l.b16 %v255
    %v2437 = vunpack.c.h.b16 %v255
    %v2438 = vunpack.c.l.b16 %v256
    %v2439 = vunpack.c.h.b16 %v256
    %v2440 = vunpack.c.l.b16 %v257
    %v2441 = vunpack.c.h.b16 %v257
    %v2442 = vunpack.c.l.b16 %v258
    %v2443 = vunpack.c.h.b16 %v258
    %v2444 = vunpack.c.l.b16 %v259
    %v2445 = vunpack.c.h.b16 %v259
    %v2446 = vunpack.c.l.b16 %v260
    %v2447 = vunpack.c.h.b16 %v260
    %v2448 = vunpack.c.l.b16 %v261
    %v2449 = vunpack.c.h.b16 %v261
    %v2450 = vunpack.c.l.b16 %v262
    %v2451 = vunpack.c.h.b16 %v262
    %v2452 = vunpack.c.l.b16 %v263
    %v2453 = vunpack.c.h.b16 %v263
    %v2454 = vunpack.c.l.b16 %v264
    %v2455 = vunpack.c.h.b16 %v264
    %v2456 = vunpack.c.l.b16 %v265
    %v2457 = vunpack.c.h.b16 %v265
    %v2458 = vunpack.c.l.b16 %v266
    %v2459 = vunpack.c.h.b16 %v266
    %v2460 = vunpack.c.l.b16 %v267
    %v2461 = vunpack.c.h.b16 %v267
    %v2462 = vunpack.c.l.b16 %v268
    %v2463 = vunpack.c.h.b16 %v268
    %v2464 = vunpack.c.l.b16 %v269
    %v2465 = vunpack.c.h.b16 %v269
    %v2466 = vunpack.c.l.b16 %v270
    %v2467 = vunpack.c.h.b16 %v270
    %v2468 = vunpack.c.l.b16 %v271
    %v2469 = vunpack.c.h.b16 %v271
    %v2470 = vunpack.c.l.b16 %v272
    %v2471 = vunpack.c.h.b16 %v272
    %v2472 = vunpack.c.l.b16 %v273
    %v2473 = vunpack.c.h.b16 %v273
    %v2474 = vunpack.c.l.b16 %v274
    %v2475 = vunpack.c.h.b16 %v274
    %v2476 = vunpack.c.l.b16 %v275
    %v2477 = vunpack.c.h.b16 %v275
    %v2478 = vunpack.c.l.b16 %v276
    %v2479 = vunpack.c.h.b16 %v276
    %v2480 = vunpack.c.l.b16 %v277
    %v2481 = vunpack.c.h.b16 %v277
    %v2482 = vunpack.c.l.b16 %v278
    %v2483 = vunpack.c.h.b16 %v278
    %v2484 = vunpack.c.l.b16 %v279
    %v2485 = vunpack.c.h.b16 %v279
    %v2486 = vunpack.c.l.b16 %v280
    %v2487 = vunpack.c.h.b16 %v280
    %v2488 = vunpack.c.l.b16 %v281
    %v2489 = vunpack.c.h.b16 %v281
    %v2490 = vunpack.c.l.b16 %v282
    %v2491 = vunpack.c.h.b16 %v282
    %v2492 = vunpack.c.l.b16 %v283
    %v2493 = vunpack.c.h.b16 %v283
    %v2494 = vunpack.c.l.b16 %v284
    %v2495 = vunpack.c.h.b16 %v284
    %v2496 = vunpack.c.l.b16 %v285
    %v2497 = vunpack.c.h.b16 %v285
    %v2498 = vunpack.c.l.b16 %v286
    %v2499 = vunpack.c.h.b16 %v286
    %v2500 = vunpack.c.l.b16 %v287
    %v2501 = vunpack.c.h.b16 %v287
    %v2502 = vunpack.c.l.b16 %v288
    %v2503 = vunpack.c.h.b16 %v288
    %v2504 = vunpack.c.l.b16 %v289
    %v2505 = vunpack.c.h.b16 %v289
    %v2506 = vunpack.c.l.b16 %v290
    %v2507 = vunpack.c.h.b16 %v290
    %v2508 = vunpack.c.l.b16 %v291
    %v2509 = vunpack.c.h.b16 %v291
    %v2510 = vunpack.c.l.b16 %v292
    %v2511 = vunpack.c.h.b16 %v292
    %v2512 = vunpack.c.l.b16 %v293
    %v2513 = vunpack.c.h.b16 %v293
    %v2514 = vunpack.c.l.b16 %v294
    %v2515 = vunpack.c.h.b16 %v294
    %v2516 = vunpack.c.l.b16 %v295
    %v2517 = vunpack.c.h.b16 %v295
    %v2518 = vunpack.c.l.b16 %v296
    %v2519 = vunpack.c.h.b16 %v296
    %v2520 = vunpack.c.l.b16 %v297
    %v2521 = vunpack.c.h.b16 %v297
    %v2522 = vunpack.c.l.b16 %v298
    %v2523 = vunpack.c.h.b16 %v298
    %v2524 = vunpack.c.l.b16 %v299
    %v2525 = vunpack.c.h.b16 %v299
    %v2526 = vunpack.c.l.b16 %v300
    %v2527 = vunpack.c.h.b16 %v300
    %v2528 = vunpack.c.l.b16 %v301
    %v2529 = vunpack.c.h.b16 %v301
    %v2530 = vunpack.c.l.b16 %v302
    %v2531 = vunpack.c.h.b16 %v302
    %v2532 = vunpack.c.l.b16 %v303
    %v2533 = vunpack.c.h.b16 %v303
    %v2534 = vunpack.c.l.b16 %v304
    %v2535 = vunpack.c.h.b16 %v304
    %v2536 = vunpack.c.l.b16 %v305
    %v2537 = vunpack.c.h.b16 %v305
    %v2538 = vunpack.c.l.b16 %v306
    %v2539 = vunpack.c.h.b16 %v306
    %v2540 = vunpack.c.l.b16 %v307
    %v2541 = vunpack.c.h.b16 %v307
    %v2542 = vunpack.c.l.b16 %v308
    %v2543 = vunpack.c.h.b16 %v308
    %v2544 = vunpack.c.l.b16 %v309
    %v2545 = vunpack.c.h.b16 %v309
    %v2546 = vunpack.c.l.b16 %v310
    %v2547 = vunpack.c.h.b16 %v310
    %v2548 = vunpack.c.l.b16 %v311
    %v2549 = vunpack.c.h.b16 %v311
    %v2550 = vunpack.c.l.b16 %v312
    %v2551 = vunpack.c.h.b16 %v312
    %v2552 = vunpack.c.l.b16 %v313
    %v2553 = vunpack.c.h.b16 %v313
    %v2554 = vunpack.c.l.b16 %v314
    %v2555 = vunpack.c.h.b16 %v314
    %v2556 = vunpack.c.l.b16 %v315
    %v2557 = vunpack.c.h.b16 %v315
    %v2558 = vunpack.c.l.b16 %v316
    %v2559 = vunpack.c.h.b16 %v316
    %v2560 = vunpack.c.l.b16 %v317
    %v2561 = vunpack.c.h.b16 %v317
    %v2562 = vunpack.c.l.b16 %v318
    %v2563 = vunpack.c.h.b16 %v318
    %v2564 = vunpack.c.l.b16 %v319
    %v2565 = vunpack.c.h.b16 %v319
    %v2566 = vunpack.c.l.b16 %v320
    %v2567 = vunpack.c.h.b16 %v320
    %v2568 = vunpack.c.l.b16 %v321
    %v2569 = vunpack.c.h.b16 %v321
    %v2570 = vunpack.c.l.b16 %v322
    %v2571 = vunpack.c.h.b16 %v322
    %v2572 = vunpack.c.l.b16 %v323
    %v2573 = vunpack.c.h.b16 %v323
    %v2574 = vunpack.c.l.b16 %v324
    %v2575 = vunpack.c.h.b16 %v324
    %v2576 = vunpack.c.l.b16 %v325
    %v2577 = vunpack.c.h.b16 %v325
    %v2578 = vunpack.c.l.b16 %v326
    %v2579 = vunpack.c.h.b16 %v326
    %v2580 = vunpack.c.l.b16 %v327
    %v2581 = vunpack.c.h.b16 %v327
    %v2582 = vunpack.c.l.b16 %v328
    %v2583 = vunpack.c.h.b16 %v328
    %v2584 = vunpack.c.l.b16 %v329
    %v2585 = vunpack.c.h.b16 %v329
    %v2586 = vunpack.c.l.b16 %v330
    %v2587 = vunpack.c.h.b16 %v330
    %v2588 = vunpack.c.l.b16 %v331
    %v2589 = vunpack.c.h.b16 %v331
    %v2590 = vunpack.c.l.b16 %v332
    %v2591 = vunpack.c.h.b16 %v332
    %v2592 = vunpack.c.l.b16 %v333
    %v2593 = vunpack.c.h.b16 %v333
    %v2594 = vunpack.c.l.b16 %v334
    %v2595 = vunpack.c.h.b16 %v334
    %v2596 = vunpack.c.l.b16 %v335
    %v2597 = vunpack.c.h.b16 %v335
    %v2598 = vunpack.c.l.b16 %v336
    %v2599 = vunpack.c.h.b16 %v336
    %v2600 = vunpack.c.l.b16 %v337
    %v2601 = vunpack.c.h.b16 %v337
    %v2602 = vunpack.c.l.b16 %v338
    %v2603 = vunpack.c.h.b16 %v338
    %v2604 = vunpack.c.l.b16 %v339
    %v2605 = vunpack.c.h.b16 %v339
    %v2606 = vunpack.c.l.b16 %v340
    %v2607 = vunpack.c.h.b16 %v340
    %v2608 = vunpack.c.l.b16 %v341
    %v2609 = vunpack.c.h.b16 %v341
    %v2610 = vunpack.c.l.b16 %v342
    %v2611 = vunpack.c.h.b16 %v342
    %v2612 = vunpack.c.l.b16 %v343
    %v2613 = vunpack.c.h.b16 %v343
    %v2614 = vunpack.c.l.b16 %v344
    %v2615 = vunpack.c.h.b16 %v344
    %v2616 = vunpack.c.l.b16 %v345
    %v2617 = vunpack.c.h.b16 %v345
    %v2618 = vunpack.c.l.b16 %v346
    %v2619 = vunpack.c.h.b16 %v346
    %v2620 = vunpack.c.l.b16 %v347
    %v2621 = vunpack.c.h.b16 %v347
    %v2622 = vunpack.c.l.b16 %v348
    %v2623 = vunpack.c.h.b16 %v348
    %v2624 = vunpack.c.l.b16 %v349
    %v2625 = vunpack.c.h.b16 %v349
    %v2626 = vunpack.c.l.b16 %v350
    %v2627 = vunpack.c.h.b16 %v350
    %v2628 = vunpack.c.l.b16 %v351
    %v2629 = vunpack.c.h.b16 %v351
    %v2630 = vunpack.c.l.b16 %v352
    %v2631 = vunpack.c.h.b16 %v352
    %v2632 = vunpack.c.l.b16 %v353
    %v2633 = vunpack.c.h.b16 %v353
    %v2634 = vunpack.c.l.b16 %v354
    %v2635 = vunpack.c.h.b16 %v354
    %v2636 = vunpack.c.l.b16 %v355
    %v2637 = vunpack.c.h.b16 %v355
    %v2638 = vunpack.c.l.b16 %v356
    %v2639 = vunpack.c.h.b16 %v356
    %v2640 = vunpack.c.l.b16 %v357
    %v2641 = vunpack.c.h.b16 %v357
    %v2642 = vunpack.c.l.b16 %v358
    %v2643 = vunpack.c.h.b16 %v358
    %v2644 = vunpack.c.l.b16 %v359
    %v2645 = vunpack.c.h.b16 %v359
    %v2646 = vunpack.c.l.b16 %v360
    %v2647 = vunpack.c.h.b16 %v360
    %v2648 = vunpack.c.l.b16 %v361
    %v2649 = vunpack.c.h.b16 %v361
    %v2650 = vunpack.c.l.b16 %v362
    %v2651 = vunpack.c.h.b16 %v362
    %v2652 = vunpack.c.l.b16 %v363
    %v2653 = vunpack.c.h.b16 %v363
    %v2654 = vunpack.c.l.b16 %v364
    %v2655 = vunpack.c.h.b16 %v364
    %v2656 = vunpack.c.l.b16 %v365
    %v2657 = vunpack.c.h.b16 %v365
    %v2658 = vunpack.c.l.b16 %v366
    %v2659 = vunpack.c.h.b16 %v366
    %v2660 = vunpack.c.l.b16 %v367
    %v2661 = vunpack.c.h.b16 %v367
    %v2662 = vunpack.c.l.b16 %v368
    %v2663 = vunpack.c.h.b16 %v368
    %v2664 = vunpack.c.l.b16 %v369
    %v2665 = vunpack.c.h.b16 %v369
    %v2666 = vunpack.c.l.b16 %v370
    %v2667 = vunpack.c.h.b16 %v370
    %v2668 = vunpack.c.l.b16 %v371
    %v2669 = vunpack.c.h.b16 %v371
    %v2670 = vunpack.c.l.b16 %v372
    %v2671 = vunpack.c.h.b16 %v372
    %v2672 = vunpack.c.l.b16 %v373
    %v2673 = vunpack.c.h.b16 %v373
    %v2674 = vunpack.c.l.b16 %v374
    %v2675 = vunpack.c.h.b16 %v374
    %v2676 = vunpack.c.l.b16 %v375
    %v2677 = vunpack.c.h.b16 %v375
    %v2678 = vunpack.c.l.b16 %v376
    %v2679 = vunpack.c.h.b16 %v376
    %v2680 = vunpack.c.l.b16 %v377
    %v2681 = vunpack.c.h.b16 %v377
    %v2682 = vunpack.c.l.b16 %v378
    %v2683 = vunpack.c.h.b16 %v378
    %v2684 = vunpack.c.l.b16 %v379
    %v2685 = vunpack.c.h.b16 %v379
    %v2686 = vunpack.c.l.b16 %v380
    %v2687 = vunpack.c.h.b16 %v380
    %v2688 = vunpack.c.l.b16 %v381
    %v2689 = vunpack.c.h.b16 %v381
    %v2690 = vunpack.c.l.b16 %v382
    %v2691 = vunpack.c.h.b16 %v382
    %v2692 = vunpack.c.l.b16 %v383
    %v2693 = vunpack.c.h.b16 %v383
    %v2694 = vunpack.c.l.b16 %v384
    %v2695 = vunpack.c.h.b16 %v384
    %v2696 = vunpack.c.l.b16 %v385
    %v2697 = vunpack.c.h.b16 %v385
    %v2698 = vunpack.c.l.b16 %v386
    %v2699 = vunpack.c.h.b16 %v386
    %v2700 = vunpack.c.l.b16 %v387
    %v2701 = vunpack.c.h.b16 %v387
    %v2702 = vunpack.c.l.b16 %v388
    %v2703 = vunpack.c.h.b16 %v388
    %v2704 = vunpack.c.l.b16 %v389
    %v2705 = vunpack.c.h.b16 %v389
    %v2706 = vunpack.c.l.b16 %v390
    %v2707 = vunpack.c.h.b16 %v390
    %v2708 = vunpack.c.l.b16 %v391
    %v2709 = vunpack.c.h.b16 %v391
    %v2710 = vunpack.c.l.b16 %v392
    %v2711 = vunpack.c.h.b16 %v392
    %v2712 = vunpack.c.l.b16 %v393
    %v2713 = vunpack.c.h.b16 %v393
    %v2714 = vunpack.c.l.b16 %v394
    %v2715 = vunpack.c.h.b16 %v394
    %v2716 = vunpack.c.l.b16 %v395
    %v2717 = vunpack.c.h.b16 %v395
    %v2718 = vunpack.c.l.b16 %v396
    %v2719 = vunpack.c.h.b16 %v396
    %v2720 = vunpack.c.l.b16 %v397
    %v2721 = vunpack.c.h.b16 %v397
    %v2722 = vunpack.c.l.b16 %v398
    %v2723 = vunpack.c.h.b16 %v398
    %v2724 = vunpack.c.l.b16 %v399
    %v2725 = vunpack.c.h.b16 %v399
    %v2726 = vunpack.c.l.b16 %v400
    %v2727 = vunpack.c.h.b16 %v400
    %v2728 = vunpack.c.l.b16 %v401
    %v2729 = vunpack.c.h.b16 %v401
    %v2730 = vunpack.c.l.b16 %v402
    %v2731 = vunpack.c.h.b16 %v402
    %v2732 = vunpack.c.l.b16 %v403
    %v2733 = vunpack.c.h.b16 %v403
    %v2734 = vunpack.c.l.b16 %v404
    %v2735 = vunpack.c.h.b16 %v404
    %v2736 = vunpack.c.l.b16 %v405
    %v2737 = vunpack.c.h.b16 %v405
    %v2738 = vunpack.c.l.b16 %v406
    %v2739 = vunpack.c.h.b16 %v406
    %v2740 = vunpack.c.l.b16 %v407
    %v2741 = vunpack.c.h.b16 %v407
    %v2742 = vunpack.c.l.b16 %v408
    %v2743 = vunpack.c.h.b16 %v408
    %v2744 = vunpack.c.l.b16 %v409
    %v2745 = vunpack.c.h.b16 %v409
    %v2746 = vunpack.c.l.b16 %v410
    %v2747 = vunpack.c.h.b16 %v410
    %v2748 = vunpack.c.l.b16 %v411
    %v2749 = vunpack.c.h.b16 %v411
    %v2750 = vunpack.c.l.b16 %v412
    %v2751 = vunpack.c.h.b16 %v412
    %v2752 = vunpack.c.l.b16 %v413
    %v2753 = vunpack.c.h.b16 %v413
    %v2754 = vunpack.c.l.b16 %v414
    %v2755 = vunpack.c.h.b16 %v414
    %v2756 = vunpack.c.l.b16 %v415
    %v2757 = vunpack.c.h.b16 %v415
    %v2758 = vunpack.c.l.b16 %v416
    %v2759 = vunpack.c.h.b16 %v416
    %v2760 = vunpack.c.l.b16 %v417
    %v2761 = vunpack.c.h.b16 %v417
    %v2762 = vunpack.c.l.b16 %v418
    %v2763 = vunpack.c.h.b16 %v418
    %v2764 = vunpack.c.l.b16 %v419
    %v2765 = vunpack.c.h.b16 %v419
    %v2766 = vunpack.c.l.b16 %v420
    %v2767 = vunpack.c.h.b16 %v420
    %v2768 = vunpack.c.l.b16 %v421
    %v2769 = vunpack.c.h.b16 %v421
    %v2770 = vunpack.c.l.b16 %v422
    %v2771 = vunpack.c.h.b16 %v422
    %v2772 = vunpack.c.l.b16 %v423
    %v2773 = vunpack.c.h.b16 %v423
    %v2774 = vunpack.c.l.b16 %v424
    %v2775 = vunpack.c.h.b16 %v424
    %v2776 = vunpack.c.l.b16 %v425
    %v2777 = vunpack.c.h.b16 %v425
    %v2778 = vunpack.c.l.b16 %v426
    %v2779 = vunpack.c.h.b16 %v426
    %v2780 = vunpack.c.l.b16 %v427
    %v2781 = vunpack.c.h.b16 %v427
    %v2782 = vunpack.c.l.b16 %v428
    %v2783 = vunpack.c.h.b16 %v428
    %v2784 = vunpack.c.l.b16 %v429
    %v2785 = vunpack.c.h.b16 %v429
    %v2786 = vunpack.c.l.b16 %v430
    %v2787 = vunpack.c.h.b16 %v430
    %v2788 = vunpack.c.l.b16 %v431
    %v2789 = vunpack.c.h.b16 %v431
    %v2790 = vunpack.c.l.b16 %v432
    %v2791 = vunpack.c.h.b16 %v432
    %v2792 = vunpack.c.l.b16 %v433
    %v2793 = vunpack.c.h.b16 %v433
    %v2794 = vunpack.c.l.b16 %v434
    %v2795 = vunpack.c.h.b16 %v434
    %v2796 = vunpack.c.l.b16 %v435
    %v2797 = vunpack.c.h.b16 %v435
    %v2798 = vunpack.c.l.b16 %v436
    %v2799 = vunpack.c.h.b16 %v436
    %v2800 = vunpack.c.l.b16 %v437
    %v2801 = vunpack.c.h.b16 %v437
    %v2802 = vunpack.c.l.b16 %v438
    %v2803 = vunpack.c.h.b16 %v438
    %v2804 = vunpack.c.l.b16 %v439
    %v2805 = vunpack.c.h.b16 %v439
    %v2806 = vunpack.c.l.b16 %v440
    %v2807 = vunpack.c.h.b16 %v440
    %v2808 = vunpack.c.l.b16 %v441
    %v2809 = vunpack.c.h.b16 %v441
    %v2810 = vunpack.c.l.b16 %v442
    %v2811 = vunpack.c.h.b16 %v442
    %v2812 = vunpack.c.l.b16 %v443
    %v2813 = vunpack.c.h.b16 %v443
    %v2814 = vunpack.c.l.b16 %v444
    %v2815 = vunpack.c.h.b16 %v444
    %v2816 = vunpack.c.l.b16 %v445
    %v2817 = vunpack.c.h.b16 %v445
    %v2818 = vunpack.c.l.b16 %v446
    %v2819 = vunpack.c.h.b16 %v446
    %v2820 = vunpack.c.l.b16 %v447
    %v2821 = vunpack.c.h.b16 %v447
    %v2822 = vunpack.c.l.b16 %v448
    %v2823 = vunpack.c.h.b16 %v448
    %v2824 = vunpack.c.l.b16 %v449
    %v2825 = vunpack.c.h.b16 %v449
    %v2826 = vunpack.c.l.b16 %v450
    %v2827 = vunpack.c.h.b16 %v450
    %v2828 = vunpack.c.l.b16 %v451
    %v2829 = vunpack.c.h.b16 %v451
    %v2830 = vunpack.c.l.b16 %v452
    %v2831 = vunpack.c.h.b16 %v452
    %v2832 = vunpack.c.l.b16 %v453
    %v2833 = vunpack.c.h.b16 %v453
    %v2834 = vunpack.c.l.b16 %v454
    %v2835 = vunpack.c.h.b16 %v454
    %v2836 = vunpack.c.l.b16 %v455
    %v2837 = vunpack.c.h.b16 %v455
    %v2838 = vunpack.c.l.b16 %v456
    %v2839 = vunpack.c.h.b16 %v456
    %v2840 = vunpack.c.l.b16 %v457
    %v2841 = vunpack.c.h.b16 %v457
    %v2842 = vunpack.c.l.b16 %v458
    %v2843 = vunpack.c.h.b16 %v458
    %v2844 = vunpack.c.l.b16 %v459
    %v2845 = vunpack.c.h.b16 %v459
    %v2846 = vunpack.c.l.b16 %v460
    %v2847 = vunpack.c.h.b16 %v460
    %v2848 = vunpack.c.l.b16 %v461
    %v2849 = vunpack.c.h.b16 %v461
    %v2850 = vunpack.c.l.b16 %v462
    %v2851 = vunpack.c.h.b16 %v462
    %v2852 = vunpack.c.l.b16 %v463
    %v2853 = vunpack.c.h.b16 %v463
    %v2854 = vunpack.c.l.b16 %v464
    %v2855 = vunpack.c.h.b16 %v464
    %v2856 = vunpack.c.l.b16 %v465
    %v2857 = vunpack.c.h.b16 %v465
    %v2858 = vunpack.c.l.b16 %v466
    %v2859 = vunpack.c.h.b16 %v466
    %v2860 = vunpack.c.l.b16 %v467
    %v2861 = vunpack.c.h.b16 %v467
    %v2862 = vunpack.c.l.b16 %v468
    %v2863 = vunpack.c.h.b16 %v468
    %v2864 = vunpack.c.l.b16 %v469
    %v2865 = vunpack.c.h.b16 %v469
    %v2866 = vunpack.c.l.b16 %v470
    %v2867 = vunpack.c.h.b16 %v470
    %v2868 = vunpack.c.l.b16 %v471
    %v2869 = vunpack.c.h.b16 %v471
    %v2870 = vunpack.c.l.b16 %v472
    %v2871 = vunpack.c.h.b16 %v472
    %v2872 = vunpack.c.l.b16 %v473
    %v2873 = vunpack.c.h.b16 %v473
    %v2874 = vunpack.c.l.b16 %v474
    %v2875 = vunpack.c.h.b16 %v474
    %v2876 = vunpack.c.l.b16 %v475
    %v2877 = vunpack.c.h.b16 %v475
    %v2878 = vunpack.c.l.b16 %v476
    %v2879 = vunpack.c.h.b16 %v476
    %v2880 = vunpack.c.l.b16 %v477
    %v2881 = vunpack.c.h.b16 %v477
    %v2882 = vunpack.c.l.b16 %v478
    %v2883 = vunpack.c.h.b16 %v478
    %v2884 = vunpack.c.l.b16 %v479
    %v2885 = vunpack.c.h.b16 %v479
    %v2886 = vunpack.c.l.b16 %v480
    %v2887 = vunpack.c.h.b16 %v480
    %v2888 = vunpack.c.l.b16 %v481
    %v2889 = vunpack.c.h.b16 %v481
    %v2890 = vunpack.c.l.b16 %v482
    %v2891 = vunpack.c.h.b16 %v482
    %v2892 = vunpack.c.l.b16 %v483
    %v2893 = vunpack.c.h.b16 %v483
    %v2894 = vunpack.c.l.b16 %v484
    %v2895 = vunpack.c.h.b16 %v484
    %v2896 = vunpack.c.l.b16 %v485
    %v2897 = vunpack.c.h.b16 %v485
    %v2898 = vunpack.c.l.b16 %v486
    %v2899 = vunpack.c.h.b16 %v486
    %v2900 = vunpack.c.l.b16 %v487
    %v2901 = vunpack.c.h.b16 %v487
    %v2902 = vunpack.c.l.b16 %v488
    %v2903 = vunpack.c.h.b16 %v488
    %v2904 = vunpack.c.l.b16 %v489
    %v2905 = vunpack.c.h.b16 %v489
    %v2906 = vunpack.c.l.b16 %v490
    %v2907 = vunpack.c.h.b16 %v490
    %v2908 = vunpack.c.l.b16 %v491
    %v2909 = vunpack.c.h.b16 %v491
    %v2910 = vunpack.c.l.b16 %v492
    %v2911 = vunpack.c.h.b16 %v492
    %v2912 = vunpack.c.l.b16 %v493
    %v2913 = vunpack.c.h.b16 %v493
    %v2914 = vunpack.c.l.b16 %v494
    %v2915 = vunpack.c.h.b16 %v494
    %v2916 = vunpack.c.l.b16 %v495
    %v2917 = vunpack.c.h.b16 %v495
    %v2918 = vunpack.c.l.b16 %v496
    %v2919 = vunpack.c.h.b16 %v496
    %v2920 = vunpack.c.l.b16 %v497
    %v2921 = vunpack.c.h.b16 %v497
    %v2922 = vunpack.c.l.b16 %v498
    %v2923 = vunpack.c.h.b16 %v498
    %v2924 = vunpack.c.l.b16 %v499
    %v2925 = vunpack.c.h.b16 %v499
    %v2926 = vunpack.c.l.b16 %v500
    %v2927 = vunpack.c.h.b16 %v500
    %v2928 = vunpack.c.l.b16 %v501
    %v2929 = vunpack.c.h.b16 %v501
    %v2930 = vunpack.c.l.b16 %v502
    %v2931 = vunpack.c.h.b16 %v502
    %v2932 = vunpack.c.l.b16 %v503
    %v2933 = vunpack.c.h.b16 %v503
    %v2934 = vunpack.c.l.b16 %v504
    %v2935 = vunpack.c.h.b16 %v504
    %v2936 = vunpack.c.l.b16 %v505
    %v2937 = vunpack.c.h.b16 %v505
    %v2938 = vunpack.c.l.b16 %v506
    %v2939 = vunpack.c.h.b16 %v506
    %v2940 = vunpack.c.l.b16 %v507
    %v2941 = vunpack.c.h.b16 %v507
    %v2942 = vunpack.c.l.b16 %v508
    %v2943 = vunpack.c.h.b16 %v508
    %v2944 = vunpack.c.l.b16 %v509
    %v2945 = vunpack.c.h.b16 %v509
    %v2946 = vunpack.c.l.b16 %v510
    %v2947 = vunpack.c.h.b16 %v510
    %v2948 = vunpack.c.l.b16 %v511
    %v2949 = vunpack.c.h.b16 %v511
    %v2950 = vunpack.c.l.b16 %v512
    %v2951 = vunpack.c.h.b16 %v512
    %v2952 = vunpack.c.l.b16 %v513
    %v2953 = vunpack.c.h.b16 %v513
    %v2954 = vunpack.c.l.b16 %v514
    %v2955 = vunpack.c.h.b16 %v514
    %v2956 = vunpack.c.l.b16 %v515
    %v2957 = vunpack.c.h.b16 %v515
    %v2958 = vunpack.c.l.b16 %v516
    %v2959 = vunpack.c.h.b16 %v516
    %v2960 = vunpack.c.l.b16 %v517
    %v2961 = vunpack.c.h.b16 %v517
    %v2962 = vunpack.c.l.b16 %v518
    %v2963 = vunpack.c.h.b16 %v518
    %v2964 = vunpack.c.l.b16 %v519
    %v2965 = vunpack.c.h.b16 %v519
    %v2966 = vunpack.c.l.b16 %v520
    %v2967 = vunpack.c.h.b16 %v520
    %v2968 = vunpack.c.l.b16 %v521
    %v2969 = vunpack.c.h.b16 %v521
    %v2970 = vunpack.c.l.b16 %v522
    %v2971 = vunpack.c.h.b16 %v522
    %v2972 = vunpack.c.l.b16 %v523
    %v2973 = vunpack.c.h.b16 %v523
    %v2974 = vunpack.c.l.b16 %v524
    %v2975 = vunpack.c.h.b16 %v524
    %v2976 = vunpack.c.l.b16 %v525
    %v2977 = vunpack.c.h.b16 %v525
    %v2978 = vunpack.c.l.b16 %v526
    %v2979 = vunpack.c.h.b16 %v526
    %v2980 = vunpack.c.l.b16 %v527
    %v2981 = vunpack.c.h.b16 %v527
    %v2982 = vunpack.c.l.b16 %v528
    %v2983 = vunpack.c.h.b16 %v528
    %v2984 = vunpack.c.l.b16 %v529
    %v2985 = vunpack.c.h.b16 %v529
    %v2986 = vunpack.c.l.b16 %v530
    %v2987 = vunpack.c.h.b16 %v530
    %v2988 = vunpack.c.l.b16 %v531
    %v2989 = vunpack.c.h.b16 %v531
    %v2990 = vunpack.c.l.b16 %v532
    %v2991 = vunpack.c.h.b16 %v532
    %v2992 = vunpack.c.l.b16 %v533
    %v2993 = vunpack.c.h.b16 %v533
    %v2994 = vunpack.c.l.b16 %v534
    %v2995 = vunpack.c.h.b16 %v534
    %v2996 = vunpack.c.l.b16 %v535
    %v2997 = vunpack.c.h.b16 %v535
    %v2998 = vunpack.c.l.b16 %v536
    %v2999 = vunpack.c.h.b16 %v536
    %v3000 = vunpack.c.l.b16 %v537
    %v3001 = vunpack.c.h.b16 %v537
    %v3002 = vunpack.c.l.b16 %v538
    %v3003 = vunpack.c.h.b16 %v538
    %v3004 = vunpack.c.l.b16 %v539
    %v3005 = vunpack.c.h.b16 %v539
    %v3006 = vunpack.c.l.b16 %v540
    %v3007 = vunpack.c.h.b16 %v540
    %v3008 = vunpack.c.l.b16 %v541
    %v3009 = vunpack.c.h.b16 %v541
    %v3010 = vunpack.c.l.b16 %v542
    %v3011 = vunpack.c.h.b16 %v542
    %v3012 = vunpack.c.l.b16 %v543
    %v3013 = vunpack.c.h.b16 %v543
    %v3014 = vunpack.c.l.b16 %v544
    %v3015 = vunpack.c.h.b16 %v544
    %v3016 = vunpack.c.l.b16 %v545
    %v3017 = vunpack.c.h.b16 %v545
    %v3018 = vunpack.c.l.b16 %v546
    %v3019 = vunpack.c.h.b16 %v546
    %v3020 = vunpack.c.l.b16 %v547
    %v3021 = vunpack.c.h.b16 %v547
    %v3022 = vunpack.c.l.b16 %v548
    %v3023 = vunpack.c.h.b16 %v548
    %v3024 = vunpack.c.l.b16 %v549
    %v3025 = vunpack.c.h.b16 %v549
    %v3026 = vunpack.c.l.b16 %v550
    %v3027 = vunpack.c.h.b16 %v550
    %v3028 = vunpack.c.l.b16 %v551
    %v3029 = vunpack.c.h.b16 %v551
    %v3030 = vunpack.c.l.b16 %v552
    %v3031 = vunpack.c.h.b16 %v552
    %v3032 = vunpack.c.l.b16 %v553
    %v3033 = vunpack.c.h.b16 %v553
    %v3034 = vunpack.c.l.b16 %v554
    %v3035 = vunpack.c.h.b16 %v554
    %v3036 = vunpack.c.l.b16 %v555
    %v3037 = vunpack.c.h.b16 %v555
    %v3038 = vunpack.c.l.b16 %v556
    %v3039 = vunpack.c.h.b16 %v556
    %v3040 = vunpack.c.l.b16 %v557
    %v3041 = vunpack.c.h.b16 %v557
    %v3042 = vunpack.c.l.b16 %v558
    %v3043 = vunpack.c.h.b16 %v558
    %v3044 = vunpack.c.l.b16 %v559
    %v3045 = vunpack.c.h.b16 %v559
    %v3046 = vunpack.c.l.b16 %v560
    %v3047 = vunpack.c.h.b16 %v560
    %v3048 = vunpack.c.l.b16 %v561
    %v3049 = vunpack.c.h.b16 %v561
    %v3050 = vunpack.c.l.b16 %v562
    %v3051 = vunpack.c.h.b16 %v562
    %v3052 = vunpack.c.l.b16 %v563
    %v3053 = vunpack.c.h.b16 %v563
    %v3054 = vunpack.c.l.b16 %v564
    %v3055 = vunpack.c.h.b16 %v564
    %v3056 = vunpack.c.l.b16 %v565
    %v3057 = vunpack.c.h.b16 %v565
    %v3058 = vunpack.c.l.b16 %v566
    %v3059 = vunpack.c.h.b16 %v566
    %v3060 = vunpack.c.l.b16 %v567
    %v3061 = vunpack.c.h.b16 %v567
    %v3062 = vunpack.c.l.b16 %v568
    %v3063 = vunpack.c.h.b16 %v568
    %v3064 = vunpack.c.l.b16 %v569
    %v3065 = vunpack.c.h.b16 %v569
    %v3066 = vunpack.c.l.b16 %v570
    %v3067 = vunpack.c.h.b16 %v570
    %v3068 = vunpack.c.l.b16 %v571
    %v3069 = vunpack.c.h.b16 %v571
    %v3070 = vunpack.c.l.b16 %v572
    %v3071 = vunpack.c.h.b16 %v572
    %v3072 = vunpack.c.l.b16 %v573
    %v3073 = vunpack.c.h.b16 %v573
    %v3074 = vunpack.c.l.b16 %v574
    %v3075 = vunpack.c.h.b16 %v574
    %v3076 = vunpack.c.l.b16 %v575
    %v3077 = vunpack.c.h.b16 %v575
    %v3078 = vunpack.c.l.b16 %v576
    %v3079 = vunpack.c.h.b16 %v576
    %v3080 = vunpack.c.l.b16 %v577
    %v3081 = vunpack.c.h.b16 %v577
    %v3082 = vunpack.c.l.b16 %v578
    %v3083 = vunpack.c.h.b16 %v578
    %v3084 = vunpack.c.l.b16 %v579
    %v3085 = vunpack.c.h.b16 %v579
    %v3086 = vunpack.c.l.b16 %v580
    %v3087 = vunpack.c.h.b16 %v580
    %v3088 = vunpack.c.l.b16 %v581
    %v3089 = vunpack.c.h.b16 %v581
    %v3090 = vunpack.c.l.b16 %v582
    %v3091 = vunpack.c.h.b16 %v582
    %v3092 = vunpack.c.l.b16 %v583
    %v3093 = vunpack.c.h.b16 %v583
    %v3094 = vunpack.c.l.b16 %v584
    %v3095 = vunpack.c.h.b16 %v584
    %v3096 = vunpack.c.l.b16 %v585
    %v3097 = vunpack.c.h.b16 %v585
    %v3098 = vunpack.c.l.b16 %v586
    %v3099 = vunpack.c.h.b16 %v586
    %v3100 = vunpack.c.l.b16 %v587
    %v3101 = vunpack.c.h.b16 %v587
    %v3102 = vunpack.c.l.b16 %v588
    %v3103 = vunpack.c.h.b16 %v588
    %v3104 = vunpack.c.l.b16 %v589
    %v3105 = vunpack.c.h.b16 %v589
    %v3106 = vunpack.c.l.b16 %v590
    %v3107 = vunpack.c.h.b16 %v590
    %v3108 = vunpack.c.l.b16 %v591
    %v3109 = vunpack.c.h.b16 %v591
    %v3110 = vunpack.c.l.b16 %v592
    %v3111 = vunpack.c.h.b16 %v592
    %v3112 = vunpack.c.l.b16 %v593
    %v3113 = vunpack.c.h.b16 %v593
    %v3114 = vunpack.c.l.b16 %v594
    %v3115 = vunpack.c.h.b16 %v594
    %v3116 = vunpack.c.l.b16 %v595
    %v3117 = vunpack.c.h.b16 %v595
    %v3118 = vunpack.c.l.b16 %v596
    %v3119 = vunpack.c.h.b16 %v596
    %v3120 = vunpack.c.l.b16 %v597
    %v3121 = vunpack.c.h.b16 %v597
    %v3122 = vunpack.c.l.b16 %v598
    %v3123 = vunpack.c.h.b16 %v598
    %v3124 = vunpack.c.l.b16 %v599
    %v3125 = vunpack.c.h.b16 %v599
    %v3126 = vunpack.c.l.b16 %v600
    %v3127 = vunpack.c.h.b16 %v600
    %v3128 = vunpack.c.l.b16 %v601
    %v3129 = vunpack.c.h.b16 %v601
    %v3130 = vunpack.c.l.b16 %v602
    %v3131 = vunpack.c.h.b16 %v602
    %v3132 = vunpack.c.l.b16 %v603
    %v3133 = vunpack.c.h.b16 %v603
    %v3134 = vunpack.c.l.b16 %v604
    %v3135 = vunpack.c.h.b16 %v604
    %v3136 = vunpack.c.l.b16 %v605
    %v3137 = vunpack.c.h.b16 %v605
    %v3138 = vunpack.c.l.b16 %v606
    %v3139 = vunpack.c.h.b16 %v606
    %v3140 = vunpack.c.l.b16 %v607
    %v3141 = vunpack.c.h.b16 %v607
    %v3142 = vunpack.c.l.b16 %v608
    %v3143 = vunpack.c.h.b16 %v608
    %v3144 = vunpack.c.l.b16 %v609
    %v3145 = vunpack.c.h.b16 %v609
    %v3146 = vunpack.c.l.b16 %v610
    %v3147 = vunpack.c.h.b16 %v610
    %v3148 = vunpack.c.l.b16 %v611
    %v3149 = vunpack.c.h.b16 %v611
    %v3150 = vunpack.c.l.b16 %v612
    %v3151 = vunpack.c.h.b16 %v612
    %v3152 = vunpack.c.l.b16 %v613
    %v3153 = vunpack.c.h.b16 %v613
    %v3154 = vunpack.c.l.b16 %v614
    %v3155 = vunpack.c.h.b16 %v614
    %v3156 = vunpack.c.l.b16 %v615
    %v3157 = vunpack.c.h.b16 %v615
    %v3158 = vunpack.c.l.b16 %v616
    %v3159 = vunpack.c.h.b16 %v616
    %v3160 = vunpack.c.l.b16 %v617
    %v3161 = vunpack.c.h.b16 %v617
    %v3162 = vunpack.c.l.b16 %v618
    %v3163 = vunpack.c.h.b16 %v618
    %v3164 = vunpack.c.l.b16 %v619
    %v3165 = vunpack.c.h.b16 %v619
    %v3166 = vunpack.c.l.b16 %v620
    %v3167 = vunpack.c.h.b16 %v620
    %v3168 = vunpack.c.l.b16 %v621
    %v3169 = vunpack.c.h.b16 %v621
    %v3170 = vunpack.c.l.b16 %v622
    %v3171 = vunpack.c.h.b16 %v622
    %v3172 = vunpack.c.l.b16 %v623
    %v3173 = vunpack.c.h.b16 %v623
    %v3174 = vunpack.c.l.b16 %v624
    %v3175 = vunpack.c.h.b16 %v624
    %v3176 = vunpack.c.l.b16 %v625
    %v3177 = vunpack.c.h.b16 %v625
    %v3178 = vunpack.c.l.b16 %v626
    %v3179 = vunpack.c.h.b16 %v626
    %v3180 = vunpack.c.l.b16 %v627
    %v3181 = vunpack.c.h.b16 %v627
    %v3182 = vunpack.c.l.b16 %v628
    %v3183 = vunpack.c.h.b16 %v628
    %v3184 = vunpack.c.l.b16 %v629
    %v3185 = vunpack.c.h.b16 %v629
    %v3186 = vunpack.c.l.b16 %v630
    %v3187 = vunpack.c.h.b16 %v630
    %v3188 = vunpack.c.l.b16 %v631
    %v3189 = vunpack.c.h.b16 %v631
    %v3190 = vunpack.c.l.b16 %v632
    %v3191 = vunpack.c.h.b16 %v632
    %v3192 = vunpack.c.l.b16 %v633
    %v3193 = vunpack.c.h.b16 %v633
    %v3194 = vunpack.c.l.b16 %v634
    %v3195 = vunpack.c.h.b16 %v634
    %v3196 = vunpack.c.l.b16 %v635
    %v3197 = vunpack.c.h.b16 %v635
    %v3198 = vunpack.c.l.b16 %v636
    %v3199 = vunpack.c.h.b16 %v636
    %v3200 = vunpack.c.l.b16 %v637
    %v3201 = vunpack.c.h.b16 %v637
    %v3202 = vunpack.c.l.b16 %v638
    %v3203 = vunpack.c.h.b16 %v638
    %v3204 = vunpack.c.l.b16 %v639
    %v3205 = vunpack.c.h.b16 %v639
    %v3206 = vunpack.c.l.b16 %v640
    %v3207 = vunpack.c.h.b16 %v640
    %v3208 = vunpack.c.l.b16 %v641
    %v3209 = vunpack.c.h.b16 %v641
    %v3210 = vunpack.c.l.b16 %v642
    %v3211 = vunpack.c.h.b16 %v642
    %v3212 = vunpack.c.l.b16 %v643
    %v3213 = vunpack.c.h.b16 %v643
    %v3214 = vunpack.c.l.b16 %v644
    %v3215 = vunpack.c.h.b16 %v644
    %v3216 = vunpack.c.l.b16 %v645
    %v3217 = vunpack.c.h.b16 %v645
    %v3218 = vunpack.c.l.b16 %v646
    %v3219 = vunpack.c.h.b16 %v646
    %v3220 = vunpack.c.l.b16 %v647
    %v3221 = vunpack.c.h.b16 %v647
    %v3222 = vunpack.c.l.b16 %v648
    %v3223 = vunpack.c.h.b16 %v648
    %v3224 = vunpack.c.l.b16 %v649
    %v3225 = vunpack.c.h.b16 %v649
    %v3226 = vunpack.c.l.b16 %v650
    %v3227 = vunpack.c.h.b16 %v650
    %v3228 = vunpack.c.l.b16 %v651
    %v3229 = vunpack.c.h.b16 %v651
    %v3230 = vunpack.c.l.b16 %v652
    %v3231 = vunpack.c.h.b16 %v652
    %v3232 = vunpack.c.l.b16 %v653
    %v3233 = vunpack.c.h.b16 %v653
    %v3234 = vunpack.c.l.b16 %v654
    %v3235 = vunpack.c.h.b16 %v654
    %v3236 = vunpack.c.l.b16 %v655
    %v3237 = vunpack.c.h.b16 %v655
    %v3238 = vunpack.c.l.b16 %v656
    %v3239 = vunpack.c.h.b16 %v656
    %v3240 = vunpack.c.l.b16 %v657
    %v3241 = vunpack.c.h.b16 %v657
    %v3242 = vunpack.c.l.b16 %v658
    %v3243 = vunpack.c.h.b16 %v658
    %v3244 = vunpack.c.l.b16 %v659
    %v3245 = vunpack.c.h.b16 %v659
    %v3246 = vunpack.c.l.b16 %v660
    %v3247 = vunpack.c.h.b16 %v660
    %v3248 = vunpack.c.l.b16 %v661
    %v3249 = vunpack.c.h.b16 %v661
    %v3250 = vunpack.c.l.b16 %v662
    %v3251 = vunpack.c.h.b16 %v662
    %v3252 = vunpack.c.l.b16 %v663
    %v3253 = vunpack.c.h.b16 %v663
    %v3254 = vunpack.c.l.b16 %v664
    %v3255 = vunpack.c.h.b16 %v664
    %v3256 = vunpack.c.l.b16 %v665
    %v3257 = vunpack.c.h.b16 %v665
    %v3258 = vunpack.c.l.b16 %v666
    %v3259 = vunpack.c.h.b16 %v666
    %v3260 = vunpack.c.l.b16 %v667
    %v3261 = vunpack.c.h.b16 %v667
    %v3262 = vunpack.c.l.b16 %v668
    %v3263 = vunpack.c.h.b16 %v668
    %v3264 = vunpack.c.l.b16 %v669
    %v3265 = vunpack.c.h.b16 %v669
    %v3266 = vunpack.c.l.b16 %v670
    %v3267 = vunpack.c.h.b16 %v670
    %v3268 = vunpack.c.l.b16 %v671
    %v3269 = vunpack.c.h.b16 %v671
    %v3270 = vunpack.c.l.b16 %v672
    %v3271 = vunpack.c.h.b16 %v672
    %v3272 = vunpack.c.l.b16 %v673
    %v3273 = vunpack.c.h.b16 %v673
    %v3274 = vunpack.c.l.b16 %v674
    %v3275 = vunpack.c.h.b16 %v674
    %v3276 = vunpack.c.l.b16 %v675
    %v3277 = vunpack.c.h.b16 %v675
    %v3278 = vunpack.c.l.b16 %v676
    %v3279 = vunpack.c.h.b16 %v676
    %v3280 = vunpack.c.l.b16 %v677
    %v3281 = vunpack.c.h.b16 %v677
    %v3282 = vunpack.c.l.b16 %v678
    %v3283 = vunpack.c.h.b16 %v678
    %v3284 = vunpack.c.l.b16 %v679
    %v3285 = vunpack.c.h.b16 %v679
    %v3286 = vunpack.c.l.b16 %v680
    %v3287 = vunpack.c.h.b16 %v680
    %v3288 = vunpack.c.l.b16 %v681
    %v3289 = vunpack.c.h.b16 %v681
    %v3290 = vunpack.c.l.b16 %v682
    %v3291 = vunpack.c.h.b16 %v682
    %v3292 = vunpack.c.l.b16 %v683
    %v3293 = vunpack.c.h.b16 %v683
    %v3294 = vunpack.c.l.b16 %v684
    %v3295 = vunpack.c.h.b16 %v684
    %v3296 = vunpack.c.l.b16 %v685
    %v3297 = vunpack.c.h.b16 %v685
    %v3298 = vunpack.c.l.b16 %v686
    %v3299 = vunpack.c.h.b16 %v686
    %v3300 = vunpack.c.l.b16 %v687
    %v3301 = vunpack.c.h.b16 %v687
    %v3302 = vunpack.c.l.b16 %v688
    %v3303 = vunpack.c.h.b16 %v688
    %v3304 = vunpack.c.l.b16 %v689
    %v3305 = vunpack.c.h.b16 %v689
    %v3306 = vunpack.c.l.b16 %v690
    %v3307 = vunpack.c.h.b16 %v690
    %v3308 = vunpack.c.l.b16 %v691
    %v3309 = vunpack.c.h.b16 %v691
    %v3310 = vunpack.c.l.b16 %v692
    %v3311 = vunpack.c.h.b16 %v692
    %v3312 = vunpack.c.l.b16 %v693
    %v3313 = vunpack.c.h.b16 %v693
    %v3314 = vunpack.c.l.b16 %v694
    %v3315 = vunpack.c.h.b16 %v694
    %v3316 = vunpack.c.l.b16 %v695
    %v3317 = vunpack.c.h.b16 %v695
    %v3318 = vunpack.c.l.b16 %v696
    %v3319 = vunpack.c.h.b16 %v696
    %v3320 = vunpack.c.l.b16 %v697
    %v3321 = vunpack.c.h.b16 %v697
    %v3322 = vunpack.c.l.b16 %v698
    %v3323 = vunpack.c.h.b16 %v698
    %v3324 = vunpack.c.l.b16 %v699
    %v3325 = vunpack.c.h.b16 %v699
    %v3326 = vunpack.c.l.b16 %v700
    %v3327 = vunpack.c.h.b16 %v700
    %v3328 = vunpack.c.l.b16 %v701
    %v3329 = vunpack.c.h.b16 %v701
    %v3330 = vunpack.c.l.b16 %v702
    %v3331 = vunpack.c.h.b16 %v702
    %v3332 = vunpack.c.l.b16 %v703
    %v3333 = vunpack.c.h.b16 %v703
    %v3334 = vunpack.c.l.b16 %v704
    %v3335 = vunpack.c.h.b16 %v704
    %v3336 = vunpack.c.l.b16 %v705
    %v3337 = vunpack.c.h.b16 %v705
    %v3338 = vunpack.c.l.b16 %v706
    %v3339 = vunpack.c.h.b16 %v706
    %v3340 = vunpack.c.l.b16 %v707
    %v3341 = vunpack.c.h.b16 %v707
    %v3342 = vunpack.c.l.b16 %v708
    %v3343 = vunpack.c.h.b16 %v708
    %v3344 = vunpack.c.l.b16 %v709
    %v3345 = vunpack.c.h.b16 %v709
    %v3346 = vunpack.c.l.b16 %v710
    %v3347 = vunpack.c.h.b16 %v710
    %v3348 = vunpack.c.l.b16 %v711
    %v3349 = vunpack.c.h.b16 %v711
    %v3350 = vunpack.c.l.b16 %v712
    %v3351 = vunpack.c.h.b16 %v712
    %v3352 = vunpack.c.l.b16 %v713
    %v3353 = vunpack.c.h.b16 %v713
    %v3354 = vunpack.c.l.b16 %v714
    %v3355 = vunpack.c.h.b16 %v714
    %v3356 = vunpack.c.l.b16 %v715
    %v3357 = vunpack.c.h.b16 %v715
    %v3358 = vunpack.c.l.b16 %v716
    %v3359 = vunpack.c.h.b16 %v716
    %v3360 = vunpack.c.l.b16 %v717
    %v3361 = vunpack.c.h.b16 %v717
    %v3362 = vunpack.c.l.b16 %v718
    %v3363 = vunpack.c.h.b16 %v718
    %v3364 = vunpack.c.l.b16 %v719
    %v3365 = vunpack.c.h.b16 %v719
    %v3366 = vunpack.c.l.b16 %v720
    %v3367 = vunpack.c.h.b16 %v720
    %v3368 = vunpack.c.l.b16 %v721
    %v3369 = vunpack.c.h.b16 %v721
    %v3370 = vunpack.c.l.b16 %v722
    %v3371 = vunpack.c.h.b16 %v722
    %v3372 = vunpack.c.l.b16 %v723
    %v3373 = vunpack.c.h.b16 %v723
    %v3374 = vunpack.c.l.b16 %v724
    %v3375 = vunpack.c.h.b16 %v724
    %v3376 = vunpack.c.l.b16 %v725
    %v3377 = vunpack.c.h.b16 %v725
    %v3378 = vunpack.c.l.b16 %v726
    %v3379 = vunpack.c.h.b16 %v726
    %v3380 = vunpack.c.l.b16 %v727
    %v3381 = vunpack.c.h.b16 %v727
    %v3382 = vunpack.c.l.b16 %v728
    %v3383 = vunpack.c.h.b16 %v728
    %v3384 = vunpack.c.l.b16 %v729
    %v3385 = vunpack.c.h.b16 %v729
    %v3386 = vunpack.c.l.b16 %v730
    %v3387 = vunpack.c.h.b16 %v730
    %v3388 = vunpack.c.l.b16 %v731
    %v3389 = vunpack.c.h.b16 %v731
    %v3390 = vunpack.c.l.b16 %v732
    %v3391 = vunpack.c.h.b16 %v732
    %v3392 = vunpack.c.l.b16 %v733
    %v3393 = vunpack.c.h.b16 %v733
    %v3394 = vunpack.c.l.b16 %v734
    %v3395 = vunpack.c.h.b16 %v734
    %v3396 = vunpack.c.l.b16 %v735
    %v3397 = vunpack.c.h.b16 %v735
    %v3398 = vunpack.c.l.b16 %v736
    %v3399 = vunpack.c.h.b16 %v736
    %v3400 = vunpack.c.l.b16 %v737
    %v3401 = vunpack.c.h.b16 %v737
    %v3402 = vunpack.c.l.b16 %v738
    %v3403 = vunpack.c.h.b16 %v738
    %v3404 = vunpack.c.l.b16 %v739
    %v3405 = vunpack.c.h.b16 %v739
    %v3406 = vunpack.c.l.b16 %v740
    %v3407 = vunpack.c.h.b16 %v740
    %v3408 = vunpack.c.l.b16 %v741
    %v3409 = vunpack.c.h.b16 %v741
    %v3410 = vunpack.c.l.b16 %v742
    %v3411 = vunpack.c.h.b16 %v742
    %v3412 = vunpack.c.l.b16 %v743
    %v3413 = vunpack.c.h.b16 %v743
    %v3414 = vunpack.c.l.b16 %v744
    %v3415 = vunpack.c.h.b16 %v744
    %v3416 = vunpack.c.l.b16 %v745
    %v3417 = vunpack.c.h.b16 %v745
    %v3418 = vunpack.c.l.b16 %v746
    %v3419 = vunpack.c.h.b16 %v746
    %v3420 = vunpack.c.l.b16 %v747
    %v3421 = vunpack.c.h.b16 %v747
    %v3422 = vunpack.c.l.b16 %v748
    %v3423 = vunpack.c.h.b16 %v748
    %v3424 = vunpack.c.l.b16 %v749
    %v3425 = vunpack.c.h.b16 %v749
    %v3426 = vunpack.c.l.b16 %v750
    %v3427 = vunpack.c.h.b16 %v750
    %v3428 = vunpack.c.l.b16 %v751
    %v3429 = vunpack.c.h.b16 %v751
    %v3430 = vunpack.c.l.b16 %v752
    %v3431 = vunpack.c.h.b16 %v752
    %v3432 = vunpack.c.l.b16 %v753
    %v3433 = vunpack.c.h.b16 %v753
    %v3434 = vunpack.c.l.b16 %v754
    %v3435 = vunpack.c.h.b16 %v754
    %v3436 = vunpack.c.l.b16 %v755
    %v3437 = vunpack.c.h.b16 %v755
    %v3438 = vunpack.c.l.b16 %v756
    %v3439 = vunpack.c.h.b16 %v756
    %v3440 = vunpack.c.l.b16 %v757
    %v3441 = vunpack.c.h.b16 %v757
    %v3442 = vunpack.c.l.b16 %v758
    %v3443 = vunpack.c.h.b16 %v758
    %v3444 = vunpack.c.l.b16 %v759
    %v3445 = vunpack.c.h.b16 %v759
    %v3446 = vunpack.c.l.b16 %v760
    %v3447 = vunpack.c.h.b16 %v760
    %v3448 = vunpack.c.l.b16 %v761
    %v3449 = vunpack.c.h.b16 %v761
    %v3450 = vunpack.c.l.b16 %v762
    %v3451 = vunpack.c.h.b16 %v762
    %v3452 = vunpack.c.l.b16 %v763
    %v3453 = vunpack.c.h.b16 %v763
    %v3454 = vunpack.c.l.b16 %v764
    %v3455 = vunpack.c.h.b16 %v764
    %v3456 = vunpack.c.l.b16 %v765
    %v3457 = vunpack.c.h.b16 %v765
    %v3458 = vunpack.c.l.b16 %v766
    %v3459 = vunpack.c.h.b16 %v766
    %v3460 = vunpack.c.l.b16 %v767
    %v3461 = vunpack.c.h.b16 %v767
    %v3462 = vunpack.c.l.b16 %v768
    %v3463 = vunpack.c.h.b16 %v768
    %v3464 = vunpack.c.l.b16 %v769
    %v3465 = vunpack.c.h.b16 %v769
    %v3466 = vunpack.c.l.b16 %v770
    %v3467 = vunpack.c.h.b16 %v770
    %v3468 = vunpack.c.l.b16 %v771
    %v3469 = vunpack.c.h.b16 %v771
    %v3470 = vunpack.c.l.b16 %v772
    %v3471 = vunpack.c.h.b16 %v772
    %v3472 = vunpack.c.l.b16 %v773
    %v3473 = vunpack.c.h.b16 %v773
    %v3474 = vunpack.c.l.b16 %v774
    %v3475 = vunpack.c.h.b16 %v774
    %v3476 = vunpack.c.l.b16 %v775
    %v3477 = vunpack.c.h.b16 %v775
    %v3478 = vunpack.c.l.b16 %v776
    %v3479 = vunpack.c.h.b16 %v776
    %v3480 = vunpack.c.l.b16 %v777
    %v3481 = vunpack.c.h.b16 %v777
    %v3482 = vunpack.c.l.b16 %v778
    %v3483 = vunpack.c.h.b16 %v778
    %v3484 = vunpack.c.l.b16 %v779
    %v3485 = vunpack.c.h.b16 %v779
    %v3486 = vunpack.c.l.b16 %v780
    %v3487 = vunpack.c.h.b16 %v780
    %v3488 = vunpack.c.l.b16 %v781
    %v3489 = vunpack.c.h.b16 %v781
    %v3490 = vunpack.c.l.b16 %v782
    %v3491 = vunpack.c.h.b16 %v782
    %v3492 = vunpack.c.l.b16 %v783
    %v3493 = vunpack.c.h.b16 %v783
    %v3494 = vunpack.c.l.b16 %v784
    %v3495 = vunpack.c.h.b16 %v784
    %v3496 = vunpack.c.l.b16 %v785
    %v3497 = vunpack.c.h.b16 %v785
    %v3498 = vunpack.c.l.b16 %v786
    %v3499 = vunpack.c.h.b16 %v786
    %v3500 = vunpack.c.l.b16 %v787
    %v3501 = vunpack.c.h.b16 %v787
    %v3502 = vunpack.c.l.b16 %v788
    %v3503 = vunpack.c.h.b16 %v788
    %v3504 = vunpack.c.l.b16 %v789
    %v3505 = vunpack.c.h.b16 %v789
    %v3506 = vunpack.c.l.b16 %v790
    %v3507 = vunpack.c.h.b16 %v790
    %v3508 = vunpack.c.l.b16 %v791
    %v3509 = vunpack.c.h.b16 %v791
    %v3510 = vunpack.c.l.b16 %v792
    %v3511 = vunpack.c.h.b16 %v792
    %v3512 = vunpack.c.l.b16 %v793
    %v3513 = vunpack.c.h.b16 %v793
    %v3514 = vunpack.c.l.b16 %v794
    %v3515 = vunpack.c.h.b16 %v794
    %v3516 = vunpack.c.l.b16 %v795
    %v3517 = vunpack.c.h.b16 %v795
    %v3518 = vunpack.c.l.b16 %v796
    %v3519 = vunpack.c.h.b16 %v796
    %v3520 = vunpack.c.l.b16 %v797
    %v3521 = vunpack.c.h.b16 %v797
    %v3522 = vunpack.c.l.b16 %v798
    %v3523 = vunpack.c.h.b16 %v798
    %v3524 = vunpack.c.l.b16 %v799
    %v3525 = vunpack.c.h.b16 %v799
    %v3526 = vunpack.c.l.b16 %v800
    %v3527 = vunpack.c.h.b16 %v800
    %v3528 = vunpack.c.l.b16 %v801
    %v3529 = vunpack.c.h.b16 %v801
    %v3530 = vunpack.c.l.b16 %v802
    %v3531 = vunpack.c.h.b16 %v802
    %v3532 = vunpack.c.l.b16 %v803
    %v3533 = vunpack.c.h.b16 %v803
    %v3534 = vunpack.c.l.b16 %v804
    %v3535 = vunpack.c.h.b16 %v804
    %v3536 = vunpack.c.l.b16 %v805
    %v3537 = vunpack.c.h.b16 %v805
    %v3538 = vunpack.c.l.b16 %v806
    %v3539 = vunpack.c.h.b16 %v806
    %v3540 = vunpack.c.l.b16 %v807
    %v3541 = vunpack.c.h.b16 %v807
    %v3542 = vunpack.c.l.b16 %v808
    %v3543 = vunpack.c.h.b16 %v808
    %v3544 = vunpack.c.l.b16 %v809
    %v3545 = vunpack.c.h.b16 %v809
    %v3546 = vunpack.c.l.b16 %v810
    %v3547 = vunpack.c.h.b16 %v810
    %v3548 = vunpack.c.l.b16 %v811
    %v3549 = vunpack.c.h.b16 %v811
    %v3550 = vunpack.c.l.b16 %v812
    %v3551 = vunpack.c.h.b16 %v812
    %v3552 = vunpack.c.l.b16 %v813
    %v3553 = vunpack.c.h.b16 %v813
    %v3554 = vunpack.c.l.b16 %v814
    %v3555 = vunpack.c.h.b16 %v814
    %v3556 = vunpack.c.l.b16 %v815
    %v3557 = vunpack.c.h.b16 %v815
    %v3558 = vunpack.c.l.b16 %v816
    %v3559 = vunpack.c.h.b16 %v816
    %v3560 = vunpack.c.l.b16 %v817
    %v3561 = vunpack.c.h.b16 %v817
    %v3562 = vunpack.c.l.b16 %v818
    %v3563 = vunpack.c.h.b16 %v818
    %v3564 = vunpack.c.l.b16 %v819
    %v3565 = vunpack.c.h.b16 %v819
    %v3566 = vunpack.c.l.b16 %v820
    %v3567 = vunpack.c.h.b16 %v820
    %v3568 = vunpack.c.l.b16 %v821
    %v3569 = vunpack.c.h.b16 %v821
    %v3570 = vunpack.c.l.b16 %v822
    %v3571 = vunpack.c.h.b16 %v822
    %v3572 = vunpack.c.l.b16 %v823
    %v3573 = vunpack.c.h.b16 %v823
    %v3574 = vunpack.c.l.b16 %v824
    %v3575 = vunpack.c.h.b16 %v824
    %v3576 = vunpack.c.l.b16 %v825
    %v3577 = vunpack.c.h.b16 %v825
    %v3578 = vunpack.c.l.b16 %v826
    %v3579 = vunpack.c.h.b16 %v826
    %v3580 = vunpack.c.l.b16 %v827
    %v3581 = vunpack.c.h.b16 %v827
    %v3582 = vunpack.c.l.b16 %v828
    %v3583 = vunpack.c.h.b16 %v828
    %v3584 = vunpack.c.l.b16 %v829
    %v3585 = vunpack.c.h.b16 %v829
    %v3586 = vunpack.c.l.b16 %v830
    %v3587 = vunpack.c.h.b16 %v830
    %v3588 = vunpack.c.l.b16 %v831
    %v3589 = vunpack.c.h.b16 %v831
    %v3590 = vunpack.c.l.b16 %v832
    %v3591 = vunpack.c.h.b16 %v832
    %v3592 = vunpack.c.l.b16 %v833
    %v3593 = vunpack.c.h.b16 %v833
    %v3594 = vunpack.c.l.b16 %v834
    %v3595 = vunpack.c.h.b16 %v834
    %v3596 = vunpack.c.l.b16 %v835
    %v3597 = vunpack.c.h.b16 %v835
    %v3598 = vunpack.c.l.b16 %v836
    %v3599 = vunpack.c.h.b16 %v836
    %v3600 = vunpack.c.l.b16 %v837
    %v3601 = vunpack.c.h.b16 %v837
    %v3602 = vunpack.c.l.b16 %v838
    %v3603 = vunpack.c.h.b16 %v838
    %v3604 = vunpack.c.l.b16 %v839
    %v3605 = vunpack.c.h.b16 %v839
    %v3606 = vunpack.c.l.b16 %v840
    %v3607 = vunpack.c.h.b16 %v840
    %v3608 = vunpack.c.l.b16 %v841
    %v3609 = vunpack.c.h.b16 %v841
    %v3610 = vunpack.c.l.b16 %v842
    %v3611 = vunpack.c.h.b16 %v842
    %v3612 = vunpack.c.l.b16 %v843
    %v3613 = vunpack.c.h.b16 %v843
    %v3614 = vunpack.c.l.b16 %v844
    %v3615 = vunpack.c.h.b16 %v844
    %v3616 = vunpack.c.l.b16 %v845
    %v3617 = vunpack.c.h.b16 %v845
    %v3618 = vunpack.c.l.b16 %v846
    %v3619 = vunpack.c.h.b16 %v846
    %v3620 = vunpack.c.l.b16 %v847
    %v3621 = vunpack.c.h.b16 %v847
    %v3622 = vunpack.c.l.b16 %v848
    %v3623 = vunpack.c.h.b16 %v848
    %v3624 = vunpack.c.l.b16 %v849
    %v3625 = vunpack.c.h.b16 %v849
    %v3626 = vunpack.c.l.b16 %v850
    %v3627 = vunpack.c.h.b16 %v850
    %v3628 = vunpack.c.l.b16 %v851
    %v3629 = vunpack.c.h.b16 %v851
    %v3630 = vunpack.c.l.b16 %v852
    %v3631 = vunpack.c.h.b16 %v852
    %v3632 = vunpack.c.l.b16 %v853
    %v3633 = vunpack.c.h.b16 %v853
    %v3634 = vunpack.c.l.b16 %v854
    %v3635 = vunpack.c.h.b16 %v854
    %v3636 = vunpack.c.l.b16 %v855
    %v3637 = vunpack.c.h.b16 %v855
    %v3638 = vunpack.c.l.b16 %v856
    %v3639 = vunpack.c.h.b16 %v856
    %v3640 = vunpack.c.l.b16 %v857
    %v3641 = vunpack.c.h.b16 %v857
    %v3642 = vunpack.c.l.b16 %v858
    %v3643 = vunpack.c.h.b16 %v858
    %v3644 = vunpack.c.l.b16 %v859
    %v3645 = vunpack.c.h.b16 %v859
    %v3646 = vunpack.c.l.b16 %v860
    %v3647 = vunpack.c.h.b16 %v860
    %v3648 = vunpack.c.l.b16 %v861
    %v3649 = vunpack.c.h.b16 %v861
    %v3650 = vunpack.c.l.b16 %v862
    %v3651 = vunpack.c.h.b16 %v862
    %v3652 = vunpack.c.l.b16 %v863
    %v3653 = vunpack.c.h.b16 %v863
    %v3654 = vunpack.c.l.b16 %v864
    %v3655 = vunpack.c.h.b16 %v864
    %v3656 = vunpack.c.l.b16 %v865
    %v3657 = vunpack.c.h.b16 %v865
    %v3658 = vunpack.c.l.b16 %v866
    %v3659 = vunpack.c.h.b16 %v866
    %v3660 = vunpack.c.l.b16 %v867
    %v3661 = vunpack.c.h.b16 %v867
    %v3662 = vunpack.c.l.b16 %v868
    %v3663 = vunpack.c.h.b16 %v868
    %v3664 = vunpack.c.l.b16 %v869
    %v3665 = vunpack.c.h.b16 %v869
    %v3666 = vunpack.c.l.b16 %v870
    %v3667 = vunpack.c.h.b16 %v870
    %v3668 = vunpack.c.l.b16 %v871
    %v3669 = vunpack.c.h.b16 %v871
    %v3670 = vunpack.c.l.b16 %v872
    %v3671 = vunpack.c.h.b16 %v872
    %v3672 = vunpack.c.l.b16 %v873
    %v3673 = vunpack.c.h.b16 %v873
    %v3674 = vunpack.c.l.b16 %v874
    %v3675 = vunpack.c.h.b16 %v874
    %v3676 = vunpack.c.l.b16 %v875
    %v3677 = vunpack.c.h.b16 %v875
    %v3678 = vunpack.c.l.b16 %v876
    %v3679 = vunpack.c.h.b16 %v876
    %v3680 = vunpack.c.l.b16 %v877
    %v3681 = vunpack.c.h.b16 %v877
    %v3682 = vunpack.c.l.b16 %v878
    %v3683 = vunpack.c.h.b16 %v878
    %v3684 = vunpack.c.l.b16 %v879
    %v3685 = vunpack.c.h.b16 %v879
    %v3686 = vunpack.c.l.b16 %v880
    %v3687 = vunpack.c.h.b16 %v880
    %v3688 = vunpack.c.l.b16 %v881
    %v3689 = vunpack.c.h.b16 %v881
    %v3690 = vunpack.c.l.b16 %v882
    %v3691 = vunpack.c.h.b16 %v882
    %v3692 = vunpack.c.l.b16 %v883
    %v3693 = vunpack.c.h.b16 %v883
    %v3694 = vunpack.c.l.b16 %v884
    %v3695 = vunpack.c.h.b16 %v884
    %v3696 = vunpack.c.l.b16 %v885
    %v3697 = vunpack.c.h.b16 %v885
    %v3698 = vunpack.c.l.b16 %v886
    %v3699 = vunpack.c.h.b16 %v886
    %v3700 = vunpack.c.l.b16 %v887
    %v3701 = vunpack.c.h.b16 %v887
    %v3702 = vunpack.c.l.b16 %v888
    %v3703 = vunpack.c.h.b16 %v888
    %v3704 = vunpack.c.l.b16 %v889
    %v3705 = vunpack.c.h.b16 %v889
    %v3706 = vunpack.c.l.b16 %v890
    %v3707 = vunpack.c.h.b16 %v890
    %v3708 = vunpack.c.l.b16 %v891
    %v3709 = vunpack.c.h.b16 %v891
    %v3710 = vunpack.c.l.b16 %v892
    %v3711 = vunpack.c.h.b16 %v892
    %v3712 = vunpack.c.l.b16 %v893
    %v3713 = vunpack.c.h.b16 %v893
    %v3714 = vunpack.c.l.b16 %v894
    %v3715 = vunpack.c.h.b16 %v894
    %v3716 = vunpack.c.l.b16 %v895
    %v3717 = vunpack.c.h.b16 %v895
    %v3718 = vunpack.c.l.b16 %v896
    %v3719 = vunpack.c.h.b16 %v896
    %v3720 = vunpack.c.l.b16 %v897
    %v3721 = vunpack.c.h.b16 %v897
    %v3722 = vunpack.c.l.b16 %v898
    %v3723 = vunpack.c.h.b16 %v898
    %v3724 = vunpack.c.l.b16 %v899
    %v3725 = vunpack.c.h.b16 %v899
    %v3726 = vunpack.c.l.b16 %v900
    %v3727 = vunpack.c.h.b16 %v900
    %v3728 = vunpack.c.l.b16 %v901
    %v3729 = vunpack.c.h.b16 %v901
    %v3730 = vunpack.c.l.b16 %v902
    %v3731 = vunpack.c.h.b16 %v902
    %v3732 = vunpack.c.l.b16 %v903
    %v3733 = vunpack.c.h.b16 %v903
    %v3734 = vunpack.c.l.b16 %v904
    %v3735 = vunpack.c.h.b16 %v904
    %v3736 = vunpack.c.l.b16 %v905
    %v3737 = vunpack.c.h.b16 %v905
    %v3738 = vunpack.c.l.b16 %v906
    %v3739 = vunpack.c.h.b16 %v906
    %v3740 = vunpack.c.l.b16 %v907
    %v3741 = vunpack.c.h.b16 %v907
    %v3742 = vunpack.c.l.b16 %v908
    %v3743 = vunpack.c.h.b16 %v908
    %v3744 = vunpack.c.l.b16 %v909
    %v3745 = vunpack.c.h.b16 %v909
    %v3746 = vunpack.c.l.b16 %v910
    %v3747 = vunpack.c.h.b16 %v910
    %v3748 = vunpack.c.l.b16 %v911
    %v3749 = vunpack.c.h.b16 %v911
    %v3750 = vunpack.c.l.b16 %v912
    %v3751 = vunpack.c.h.b16 %v912
    %v3752 = vunpack.c.l.b16 %v913
    %v3753 = vunpack.c.h.b16 %v913
    %v3754 = vunpack.c.l.b16 %v914
    %v3755 = vunpack.c.h.b16 %v914
    %v3756 = vunpack.c.l.b16 %v915
    %v3757 = vunpack.c.h.b16 %v915
    %v3758 = vunpack.c.l.b16 %v916
    %v3759 = vunpack.c.h.b16 %v916
    %v3760 = vunpack.c.l.b16 %v917
    %v3761 = vunpack.c.h.b16 %v917
    %v3762 = vunpack.c.l.b16 %v918
    %v3763 = vunpack.c.h.b16 %v918
    %v3764 = vunpack.c.l.b16 %v919
    %v3765 = vunpack.c.h.b16 %v919
    %v3766 = vunpack.c.l.b16 %v920
    %v3767 = vunpack.c.h.b16 %v920
    %v3768 = vunpack.c.l.b16 %v921
    %v3769 = vunpack.c.h.b16 %v921
    %v3770 = vunpack.c.l.b16 %v922
    %v3771 = vunpack.c.h.b16 %v922
    %v3772 = vunpack.c.l.b16 %v923
    %v3773 = vunpack.c.h.b16 %v923
    %v3774 = vunpack.c.l.b16 %v924
    %v3775 = vunpack.c.h.b16 %v924
    %v3776 = vunpack.c.l.b16 %v925
    %v3777 = vunpack.c.h.b16 %v925
    %v3778 = vunpack.c.l.b16 %v926
    %v3779 = vunpack.c.h.b16 %v926
    %v3780 = vunpack.c.l.b16 %v927
    %v3781 = vunpack.c.h.b16 %v927
    %v3782 = vunpack.c.l.b16 %v928
    %v3783 = vunpack.c.h.b16 %v928
    %v3784 = vunpack.c.l.b16 %v929
    %v3785 = vunpack.c.h.b16 %v929
    %v3786 = vunpack.c.l.b16 %v930
    %v3787 = vunpack.c.h.b16 %v930
    %v3788 = vunpack.c.l.b16 %v931
    %v3789 = vunpack.c.h.b16 %v931
    %v3790 = vunpack.c.l.b16 %v932
    %v3791 = vunpack.c.h.b16 %v932
    %v3792 = vunpack.c.l.b16 %v933
    %v3793 = vunpack.c.h.b16 %v933
    %v3794 = vunpack.c.l.b16 %v934
    %v3795 = vunpack.c.h.b16 %v934
    %v3796 = vunpack.c.l.b16 %v935
    %v3797 = vunpack.c.h.b16 %v935
    %v3798 = vunpack.c.l.b16 %v936
    %v3799 = vunpack.c.h.b16 %v936
    %v3800 = vunpack.c.l.b16 %v937
    %v3801 = vunpack.c.h.b16 %v937
    %v3802 = vunpack.c.l.b16 %v938
    %v3803 = vunpack.c.h.b16 %v938
    %v3804 = vunpack.c.l.b16 %v939
    %v3805 = vunpack.c.h.b16 %v939
    %v3806 = vunpack.c.l.b16 %v940
    %v3807 = vunpack.c.h.b16 %v940
    %v3808 = vunpack.c.l.b16 %v941
    %v3809 = vunpack.c.h.b16 %v941
    %v3810 = vunpack.c.l.b16 %v942
    %v3811 = vunpack.c.h.b16 %v942
    %v3812 = vunpack.c.l.b16 %v943
    %v3813 = vunpack.c.h.b16 %v943
    %v3814 = vunpack.c.l.b16 %v944
    %v3815 = vunpack.c.h.b16 %v944
    %v3816 = vunpack.c.l.b16 %v945
    %v3817 = vunpack.c.h.b16 %v945
    %v3818 = vunpack.c.l.b16 %v946
    %v3819 = vunpack.c.h.b16 %v946
    %v3820 = vunpack.c.l.b16 %v947
    %v3821 = vunpack.c.h.b16 %v947
    %v3822 = vunpack.c.l.b16 %v948
    %v3823 = vunpack.c.h.b16 %v948
    %v3824 = vunpack.c.l.b16 %v949
    %v3825 = vunpack.c.h.b16 %v949
    %v3826 = vunpack.c.l.b16 %v950
    %v3827 = vunpack.c.h.b16 %v950
    %v3828 = vunpack.c.l.b16 %v951
    %v3829 = vunpack.c.h.b16 %v951
    %v3830 = vunpack.c.l.b16 %v952
    %v3831 = vunpack.c.h.b16 %v952
    %v3832 = vunpack.c.l.b16 %v953
    %v3833 = vunpack.c.h.b16 %v953
    %v3834 = vunpack.c.l.b16 %v954
    %v3835 = vunpack.c.h.b16 %v954
    %v3836 = vunpack.c.l.b16 %v955
    %v3837 = vunpack.c.h.b16 %v955
    %v3838 = vunpack.c.l.b16 %v956
    %v3839 = vunpack.c.h.b16 %v956
    %v3840 = vunpack.c.l.b16 %v957
    %v3841 = vunpack.c.h.b16 %v957
    %v3842 = vunpack.c.l.b16 %v958
    %v3843 = vunpack.c.h.b16 %v958
    %v3844 = vunpack.c.l.b16 %v959
    %v3845 = vunpack.c.h.b16 %v959
    %v3846 = vunpack.c.l.b16 %v960
    %v3847 = vunpack.c.h.b16 %v960
    %v3848 = vunpack.c.l.b16 %v961
    %v3849 = vunpack.c.h.b16 %v961
    %v3850 = vunpack.c.l.b16 %v962
    %v3851 = vunpack.c.h.b16 %v962
    %v3852 = vunpack.c.l.b16 %v963
    %v3853 = vunpack.c.h.b16 %v963
    %v3854 = vunpack.c.l.b16 %v964
    %v3855 = vunpack.c.h.b16 %v964
    %v3856 = vunpack.c.l.b16 %v965
    %v3857 = vunpack.c.h.b16 %v965
    %v3858 = vunpack.c.l.b16 %v966
    %v3859 = vunpack.c.h.b16 %v966
    %v3860 = vunpack.c.l.b16 %v967
    %v3861 = vunpack.c.h.b16 %v967
    %v3862 = vunpack.c.l.b16 %v968
    %v3863 = vunpack.c.h.b16 %v968
    %v3864 = vunpack.c.l.b16 %v969
    %v3865 = vunpack.c.h.b16 %v969
    %v3866 = vunpack.c.l.b16 %v970
    %v3867 = vunpack.c.h.b16 %v970
    %v3868 = vunpack.c.l.b16 %v971
    %v3869 = vunpack.c.h.b16 %v971
    %v3870 = vunpack.c.l.b16 %v972
    %v3871 = vunpack.c.h.b16 %v972
    %v3872 = vunpack.c.l.b16 %v973
    %v3873 = vunpack.c.h.b16 %v973
    %v3874 = vunpack.c.l.b16 %v974
    %v3875 = vunpack.c.h.b16 %v974
    %v3876 = vunpack.c.l.b16 %v975
    %v3877 = vunpack.c.h.b16 %v975
    %v3878 = vunpack.c.l.b16 %v976
    %v3879 = vunpack.c.h.b16 %v976
    %v3880 = vunpack.c.l.b16 %v977
    %v3881 = vunpack.c.h.b16 %v977
    %v3882 = vunpack.c.l.b16 %v978
    %v3883 = vunpack.c.h.b16 %v978
    %v3884 = vunpack.c.l.b16 %v979
    %v3885 = vunpack.c.h.b16 %v979
    %v3886 = vunpack.c.l.b16 %v980
    %v3887 = vunpack.c.h.b16 %v980
    %v3888 = vunpack.c.l.b16 %v981
    %v3889 = vunpack.c.h.b16 %v981
    %v3890 = vunpack.c.l.b16 %v982
    %v3891 = vunpack.c.h.b16 %v982
    %v3892 = vunpack.c.l.b16 %v983
    %v3893 = vunpack.c.h.b16 %v983
    %v3894 = vunpack.c.l.b16 %v984
    %v3895 = vunpack.c.h.b16 %v984
    %v3896 = vunpack.c.l.b16 %v985
    %v3897 = vunpack.c.h.b16 %v985
    %v3898 = vunpack.c.l.b16 %v986
    %v3899 = vunpack.c.h.b16 %v986
    %v3900 = vunpack.c.l.b16 %v987
    %v3901 = vunpack.c.h.b16 %v987
    %v3902 = vunpack.c.l.b16 %v988
    %v3903 = vunpack.c.h.b16 %v988
    %v3904 = vunpack.c.l.b16 %v989
    %v3905 = vunpack.c.h.b16 %v989
    %v3906 = vunpack.c.l.b16 %v990
    %v3907 = vunpack.c.h.b16 %v990
    %v3908 = vunpack.c.l.b16 %v991
    %v3909 = vunpack.c.h.b16 %v991
    %v3910 = vunpack.c.l.b16 %v992
    %v3911 = vunpack.c.h.b16 %v992
    %v3912 = vunpack.c.l.b16 %v993
    %v3913 = vunpack.c.h.b16 %v993
    %v3914 = vunpack.c.l.b16 %v994
    %v3915 = vunpack.c.h.b16 %v994
    %v3916 = vunpack.c.l.b16 %v995
    %v3917 = vunpack.c.h.b16 %v995
    %v3918 = vunpack.c.l.b16 %v996
    %v3919 = vunpack.c.h.b16 %v996
    %v3920 = vunpack.c.l.b16 %v997
    %v3921 = vunpack.c.h.b16 %v997
    %v3922 = vunpack.c.l.b16 %v998
    %v3923 = vunpack.c.h.b16 %v998
    %v3924 = vunpack.c.l.b16 %v999
    %v3925 = vunpack.c.h.b16 %v999
    %v3926 = vunpack.c.l.b16 %v1000
    %v3927 = vunpack.c.h.b16 %v1000
    %v3928 = vunpack.c.l.b16 %v1001
    %v3929 = vunpack.c.h.b16 %v1001
    %v3930 = vunpack.c.l.b16 %v1002
    %v3931 = vunpack.c.h.b16 %v1002
    %v3932 = vunpack.c.l.b16 %v1003
    %v3933 = vunpack.c.h.b16 %v1003
    %v3934 = vunpack.c.l.b16 %v1004
    %v3935 = vunpack.c.h.b16 %v1004
    %v3936 = vunpack.c.l.b16 %v1005
    %v3937 = vunpack.c.h.b16 %v1005
    %v3938 = vunpack.c.l.b16 %v1006
    %v3939 = vunpack.c.h.b16 %v1006
    %v3940 = vunpack.c.l.b16 %v1007
    %v3941 = vunpack.c.h.b16 %v1007
    %v3942 = vunpack.c.l.b16 %v1008
    %v3943 = vunpack.c.h.b16 %v1008
    %v3944 = vunpack.c.l.b16 %v1009
    %v3945 = vunpack.c.h.b16 %v1009
    %v3946 = vunpack.c.l.b16 %v1010
    %v3947 = vunpack.c.h.b16 %v1010
    %v3948 = vunpack.c.l.b16 %v1011
    %v3949 = vunpack.c.h.b16 %v1011
    %v3950 = vunpack.c.l.b16 %v1012
    %v3951 = vunpack.c.h.b16 %v1012
    %v3952 = vunpack.c.l.b16 %v1013
    %v3953 = vunpack.c.h.b16 %v1013
    %v3954 = vunpack.c.l.b16 %v1014
    %v3955 = vunpack.c.h.b16 %v1014
    %v3956 = vunpack.c.l.b16 %v1015
    %v3957 = vunpack.c.h.b16 %v1015
    %v3958 = vunpack.c.l.b16 %v1016
    %v3959 = vunpack.c.h.b16 %v1016
    %v3960 = vunpack.c.l.b16 %v1017
    %v3961 = vunpack.c.h.b16 %v1017
    %v3962 = vunpack.c.l.b16 %v1018
    %v3963 = vunpack.c.h.b16 %v1018
    %v3964 = vunpack.c.l.b16 %v1019
    %v3965 = vunpack.c.h.b16 %v1019
    %v3966 = vunpack.c.l.b16 %v1020
    %v3967 = vunpack.c.h.b16 %v1020
    %v3968 = vunpack.c.l.b16 %v1021
    %v3969 = vunpack.c.h.b16 %v1021
    %v3970 = vunpack.c.l.b16 %v1022
    %v3971 = vunpack.c.h.b16 %v1022
    %v3972 = vunpack.c.l.b16 %v1023
    %v3973 = vunpack.c.h.b16 %v1023
    %v3974 = vunpack.c.l.b16 %v1024
    %v3975 = vunpack.c.h.b16 %v1024
    %v3976 = vunpack.c.l.b16 %v1025
    %v3977 = vunpack.c.h.b16 %v1025
    %v3978 = vunpack.c.l.b16 %v1026
    %v3979 = vunpack.c.h.b16 %v1026
    %v3980 = vunpack.c.l.b16 %v1027
    %v3981 = vunpack.c.h.b16 %v1027
    %v3982 = vunpack.c.l.b16 %v1028
    %v3983 = vunpack.c.h.b16 %v1028
    %v3984 = vunpack.c.l.b16 %v1029
    %v3985 = vunpack.c.h.b16 %v1029
    %v3986 = vunpack.c.l.b16 %v1030
    %v3987 = vunpack.c.h.b16 %v1030
    %v3988 = vunpack.c.l.b16 %v1031
    %v3989 = vunpack.c.h.b16 %v1031
    %v3990 = vunpack.c.l.b16 %v1032
    %v3991 = vunpack.c.h.b16 %v1032
    %v3992 = vunpack.c.l.b16 %v1033
    %v3993 = vunpack.c.h.b16 %v1033
    %v3994 = vunpack.c.l.b16 %v1034
    %v3995 = vunpack.c.h.b16 %v1034
    %v3996 = vunpack.c.l.b16 %v1035
    %v3997 = vunpack.c.h.b16 %v1035
    %v3998 = vunpack.c.l.b16 %v1036
    %v3999 = vunpack.c.h.b16 %v1036
    %v4000 = vunpack.c.l.b16 %v1037
    %v4001 = vunpack.c.h.b16 %v1037
    %v4002 = vunpack.c.l.b16 %v1038
    %v4003 = vunpack.c.h.b16 %v1038
    %v4004 = vunpack.c.l.b16 %v1039
    %v4005 = vunpack.c.h.b16 %v1039
    %v4006 = vunpack.c.l.b16 %v1040
    %v4007 = vunpack.c.h.b16 %v1040
    %v4008 = vunpack.c.l.b16 %v1041
    %v4009 = vunpack.c.h.b16 %v1041
    %v4010 = vunpack.c.l.b16 %v1042
    %v4011 = vunpack.c.h.b16 %v1042
    %v4012 = vunpack.c.l.b16 %v1043
    %v4013 = vunpack.c.h.b16 %v1043
    %v4014 = vunpack.c.l.b16 %v1044
    %v4015 = vunpack.c.h.b16 %v1044
    %v4016 = vunpack.c.l.b16 %v1045
    %v4017 = vunpack.c.h.b16 %v1045
    %v4018 = vunpack.c.l.b16 %v1046
    %v4019 = vunpack.c.h.b16 %v1046
    %v4020 = vunpack.c.l.b16 %v1047
    %v4021 = vunpack.c.h.b16 %v1047
    %v4022 = vunpack.c.l.b16 %v1048
    %v4023 = vunpack.c.h.b16 %v1048
    %v4024 = vunpack.c.l.b16 %v1049
    %v4025 = vunpack.c.h.b16 %v1049
    %v4026 = vunpack.c.l.b16 %v1050
    %v4027 = vunpack.c.h.b16 %v1050
    %v4028 = vunpack.c.l.b16 %v1051
    %v4029 = vunpack.c.h.b16 %v1051
    %v4030 = vunpack.c.l.b16 %v1052
    %v4031 = vunpack.c.h.b16 %v1052
    %v4032 = vunpack.c.l.b16 %v1053
    %v4033 = vunpack.c.h.b16 %v1053
    %v4034 = vunpack.c.l.b16 %v1054
    %v4035 = vunpack.c.h.b16 %v1054
    %v4036 = vunpack.c.l.b16 %v1055
    %v4037 = vunpack.c.h.b16 %v1055
    %v4038 = vunpack.c.l.b16 %v1056
    %v4039 = vunpack.c.h.b16 %v1056
    %v4040 = vunpack.c.l.b16 %v1057
    %v4041 = vunpack.c.h.b16 %v1057
    %v4042 = vunpack.c.l.b16 %v1058
    %v4043 = vunpack.c.h.b16 %v1058
    %v4044 = vunpack.c.l.b16 %v1059
    %v4045 = vunpack.c.h.b16 %v1059
    %v4046 = vunpack.c.l.b16 %v1060
    %v4047 = vunpack.c.h.b16 %v1060
    %v4048 = vunpack.c.l.b16 %v1061
    %v4049 = vunpack.c.h.b16 %v1061
    %v4050 = vunpack.c.l.b16 %v1062
    %v4051 = vunpack.c.h.b16 %v1062
    %v4052 = vunpack.c.l.b16 %v1063
    %v4053 = vunpack.c.h.b16 %v1063
    %v4054 = vunpack.c.l.b16 %v1064
    %v4055 = vunpack.c.h.b16 %v1064
    %v4056 = vunpack.c.l.b16 %v1065
    %v4057 = vunpack.c.h.b16 %v1065
    %v4058 = vunpack.c.l.b16 %v1066
    %v4059 = vunpack.c.h.b16 %v1066
    %v4060 = vunpack.c.l.b16 %v1067
    %v4061 = vunpack.c.h.b16 %v1067
    %v4062 = vunpack.c.l.b16 %v1068
    %v4063 = vunpack.c.h.b16 %v1068
    %v4064 = vunpack.c.l.b16 %v1069
    %v4065 = vunpack.c.h.b16 %v1069
    %v4066 = vunpack.c.l.b16 %v1070
    %v4067 = vunpack.c.h.b16 %v1070
    %v4068 = vunpack.c.l.b16 %v1071
    %v4069 = vunpack.c.h.b16 %v1071
    %v4070 = vunpack.c.l.b16 %v1072
    %v4071 = vunpack.c.h.b16 %v1072
    %v4072 = vunpack.c.l.b16 %v1073
    %v4073 = vunpack.c.h.b16 %v1073
    %v4074 = vunpack.c.l.b16 %v1074
    %v4075 = vunpack.c.h.b16 %v1074
    %v4076 = vunpack.c.l.b16 %v1075
    %v4077 = vunpack.c.h.b16 %v1075
    %v4078 = vunpack.c.l.b16 %v1076
    %v4079 = vunpack.c.h.b16 %v1076
    %v4080 = vunpack.c.l.b16 %v1077
    %v4081 = vunpack.c.h.b16 %v1077
    %v4082 = vunpack.c.l.b16 %v1078
    %v4083 = vunpack.c.h.b16 %v1078
    %v4084 = vunpack.c.l.b16 %v1079
    %v4085 = vunpack.c.h.b16 %v1079
    %v4086 = vunpack.c.l.b16 %v1080
    %v4087 = vunpack.c.h.b16 %v1080
    %v4088 = vunpack.c.l.b16 %v1081
    %v4089 = vunpack.c.h.b16 %v1081
    %v4090 = vunpack.c.l.b16 %v1082
    %v4091 = vunpack.c.h.b16 %v1082
    %v4092 = vunpack.c.l.b16 %v1083
    %v4093 = vunpack.c.h.b16 %v1083
    %v4094 = vunpack.c.l.b16 %v1084
    %v4095 = vunpack.c.h.b16 %v1084
    %v4096 = vunpack.c.l.b16 %v1085
    %v4097 = vunpack.c.h.b16 %v1085
    %v4098 = vunpack.c.l.b16 %v1086
    %v4099 = vunpack.c.h.b16 %v1086
    %v4100 = vunpack.c.l.b16 %v1087
    %v4101 = vunpack.c.h.b16 %v1087
    %v4102 = vunpack.c.l.b16 %v1088
    %v4103 = vunpack.c.h.b16 %v1088
    %v4104 = vunpack.c.l.b16 %v1089
    %v4105 = vunpack.c.h.b16 %v1089
    %v4106 = vunpack.c.l.b16 %v1090
    %v4107 = vunpack.c.h.b16 %v1090
    %v4108 = vunpack.c.l.b16 %v1091
    %v4109 = vunpack.c.h.b16 %v1091
    %v4110 = vunpack.c.l.b16 %v1092
    %v4111 = vunpack.c.h.b16 %v1092
    %v4112 = vunpack.c.l.b16 %v1093
    %v4113 = vunpack.c.h.b16 %v1093
    %v4114 = vunpack.c.l.b16 %v1094
    %v4115 = vunpack.c.h.b16 %v1094
    %v4116 = vunpack.c.l.b16 %v1095
    %v4117 = vunpack.c.h.b16 %v1095
    %v4118 = vunpack.c.l.b16 %v1096
    %v4119 = vunpack.c.h.b16 %v1096
    %v4120 = vunpack.c.l.b16 %v1097
    %v4121 = vunpack.c.h.b16 %v1097
    %v4122 = vunpack.c.l.b16 %v1098
    %v4123 = vunpack.c.h.b16 %v1098
    %v4124 = vunpack.c.l.b16 %v1099
    %v4125 = vunpack.c.h.b16 %v1099
    %v4126 = vunpack.c.l.b16 %v1100
    %v4127 = vunpack.c.h.b16 %v1100
    %v4128 = vunpack.c.l.b16 %v1101
    %v4129 = vunpack.c.h.b16 %v1101
    %v4130 = vunpack.c.l.b16 %v1102
    %v4131 = vunpack.c.h.b16 %v1102
    %v4132 = vunpack.c.l.b16 %v1103
    %v4133 = vunpack.c.h.b16 %v1103
    %v4134 = vunpack.c.l.b16 %v1104
    %v4135 = vunpack.c.h.b16 %v1104
    %v4136 = vunpack.c.l.b16 %v1105
    %v4137 = vunpack.c.h.b16 %v1105
    %v4138 = vunpack.c.l.b16 %v1106
    %v4139 = vunpack.c.h.b16 %v1106
    %v4140 = vunpack.c.l.b16 %v1107
    %v4141 = vunpack.c.h.b16 %v1107
    %v4142 = vunpack.c.l.b16 %v1108
    %v4143 = vunpack.c.h.b16 %v1108
    %v4144 = vunpack.c.l.b16 %v1109
    %v4145 = vunpack.c.h.b16 %v1109
    %v4146 = vunpack.c.l.b16 %v1110
    %v4147 = vunpack.c.h.b16 %v1110
    %v4148 = vunpack.c.l.b16 %v1111
    %v4149 = vunpack.c.h.b16 %v1111
    %v4150 = vunpack.c.l.b16 %v1112
    %v4151 = vunpack.c.h.b16 %v1112
    %v4152 = vunpack.c.l.b16 %v1113
    %v4153 = vunpack.c.h.b16 %v1113
    %v4154 = vunpack.c.l.b16 %v1114
    %v4155 = vunpack.c.h.b16 %v1114
    %v4156 = vunpack.c.l.b16 %v1115
    %v4157 = vunpack.c.h.b16 %v1115
    %v4158 = vunpack.c.l.b16 %v1116
    %v4159 = vunpack.c.h.b16 %v1116
    %v4160 = vunpack.c.l.b16 %v1117
    %v4161 = vunpack.c.h.b16 %v1117
    %v4162 = vunpack.c.l.b16 %v1118
    %v4163 = vunpack.c.h.b16 %v1118
    %v4164 = vunpack.c.l.b16 %v1119
    %v4165 = vunpack.c.h.b16 %v1119
    %v4166 = vunpack.c.l.b16 %v1120
    %v4167 = vunpack.c.h.b16 %v1120
    %v4168 = vunpack.c.l.b16 %v1121
    %v4169 = vunpack.c.h.b16 %v1121
    %v4170 = vunpack.c.l.b16 %v1122
    %v4171 = vunpack.c.h.b16 %v1122
    %v4172 = vunpack.c.l.b16 %v1123
    %v4173 = vunpack.c.h.b16 %v1123
    %v4174 = vunpack.c.l.b16 %v1124
    %v4175 = vunpack.c.h.b16 %v1124
    %v4176 = vunpack.c.l.b16 %v1125
    %v4177 = vunpack.c.h.b16 %v1125
    %v4178 = vunpack.c.l.b16 %v1126
    %v4179 = vunpack.c.h.b16 %v1126
    %v4180 = vunpack.c.l.b16 %v1127
    %v4181 = vunpack.c.h.b16 %v1127
    %v4182 = vunpack.c.l.b16 %v1128
    %v4183 = vunpack.c.h.b16 %v1128
    %v4184 = vunpack.c.l.b16 %v1129
    %v4185 = vunpack.c.h.b16 %v1129
    %v4186 = vunpack.c.l.b16 %v1130
    %v4187 = vunpack.c.h.b16 %v1130
    %v4188 = vunpack.c.l.b16 %v1131
    %v4189 = vunpack.c.h.b16 %v1131
    %v4190 = vunpack.c.l.b16 %v1132
    %v4191 = vunpack.c.h.b16 %v1132
    %v4192 = vunpack.c.l.b16 %v1133
    %v4193 = vunpack.c.h.b16 %v1133
    %v4194 = vunpack.c.l.b16 %v1134
    %v4195 = vunpack.c.h.b16 %v1134
    %v4196 = vunpack.c.l.b16 %v1135
    %v4197 = vunpack.c.h.b16 %v1135
    %v4198 = vunpack.c.l.b16 %v1136
    %v4199 = vunpack.c.h.b16 %v1136
    %v4200 = vunpack.c.l.b16 %v1137
    %v4201 = vunpack.c.h.b16 %v1137
    %v4202 = vunpack.c.l.b16 %v1138
    %v4203 = vunpack.c.h.b16 %v1138
    %v4204 = vunpack.c.l.b16 %v1139
    %v4205 = vunpack.c.h.b16 %v1139
    %v4206 = vunpack.c.l.b16 %v1140
    %v4207 = vunpack.c.h.b16 %v1140
    %v4208 = vunpack.c.l.b16 %v1141
    %v4209 = vunpack.c.h.b16 %v1141
    %v4210 = vunpack.c.l.b16 %v1142
    %v4211 = vunpack.c.h.b16 %v1142
    %v4212 = vunpack.c.l.b16 %v1143
    %v4213 = vunpack.c.h.b16 %v1143
    %v4214 = vunpack.c.l.b16 %v1144
    %v4215 = vunpack.c.h.b16 %v1144
    %v4216 = vunpack.c.l.b16 %v1145
    %v4217 = vunpack.c.h.b16 %v1145
    %v4218 = vunpack.c.l.b16 %v1146
    %v4219 = vunpack.c.h.b16 %v1146
    %v4220 = vunpack.c.l.b16 %v1147
    %v4221 = vunpack.c.h.b16 %v1147
    %v4222 = vunpack.c.l.b16 %v1148
    %v4223 = vunpack.c.h.b16 %v1148
    %v4224 = vunpack.c.l.b16 %v1149
    %v4225 = vunpack.c.h.b16 %v1149
    %v4226 = vunpack.c.l.b16 %v1150
    %v4227 = vunpack.c.h.b16 %v1150
    %v4228 = vunpack.c.l.b16 %v1151
    %v4229 = vunpack.c.h.b16 %v1151
    %v4230 = vunpack.c.l.b16 %v1152
    %v4231 = vunpack.c.h.b16 %v1152
    %v4232 = vunpack.c.l.b16 %v1153
    %v4233 = vunpack.c.h.b16 %v1153
    %v4234 = vunpack.c.l.b16 %v1154
    %v4235 = vunpack.c.h.b16 %v1154
    %v4236 = vunpack.c.l.b16 %v1155
    %v4237 = vunpack.c.h.b16 %v1155
    %v4238 = vunpack.c.l.b16 %v1156
    %v4239 = vunpack.c.h.b16 %v1156
    %v4240 = vunpack.c.l.b16 %v1157
    %v4241 = vunpack.c.h.b16 %v1157
    %v4242 = vunpack.c.l.b16 %v1158
    %v4243 = vunpack.c.h.b16 %v1158
    %v4244 = vunpack.c.l.b16 %v1159
    %v4245 = vunpack.c.h.b16 %v1159
    %v4246 = vunpack.c.l.b16 %v1160
    %v4247 = vunpack.c.h.b16 %v1160
    %v4248 = vunpack.c.l.b16 %v1161
    %v4249 = vunpack.c.h.b16 %v1161
    %v4250 = vunpack.c.l.b16 %v1162
    %v4251 = vunpack.c.h.b16 %v1162
    %v4252 = vunpack.c.l.b16 %v1163
    %v4253 = vunpack.c.h.b16 %v1163
    %v4254 = vunpack.c.l.b16 %v1164
    %v4255 = vunpack.c.h.b16 %v1164
    %v4256 = vunpack.c.l.b16 %v1165
    %v4257 = vunpack.c.h.b16 %v1165
    %v4258 = vunpack.c.l.b16 %v1166
    %v4259 = vunpack.c.h.b16 %v1166
    %v4260 = vunpack.c.l.b16 %v1167
    %v4261 = vunpack.c.h.b16 %v1167
    %v4262 = vunpack.c.l.b16 %v1168
    %v4263 = vunpack.c.h.b16 %v1168
    %v4264 = vunpack.c.l.b16 %v1169
    %v4265 = vunpack.c.h.b16 %v1169
    %v4266 = vunpack.c.l.b16 %v1170
    %v4267 = vunpack.c.h.b16 %v1170
    %v4268 = vunpack.c.l.b16 %v1171
    %v4269 = vunpack.c.h.b16 %v1171
    %v4270 = vunpack.c.l.b16 %v1172
    %v4271 = vunpack.c.h.b16 %v1172
    %v4272 = vunpack.c.l.b16 %v1173
    %v4273 = vunpack.c.h.b16 %v1173
    %v4274 = vunpack.c.l.b16 %v1174
    %v4275 = vunpack.c.h.b16 %v1174
    %v4276 = vunpack.c.l.b16 %v1175
    %v4277 = vunpack.c.h.b16 %v1175
    %v4278 = vunpack.c.l.b16 %v1176
    %v4279 = vunpack.c.h.b16 %v1176
    %v4280 = vunpack.c.l.b16 %v1177
    %v4281 = vunpack.c.h.b16 %v1177
    %v4282 = vunpack.c.l.b16 %v1178
    %v4283 = vunpack.c.h.b16 %v1178
    %v4284 = vunpack.c.l.b16 %v1179
    %v4285 = vunpack.c.h.b16 %v1179
    %v4286 = vunpack.c.l.b16 %v1180
    %v4287 = vunpack.c.h.b16 %v1180
    %v4288 = vunpack.c.l.b16 %v1181
    %v4289 = vunpack.c.h.b16 %v1181
    %v4290 = vunpack.c.l.b16 %v1182
    %v4291 = vunpack.c.h.b16 %v1182
    %v4292 = vunpack.c.l.b16 %v1183
    %v4293 = vunpack.c.h.b16 %v1183
    %v4294 = vunpack.c.l.b16 %v1184
    %v4295 = vunpack.c.h.b16 %v1184
    %v4296 = vunpack.c.l.b16 %v1185
    %v4297 = vunpack.c.h.b16 %v1185
    %v4298 = vunpack.c.l.b16 %v1186
    %v4299 = vunpack.c.h.b16 %v1186
    %v4300 = vunpack.c.l.b16 %v1187
    %v4301 = vunpack.c.h.b16 %v1187
    %v4302 = vunpack.c.l.b16 %v1188
    %v4303 = vunpack.c.h.b16 %v1188
    %v4304 = vunpack.c.l.b16 %v1189
    %v4305 = vunpack.c.h.b16 %v1189
    %v4306 = vunpack.c.l.b16 %v1190
    %v4307 = vunpack.c.h.b16 %v1190
    %v4308 = vunpack.c.l.b16 %v1191
    %v4309 = vunpack.c.h.b16 %v1191
    %v4310 = vunpack.c.l.b16 %v1192
    %v4311 = vunpack.c.h.b16 %v1192
    %v4312 = vunpack.c.l.b16 %v1193
    %v4313 = vunpack.c.h.b16 %v1193
    %v4314 = vunpack.c.l.b16 %v1194
    %v4315 = vunpack.c.h.b16 %v1194
    %v4316 = vunpack.c.l.b16 %v1195
    %v4317 = vunpack.c.h.b16 %v1195
    %v4318 = vunpack.c.l.b16 %v1196
    %v4319 = vunpack.c.h.b16 %v1196
    %v4320 = vunpack.c.l.b16 %v1197
    %v4321 = vunpack.c.h.b16 %v1197
    %v4322 = vunpack.c.l.b16 %v1198
    %v4323 = vunpack.c.h.b16 %v1198
    %v4324 = vunpack.c.l.b16 %v1199
    %v4325 = vunpack.c.h.b16 %v1199
    %v4326 = vunpack.c.l.b16 %v1200
    %v4327 = vunpack.c.h.b16 %v1200
    %v4328 = vunpack.c.l.b16 %v1201
    %v4329 = vunpack.c.h.b16 %v1201
    %v4330 = vunpack.c.l.b16 %v1202
    %v4331 = vunpack.c.h.b16 %v1202
    %v4332 = vunpack.c.l.b16 %v1203
    %v4333 = vunpack.c.h.b16 %v1203
    %v4334 = vunpack.c.l.b16 %v1204
    %v4335 = vunpack.c.h.b16 %v1204
    %v4336 = vunpack.c.l.b16 %v1205
    %v4337 = vunpack.c.h.b16 %v1205
    %v4338 = vunpack.c.l.b16 %v1206
    %v4339 = vunpack.c.h.b16 %v1206
    %v4340 = vunpack.c.l.b16 %v1207
    %v4341 = vunpack.c.h.b16 %v1207
    %v4342 = vunpack.c.l.b16 %v1208
    %v4343 = vunpack.c.h.b16 %v1208
    %v4344 = vunpack.c.l.b16 %v1209
    %v4345 = vunpack.c.h.b16 %v1209
    %v4346 = vunpack.c.l.b16 %v1210
    %v4347 = vunpack.c.h.b16 %v1210
    %v4348 = vunpack.c.l.b16 %v1211
    %v4349 = vunpack.c.h.b16 %v1211
    %v4350 = vunpack.c.l.b16 %v1212
    %v4351 = vunpack.c.h.b16 %v1212
    %v4352 = vunpack.c.l.b16 %v1213
    %v4353 = vunpack.c.h.b16 %v1213
    %v4354 = vunpack.c.l.b16 %v1214
    %v4355 = vunpack.c.h.b16 %v1214
    %v4356 = vunpack.c.l.b16 %v1215
    %v4357 = vunpack.c.h.b16 %v1215
    %v4358 = vunpack.c.l.b16 %v1216
    %v4359 = vunpack.c.h.b16 %v1216
    %v4360 = vunpack.c.l.b16 %v1217
    %v4361 = vunpack.c.h.b16 %v1217
    %v4362 = vunpack.c.l.b16 %v1218
    %v4363 = vunpack.c.h.b16 %v1218
    %v4364 = vunpack.c.l.b16 %v1219
    %v4365 = vunpack.c.h.b16 %v1219
    %v4366 = vunpack.c.l.b16 %v1220
    %v4367 = vunpack.c.h.b16 %v1220
    %v4368 = vunpack.c.l.b16 %v1221
    %v4369 = vunpack.c.h.b16 %v1221
    %v4370 = vunpack.c.l.b16 %v1222
    %v4371 = vunpack.c.h.b16 %v1222
    %v4372 = vunpack.c.l.b16 %v1223
    %v4373 = vunpack.c.h.b16 %v1223
    %v4374 = vunpack.c.l.b16 %v1224
    %v4375 = vunpack.c.h.b16 %v1224
    %v4376 = vunpack.c.l.b16 %v1225
    %v4377 = vunpack.c.h.b16 %v1225
    %v4378 = vunpack.c.l.b16 %v1226
    %v4379 = vunpack.c.h.b16 %v1226
    %v4380 = vunpack.c.l.b16 %v1227
    %v4381 = vunpack.c.h.b16 %v1227
    %v4382 = vunpack.c.l.b16 %v1228
    %v4383 = vunpack.c.h.b16 %v1228
    %v4384 = vunpack.c.l.b16 %v1229
    %v4385 = vunpack.c.h.b16 %v1229
    %v4386 = vunpack.c.l.b16 %v1230
    %v4387 = vunpack.c.h.b16 %v1230
    %v4388 = vunpack.c.l.b16 %v1231
    %v4389 = vunpack.c.h.b16 %v1231
    %v4390 = vunpack.c.l.b16 %v1232
    %v4391 = vunpack.c.h.b16 %v1232
    %v4392 = vunpack.c.l.b16 %v1233
    %v4393 = vunpack.c.h.b16 %v1233
    %v4394 = vunpack.c.l.b16 %v1234
    %v4395 = vunpack.c.h.b16 %v1234
    %v4396 = vunpack.c.l.b16 %v1235
    %v4397 = vunpack.c.h.b16 %v1235
    %v4398 = vunpack.c.l.b16 %v1236
    %v4399 = vunpack.c.h.b16 %v1236
    %v4400 = vunpack.c.l.b16 %v1237
    %v4401 = vunpack.c.h.b16 %v1237
    %v4402 = vunpack.c.l.b16 %v1238
    %v4403 = vunpack.c.h.b16 %v1238
    %v4404 = vunpack.c.l.b16 %v1239
    %v4405 = vunpack.c.h.b16 %v1239
    %v4406 = vunpack.c.l.b16 %v1240
    %v4407 = vunpack.c.h.b16 %v1240
    %v4408 = vunpack.c.l.b16 %v1241
    %v4409 = vunpack.c.h.b16 %v1241
    %v4410 = vunpack.c.l.b16 %v1242
    %v4411 = vunpack.c.h.b16 %v1242
    %v4412 = vunpack.c.l.b16 %v1243
    %v4413 = vunpack.c.h.b16 %v1243
    %v4414 = vunpack.c.l.b16 %v1244
    %v4415 = vunpack.c.h.b16 %v1244
    %v4416 = vunpack.c.l.b16 %v1245
    %v4417 = vunpack.c.h.b16 %v1245
    %v4418 = vunpack.c.l.b16 %v1246
    %v4419 = vunpack.c.h.b16 %v1246
    %v4420 = vunpack.c.l.b16 %v1247
    %v4421 = vunpack.c.h.b16 %v1247
    %v4422 = vunpack.c.l.b16 %v1248
    %v4423 = vunpack.c.h.b16 %v1248
    %v4424 = vunpack.c.l.b16 %v1249
    %v4425 = vunpack.c.h.b16 %v1249
    %v4426 = vunpack.c.l.b16 %v1250
    %v4427 = vunpack.c.h.b16 %v1250
    %v4428 = vunpack.c.l.b16 %v1251
    %v4429 = vunpack.c.h.b16 %v1251
    %v4430 = vunpack.c.l.b16 %v1252
    %v4431 = vunpack.c.h.b16 %v1252
    %v4432 = vunpack.c.l.b16 %v1253
    %v4433 = vunpack.c.h.b16 %v1253
    %v4434 = vunpack.c.l.b16 %v1254
    %v4435 = vunpack.c.h.b16 %v1254
    %v4436 = vunpack.c.l.b16 %v1255
    %v4437 = vunpack.c.h.b16 %v1255
    %v4438 = vunpack.c.l.b16 %v1256
    %v4439 = vunpack.c.h.b16 %v1256
    %v4440 = vunpack.c.l.b16 %v1257
    %v4441 = vunpack.c.h.b16 %v1257
    %v4442 = vpack.c.b16 %v2410, %v2394
    %v4443 = vpack.c.b16 %v2411, %v2395
    %v4444 = vpack.c.b16 %v2412, %v2396
    %v4445 = vpack.c.b16 %v2413, %v2397
    %v4446 = vpack.c.b16 %v2414, %v2398
    %v4447 = vpack.c.b16 %v2415, %v2399
    %v4448 = vpack.c.b16 %v2416, %v2400
    %v4449 = vpack.c.b16 %v2417, %v2401
    %v4450 = vpack.c.b16 %v2418, %v2402
    %v4451 = vpack.c.b16 %v2419, %v2403
    %v4452 = vpack.c.b16 %v2420, %v2404
    %v4453 = vpack.c.b16 %v2421, %v2405
    %v4454 = vpack.c.b16 %v2422, %v2406
    %v4455 = vpack.c.b16 %v2423, %v2407
    %v4456 = vpack.c.b16 %v2424, %v2408
    %v4457 = vpack.c.b16 %v2425, %v2409
    %v4458 = vpack.c.b16 %v2442, %v2426
    %v4459 = vpack.c.b16 %v2443, %v2427
    %v4460 = vpack.c.b16 %v2444, %v2428
    %v4461 = vpack.c.b16 %v2445, %v2429
    %v4462 = vpack.c.b16 %v2446, %v2430
    %v4463 = vpack.c.b16 %v2447, %v2431
    %v4464 = vpack.c.b16 %v2448, %v2432
    %v4465 = vpack.c.b16 %v2449, %v2433
    %v4466 = vpack.c.b16 %v2450, %v2434
    %v4467 = vpack.c.b16 %v2451, %v2435
    %v4468 = vpack.c.b16 %v2452, %v2436
    %v4469 = vpack.c.b16 %v2453, %v2437
    %v4470 = vpack.c.b16 %v2454, %v2438
    %v4471 = vpack.c.b16 %v2455, %v2439
    %v4472 = vpack.c.b16 %v2456, %v2440
    %v4473 = vpack.c.b16 %v2457, %v2441
    %v4474 = vpack.c.b16 %v2474, %v2458
    %v4475 = vpack.c.b16 %v2475, %v2459
    %v4476 = vpack.c.b16 %v2476, %v2460
    %v4477 = vpack.c.b16 %v2477, %v2461
    %v4478 = vpack.c.b16 %v2478, %v2462
    %v4479 = vpack.c.b16 %v2479, %v2463
    %v4480 = vpack.c.b16 %v2480, %v2464
    %v4481 = vpack.c.b16 %v2481, %v2465
    %v4482 = vpack.c.b16 %v2482, %v2466
    %v4483 = vpack.c.b16 %v2483, %v2467
    %v4484 = vpack.c.b16 %v2484, %v2468
    %v4485 = vpack.c.b16 %v2485, %v2469
    %v4486 = vpack.c.b16 %v2486, %v2470
    %v4487 = vpack.c.b16 %v2487, %v2471
    %v4488 = vpack.c.b16 %v2488, %v2472
    %v4489 = vpack.c.b16 %v2489, %v2473
    %v4490 = vpack.c.b16 %v2506, %v2490
    %v4491 = vpack.c.b16 %v2507, %v2491
    %v4492 = vpack.c.b16 %v2508, %v2492
    %v4493 = vpack.c.b16 %v2509, %v2493
    %v4494 = vpack.c.b16 %v2510, %v2494
    %v4495 = vpack.c.b16 %v2511, %v2495
    %v4496 = vpack.c.b16 %v2512, %v2496
    %v4497 = vpack.c.b16 %v2513, %v2497
    %v4498 = vpack.c.b16 %v2514, %v2498
    %v4499 = vpack.c.b16 %v2515, %v2499
    %v4500 = vpack.c.b16 %v2516, %v2500
    %v4501 = vpack.c.b16 %v2517, %v2501
    %v4502 = vpack.c.b16 %v2518, %v2502
    %v4503 = vpack.c.b16 %v2519, %v2503
    %v4504 = vpack.c.b16 %v2520, %v2504
    %v4505 = vpack.c.b16 %v2521, %v2505
    %v4506 = vpack.c.b16 %v2538, %v2522
    %v4507 = vpack.c.b16 %v2539, %v2523
    %v4508 = vpack.c.b16 %v2540, %v2524
    %v4509 = vpack.c.b16 %v2541, %v2525
    %v4510 = vpack.c.b16 %v2542, %v2526
    %v4511 = vpack.c.b16 %v2543, %v2527
    %v4512 = vpack.c.b16 %v2544, %v2528
    %v4513 = vpack.c.b16 %v2545, %v2529
    %v4514 = vpack.c.b16 %v2546, %v2530
    %v4515 = vpack.c.b16 %v2547, %v2531
    %v4516 = vpack.c.b16 %v2548, %v2532
    %v4517 = vpack.c.b16 %v2549, %v2533
    %v4518 = vpack.c.b16 %v2550, %v2534
    %v4519 = vpack.c.b16 %v2551, %v2535
    %v4520 = vpack.c.b16 %v2552, %v2536
    %v4521 = vpack.c.b16 %v2553, %v2537
    %v4522 = vpack.c.b16 %v2570, %v2554
    %v4523 = vpack.c.b16 %v2571, %v2555
    %v4524 = vpack.c.b16 %v2572, %v2556
    %v4525 = vpack.c.b16 %v2573, %v2557
    %v4526 = vpack.c.b16 %v2574, %v2558
    %v4527 = vpack.c.b16 %v2575, %v2559
    %v4528 = vpack.c.b16 %v2576, %v2560
    %v4529 = vpack.c.b16 %v2577, %v2561
    %v4530 = vpack.c.b16 %v2578, %v2562
    %v4531 = vpack.c.b16 %v2579, %v2563
    %v4532 = vpack.c.b16 %v2580, %v2564
    %v4533 = vpack.c.b16 %v2581, %v2565
    %v4534 = vpack.c.b16 %v2582, %v2566
    %v4535 = vpack.c.b16 %v2583, %v2567
    %v4536 = vpack.c.b16 %v2584, %v2568
    %v4537 = vpack.c.b16 %v2585, %v2569
    %v4538 = vpack.c.b16 %v2602, %v2586
    %v4539 = vpack.c.b16 %v2603, %v2587
    %v4540 = vpack.c.b16 %v2604, %v2588
    %v4541 = vpack.c.b16 %v2605, %v2589
    %v4542 = vpack.c.b16 %v2606, %v2590
    %v4543 = vpack.c.b16 %v2607, %v2591
    %v4544 = vpack.c.b16 %v2608, %v2592
    %v4545 = vpack.c.b16 %v2609, %v2593
    %v4546 = vpack.c.b16 %v2610, %v2594
    %v4547 = vpack.c.b16 %v2611, %v2595
    %v4548 = vpack.c.b16 %v2612, %v2596
    %v4549 = vpack.c.b16 %v2613, %v2597
    %v4550 = vpack.c.b16 %v2614, %v2598
    %v4551 = vpack.c.b16 %v2615, %v2599
    %v4552 = vpack.c.b16 %v2616, %v2600
    %v4553 = vpack.c.b16 %v2617, %v2601
    %v4554 = vpack.c.b16 %v2634, %v2618
    %v4555 = vpack.c.b16 %v2635, %v2619
    %v4556 = vpack.c.b16 %v2636, %v2620
    %v4557 = vpack.c.b16 %v2637, %v2621
    %v4558 = vpack.c.b16 %v2638, %v2622
    %v4559 = vpack.c.b16 %v2639, %v2623
    %v4560 = vpack.c.b16 %v2640, %v2624
    %v4561 = vpack.c.b16 %v2641, %v2625
    %v4562 = vpack.c.b16 %v2642, %v2626
    %v4563 = vpack.c.b16 %v2643, %v2627
    %v4564 = vpack.c.b16 %v2644, %v2628
    %v4565 = vpack.c.b16 %v2645, %v2629
    %v4566 = vpack.c.b16 %v2646, %v2630
    %v4567 = vpack.c.b16 %v2647, %v2631
    %v4568 = vpack.c.b16 %v2648, %v2632
    %v4569 = vpack.c.b16 %v2649, %v2633
    %v4570 = vpack.c.b16 %v2666, %v2650
    %v4571 = vpack.c.b16 %v2667, %v2651
    %v4572 = vpack.c.b16 %v2668, %v2652
    %v4573 = vpack.c.b16 %v2669, %v2653
    %v4574 = vpack.c.b16 %v2670, %v2654
    %v4575 = vpack.c.b16 %v2671, %v2655
    %v4576 = vpack.c.b16 %v2672, %v2656
    %v4577 = vpack.c.b16 %v2673, %v2657
    %v4578 = vpack.c.b16 %v2674, %v2658
    %v4579 = vpack.c.b16 %v2675, %v2659
    %v4580 = vpack.c.b16 %v2676, %v2660
    %v4581 = vpack.c.b16 %v2677, %v2661
    %v4582 = vpack.c.b16 %v2678, %v2662
    %v4583 = vpack.c.b16 %v2679, %v2663
    %v4584 = vpack.c.b16 %v2680, %v2664
    %v4585 = vpack.c.b16 %v2681, %v2665
    %v4586 = vpack.c.b16 %v2698, %v2682
    %v4587 = vpack.c.b16 %v2699, %v2683
    %v4588 = vpack.c.b16 %v2700, %v2684
    %v4589 = vpack.c.b16 %v2701, %v2685
    %v4590 = vpack.c.b16 %v2702, %v2686
    %v4591 = vpack.c.b16 %v2703, %v2687
    %v4592 = vpack.c.b16 %v2704, %v2688
    %v4593 = vpack.c.b16 %v2705, %v2689
    %v4594 = vpack.c.b16 %v2706, %v2690
    %v4595 = vpack.c.b16 %v2707, %v2691
    %v4596 = vpack.c.b16 %v2708, %v2692
    %v4597 = vpack.c.b16 %v2709, %v2693
    %v4598 = vpack.c.b16 %v2710, %v2694
    %v4599 = vpack.c.b16 %v2711, %v2695
    %v4600 = vpack.c.b16 %v2712, %v2696
    %v4601 = vpack.c.b16 %v2713, %v2697
    %v4602 = vpack.c.b16 %v2730, %v2714
    %v4603 = vpack.c.b16 %v2731, %v2715
    %v4604 = vpack.c.b16 %v2732, %v2716
    %v4605 = vpack.c.b16 %v2733, %v2717
    %v4606 = vpack.c.b16 %v2734, %v2718
    %v4607 = vpack.c.b16 %v2735, %v2719
    %v4608 = vpack.c.b16 %v2736, %v2720
    %v4609 = vpack.c.b16 %v2737, %v2721
    %v4610 = vpack.c.b16 %v2738, %v2722
    %v4611 = vpack.c.b16 %v2739, %v2723
    %v4612 = vpack.c.b16 %v2740, %v2724
    %v4613 = vpack.c.b16 %v2741, %v2725
    %v4614 = vpack.c.b16 %v2742, %v2726
    %v4615 = vpack.c.b16 %v2743, %v2727
    %v4616 = vpack.c.b16 %v2744, %v2728
    %v4617 = vpack.c.b16 %v2745, %v2729
    %v4618 = vpack.c.b16 %v2762, %v2746
    %v4619 = vpack.c.b16 %v2763, %v2747
    %v4620 = vpack.c.b16 %v2764, %v2748
    %v4621 = vpack.c.b16 %v2765, %v2749
    %v4622 = vpack.c.b16 %v2766, %v2750
    %v4623 = vpack.c.b16 %v2767, %v2751
    %v4624 = vpack.c.b16 %v2768, %v2752
    %v4625 = vpack.c.b16 %v2769, %v2753
    %v4626 = vpack.c.b16 %v2770, %v2754
    %v4627 = vpack.c.b16 %v2771, %v2755
    %v4628 = vpack.c.b16 %v2772, %v2756
    %v4629 = vpack.c.b16 %v2773, %v2757
    %v4630 = vpack.c.b16 %v2774, %v2758
    %v4631 = vpack.c.b16 %v2775, %v2759
    %v4632 = vpack.c.b16 %v2776, %v2760
    %v4633 = vpack.c.b16 %v2777, %v2761
    %v4634 = vpack.c.b16 %v2794, %v2778
    %v4635 = vpack.c.b16 %v2795, %v2779
    %v4636 = vpack.c.b16 %v2796, %v2780
    %v4637 = vpack.c.b16 %v2797, %v2781
    %v4638 = vpack.c.b16 %v2798, %v2782
    %v4639 = vpack.c.b16 %v2799, %v2783
    %v4640 = vpack.c.b16 %v2800, %v2784
    %v4641 = vpack.c.b16 %v2801, %v2785
    %v4642 = vpack.c.b16 %v2802, %v2786
    %v4643 = vpack.c.b16 %v2803, %v2787
    %v4644 = vpack.c.b16 %v2804, %v2788
    %v4645 = vpack.c.b16 %v2805, %v2789
    %v4646 = vpack.c.b16 %v2806, %v2790
    %v4647 = vpack.c.b16 %v2807, %v2791
    %v4648 = vpack.c.b16 %v2808, %v2792
    %v4649 = vpack.c.b16 %v2809, %v2793
    %v4650 = vpack.c.b16 %v2826, %v2810
    %v4651 = vpack.c.b16 %v2827, %v2811
    %v4652 = vpack.c.b16 %v2828, %v2812
    %v4653 = vpack.c.b16 %v2829, %v2813
    %v4654 = vpack.c.b16 %v2830, %v2814
    %v4655 = vpack.c.b16 %v2831, %v2815
    %v4656 = vpack.c.b16 %v2832, %v2816
    %v4657 = vpack.c.b16 %v2833, %v2817
    %v4658 = vpack.c.b16 %v2834, %v2818
    %v4659 = vpack.c.b16 %v2835, %v2819
    %v4660 = vpack.c.b16 %v2836, %v2820
    %v4661 = vpack.c.b16 %v2837, %v2821
    %v4662 = vpack.c.b16 %v2838, %v2822
    %v4663 = vpack.c.b16 %v2839, %v2823
    %v4664 = vpack.c.b16 %v2840, %v2824
    %v4665 = vpack.c.b16 %v2841, %v2825
    %v4666 = vpack.c.b16 %v2858, %v2842
    %v4667 = vpack.c.b16 %v2859, %v2843
    %v4668 = vpack.c.b16 %v2860, %v2844
    %v4669 = vpack.c.b16 %v2861, %v2845
    %v4670 = vpack.c.b16 %v2862, %v2846
    %v4671 = vpack.c.b16 %v2863, %v2847
    %v4672 = vpack.c.b16 %v2864, %v2848
    %v4673 = vpack.c.b16 %v2865, %v2849
    %v4674 = vpack.c.b16 %v2866, %v2850
    %v4675 = vpack.c.b16 %v2867, %v2851
    %v4676 = vpack.c.b16 %v2868, %v2852
    %v4677 = vpack.c.b16 %v2869, %v2853
    %v4678 = vpack.c.b16 %v2870, %v2854
    %v4679 = vpack.c.b16 %v2871, %v2855
    %v4680 = vpack.c.b16 %v2872, %v2856
    %v4681 = vpack.c.b16 %v2873, %v2857
    %v4682 = vpack.c.b16 %v2890, %v2874
    %v4683 = vpack.c.b16 %v2891, %v2875
    %v4684 = vpack.c.b16 %v2892, %v2876
    %v4685 = vpack.c.b16 %v2893, %v2877
    %v4686 = vpack.c.b16 %v2894, %v2878
    %v4687 = vpack.c.b16 %v2895, %v2879
    %v4688 = vpack.c.b16 %v2896, %v2880
    %v4689 = vpack.c.b16 %v2897, %v2881
    %v4690 = vpack.c.b16 %v2898, %v2882
    %v4691 = vpack.c.b16 %v2899, %v2883
    %v4692 = vpack.c.b16 %v2900, %v2884
    %v4693 = vpack.c.b16 %v2901, %v2885
    %v4694 = vpack.c.b16 %v2902, %v2886
    %v4695 = vpack.c.b16 %v2903, %v2887
    %v4696 = vpack.c.b16 %v2904, %v2888
    %v4697 = vpack.c.b16 %v2905, %v2889
    %v4698 = vpack.c.b16 %v2922, %v2906
    %v4699 = vpack.c.b16 %v2923, %v2907
    %v4700 = vpack.c.b16 %v2924, %v2908
    %v4701 = vpack.c.b16 %v2925, %v2909
    %v4702 = vpack.c.b16 %v2926, %v2910
    %v4703 = vpack.c.b16 %v2927, %v2911
    %v4704 = vpack.c.b16 %v2928, %v2912
    %v4705 = vpack.c.b16 %v2929, %v2913
    %v4706 = vpack.c.b16 %v2930, %v2914
    %v4707 = vpack.c.b16 %v2931, %v2915
    %v4708 = vpack.c.b16 %v2932, %v2916
    %v4709 = vpack.c.b16 %v2933, %v2917
    %v4710 = vpack.c.b16 %v2934, %v2918
    %v4711 = vpack.c.b16 %v2935, %v2919
    %v4712 = vpack.c.b16 %v2936, %v2920
    %v4713 = vpack.c.b16 %v2937, %v2921
    %v4714 = vpack.c.b16 %v2954, %v2938
    %v4715 = vpack.c.b16 %v2955, %v2939
    %v4716 = vpack.c.b16 %v2956, %v2940
    %v4717 = vpack.c.b16 %v2957, %v2941
    %v4718 = vpack.c.b16 %v2958, %v2942
    %v4719 = vpack.c.b16 %v2959, %v2943
    %v4720 = vpack.c.b16 %v2960, %v2944
    %v4721 = vpack.c.b16 %v2961, %v2945
    %v4722 = vpack.c.b16 %v2962, %v2946
    %v4723 = vpack.c.b16 %v2963, %v2947
    %v4724 = vpack.c.b16 %v2964, %v2948
    %v4725 = vpack.c.b16 %v2965, %v2949
    %v4726 = vpack.c.b16 %v2966, %v2950
    %v4727 = vpack.c.b16 %v2967, %v2951
    %v4728 = vpack.c.b16 %v2968, %v2952
    %v4729 = vpack.c.b16 %v2969, %v2953
    %v4730 = vpack.c.b16 %v2986, %v2970
    %v4731 = vpack.c.b16 %v2987, %v2971
    %v4732 = vpack.c.b16 %v2988, %v2972
    %v4733 = vpack.c.b16 %v2989, %v2973
    %v4734 = vpack.c.b16 %v2990, %v2974
    %v4735 = vpack.c.b16 %v2991, %v2975
    %v4736 = vpack.c.b16 %v2992, %v2976
    %v4737 = vpack.c.b16 %v2993, %v2977
    %v4738 = vpack.c.b16 %v2994, %v2978
    %v4739 = vpack.c.b16 %v2995, %v2979
    %v4740 = vpack.c.b16 %v2996, %v2980
    %v4741 = vpack.c.b16 %v2997, %v2981
    %v4742 = vpack.c.b16 %v2998, %v2982
    %v4743 = vpack.c.b16 %v2999, %v2983
    %v4744 = vpack.c.b16 %v3000, %v2984
    %v4745 = vpack.c.b16 %v3001, %v2985
    %v4746 = vpack.c.b16 %v3018, %v3002
    %v4747 = vpack.c.b16 %v3019, %v3003
    %v4748 = vpack.c.b16 %v3020, %v3004
    %v4749 = vpack.c.b16 %v3021, %v3005
    %v4750 = vpack.c.b16 %v3022, %v3006
    %v4751 = vpack.c.b16 %v3023, %v3007
    %v4752 = vpack.c.b16 %v3024, %v3008
    %v4753 = vpack.c.b16 %v3025, %v3009
    %v4754 = vpack.c.b16 %v3026, %v3010
    %v4755 = vpack.c.b16 %v3027, %v3011
    %v4756 = vpack.c.b16 %v3028, %v3012
    %v4757 = vpack.c.b16 %v3029, %v3013
    %v4758 = vpack.c.b16 %v3030, %v3014
    %v4759 = vpack.c.b16 %v3031, %v3015
    %v4760 = vpack.c.b16 %v3032, %v3016
    %v4761 = vpack.c.b16 %v3033, %v3017
    %v4762 = vpack.c.b16 %v3050, %v3034
    %v4763 = vpack.c.b16 %v3051, %v3035
    %v4764 = vpack.c.b16 %v3052, %v3036
    %v4765 = vpack.c.b16 %v3053, %v3037
    %v4766 = vpack.c.b16 %v3054, %v3038
    %v4767 = vpack.c.b16 %v3055, %v3039
    %v4768 = vpack.c.b16 %v3056, %v3040
    %v4769 = vpack.c.b16 %v3057, %v3041
    %v4770 = vpack.c.b16 %v3058, %v3042
    %v4771 = vpack.c.b16 %v3059, %v3043
    %v4772 = vpack.c.b16 %v3060, %v3044
    %v4773 = vpack.c.b16 %v3061, %v3045
    %v4774 = vpack.c.b16 %v3062, %v3046
    %v4775 = vpack.c.b16 %v3063, %v3047
    %v4776 = vpack.c.b16 %v3064, %v3048
    %v4777 = vpack.c.b16 %v3065, %v3049
    %v4778 = vpack.c.b16 %v3082, %v3066
    %v4779 = vpack.c.b16 %v3083, %v3067
    %v4780 = vpack.c.b16 %v3084, %v3068
    %v4781 = vpack.c.b16 %v3085, %v3069
    %v4782 = vpack.c.b16 %v3086, %v3070
    %v4783 = vpack.c.b16 %v3087, %v3071
    %v4784 = vpack.c.b16 %v3088, %v3072
    %v4785 = vpack.c.b16 %v3089, %v3073
    %v4786 = vpack.c.b16 %v3090, %v3074
    %v4787 = vpack.c.b16 %v3091, %v3075
    %v4788 = vpack.c.b16 %v3092, %v3076
    %v4789 = vpack.c.b16 %v3093, %v3077
    %v4790 = vpack.c.b16 %v3094, %v3078
    %v4791 = vpack.c.b16 %v3095, %v3079
    %v4792 = vpack.c.b16 %v3096, %v3080
    %v4793 = vpack.c.b16 %v3097, %v3081
    %v4794 = vpack.c.b16 %v3114, %v3098
    %v4795 = vpack.c.b16 %v3115, %v3099
    %v4796 = vpack.c.b16 %v3116, %v3100
    %v4797 = vpack.c.b16 %v3117, %v3101
    %v4798 = vpack.c.b16 %v3118, %v3102
    %v4799 = vpack.c.b16 %v3119, %v3103
    %v4800 = vpack.c.b16 %v3120, %v3104
    %v4801 = vpack.c.b16 %v3121, %v3105
    %v4802 = vpack.c.b16 %v3122, %v3106
    %v4803 = vpack.c.b16 %v3123, %v3107
    %v4804 = vpack.c.b16 %v3124, %v3108
    %v4805 = vpack.c.b16 %v3125, %v3109
    %v4806 = vpack.c.b16 %v3126, %v3110
    %v4807 = vpack.c.b16 %v3127, %v3111
    %v4808 = vpack.c.b16 %v3128, %v3112
    %v4809 = vpack.c.b16 %v3129, %v3113
    %v4810 = vpack.c.b16 %v3146, %v3130
    %v4811 = vpack.c.b16 %v3147, %v3131
    %v4812 = vpack.c.b16 %v3148, %v3132
    %v4813 = vpack.c.b16 %v3149, %v3133
    %v4814 = vpack.c.b16 %v3150, %v3134
    %v4815 = vpack.c.b16 %v3151, %v3135
    %v4816 = vpack.c.b16 %v3152, %v3136
    %v4817 = vpack.c.b16 %v3153, %v3137
    %v4818 = vpack.c.b16 %v3154, %v3138
    %v4819 = vpack.c.b16 %v3155, %v3139
    %v4820 = vpack.c.b16 %v3156, %v3140
    %v4821 = vpack.c.b16 %v3157, %v3141
    %v4822 = vpack.c.b16 %v3158, %v3142
    %v4823 = vpack.c.b16 %v3159, %v3143
    %v4824 = vpack.c.b16 %v3160, %v3144
    %v4825 = vpack.c.b16 %v3161, %v3145
    %v4826 = vpack.c.b16 %v3178, %v3162
    %v4827 = vpack.c.b16 %v3179, %v3163
    %v4828 = vpack.c.b16 %v3180, %v3164
    %v4829 = vpack.c.b16 %v3181, %v3165
    %v4830 = vpack.c.b16 %v3182, %v3166
    %v4831 = vpack.c.b16 %v3183, %v3167
    %v4832 = vpack.c.b16 %v3184, %v3168
    %v4833 = vpack.c.b16 %v3185, %v3169
    %v4834 = vpack.c.b16 %v3186, %v3170
    %v4835 = vpack.c.b16 %v3187, %v3171
    %v4836 = vpack.c.b16 %v3188, %v3172
    %v4837 = vpack.c.b16 %v3189, %v3173
    %v4838 = vpack.c.b16 %v3190, %v3174
    %v4839 = vpack.c.b16 %v3191, %v3175
    %v4840 = vpack.c.b16 %v3192, %v3176
    %v4841 = vpack.c.b16 %v3193, %v3177
    %v4842 = vpack.c.b16 %v3210, %v3194
    %v4843 = vpack.c.b16 %v3211, %v3195
    %v4844 = vpack.c.b16 %v3212, %v3196
    %v4845 = vpack.c.b16 %v3213, %v3197
    %v4846 = vpack.c.b16 %v3214, %v3198
    %v4847 = vpack.c.b16 %v3215, %v3199
    %v4848 = vpack.c.b16 %v3216, %v3200
    %v4849 = vpack.c.b16 %v3217, %v3201
    %v4850 = vpack.c.b16 %v3218, %v3202
    %v4851 = vpack.c.b16 %v3219, %v3203
    %v4852 = vpack.c.b16 %v3220, %v3204
    %v4853 = vpack.c.b16 %v3221, %v3205
    %v4854 = vpack.c.b16 %v3222, %v3206
    %v4855 = vpack.c.b16 %v3223, %v3207
    %v4856 = vpack.c.b16 %v3224, %v3208
    %v4857 = vpack.c.b16 %v3225, %v3209
    %v4858 = vpack.c.b16 %v3242, %v3226
    %v4859 = vpack.c.b16 %v3243, %v3227
    %v4860 = vpack.c.b16 %v3244, %v3228
    %v4861 = vpack.c.b16 %v3245, %v3229
    %v4862 = vpack.c.b16 %v3246, %v3230
    %v4863 = vpack.c.b16 %v3247, %v3231
    %v4864 = vpack.c.b16 %v3248, %v3232
    %v4865 = vpack.c.b16 %v3249, %v3233
    %v4866 = vpack.c.b16 %v3250, %v3234
    %v4867 = vpack.c.b16 %v3251, %v3235
    %v4868 = vpack.c.b16 %v3252, %v3236
    %v4869 = vpack.c.b16 %v3253, %v3237
    %v4870 = vpack.c.b16 %v3254, %v3238
    %v4871 = vpack.c.b16 %v3255, %v3239
    %v4872 = vpack.c.b16 %v3256, %v3240
    %v4873 = vpack.c.b16 %v3257, %v3241
    %v4874 = vpack.c.b16 %v3274, %v3258
    %v4875 = vpack.c.b16 %v3275, %v3259
    %v4876 = vpack.c.b16 %v3276, %v3260
    %v4877 = vpack.c.b16 %v3277, %v3261
    %v4878 = vpack.c.b16 %v3278, %v3262
    %v4879 = vpack.c.b16 %v3279, %v3263
    %v4880 = vpack.c.b16 %v3280, %v3264
    %v4881 = vpack.c.b16 %v3281, %v3265
    %v4882 = vpack.c.b16 %v3282, %v3266
    %v4883 = vpack.c.b16 %v3283, %v3267
    %v4884 = vpack.c.b16 %v3284, %v3268
    %v4885 = vpack.c.b16 %v3285, %v3269
    %v4886 = vpack.c.b16 %v3286, %v3270
    %v4887 = vpack.c.b16 %v3287, %v3271
    %v4888 = vpack.c.b16 %v3288, %v3272
    %v4889 = vpack.c.b16 %v3289, %v3273
    %v4890 = vpack.c.b16 %v3306, %v3290
    %v4891 = vpack.c.b16 %v3307, %v3291
    %v4892 = vpack.c.b16 %v3308, %v3292
    %v4893 = vpack.c.b16 %v3309, %v3293
    %v4894 = vpack.c.b16 %v3310, %v3294
    %v4895 = vpack.c.b16 %v3311, %v3295
    %v4896 = vpack.c.b16 %v3312, %v3296
    %v4897 = vpack.c.b16 %v3313, %v3297
    %v4898 = vpack.c.b16 %v3314, %v3298
    %v4899 = vpack.c.b16 %v3315, %v3299
    %v4900 = vpack.c.b16 %v3316, %v3300
    %v4901 = vpack.c.b16 %v3317, %v3301
    %v4902 = vpack.c.b16 %v3318, %v3302
    %v4903 = vpack.c.b16 %v3319, %v3303
    %v4904 = vpack.c.b16 %v3320, %v3304
    %v4905 = vpack.c.b16 %v3321, %v3305
    %v4906 = vpack.c.b16 %v3338, %v3322
    %v4907 = vpack.c.b16 %v3339, %v3323
    %v4908 = vpack.c.b16 %v3340, %v3324
    %v4909 = vpack.c.b16 %v3341, %v3325
    %v4910 = vpack.c.b16 %v3342, %v3326
    %v4911 = vpack.c.b16 %v3343, %v3327
    %v4912 = vpack.c.b16 %v3344, %v3328
    %v4913 = vpack.c.b16 %v3345, %v3329
    %v4914 = vpack.c.b16 %v3346, %v3330
    %v4915 = vpack.c.b16 %v3347, %v3331
    %v4916 = vpack.c.b16 %v3348, %v3332
    %v4917 = vpack.c.b16 %v3349, %v3333
    %v4918 = vpack.c.b16 %v3350, %v3334
    %v4919 = vpack.c.b16 %v3351, %v3335
    %v4920 = vpack.c.b16 %v3352, %v3336
    %v4921 = vpack.c.b16 %v3353, %v3337
    %v4922 = vpack.c.b16 %v3370, %v3354
    %v4923 = vpack.c.b16 %v3371, %v3355
    %v4924 = vpack.c.b16 %v3372, %v3356
    %v4925 = vpack.c.b16 %v3373, %v3357
    %v4926 = vpack.c.b16 %v3374, %v3358
    %v4927 = vpack.c.b16 %v3375, %v3359
    %v4928 = vpack.c.b16 %v3376, %v3360
    %v4929 = vpack.c.b16 %v3377, %v3361
    %v4930 = vpack.c.b16 %v3378, %v3362
    %v4931 = vpack.c.b16 %v3379, %v3363
    %v4932 = vpack.c.b16 %v3380, %v3364
    %v4933 = vpack.c.b16 %v3381, %v3365
    %v4934 = vpack.c.b16 %v3382, %v3366
    %v4935 = vpack.c.b16 %v3383, %v3367
    %v4936 = vpack.c.b16 %v3384, %v3368
    %v4937 = vpack.c.b16 %v3385, %v3369
    %v4938 = vpack.c.b16 %v3402, %v3386
    %v4939 = vpack.c.b16 %v3403, %v3387
    %v4940 = vpack.c.b16 %v3404, %v3388
    %v4941 = vpack.c.b16 %v3405, %v3389
    %v4942 = vpack.c.b16 %v3406, %v3390
    %v4943 = vpack.c.b16 %v3407, %v3391
    %v4944 = vpack.c.b16 %v3408, %v3392
    %v4945 = vpack.c.b16 %v3409, %v3393
    %v4946 = vpack.c.b16 %v3410, %v3394
    %v4947 = vpack.c.b16 %v3411, %v3395
    %v4948 = vpack.c.b16 %v3412, %v3396
    %v4949 = vpack.c.b16 %v3413, %v3397
    %v4950 = vpack.c.b16 %v3414, %v3398
    %v4951 = vpack.c.b16 %v3415, %v3399
    %v4952 = vpack.c.b16 %v3416, %v3400
    %v4953 = vpack.c.b16 %v3417, %v3401
    %v4954 = vpack.c.b16 %v3434, %v3418
    %v4955 = vpack.c.b16 %v3435, %v3419
    %v4956 = vpack.c.b16 %v3436, %v3420
    %v4957 = vpack.c.b16 %v3437, %v3421
    %v4958 = vpack.c.b16 %v3438, %v3422
    %v4959 = vpack.c.b16 %v3439, %v3423
    %v4960 = vpack.c.b16 %v3440, %v3424
    %v4961 = vpack.c.b16 %v3441, %v3425
    %v4962 = vpack.c.b16 %v3442, %v3426
    %v4963 = vpack.c.b16 %v3443, %v3427
    %v4964 = vpack.c.b16 %v3444, %v3428
    %v4965 = vpack.c.b16 %v3445, %v3429
    %v4966 = vpack.c.b16 %v3446, %v3430
    %v4967 = vpack.c.b16 %v3447, %v3431
    %v4968 = vpack.c.b16 %v3448, %v3432
    %v4969 = vpack.c.b16 %v3449, %v3433
    %v4970 = vpack.c.b16 %v3466, %v3450
    %v4971 = vpack.c.b16 %v3467, %v3451
    %v4972 = vpack.c.b16 %v3468, %v3452
    %v4973 = vpack.c.b16 %v3469, %v3453
    %v4974 = vpack.c.b16 %v3470, %v3454
    %v4975 = vpack.c.b16 %v3471, %v3455
    %v4976 = vpack.c.b16 %v3472, %v3456
    %v4977 = vpack.c.b16 %v3473, %v3457
    %v4978 = vpack.c.b16 %v3474, %v3458
    %v4979 = vpack.c.b16 %v3475, %v3459
    %v4980 = vpack.c.b16 %v3476, %v3460
    %v4981 = vpack.c.b16 %v3477, %v3461
    %v4982 = vpack.c.b16 %v3478, %v3462
    %v4983 = vpack.c.b16 %v3479, %v3463
    %v4984 = vpack.c.b16 %v3480, %v3464
    %v4985 = vpack.c.b16 %v3481, %v3465
    %v4986 = vpack.c.b16 %v3498, %v3482
    %v4987 = vpack.c.b16 %v3499, %v3483
    %v4988 = vpack.c.b16 %v3500, %v3484
    %v4989 = vpack.c.b16 %v3501, %v3485
    %v4990 = vpack.c.b16 %v3502, %v3486
    %v4991 = vpack.c.b16 %v3503, %v3487
    %v4992 = vpack.c.b16 %v3504, %v3488
    %v4993 = vpack.c.b16 %v3505, %v3489
    %v4994 = vpack.c.b16 %v3506, %v3490
    %v4995 = vpack.c.b16 %v3507, %v3491
    %v4996 = vpack.c.b16 %v3508, %v3492
    %v4997 = vpack.c.b16 %v3509, %v3493
    %v4998 = vpack.c.b16 %v3510, %v3494
    %v4999 = vpack.c.b16 %v3511, %v3495
    %v5000 = vpack.c.b16 %v3512, %v3496
    %v5001 = vpack.c.b16 %v3513, %v3497
    %v5002 = vpack.c.b16 %v3530, %v3514
    %v5003 = vpack.c.b16 %v3531, %v3515
    %v5004 = vpack.c.b16 %v3532, %v3516
    %v5005 = vpack.c.b16 %v3533, %v3517
    %v5006 = vpack.c.b16 %v3534, %v3518
    %v5007 = vpack.c.b16 %v3535, %v3519
    %v5008 = vpack.c.b16 %v3536, %v3520
    %v5009 = vpack.c.b16 %v3537, %v3521
    %v5010 = vpack.c.b16 %v3538, %v3522
    %v5011 = vpack.c.b16 %v3539, %v3523
    %v5012 = vpack.c.b16 %v3540, %v3524
    %v5013 = vpack.c.b16 %v3541, %v3525
    %v5014 = vpack.c.b16 %v3542, %v3526
    %v5015 = vpack.c.b16 %v3543, %v3527
    %v5016 = vpack.c.b16 %v3544, %v3528
    %v5017 = vpack.c.b16 %v3545, %v3529
    %v5018 = vpack.c.b16 %v3562, %v3546
    %v5019 = vpack.c.b16 %v3563, %v3547
    %v5020 = vpack.c.b16 %v3564, %v3548
    %v5021 = vpack.c.b16 %v3565, %v3549
    %v5022 = vpack.c.b16 %v3566, %v3550
    %v5023 = vpack.c.b16 %v3567, %v3551
    %v5024 = vpack.c.b16 %v3568, %v3552
    %v5025 = vpack.c.b16 %v3569, %v3553
    %v5026 = vpack.c.b16 %v3570, %v3554
    %v5027 = vpack.c.b16 %v3571, %v3555
    %v5028 = vpack.c.b16 %v3572, %v3556
    %v5029 = vpack.c.b16 %v3573, %v3557
    %v5030 = vpack.c.b16 %v3574, %v3558
    %v5031 = vpack.c.b16 %v3575, %v3559
    %v5032 = vpack.c.b16 %v3576, %v3560
    %v5033 = vpack.c.b16 %v3577, %v3561
    %v5034 = vpack.c.b16 %v3594, %v3578
    %v5035 = vpack.c.b16 %v3595, %v3579
    %v5036 = vpack.c.b16 %v3596, %v3580
    %v5037 = vpack.c.b16 %v3597, %v3581
    %v5038 = vpack.c.b16 %v3598, %v3582
    %v5039 = vpack.c.b16 %v3599, %v3583
    %v5040 = vpack.c.b16 %v3600, %v3584
    %v5041 = vpack.c.b16 %v3601, %v3585
    %v5042 = vpack.c.b16 %v3602, %v3586
    %v5043 = vpack.c.b16 %v3603, %v3587
    %v5044 = vpack.c.b16 %v3604, %v3588
    %v5045 = vpack.c.b16 %v3605, %v3589
    %v5046 = vpack.c.b16 %v3606, %v3590
    %v5047 = vpack.c.b16 %v3607, %v3591
    %v5048 = vpack.c.b16 %v3608, %v3592
    %v5049 = vpack.c.b16 %v3609, %v3593
    %v5050 = vpack.c.b16 %v3626, %v3610
    %v5051 = vpack.c.b16 %v3627, %v3611
    %v5052 = vpack.c.b16 %v3628, %v3612
    %v5053 = vpack.c.b16 %v3629, %v3613
    %v5054 = vpack.c.b16 %v3630, %v3614
    %v5055 = vpack.c.b16 %v3631, %v3615
    %v5056 = vpack.c.b16 %v3632, %v3616
    %v5057 = vpack.c.b16 %v3633, %v3617
    %v5058 = vpack.c.b16 %v3634, %v3618
    %v5059 = vpack.c.b16 %v3635, %v3619
    %v5060 = vpack.c.b16 %v3636, %v3620
    %v5061 = vpack.c.b16 %v3637, %v3621
    %v5062 = vpack.c.b16 %v3638, %v3622
    %v5063 = vpack.c.b16 %v3639, %v3623
    %v5064 = vpack.c.b16 %v3640, %v3624
    %v5065 = vpack.c.b16 %v3641, %v3625
    %v5066 = vpack.c.b16 %v3658, %v3642
    %v5067 = vpack.c.b16 %v3659, %v3643
    %v5068 = vpack.c.b16 %v3660, %v3644
    %v5069 = vpack.c.b16 %v3661, %v3645
    %v5070 = vpack.c.b16 %v3662, %v3646
    %v5071 = vpack.c.b16 %v3663, %v3647
    %v5072 = vpack.c.b16 %v3664, %v3648
    %v5073 = vpack.c.b16 %v3665, %v3649
    %v5074 = vpack.c.b16 %v3666, %v3650
    %v5075 = vpack.c.b16 %v3667, %v3651
    %v5076 = vpack.c.b16 %v3668, %v3652
    %v5077 = vpack.c.b16 %v3669, %v3653
    %v5078 = vpack.c.b16 %v3670, %v3654
    %v5079 = vpack.c.b16 %v3671, %v3655
    %v5080 = vpack.c.b16 %v3672, %v3656
    %v5081 = vpack.c.b16 %v3673, %v3657
    %v5082 = vpack.c.b16 %v3690, %v3674
    %v5083 = vpack.c.b16 %v3691, %v3675
    %v5084 = vpack.c.b16 %v3692, %v3676
    %v5085 = vpack.c.b16 %v3693, %v3677
    %v5086 = vpack.c.b16 %v3694, %v3678
    %v5087 = vpack.c.b16 %v3695, %v3679
    %v5088 = vpack.c.b16 %v3696, %v3680
    %v5089 = vpack.c.b16 %v3697, %v3681
    %v5090 = vpack.c.b16 %v3698, %v3682
    %v5091 = vpack.c.b16 %v3699, %v3683
    %v5092 = vpack.c.b16 %v3700, %v3684
    %v5093 = vpack.c.b16 %v3701, %v3685
    %v5094 = vpack.c.b16 %v3702, %v3686
    %v5095 = vpack.c.b16 %v3703, %v3687
    %v5096 = vpack.c.b16 %v3704, %v3688
    %v5097 = vpack.c.b16 %v3705, %v3689
    %v5098 = vpack.c.b16 %v3722, %v3706
    %v5099 = vpack.c.b16 %v3723, %v3707
    %v5100 = vpack.c.b16 %v3724, %v3708
    %v5101 = vpack.c.b16 %v3725, %v3709
    %v5102 = vpack.c.b16 %v3726, %v3710
    %v5103 = vpack.c.b16 %v3727, %v3711
    %v5104 = vpack.c.b16 %v3728, %v3712
    %v5105 = vpack.c.b16 %v3729, %v3713
    %v5106 = vpack.c.b16 %v3730, %v3714
    %v5107 = vpack.c.b16 %v3731, %v3715
    %v5108 = vpack.c.b16 %v3732, %v3716
    %v5109 = vpack.c.b16 %v3733, %v3717
    %v5110 = vpack.c.b16 %v3734, %v3718
    %v5111 = vpack.c.b16 %v3735, %v3719
    %v5112 = vpack.c.b16 %v3736, %v3720
    %v5113 = vpack.c.b16 %v3737, %v3721
    %v5114 = vpack.c.b16 %v3754, %v3738
    %v5115 = vpack.c.b16 %v3755, %v3739
    %v5116 = vpack.c.b16 %v3756, %v3740
    %v5117 = vpack.c.b16 %v3757, %v3741
    %v5118 = vpack.c.b16 %v3758, %v3742
    %v5119 = vpack.c.b16 %v3759, %v3743
    %v5120 = vpack.c.b16 %v3760, %v3744
    %v5121 = vpack.c.b16 %v3761, %v3745
    %v5122 = vpack.c.b16 %v3762, %v3746
    %v5123 = vpack.c.b16 %v3763, %v3747
    %v5124 = vpack.c.b16 %v3764, %v3748
    %v5125 = vpack.c.b16 %v3765, %v3749
    %v5126 = vpack.c.b16 %v3766, %v3750
    %v5127 = vpack.c.b16 %v3767, %v3751
    %v5128 = vpack.c.b16 %v3768, %v3752
    %v5129 = vpack.c.b16 %v3769, %v3753
    %v5130 = vpack.c.b16 %v3786, %v3770
    %v5131 = vpack.c.b16 %v3787, %v3771
    %v5132 = vpack.c.b16 %v3788, %v3772
    %v5133 = vpack.c.b16 %v3789, %v3773
    %v5134 = vpack.c.b16 %v3790, %v3774
    %v5135 = vpack.c.b16 %v3791, %v3775
    %v5136 = vpack.c.b16 %v3792, %v3776
    %v5137 = vpack.c.b16 %v3793, %v3777
    %v5138 = vpack.c.b16 %v3794, %v3778
    %v5139 = vpack.c.b16 %v3795, %v3779
    %v5140 = vpack.c.b16 %v3796, %v3780
    %v5141 = vpack.c.b16 %v3797, %v3781
    %v5142 = vpack.c.b16 %v3798, %v3782
    %v5143 = vpack.c.b16 %v3799, %v3783
    %v5144 = vpack.c.b16 %v3800, %v3784
    %v5145 = vpack.c.b16 %v3801, %v3785
    %v5146 = vpack.c.b16 %v3818, %v3802
    %v5147 = vpack.c.b16 %v3819, %v3803
    %v5148 = vpack.c.b16 %v3820, %v3804
    %v5149 = vpack.c.b16 %v3821, %v3805
    %v5150 = vpack.c.b16 %v3822, %v3806
    %v5151 = vpack.c.b16 %v3823, %v3807
    %v5152 = vpack.c.b16 %v3824, %v3808
    %v5153 = vpack.c.b16 %v3825, %v3809
    %v5154 = vpack.c.b16 %v3826, %v3810
    %v5155 = vpack.c.b16 %v3827, %v3811
    %v5156 = vpack.c.b16 %v3828, %v3812
    %v5157 = vpack.c.b16 %v3829, %v3813
    %v5158 = vpack.c.b16 %v3830, %v3814
    %v5159 = vpack.c.b16 %v3831, %v3815
    %v5160 = vpack.c.b16 %v3832, %v3816
    %v5161 = vpack.c.b16 %v3833, %v3817
    %v5162 = vpack.c.b16 %v3850, %v3834
    %v5163 = vpack.c.b16 %v3851, %v3835
    %v5164 = vpack.c.b16 %v3852, %v3836
    %v5165 = vpack.c.b16 %v3853, %v3837
    %v5166 = vpack.c.b16 %v3854, %v3838
    %v5167 = vpack.c.b16 %v3855, %v3839
    %v5168 = vpack.c.b16 %v3856, %v3840
    %v5169 = vpack.c.b16 %v3857, %v3841
    %v5170 = vpack.c.b16 %v3858, %v3842
    %v5171 = vpack.c.b16 %v3859, %v3843
    %v5172 = vpack.c.b16 %v3860, %v3844
    %v5173 = vpack.c.b16 %v3861, %v3845
    %v5174 = vpack.c.b16 %v3862, %v3846
    %v5175 = vpack.c.b16 %v3863, %v3847
    %v5176 = vpack.c.b16 %v3864, %v3848
    %v5177 = vpack.c.b16 %v3865, %v3849
    %v5178 = vpack.c.b16 %v3882, %v3866
    %v5179 = vpack.c.b16 %v3883, %v3867
    %v5180 = vpack.c.b16 %v3884, %v3868
    %v5181 = vpack.c.b16 %v3885, %v3869
    %v5182 = vpack.c.b16 %v3886, %v3870
    %v5183 = vpack.c.b16 %v3887, %v3871
    %v5184 = vpack.c.b16 %v3888, %v3872
    %v5185 = vpack.c.b16 %v3889, %v3873
    %v5186 = vpack.c.b16 %v3890, %v3874
    %v5187 = vpack.c.b16 %v3891, %v3875
    %v5188 = vpack.c.b16 %v3892, %v3876
    %v5189 = vpack.c.b16 %v3893, %v3877
    %v5190 = vpack.c.b16 %v3894, %v3878
    %v5191 = vpack.c.b16 %v3895, %v3879
    %v5192 = vpack.c.b16 %v3896, %v3880
    %v5193 = vpack.c.b16 %v3897, %v3881
    %v5194 = vpack.c.b16 %v3914, %v3898
    %v5195 = vpack.c.b16 %v3915, %v3899
    %v5196 = vpack.c.b16 %v3916, %v3900
    %v5197 = vpack.c.b16 %v3917, %v3901
    %v5198 = vpack.c.b16 %v3918, %v3902
    %v5199 = vpack.c.b16 %v3919, %v3903
    %v5200 = vpack.c.b16 %v3920, %v3904
    %v5201 = vpack.c.b16 %v3921, %v3905
    %v5202 = vpack.c.b16 %v3922, %v3906
    %v5203 = vpack.c.b16 %v3923, %v3907
    %v5204 = vpack.c.b16 %v3924, %v3908
    %v5205 = vpack.c.b16 %v3925, %v3909
    %v5206 = vpack.c.b16 %v3926, %v3910
    %v5207 = vpack.c.b16 %v3927, %v3911
    %v5208 = vpack.c.b16 %v3928, %v3912
    %v5209 = vpack.c.b16 %v3929, %v3913
    %v5210 = vpack.c.b16 %v3946, %v3930
    %v5211 = vpack.c.b16 %v3947, %v3931
    %v5212 = vpack.c.b16 %v3948, %v3932
    %v5213 = vpack.c.b16 %v3949, %v3933
    %v5214 = vpack.c.b16 %v3950, %v3934
    %v5215 = vpack.c.b16 %v3951, %v3935
    %v5216 = vpack.c.b16 %v3952, %v3936
    %v5217 = vpack.c.b16 %v3953, %v3937
    %v5218 = vpack.c.b16 %v3954, %v3938
    %v5219 = vpack.c.b16 %v3955, %v3939
    %v5220 = vpack.c.b16 %v3956, %v3940
    %v5221 = vpack.c.b16 %v3957, %v3941
    %v5222 = vpack.c.b16 %v3958, %v3942
    %v5223 = vpack.c.b16 %v3959, %v3943
    %v5224 = vpack.c.b16 %v3960, %v3944
    %v5225 = vpack.c.b16 %v3961, %v3945
    %v5226 = vpack.c.b16 %v3978, %v3962
    %v5227 = vpack.c.b16 %v3979, %v3963
    %v5228 = vpack.c.b16 %v3980, %v3964
    %v5229 = vpack.c.b16 %v3981, %v3965
    %v5230 = vpack.c.b16 %v3982, %v3966
    %v5231 = vpack.c.b16 %v3983, %v3967
    %v5232 = vpack.c.b16 %v3984, %v3968
    %v5233 = vpack.c.b16 %v3985, %v3969
    %v5234 = vpack.c.b16 %v3986, %v3970
    %v5235 = vpack.c.b16 %v3987, %v3971
    %v5236 = vpack.c.b16 %v3988, %v3972
    %v5237 = vpack.c.b16 %v3989, %v3973
    %v5238 = vpack.c.b16 %v3990, %v3974
    %v5239 = vpack.c.b16 %v3991, %v3975
    %v5240 = vpack.c.b16 %v3992, %v3976
    %v5241 = vpack.c.b16 %v3993, %v3977
    %v5242 = vpack.c.b16 %v4010, %v3994
    %v5243 = vpack.c.b16 %v4011, %v3995
    %v5244 = vpack.c.b16 %v4012, %v3996
    %v5245 = vpack.c.b16 %v4013, %v3997
    %v5246 = vpack.c.b16 %v4014, %v3998
    %v5247 = vpack.c.b16 %v4015, %v3999
    %v5248 = vpack.c.b16 %v4016, %v4000
    %v5249 = vpack.c.b16 %v4017, %v4001
    %v5250 = vpack.c.b16 %v4018, %v4002
    %v5251 = vpack.c.b16 %v4019, %v4003
    %v5252 = vpack.c.b16 %v4020, %v4004
    %v5253 = vpack.c.b16 %v4021, %v4005
    %v5254 = vpack.c.b16 %v4022, %v4006
    %v5255 = vpack.c.b16 %v4023, %v4007
    %v5256 = vpack.c.b16 %v4024, %v4008
    %v5257 = vpack.c.b16 %v4025, %v4009
    %v5258 = vpack.c.b16 %v4042, %v4026
    %v5259 = vpack.c.b16 %v4043, %v4027
    %v5260 = vpack.c.b16 %v4044, %v4028
    %v5261 = vpack.c.b16 %v4045, %v4029
    %v5262 = vpack.c.b16 %v4046, %v4030
    %v5263 = vpack.c.b16 %v4047, %v4031
    %v5264 = vpack.c.b16 %v4048, %v4032
    %v5265 = vpack.c.b16 %v4049, %v4033
    %v5266 = vpack.c.b16 %v4050, %v4034
    %v5267 = vpack.c.b16 %v4051, %v4035
    %v5268 = vpack.c.b16 %v4052, %v4036
    %v5269 = vpack.c.b16 %v4053, %v4037
    %v5270 = vpack.c.b16 %v4054, %v4038
    %v5271 = vpack.c.b16 %v4055, %v4039
    %v5272 = vpack.c.b16 %v4056, %v4040
    %v5273 = vpack.c.b16 %v4057, %v4041
    %v5274 = vpack.c.b16 %v4074, %v4058
    %v5275 = vpack.c.b16 %v4075, %v4059
    %v5276 = vpack.c.b16 %v4076, %v4060
    %v5277 = vpack.c.b16 %v4077, %v4061
    %v5278 = vpack.c.b16 %v4078, %v4062
    %v5279 = vpack.c.b16 %v4079, %v4063
    %v5280 = vpack.c.b16 %v4080, %v4064
    %v5281 = vpack.c.b16 %v4081, %v4065
    %v5282 = vpack.c.b16 %v4082, %v4066
    %v5283 = vpack.c.b16 %v4083, %v4067
    %v5284 = vpack.c.b16 %v4084, %v4068
    %v5285 = vpack.c.b16 %v4085, %v4069
    %v5286 = vpack.c.b16 %v4086, %v4070
    %v5287 = vpack.c.b16 %v4087, %v4071
    %v5288 = vpack.c.b16 %v4088, %v4072
    %v5289 = vpack.c.b16 %v4089, %v4073
    %v5290 = vpack.c.b16 %v4106, %v4090
    %v5291 = vpack.c.b16 %v4107, %v4091
    %v5292 = vpack.c.b16 %v4108, %v4092
    %v5293 = vpack.c.b16 %v4109, %v4093
    %v5294 = vpack.c.b16 %v4110, %v4094
    %v5295 = vpack.c.b16 %v4111, %v4095
    %v5296 = vpack.c.b16 %v4112, %v4096
    %v5297 = vpack.c.b16 %v4113, %v4097
    %v5298 = vpack.c.b16 %v4114, %v4098
    %v5299 = vpack.c.b16 %v4115, %v4099
    %v5300 = vpack.c.b16 %v4116, %v4100
    %v5301 = vpack.c.b16 %v4117, %v4101
    %v5302 = vpack.c.b16 %v4118, %v4102
    %v5303 = vpack.c.b16 %v4119, %v4103
    %v5304 = vpack.c.b16 %v4120, %v4104
    %v5305 = vpack.c.b16 %v4121, %v4105
    %v5306 = vpack.c.b16 %v4138, %v4122
    %v5307 = vpack.c.b16 %v4139, %v4123
    %v5308 = vpack.c.b16 %v4140, %v4124
    %v5309 = vpack.c.b16 %v4141, %v4125
    %v5310 = vpack.c.b16 %v4142, %v4126
    %v5311 = vpack.c.b16 %v4143, %v4127
    %v5312 = vpack.c.b16 %v4144, %v4128
    %v5313 = vpack.c.b16 %v4145, %v4129
    %v5314 = vpack.c.b16 %v4146, %v4130
    %v5315 = vpack.c.b16 %v4147, %v4131
    %v5316 = vpack.c.b16 %v4148, %v4132
    %v5317 = vpack.c.b16 %v4149, %v4133
    %v5318 = vpack.c.b16 %v4150, %v4134
    %v5319 = vpack.c.b16 %v4151, %v4135
    %v5320 = vpack.c.b16 %v4152, %v4136
    %v5321 = vpack.c.b16 %v4153, %v4137
    %v5322 = vpack.c.b16 %v4170, %v4154
    %v5323 = vpack.c.b16 %v4171, %v4155
    %v5324 = vpack.c.b16 %v4172, %v4156
    %v5325 = vpack.c.b16 %v4173, %v4157
    %v5326 = vpack.c.b16 %v4174, %v4158
    %v5327 = vpack.c.b16 %v4175, %v4159
    %v5328 = vpack.c.b16 %v4176, %v4160
    %v5329 = vpack.c.b16 %v4177, %v4161
    %v5330 = vpack.c.b16 %v4178, %v4162
    %v5331 = vpack.c.b16 %v4179, %v4163
    %v5332 = vpack.c.b16 %v4180, %v4164
    %v5333 = vpack.c.b16 %v4181, %v4165
    %v5334 = vpack.c.b16 %v4182, %v4166
    %v5335 = vpack.c.b16 %v4183, %v4167
    %v5336 = vpack.c.b16 %v4184, %v4168
    %v5337 = vpack.c.b16 %v4185, %v4169
    %v5338 = vpack.c.b16 %v4202, %v4186
    %v5339 = vpack.c.b16 %v4203, %v4187
    %v5340 = vpack.c.b16 %v4204, %v4188
    %v5341 = vpack.c.b16 %v4205, %v4189
    %v5342 = vpack.c.b16 %v4206, %v4190
    %v5343 = vpack.c.b16 %v4207, %v4191
    %v5344 = vpack.c.b16 %v4208, %v4192
    %v5345 = vpack.c.b16 %v4209, %v4193
    %v5346 = vpack.c.b16 %v4210, %v4194
    %v5347 = vpack.c.b16 %v4211, %v4195
    %v5348 = vpack.c.b16 %v4212, %v4196
    %v5349 = vpack.c.b16 %v4213, %v4197
    %v5350 = vpack.c.b16 %v4214, %v4198
    %v5351 = vpack.c.b16 %v4215, %v4199
    %v5352 = vpack.c.b16 %v4216, %v4200
    %v5353 = vpack.c.b16 %v4217, %v4201
    %v5354 = vpack.c.b16 %v4234, %v4218
    %v5355 = vpack.c.b16 %v4235, %v4219
    %v5356 = vpack.c.b16 %v4236, %v4220
    %v5357 = vpack.c.b16 %v4237, %v4221
    %v5358 = vpack.c.b16 %v4238, %v4222
    %v5359 = vpack.c.b16 %v4239, %v4223
    %v5360 = vpack.c.b16 %v4240, %v4224
    %v5361 = vpack.c.b16 %v4241, %v4225
    %v5362 = vpack.c.b16 %v4242, %v4226
    %v5363 = vpack.c.b16 %v4243, %v4227
    %v5364 = vpack.c.b16 %v4244, %v4228
    %v5365 = vpack.c.b16 %v4245, %v4229
    %v5366 = vpack.c.b16 %v4246, %v4230
    %v5367 = vpack.c.b16 %v4247, %v4231
    %v5368 = vpack.c.b16 %v4248, %v4232
    %v5369 = vpack.c.b16 %v4249, %v4233
    %v5370 = vpack.c.b16 %v4266, %v4250
    %v5371 = vpack.c.b16 %v4267, %v4251
    %v5372 = vpack.c.b16 %v4268, %v4252
    %v5373 = vpack.c.b16 %v4269, %v4253
    %v5374 = vpack.c.b16 %v4270, %v4254
    %v5375 = vpack.c.b16 %v4271, %v4255
    %v5376 = vpack.c.b16 %v4272, %v4256
    %v5377 = vpack.c.b16 %v4273, %v4257
    %v5378 = vpack.c.b16 %v4274, %v4258
    %v5379 = vpack.c.b16 %v4275, %v4259
    %v5380 = vpack.c.b16 %v4276, %v4260
    %v5381 = vpack.c.b16 %v4277, %v4261
    %v5382 = vpack.c.b16 %v4278, %v4262
    %v5383 = vpack.c.b16 %v4279, %v4263
    %v5384 = vpack.c.b16 %v4280, %v4264
    %v5385 = vpack.c.b16 %v4281, %v4265
    %v5386 = vpack.c.b16 %v4298, %v4282
    %v5387 = vpack.c.b16 %v4299, %v4283
    %v5388 = vpack.c.b16 %v4300, %v4284
    %v5389 = vpack.c.b16 %v4301, %v4285
    %v5390 = vpack.c.b16 %v4302, %v4286
    %v5391 = vpack.c.b16 %v4303, %v4287
    %v5392 = vpack.c.b16 %v4304, %v4288
    %v5393 = vpack.c.b16 %v4305, %v4289
    %v5394 = vpack.c.b16 %v4306, %v4290
    %v5395 = vpack.c.b16 %v4307, %v4291
    %v5396 = vpack.c.b16 %v4308, %v4292
    %v5397 = vpack.c.b16 %v4309, %v4293
    %v5398 = vpack.c.b16 %v4310, %v4294
    %v5399 = vpack.c.b16 %v4311, %v4295
    %v5400 = vpack.c.b16 %v4312, %v4296
    %v5401 = vpack.c.b16 %v4313, %v4297
    %v5402 = vpack.c.b16 %v4330, %v4314
    %v5403 = vpack.c.b16 %v4331, %v4315
    %v5404 = vpack.c.b16 %v4332, %v4316
    %v5405 = vpack.c.b16 %v4333, %v4317
    %v5406 = vpack.c.b16 %v4334, %v4318
    %v5407 = vpack.c.b16 %v4335, %v4319
    %v5408 = vpack.c.b16 %v4336, %v4320
    %v5409 = vpack.c.b16 %v4337, %v4321
    %v5410 = vpack.c.b16 %v4338, %v4322
    %v5411 = vpack.c.b16 %v4339, %v4323
    %v5412 = vpack.c.b16 %v4340, %v4324
    %v5413 = vpack.c.b16 %v4341, %v4325
    %v5414 = vpack.c.b16 %v4342, %v4326
    %v5415 = vpack.c.b16 %v4343, %v4327
    %v5416 = vpack.c.b16 %v4344, %v4328
    %v5417 = vpack.c.b16 %v4345, %v4329
    %v5418 = vpack.c.b16 %v4362, %v4346
    %v5419 = vpack.c.b16 %v4363, %v4347
    %v5420 = vpack.c.b16 %v4364, %v4348
    %v5421 = vpack.c.b16 %v4365, %v4349
    %v5422 = vpack.c.b16 %v4366, %v4350
    %v5423 = vpack.c.b16 %v4367, %v4351
    %v5424 = vpack.c.b16 %v4368, %v4352
    %v5425 = vpack.c.b16 %v4369, %v4353
    %v5426 = vpack.c.b16 %v4370, %v4354
    %v5427 = vpack.c.b16 %v4371, %v4355
    %v5428 = vpack.c.b16 %v4372, %v4356
    %v5429 = vpack.c.b16 %v4373, %v4357
    %v5430 = vpack.c.b16 %v4374, %v4358
    %v5431 = vpack.c.b16 %v4375, %v4359
    %v5432 = vpack.c.b16 %v4376, %v4360
    %v5433 = vpack.c.b16 %v4377, %v4361
    %v5434 = vpack.c.b16 %v4394, %v4378
    %v5435 = vpack.c.b16 %v4395, %v4379
    %v5436 = vpack.c.b16 %v4396, %v4380
    %v5437 = vpack.c.b16 %v4397, %v4381
    %v5438 = vpack.c.b16 %v4398, %v4382
    %v5439 = vpack.c.b16 %v4399, %v4383
    %v5440 = vpack.c.b16 %v4400, %v4384
    %v5441 = vpack.c.b16 %v4401, %v4385
    %v5442 = vpack.c.b16 %v4402, %v4386
    %v5443 = vpack.c.b16 %v4403, %v4387
    %v5444 = vpack.c.b16 %v4404, %v4388
    %v5445 = vpack.c.b16 %v4405, %v4389
    %v5446 = vpack.c.b16 %v4406, %v4390
    %v5447 = vpack.c.b16 %v4407, %v4391
    %v5448 = vpack.c.b16 %v4408, %v4392
    %v5449 = vpack.c.b16 %v4409, %v4393
    %v5450 = vpack.c.b16 %v4426, %v4410
    %v5451 = vpack.c.b16 %v4427, %v4411
    %v5452 = vpack.c.b16 %v4428, %v4412
    %v5453 = vpack.c.b16 %v4429, %v4413
    %v5454 = vpack.c.b16 %v4430, %v4414
    %v5455 = vpack.c.b16 %v4431, %v4415
    %v5456 = vpack.c.b16 %v4432, %v4416
    %v5457 = vpack.c.b16 %v4433, %v4417
    %v5458 = vpack.c.b16 %v4434, %v4418
    %v5459 = vpack.c.b16 %v4435, %v4419
    %v5460 = vpack.c.b16 %v4436, %v4420
    %v5461 = vpack.c.b16 %v4437, %v4421
    %v5462 = vpack.c.b16 %v4438, %v4422
    %v5463 = vpack.c.b16 %v4439, %v4423
    %v5464 = vpack.c.b16 %v4440, %v4424
    %v5465 = vpack.c.b16 %v4441, %v4425
    %6490 = vmatprep.subr.bf16.mxu0 %v4443
    %6491 = vmatpush1.bf16.msra.mxu0 %v4442
    %6492 = vmatprep.subr.bf16.mxu0 %v4459
    %6493 = vmatpush1.bf16.msra.mxu0 %v4458
    %6494 = vmatprep.subr.bf16.mxu0 %v4475
    %6495 = vmatpush1.bf16.msra.mxu0 %v4474
    %6496 = vmatprep.subr.bf16.mxu0 %v4491
    %6497 = vmatpush1.bf16.msra.mxu0 %v4490
    %6498 = vmatprep.subr.bf16.mxu0 %v4507
    %6499 = vmatpush1.bf16.msra.mxu0 %v4506
    %6500 = vmatprep.subr.bf16.mxu0 %v4523
    %6501 = vmatpush1.bf16.msra.mxu0 %v4522
    %6502 = vmatprep.subr.bf16.mxu0 %v4539
    %6503 = vmatpush1.bf16.msra.mxu0 %v4538
    %6504 = vmatprep.subr.bf16.mxu0 %v4555
    %6505 = vmatpush1.bf16.msra.mxu0 %v4554
    %6506 = vmatprep.subr.bf16.mxu0 %v4571
    %6507 = vmatpush1.bf16.msra.mxu0 %v4570
    %6508 = vmatprep.subr.bf16.mxu0 %v4587
    %6509 = vmatpush1.bf16.msra.mxu0 %v4586
    %6510 = vmatprep.subr.bf16.mxu0 %v4603
    %6511 = vmatpush1.bf16.msra.mxu0 %v4602
    %6512 = vmatprep.subr.bf16.mxu0 %v4619
    %6513 = vmatpush1.bf16.msra.mxu0 %v4618
    %6514 = vmatprep.subr.bf16.mxu0 %v4635
    %6515 = vmatpush1.bf16.msra.mxu0 %v4634
    %6516 = vmatprep.subr.bf16.mxu0 %v4651
    %6517 = vmatpush1.bf16.msra.mxu0 %v4650
    %6518 = vmatprep.subr.bf16.mxu0 %v4667
    %6519 = vmatpush1.bf16.msra.mxu0 %v4666
    %6520 = vmatprep.subr.bf16.mxu0 %v4683
    %6521 = vmatpush1.bf16.msra.mxu0 %v4682
    %6522 = vmatprep.mubr.bf16.mxu0 %v1355
    %6523 = vmatmul.mubr.bf16.gmra.mrb[0].mxu0 %v1354
    %v6524 = vpop.f32.mrb[0].mxu0
    %v6525 = vadd.f32 %v1265, %v6524
    %v6526 = vpop.f32.mrb[0].mxu0
    %v6527 = vadd.f32 %v1269, %v6526
    %v6528 = vpop.f32.mrb[0].mxu0
    %v6529 = vpop.f32.mrb[0].mxu0
    %6530 = vdwg.mxu0
    %6531 = vmatprep.subr.bf16.mxu0 %v4699
    %6532 = vmatpush1.bf16.msra.mxu0 %v4698
    %6533 = vmatprep.subr.bf16.mxu0 %v4715
    %6534 = vmatpush1.bf16.msra.mxu0 %v4714
    %6535 = vmatprep.subr.bf16.mxu0 %v4731
    %6536 = vmatpush1.bf16.msra.mxu0 %v4730
    %6537 = vmatprep.subr.bf16.mxu0 %v4747
    %6538 = vmatpush1.bf16.msra.mxu0 %v4746
    %6539 = vmatprep.subr.bf16.mxu0 %v4763
    %6540 = vmatpush1.bf16.msra.mxu0 %v4762
    %6541 = vmatprep.subr.bf16.mxu0 %v4779
    %6542 = vmatpush1.bf16.msra.mxu0 %v4778
    %6543 = vmatprep.subr.bf16.mxu0 %v4795
    %6544 = vmatpush1.bf16.msra.mxu0 %v4794
    %6545 = vmatprep.subr.bf16.mxu0 %v4811
    %6546 = vmatpush1.bf16.msra.mxu0 %v4810
    %6547 = vmatprep.subr.bf16.mxu0 %v4827
    %6548 = vmatpush1.bf16.msra.mxu0 %v4826
    %6549 = vmatprep.subr.bf16.mxu0 %v4843
    %6550 = vmatpush1.bf16.msra.mxu0 %v4842
    %6551 = vmatprep.subr.bf16.mxu0 %v4859
    %6552 = vmatpush1.bf16.msra.mxu0 %v4858
    %6553 = vmatprep.subr.bf16.mxu0 %v4875
    %6554 = vmatpush1.bf16.msra.mxu0 %v4874
    %6555 = vmatprep.subr.bf16.mxu0 %v4891
    %6556 = vmatpush1.bf16.msra.mxu0 %v4890
    %6557 = vmatprep.subr.bf16.mxu0 %v4907
    %6558 = vmatpush1.bf16.msra.mxu0 %v4906
    %6559 = vmatprep.subr.bf16.mxu0 %v4923
    %6560 = vmatpush1.bf16.msra.mxu0 %v4922
    %6561 = vmatprep.subr.bf16.mxu0 %v4939
    %6562 = vmatpush1.bf16.msra.mxu0 %v4938
    %6563 = vmatprep.mubr.bf16.mxu0 %v1357
    %6564 = vmatmul.mubr.bf16.gmra.mrb[0].mxu0 %v1356
    %v6565 = vpop.f32.mrb[0].mxu0
    %v6566 = vadd.f32 %v6525, %v6565
    %v6567 = vpop.f32.mrb[0].mxu0
    %v6568 = vadd.f32 %v6527, %v6567
    %v6569 = vpop.f32.mrb[0].mxu0
    %v6570 = vpop.f32.mrb[0].mxu0
    %6571 = vdwg.mxu0
    %6572 = vmatprep.subr.bf16.mxu0 %v4955
    %6573 = vmatpush1.bf16.msra.mxu0 %v4954
    %6574 = vmatprep.subr.bf16.mxu0 %v4971
    %6575 = vmatpush1.bf16.msra.mxu0 %v4970
    %6576 = vmatprep.subr.bf16.mxu0 %v4987
    %6577 = vmatpush1.bf16.msra.mxu0 %v4986
    %6578 = vmatprep.subr.bf16.mxu0 %v5003
    %6579 = vmatpush1.bf16.msra.mxu0 %v5002
    %6580 = vmatprep.subr.bf16.mxu0 %v5019
    %6581 = vmatpush1.bf16.msra.mxu0 %v5018
    %6582 = vmatprep.subr.bf16.mxu0 %v5035
    %6583 = vmatpush1.bf16.msra.mxu0 %v5034
    %6584 = vmatprep.subr.bf16.mxu0 %v5051
    %6585 = vmatpush1.bf16.msra.mxu0 %v5050
    %6586 = vmatprep.subr.bf16.mxu0 %v5067
    %6587 = vmatpush1.bf16.msra.mxu0 %v5066
    %6588 = vmatprep.subr.bf16.mxu0 %v5083
    %6589 = vmatpush1.bf16.msra.mxu0 %v5082
    %6590 = vmatprep.subr.bf16.mxu0 %v5099
    %6591 = vmatpush1.bf16.msra.mxu0 %v5098
    %6592 = vmatprep.subr.bf16.mxu0 %v5115
    %6593 = vmatpush1.bf16.msra.mxu0 %v5114
    %6594 = vmatprep.subr.bf16.mxu0 %v5131
    %6595 = vmatpush1.bf16.msra.mxu0 %v5130
    %6596 = vmatprep.subr.bf16.mxu0 %v5147
    %6597 = vmatpush1.bf16.msra.mxu0 %v5146
    %6598 = vmatprep.subr.bf16.mxu0 %v5163
    %6599 = vmatpush1.bf16.msra.mxu0 %v5162
    %6600 = vmatprep.subr.bf16.mxu0 %v5179
    %6601 = vmatpush1.bf16.msra.mxu0 %v5178
    %6602 = vmatprep.subr.bf16.mxu0 %v5195
    %6603 = vmatpush1.bf16.msra.mxu0 %v5194
    %6604 = vmatprep.mubr.bf16.mxu0 %v1359
    %6605 = vmatmul.mubr.bf16.gmra.mrb[0].mxu0 %v1358
    %v6606 = vpop.f32.mrb[0].mxu0
    %v6607 = vadd.f32 %v6566, %v6606
    %v6608 = vpop.f32.mrb[0].mxu0
    %v6609 = vadd.f32 %v6568, %v6608
    %v6610 = vpop.f32.mrb[0].mxu0
    %v6611 = vpop.f32.mrb[0].mxu0
    %6612 = vdwg.mxu0
    %6613 = vmatprep.subr.bf16.mxu0 %v5211
    %6614 = vmatpush1.bf16.msra.mxu0 %v5210
    %6615 = vmatprep.subr.bf16.mxu0 %v5227
    %6616 = vmatpush1.bf16.msra.mxu0 %v5226
    %6617 = vmatprep.subr.bf16.mxu0 %v5243
    %6618 = vmatpush1.bf16.msra.mxu0 %v5242
    %6619 = vmatprep.subr.bf16.mxu0 %v5259
    %6620 = vmatpush1.bf16.msra.mxu0 %v5258
    %6621 = vmatprep.subr.bf16.mxu0 %v5275
    %6622 = vmatpush1.bf16.msra.mxu0 %v5274
    %6623 = vmatprep.subr.bf16.mxu0 %v5291
    %6624 = vmatpush1.bf16.msra.mxu0 %v5290
    %6625 = vmatprep.subr.bf16.mxu0 %v5307
    %6626 = vmatpush1.bf16.msra.mxu0 %v5306
    %6627 = vmatprep.subr.bf16.mxu0 %v5323
    %6628 = vmatpush1.bf16.msra.mxu0 %v5322
    %6629 = vmatprep.subr.bf16.mxu0 %v5339
    %6630 = vmatpush1.bf16.msra.mxu0 %v5338
    %6631 = vmatprep.subr.bf16.mxu0 %v5355
    %6632 = vmatpush1.bf16.msra.mxu0 %v5354
    %6633 = vmatprep.subr.bf16.mxu0 %v5371
    %6634 = vmatpush1.bf16.msra.mxu0 %v5370
    %6635 = vmatprep.subr.bf16.mxu0 %v5387
    %6636 = vmatpush1.bf16.msra.mxu0 %v5386
    %6637 = vmatprep.subr.bf16.mxu0 %v5403
    %6638 = vmatpush1.bf16.msra.mxu0 %v5402
    %6639 = vmatprep.subr.bf16.mxu0 %v5419
    %6640 = vmatpush1.bf16.msra.mxu0 %v5418
    %6641 = vmatprep.subr.bf16.mxu0 %v5435
    %6642 = vmatpush1.bf16.msra.mxu0 %v5434
    %6643 = vmatprep.subr.bf16.mxu0 %v5451
    %6644 = vmatpush1.bf16.msra.mxu0 %v5450
    %6645 = vmatprep.mubr.bf16.mxu0 %v1361
    %6646 = vmatmul.mubr.bf16.gmra.mrb[0].mxu0 %v1360
    %v6647 = vpop.f32.mrb[0].mxu0
    %v6648 = vadd.f32 %v6607, %v6647
    %v6649 = vpop.f32.mrb[0].mxu0
    %v6650 = vadd.f32 %v6609, %v6649
    %v6651 = vpop.f32.mrb[0].mxu0
    %v6652 = vpop.f32.mrb[0].mxu0
    %6653 = vdwg.mxu0
    %6654 = vmatprep.subr.bf16.mxu0 %v4445
    %6655 = vmatpush1.bf16.msra.mxu0 %v4444
    %6656 = vmatprep.subr.bf16.mxu0 %v4461
    %6657 = vmatpush1.bf16.msra.mxu0 %v4460
    %6658 = vmatprep.subr.bf16.mxu0 %v4477
    %6659 = vmatpush1.bf16.msra.mxu0 %v4476
    %6660 = vmatprep.subr.bf16.mxu0 %v4493
    %6661 = vmatpush1.bf16.msra.mxu0 %v4492
    %6662 = vmatprep.subr.bf16.mxu0 %v4509
    %6663 = vmatpush1.bf16.msra.mxu0 %v4508
    %6664 = vmatprep.subr.bf16.mxu0 %v4525
    %6665 = vmatpush1.bf16.msra.mxu0 %v4524
    %6666 = vmatprep.subr.bf16.mxu0 %v4541
    %6667 = vmatpush1.bf16.msra.mxu0 %v4540
    %6668 = vmatprep.subr.bf16.mxu0 %v4557
    %6669 = vmatpush1.bf16.msra.mxu0 %v4556
    %6670 = vmatprep.subr.bf16.mxu0 %v4573
    %6671 = vmatpush1.bf16.msra.mxu0 %v4572
    %6672 = vmatprep.subr.bf16.mxu0 %v4589
    %6673 = vmatpush1.bf16.msra.mxu0 %v4588
    %6674 = vmatprep.subr.bf16.mxu0 %v4605
    %6675 = vmatpush1.bf16.msra.mxu0 %v4604
    %6676 = vmatprep.subr.bf16.mxu0 %v4621
    %6677 = vmatpush1.bf16.msra.mxu0 %v4620
    %6678 = vmatprep.subr.bf16.mxu0 %v4637
    %6679 = vmatpush1.bf16.msra.mxu0 %v4636
    %6680 = vmatprep.subr.bf16.mxu0 %v4653
    %6681 = vmatpush1.bf16.msra.mxu0 %v4652
    %6682 = vmatprep.subr.bf16.mxu0 %v4669
    %6683 = vmatpush1.bf16.msra.mxu0 %v4668
    %6684 = vmatprep.subr.bf16.mxu0 %v4685
    %6685 = vmatpush1.bf16.msra.mxu0 %v4684
    %6686 = vmatprep.mubr.bf16.mxu0 %v1355
    %6687 = vmatmul.mubr.bf16.gmra.mrb[0].mxu0 %v1354
    %v6688 = vpop.f32.mrb[0].mxu0
    %v6689 = vadd.f32 %v1273, %v6688
    %v6690 = vpop.f32.mrb[0].mxu0
    %v6691 = vadd.f32 %v1277, %v6690
    %v6692 = vpop.f32.mrb[0].mxu0
    %v6693 = vpop.f32.mrb[0].mxu0
    %6694 = vdwg.mxu0
    %6695 = vmatprep.subr.bf16.mxu0 %v4701
    %6696 = vmatpush1.bf16.msra.mxu0 %v4700
    %6697 = vmatprep.subr.bf16.mxu0 %v4717
    %6698 = vmatpush1.bf16.msra.mxu0 %v4716
    %6699 = vmatprep.subr.bf16.mxu0 %v4733
    %6700 = vmatpush1.bf16.msra.mxu0 %v4732
    %6701 = vmatprep.subr.bf16.mxu0 %v4749
    %6702 = vmatpush1.bf16.msra.mxu0 %v4748
    %6703 = vmatprep.subr.bf16.mxu0 %v4765
    %6704 = vmatpush1.bf16.msra.mxu0 %v4764
    %6705 = vmatprep.subr.bf16.mxu0 %v4781
    %6706 = vmatpush1.bf16.msra.mxu0 %v4780
    %6707 = vmatprep.subr.bf16.mxu0 %v4797
    %6708 = vmatpush1.bf16.msra.mxu0 %v4796
    %6709 = vmatprep.subr.bf16.mxu0 %v4813
    %6710 = vmatpush1.bf16.msra.mxu0 %v4812
    %6711 = vmatprep.subr.bf16.mxu0 %v4829
    %6712 = vmatpush1.bf16.msra.mxu0 %v4828
    %6713 = vmatprep.subr.bf16.mxu0 %v4845
    %6714 = vmatpush1.bf16.msra.mxu0 %v4844
    %6715 = vmatprep.subr.bf16.mxu0 %v4861
    %6716 = vmatpush1.bf16.msra.mxu0 %v4860
    %6717 = vmatprep.subr.bf16.mxu0 %v4877
    %6718 = vmatpush1.bf16.msra.mxu0 %v4876
    %6719 = vmatprep.subr.bf16.mxu0 %v4893
    %6720 = vmatpush1.bf16.msra.mxu0 %v4892
    %6721 = vmatprep.subr.bf16.mxu0 %v4909
    %6722 = vmatpush1.bf16.msra.mxu0 %v4908
    %6723 = vmatprep.subr.bf16.mxu0 %v4925
    %6724 = vmatpush1.bf16.msra.mxu0 %v4924
    %6725 = vmatprep.subr.bf16.mxu0 %v4941
    %6726 = vmatpush1.bf16.msra.mxu0 %v4940
    %6727 = vmatprep.mubr.bf16.mxu0 %v1357
    %6728 = vmatmul.mubr.bf16.gmra.mrb[0].mxu0 %v1356
    %v6729 = vpop.f32.mrb[0].mxu0
    %v6730 = vadd.f32 %v6689, %v6729
    %v6731 = vpop.f32.mrb[0].mxu0
    %v6732 = vadd.f32 %v6691, %v6731
    %v6733 = vpop.f32.mrb[0].mxu0
    %v6734 = vpop.f32.mrb[0].mxu0
    %6735 = vdwg.mxu0
    %6736 = vmatprep.subr.bf16.mxu0 %v4957
    %6737 = vmatpush1.bf16.msra.mxu0 %v4956
    %6738 = vmatprep.subr.bf16.mxu0 %v4973
    %6739 = vmatpush1.bf16.msra.mxu0 %v4972
    %6740 = vmatprep.subr.bf16.mxu0 %v4989
    %6741 = vmatpush1.bf16.msra.mxu0 %v4988
    %6742 = vmatprep.subr.bf16.mxu0 %v5005
    %6743 = vmatpush1.bf16.msra.mxu0 %v5004
    %6744 = vmatprep.subr.bf16.mxu0 %v5021
    %6745 = vmatpush1.bf16.msra.mxu0 %v5020
    %6746 = vmatprep.subr.bf16.mxu0 %v5037
    %6747 = vmatpush1.bf16.msra.mxu0 %v5036
    %6748 = vmatprep.subr.bf16.mxu0 %v5053
    %6749 = vmatpush1.bf16.msra.mxu0 %v5052
    %6750 = vmatprep.subr.bf16.mxu0 %v5069
    %6751 = vmatpush1.bf16.msra.mxu0 %v5068
    %6752 = vmatprep.subr.bf16.mxu0 %v5085
    %6753 = vmatpush1.bf16.msra.mxu0 %v5084
    %6754 = vmatprep.subr.bf16.mxu0 %v5101
    %6755 = vmatpush1.bf16.msra.mxu0 %v5100
    %6756 = vmatprep.subr.bf16.mxu0 %v5117
    %6757 = vmatpush1.bf16.msra.mxu0 %v5116
    %6758 = vmatprep.subr.bf16.mxu0 %v5133
    %6759 = vmatpush1.bf16.msra.mxu0 %v5132
    %6760 = vmatprep.subr.bf16.mxu0 %v5149
    %6761 = vmatpush1.bf16.msra.mxu0 %v5148
    %6762 = vmatprep.subr.bf16.mxu0 %v5165
    %6763 = vmatpush1.bf16.msra.mxu0 %v5164
    %6764 = vmatprep.subr.bf16.mxu0 %v5181
    %6765 = vmatpush1.bf16.msra.mxu0 %v5180
    %6766 = vmatprep.subr.bf16.mxu0 %v5197
    %6767 = vmatpush1.bf16.msra.mxu0 %v5196
    %6768 = vmatprep.mubr.bf16.mxu0 %v1359
    %6769 = vmatmul.mubr.bf16.gmra.mrb[0].mxu0 %v1358
    %v6770 = vpop.f32.mrb[0].mxu0
    %v6771 = vadd.f32 %v6730, %v6770
    %v6772 = vpop.f32.mrb[0].mxu0
    %v6773 = vadd.f32 %v6732, %v6772
    %v6774 = vpop.f32.mrb[0].mxu0
    %v6775 = vpop.f32.mrb[0].mxu0
    %6776 = vdwg.mxu0
    %6777 = vmatprep.subr.bf16.mxu0 %v5213
    %6778 = vmatpush1.bf16.msra.mxu0 %v5212
    %6779 = vmatprep.subr.bf16.mxu0 %v5229
    %6780 = vmatpush1.bf16.msra.mxu0 %v5228
    %6781 = vmatprep.subr.bf16.mxu0 %v5245
    %6782 = vmatpush1.bf16.msra.mxu0 %v5244
    %6783 = vmatprep.subr.bf16.mxu0 %v5261
    %6784 = vmatpush1.bf16.msra.mxu0 %v5260
    %6785 = vmatprep.subr.bf16.mxu0 %v5277
    %6786 = vmatpush1.bf16.msra.mxu0 %v5276
    %6787 = vmatprep.subr.bf16.mxu0 %v5293
    %6788 = vmatpush1.bf16.msra.mxu0 %v5292
    %6789 = vmatprep.subr.bf16.mxu0 %v5309
    %6790 = vmatpush1.bf16.msra.mxu0 %v5308
    %6791 = vmatprep.subr.bf16.mxu0 %v5325
    %6792 = vmatpush1.bf16.msra.mxu0 %v5324
    %6793 = vmatprep.subr.bf16.mxu0 %v5341
    %6794 = vmatpush1.bf16.msra.mxu0 %v5340
    %6795 = vmatprep.subr.bf16.mxu0 %v5357
    %6796 = vmatpush1.bf16.msra.mxu0 %v5356
    %6797 = vmatprep.subr.bf16.mxu0 %v5373
    %6798 = vmatpush1.bf16.msra.mxu0 %v5372
    %6799 = vmatprep.subr.bf16.mxu0 %v5389
    %6800 = vmatpush1.bf16.msra.mxu0 %v5388
    %6801 = vmatprep.subr.bf16.mxu0 %v5405
    %6802 = vmatpush1.bf16.msra.mxu0 %v5404
    %6803 = vmatprep.subr.bf16.mxu0 %v5421
    %6804 = vmatpush1.bf16.msra.mxu0 %v5420
    %6805 = vmatprep.subr.bf16.mxu0 %v5437
    %6806 = vmatpush1.bf16.msra.mxu0 %v5436
    %6807 = vmatprep.subr.bf16.mxu0 %v5453
    %6808 = vmatpush1.bf16.msra.mxu0 %v5452
    %6809 = vmatprep.mubr.bf16.mxu0 %v1361
    %6810 = vmatmul.mubr.bf16.gmra.mrb[0].mxu0 %v1360
    %v6811 = vpop.f32.mrb[0].mxu0
    %v6812 = vadd.f32 %v6771, %v6811
    %v6813 = vpop.f32.mrb[0].mxu0
    %v6814 = vadd.f32 %v6773, %v6813
    %v6815 = vpop.f32.mrb[0].mxu0
    %v6816 = vpop.f32.mrb[0].mxu0
    %6817 = vdwg.mxu0
    %6818 = vmatprep.subr.bf16.mxu0 %v4447
    %6819 = vmatpush1.bf16.msra.mxu0 %v4446
    %6820 = vmatprep.subr.bf16.mxu0 %v4463
    %6821 = vmatpush1.bf16.msra.mxu0 %v4462
    %6822 = vmatprep.subr.bf16.mxu0 %v4479
    %6823 = vmatpush1.bf16.msra.mxu0 %v4478
    %6824 = vmatprep.subr.bf16.mxu0 %v4495
    %6825 = vmatpush1.bf16.msra.mxu0 %v4494
    %6826 = vmatprep.subr.bf16.mxu0 %v4511
    %6827 = vmatpush1.bf16.msra.mxu0 %v4510
    %6828 = vmatprep.subr.bf16.mxu0 %v4527
    %6829 = vmatpush1.bf16.msra.mxu0 %v4526
    %6830 = vmatprep.subr.bf16.mxu0 %v4543
    %6831 = vmatpush1.bf16.msra.mxu0 %v4542
    %6832 = vmatprep.subr.bf16.mxu0 %v4559
    %6833 = vmatpush1.bf16.msra.mxu0 %v4558
    %6834 = vmatprep.subr.bf16.mxu0 %v4575
    %6835 = vmatpush1.bf16.msra.mxu0 %v4574
    %6836 = vmatprep.subr.bf16.mxu0 %v4591
    %6837 = vmatpush1.bf16.msra.mxu0 %v4590
    %6838 = vmatprep.subr.bf16.mxu0 %v4607
    %6839 = vmatpush1.bf16.msra.mxu0 %v4606
    %6840 = vmatprep.subr.bf16.mxu0 %v4623
    %6841 = vmatpush1.bf16.msra.mxu0 %v4622
    %6842 = vmatprep.subr.bf16.mxu0 %v4639
    %6843 = vmatpush1.bf16.msra.mxu0 %v4638
    %6844 = vmatprep.subr.bf16.mxu0 %v4655
    %6845 = vmatpush1.bf16.msra.mxu0 %v4654
    %6846 = vmatprep.subr.bf16.mxu0 %v4671
    %6847 = vmatpush1.bf16.msra.mxu0 %v4670
    %6848 = vmatprep.subr.bf16.mxu0 %v4687
    %6849 = vmatpush1.bf16.msra.mxu0 %v4686
    %6850 = vmatprep.mubr.bf16.mxu0 %v1355
    %6851 = vmatmul.mubr.bf16.gmra.mrb[0].mxu0 %v1354
    %v6852 = vpop.f32.mrb[0].mxu0
    %v6853 = vadd.f32 %v1281, %v6852
    %v6854 = vpop.f32.mrb[0].mxu0
    %v6855 = vadd.f32 %v1285, %v6854
    %v6856 = vpop.f32.mrb[0].mxu0
    %v6857 = vpop.f32.mrb[0].mxu0
    %6858 = vdwg.mxu0
    %6859 = vmatprep.subr.bf16.mxu0 %v4703
    %6860 = vmatpush1.bf16.msra.mxu0 %v4702
    %6861 = vmatprep.subr.bf16.mxu0 %v4719
    %6862 = vmatpush1.bf16.msra.mxu0 %v4718
    %6863 = vmatprep.subr.bf16.mxu0 %v4735
    %6864 = vmatpush1.bf16.msra.mxu0 %v4734
    %6865 = vmatprep.subr.bf16.mxu0 %v4751
    %6866 = vmatpush1.bf16.msra.mxu0 %v4750
    %6867 = vmatprep.subr.bf16.mxu0 %v4767
    %6868 = vmatpush1.bf16.msra.mxu0 %v4766
    %6869 = vmatprep.subr.bf16.mxu0 %v4783
    %6870 = vmatpush1.bf16.msra.mxu0 %v4782
    %6871 = vmatprep.subr.bf16.mxu0 %v4799
    %6872 = vmatpush1.bf16.msra.mxu0 %v4798
    %6873 = vmatprep.subr.bf16.mxu0 %v4815
    %6874 = vmatpush1.bf16.msra.mxu0 %v4814
    %6875 = vmatprep.subr.bf16.mxu0 %v4831
    %6876 = vmatpush1.bf16.msra.mxu0 %v4830
    %6877 = vmatprep.subr.bf16.mxu0 %v4847
    %6878 = vmatpush1.bf16.msra.mxu0 %v4846
    %6879 = vmatprep.subr.bf16.mxu0 %v4863
    %6880 = vmatpush1.bf16.msra.mxu0 %v4862
    %6881 = vmatprep.subr.bf16.mxu0 %v4879
    %6882 = vmatpush1.bf16.msra.mxu0 %v4878
    %6883 = vmatprep.subr.bf16.mxu0 %v4895
    %6884 = vmatpush1.bf16.msra.mxu0 %v4894
    %6885 = vmatprep.subr.bf16.mxu0 %v4911
    %6886 = vmatpush1.bf16.msra.mxu0 %v4910
    %6887 = vmatprep.subr.bf16.mxu0 %v4927
    %6888 = vmatpush1.bf16.msra.mxu0 %v4926
    %6889 = vmatprep.subr.bf16.mxu0 %v4943
    %6890 = vmatpush1.bf16.msra.mxu0 %v4942
    %6891 = vmatprep.mubr.bf16.mxu0 %v1357
    %6892 = vmatmul.mubr.bf16.gmra.mrb[0].mxu0 %v1356
    %v6893 = vpop.f32.mrb[0].mxu0
    %v6894 = vadd.f32 %v6853, %v6893
    %v6895 = vpop.f32.mrb[0].mxu0
    %v6896 = vadd.f32 %v6855, %v6895
    %v6897 = vpop.f32.mrb[0].mxu0
    %v6898 = vpop.f32.mrb[0].mxu0
    %6899 = vdwg.mxu0
    %6900 = vmatprep.subr.bf16.mxu0 %v4959
    %6901 = vmatpush1.bf16.msra.mxu0 %v4958
    %6902 = vmatprep.subr.bf16.mxu0 %v4975
    %6903 = vmatpush1.bf16.msra.mxu0 %v4974
    %6904 = vmatprep.subr.bf16.mxu0 %v4991
    %6905 = vmatpush1.bf16.msra.mxu0 %v4990
    %6906 = vmatprep.subr.bf16.mxu0 %v5007
    %6907 = vmatpush1.bf16.msra.mxu0 %v5006
    %6908 = vmatprep.subr.bf16.mxu0 %v5023
    %6909 = vmatpush1.bf16.msra.mxu0 %v5022
    %6910 = vmatprep.subr.bf16.mxu0 %v5039
    %6911 = vmatpush1.bf16.msra.mxu0 %v5038
    %6912 = vmatprep.subr.bf16.mxu0 %v5055
    %6913 = vmatpush1.bf16.msra.mxu0 %v5054
    %6914 = vmatprep.subr.bf16.mxu0 %v5071
    %6915 = vmatpush1.bf16.msra.mxu0 %v5070
    %6916 = vmatprep.subr.bf16.mxu0 %v5087
    %6917 = vmatpush1.bf16.msra.mxu0 %v5086
    %6918 = vmatprep.subr.bf16.mxu0 %v5103
    %6919 = vmatpush1.bf16.msra.mxu0 %v5102
    %6920 = vmatprep.subr.bf16.mxu0 %v5119
    %6921 = vmatpush1.bf16.msra.mxu0 %v5118
    %6922 = vmatprep.subr.bf16.mxu0 %v5135
    %6923 = vmatpush1.bf16.msra.mxu0 %v5134
    %6924 = vmatprep.subr.bf16.mxu0 %v5151
    %6925 = vmatpush1.bf16.msra.mxu0 %v5150
    %6926 = vmatprep.subr.bf16.mxu0 %v5167
    %6927 = vmatpush1.bf16.msra.mxu0 %v5166
    %6928 = vmatprep.subr.bf16.mxu0 %v5183
    %6929 = vmatpush1.bf16.msra.mxu0 %v5182
    %6930 = vmatprep.subr.bf16.mxu0 %v5199
    %6931 = vmatpush1.bf16.msra.mxu0 %v5198
    %6932 = vmatprep.mubr.bf16.mxu0 %v1359
    %6933 = vmatmul.mubr.bf16.gmra.mrb[0].mxu0 %v1358
    %v6934 = vpop.f32.mrb[0].mxu0
    %v6935 = vadd.f32 %v6894, %v6934
    %v6936 = vpop.f32.mrb[0].mxu0
    %v6937 = vadd.f32 %v6896, %v6936
    %v6938 = vpop.f32.mrb[0].mxu0
    %v6939 = vpop.f32.mrb[0].mxu0
    %6940 = vdwg.mxu0
    %6941 = vmatprep.subr.bf16.mxu0 %v5215
    %6942 = vmatpush1.bf16.msra.mxu0 %v5214
    %6943 = vmatprep.subr.bf16.mxu0 %v5231
    %6944 = vmatpush1.bf16.msra.mxu0 %v5230
    %6945 = vmatprep.subr.bf16.mxu0 %v5247
    %6946 = vmatpush1.bf16.msra.mxu0 %v5246
    %6947 = vmatprep.subr.bf16.mxu0 %v5263
    %6948 = vmatpush1.bf16.msra.mxu0 %v5262
    %6949 = vmatprep.subr.bf16.mxu0 %v5279
    %6950 = vmatpush1.bf16.msra.mxu0 %v5278
    %6951 = vmatprep.subr.bf16.mxu0 %v5295
    %6952 = vmatpush1.bf16.msra.mxu0 %v5294
    %6953 = vmatprep.subr.bf16.mxu0 %v5311
    %6954 = vmatpush1.bf16.msra.mxu0 %v5310
    %6955 = vmatprep.subr.bf16.mxu0 %v5327
    %6956 = vmatpush1.bf16.msra.mxu0 %v5326
    %6957 = vmatprep.subr.bf16.mxu0 %v5343
    %6958 = vmatpush1.bf16.msra.mxu0 %v5342
    %6959 = vmatprep.subr.bf16.mxu0 %v5359
    %6960 = vmatpush1.bf16.msra.mxu0 %v5358
    %6961 = vmatprep.subr.bf16.mxu0 %v5375
    %6962 = vmatpush1.bf16.msra.mxu0 %v5374
    %6963 = vmatprep.subr.bf16.mxu0 %v5391
    %6964 = vmatpush1.bf16.msra.mxu0 %v5390
    %6965 = vmatprep.subr.bf16.mxu0 %v5407
    %6966 = vmatpush1.bf16.msra.mxu0 %v5406
    %6967 = vmatprep.subr.bf16.mxu0 %v5423
    %6968 = vmatpush1.bf16.msra.mxu0 %v5422
    %6969 = vmatprep.subr.bf16.mxu0 %v5439
    %6970 = vmatpush1.bf16.msra.mxu0 %v5438
    %6971 = vmatprep.subr.bf16.mxu0 %v5455
    %6972 = vmatpush1.bf16.msra.mxu0 %v5454
    %6973 = vmatprep.mubr.bf16.mxu0 %v1361
    %6974 = vmatmul.mubr.bf16.gmra.mrb[0].mxu0 %v1360
    %v6975 = vpop.f32.mrb[0].mxu0
    %v6976 = vadd.f32 %v6935, %v6975
    %v6977 = vpop.f32.mrb[0].mxu0
    %v6978 = vadd.f32 %v6937, %v6977
    %v6979 = vpop.f32.mrb[0].mxu0
    %v6980 = vpop.f32.mrb[0].mxu0
    %6981 = vdwg.mxu0
    %6982 = vmatprep.subr.bf16.mxu0 %v4449
    %6983 = vmatpush1.bf16.msra.mxu0 %v4448
    %6984 = vmatprep.subr.bf16.mxu0 %v4465
    %6985 = vmatpush1.bf16.msra.mxu0 %v4464
    %6986 = vmatprep.subr.bf16.mxu0 %v4481
    %6987 = vmatpush1.bf16.msra.mxu0 %v4480
    %6988 = vmatprep.subr.bf16.mxu0 %v4497
    %6989 = vmatpush1.bf16.msra.mxu0 %v4496
    %6990 = vmatprep.subr.bf16.mxu0 %v4513
    %6991 = vmatpush1.bf16.msra.mxu0 %v4512
    %6992 = vmatprep.subr.bf16.mxu0 %v4529
    %6993 = vmatpush1.bf16.msra.mxu0 %v4528
    %6994 = vmatprep.subr.bf16.mxu0 %v4545
    %6995 = vmatpush1.bf16.msra.mxu0 %v4544
    %6996 = vmatprep.subr.bf16.mxu0 %v4561
    %6997 = vmatpush1.bf16.msra.mxu0 %v4560
    %6998 = vmatprep.subr.bf16.mxu0 %v4577
    %6999 = vmatpush1.bf16.msra.mxu0 %v4576
    %7000 = vmatprep.subr.bf16.mxu0 %v4593
    %7001 = vmatpush1.bf16.msra.mxu0 %v4592
    %7002 = vmatprep.subr.bf16.mxu0 %v4609
    %7003 = vmatpush1.bf16.msra.mxu0 %v4608
    %7004 = vmatprep.subr.bf16.mxu0 %v4625
    %7005 = vmatpush1.bf16.msra.mxu0 %v4624
    %7006 = vmatprep.subr.bf16.mxu0 %v4641
    %7007 = vmatpush1.bf16.msra.mxu0 %v4640
    %7008 = vmatprep.subr.bf16.mxu0 %v4657
    %7009 = vmatpush1.bf16.msra.mxu0 %v4656
    %7010 = vmatprep.subr.bf16.mxu0 %v4673
    %7011 = vmatpush1.bf16.msra.mxu0 %v4672
    %7012 = vmatprep.subr.bf16.mxu0 %v4689
    %7013 = vmatpush1.bf16.msra.mxu0 %v4688
    %7014 = vmatprep.mubr.bf16.mxu0 %v1355
    %7015 = vmatmul.mubr.bf16.gmra.mrb[0].mxu0 %v1354
    %v7016 = vpop.f32.mrb[0].mxu0
    %v7017 = vadd.f32 %v1289, %v7016
    %v7018 = vpop.f32.mrb[0].mxu0
    %v7019 = vadd.f32 %v1293, %v7018
    %v7020 = vpop.f32.mrb[0].mxu0
    %v7021 = vpop.f32.mrb[0].mxu0
    %7022 = vdwg.mxu0
    %7023 = vmatprep.subr.bf16.mxu0 %v4705
    %7024 = vmatpush1.bf16.msra.mxu0 %v4704
    %7025 = vmatprep.subr.bf16.mxu0 %v4721
    %7026 = vmatpush1.bf16.msra.mxu0 %v4720
    %7027 = vmatprep.subr.bf16.mxu0 %v4737
    %7028 = vmatpush1.bf16.msra.mxu0 %v4736
    %7029 = vmatprep.subr.bf16.mxu0 %v4753
    %7030 = vmatpush1.bf16.msra.mxu0 %v4752
    %7031 = vmatprep.subr.bf16.mxu0 %v4769
    %7032 = vmatpush1.bf16.msra.mxu0 %v4768
    %7033 = vmatprep.subr.bf16.mxu0 %v4785
    %7034 = vmatpush1.bf16.msra.mxu0 %v4784
    %7035 = vmatprep.subr.bf16.mxu0 %v4801
    %7036 = vmatpush1.bf16.msra.mxu0 %v4800
    %7037 = vmatprep.subr.bf16.mxu0 %v4817
    %7038 = vmatpush1.bf16.msra.mxu0 %v4816
    %7039 = vmatprep.subr.bf16.mxu0 %v4833
    %7040 = vmatpush1.bf16.msra.mxu0 %v4832
    %7041 = vmatprep.subr.bf16.mxu0 %v4849
    %7042 = vmatpush1.bf16.msra.mxu0 %v4848
    %7043 = vmatprep.subr.bf16.mxu0 %v4865
    %7044 = vmatpush1.bf16.msra.mxu0 %v4864
    %7045 = vmatprep.subr.bf16.mxu0 %v4881
    %7046 = vmatpush1.bf16.msra.mxu0 %v4880
    %7047 = vmatprep.subr.bf16.mxu0 %v4897
    %7048 = vmatpush1.bf16.msra.mxu0 %v4896
    %7049 = vmatprep.subr.bf16.mxu0 %v4913
    %7050 = vmatpush1.bf16.msra.mxu0 %v4912
    %7051 = vmatprep.subr.bf16.mxu0 %v4929
    %7052 = vmatpush1.bf16.msra.mxu0 %v4928
    %7053 = vmatprep.subr.bf16.mxu0 %v4945
    %7054 = vmatpush1.bf16.msra.mxu0 %v4944
    %7055 = vmatprep.mubr.bf16.mxu0 %v1357
    %7056 = vmatmul.mubr.bf16.gmra.mrb[0].mxu0 %v1356
    %v7057 = vpop.f32.mrb[0].mxu0
    %v7058 = vadd.f32 %v7017, %v7057
    %v7059 = vpop.f32.mrb[0].mxu0
    %v7060 = vadd.f32 %v7019, %v7059
    %v7061 = vpop.f32.mrb[0].mxu0
    %v7062 = vpop.f32.mrb[0].mxu0
    %7063 = vdwg.mxu0
    %7064 = vmatprep.subr.bf16.mxu0 %v4961
    %7065 = vmatpush1.bf16.msra.mxu0 %v4960
    %7066 = vmatprep.subr.bf16.mxu0 %v4977
    %7067 = vmatpush1.bf16.msra.mxu0 %v4976
    %7068 = vmatprep.subr.bf16.mxu0 %v4993
    %7069 = vmatpush1.bf16.msra.mxu0 %v4992
    %7070 = vmatprep.subr.bf16.mxu0 %v5009
    %7071 = vmatpush1.bf16.msra.mxu0 %v5008
    %7072 = vmatprep.subr.bf16.mxu0 %v5025
    %7073 = vmatpush1.bf16.msra.mxu0 %v5024
    %7074 = vmatprep.subr.bf16.mxu0 %v5041
    %7075 = vmatpush1.bf16.msra.mxu0 %v5040
    %7076 = vmatprep.subr.bf16.mxu0 %v5057
    %7077 = vmatpush1.bf16.msra.mxu0 %v5056
    %7078 = vmatprep.subr.bf16.mxu0 %v5073
    %7079 = vmatpush1.bf16.msra.mxu0 %v5072
    %7080 = vmatprep.subr.bf16.mxu0 %v5089
    %7081 = vmatpush1.bf16.msra.mxu0 %v5088
    %7082 = vmatprep.subr.bf16.mxu0 %v5105
    %7083 = vmatpush1.bf16.msra.mxu0 %v5104
    %7084 = vmatprep.subr.bf16.mxu0 %v5121
    %7085 = vmatpush1.bf16.msra.mxu0 %v5120
    %7086 = vmatprep.subr.bf16.mxu0 %v5137
    %7087 = vmatpush1.bf16.msra.mxu0 %v5136
    %7088 = vmatprep.subr.bf16.mxu0 %v5153
    %7089 = vmatpush1.bf16.msra.mxu0 %v5152
    %7090 = vmatprep.subr.bf16.mxu0 %v5169
    %7091 = vmatpush1.bf16.msra.mxu0 %v5168
    %7092 = vmatprep.subr.bf16.mxu0 %v5185
    %7093 = vmatpush1.bf16.msra.mxu0 %v5184
    %7094 = vmatprep.subr.bf16.mxu0 %v5201
    %7095 = vmatpush1.bf16.msra.mxu0 %v5200
    %7096 = vmatprep.mubr.bf16.mxu0 %v1359
    %7097 = vmatmul.mubr.bf16.gmra.mrb[0].mxu0 %v1358
    %v7098 = vpop.f32.mrb[0].mxu0
    %v7099 = vadd.f32 %v7058, %v7098
    %v7100 = vpop.f32.mrb[0].mxu0
    %v7101 = vadd.f32 %v7060, %v7100
    %v7102 = vpop.f32.mrb[0].mxu0
    %v7103 = vpop.f32.mrb[0].mxu0
    %7104 = vdwg.mxu0
    %7105 = vmatprep.subr.bf16.mxu0 %v5217
    %7106 = vmatpush1.bf16.msra.mxu0 %v5216
    %7107 = vmatprep.subr.bf16.mxu0 %v5233
    %7108 = vmatpush1.bf16.msra.mxu0 %v5232
    %7109 = vmatprep.subr.bf16.mxu0 %v5249
    %7110 = vmatpush1.bf16.msra.mxu0 %v5248
    %7111 = vmatprep.subr.bf16.mxu0 %v5265
    %7112 = vmatpush1.bf16.msra.mxu0 %v5264
    %7113 = vmatprep.subr.bf16.mxu0 %v5281
    %7114 = vmatpush1.bf16.msra.mxu0 %v5280
    %7115 = vmatprep.subr.bf16.mxu0 %v5297
    %7116 = vmatpush1.bf16.msra.mxu0 %v5296
    %7117 = vmatprep.subr.bf16.mxu0 %v5313
    %7118 = vmatpush1.bf16.msra.mxu0 %v5312
    %7119 = vmatprep.subr.bf16.mxu0 %v5329
    %7120 = vmatpush1.bf16.msra.mxu0 %v5328
    %7121 = vmatprep.subr.bf16.mxu0 %v5345
    %7122 = vmatpush1.bf16.msra.mxu0 %v5344
    %7123 = vmatprep.subr.bf16.mxu0 %v5361
    %7124 = vmatpush1.bf16.msra.mxu0 %v5360
    %7125 = vmatprep.subr.bf16.mxu0 %v5377
    %7126 = vmatpush1.bf16.msra.mxu0 %v5376
    %7127 = vmatprep.subr.bf16.mxu0 %v5393
    %7128 = vmatpush1.bf16.msra.mxu0 %v5392
    %7129 = vmatprep.subr.bf16.mxu0 %v5409
    %7130 = vmatpush1.bf16.msra.mxu0 %v5408
    %7131 = vmatprep.subr.bf16.mxu0 %v5425
    %7132 = vmatpush1.bf16.msra.mxu0 %v5424
    %7133 = vmatprep.subr.bf16.mxu0 %v5441
    %7134 = vmatpush1.bf16.msra.mxu0 %v5440
    %7135 = vmatprep.subr.bf16.mxu0 %v5457
    %7136 = vmatpush1.bf16.msra.mxu0 %v5456
    %7137 = vmatprep.mubr.bf16.mxu0 %v1361
    %7138 = vmatmul.mubr.bf16.gmra.mrb[0].mxu0 %v1360
    %v7139 = vpop.f32.mrb[0].mxu0
    %v7140 = vadd.f32 %v7099, %v7139
    %v7141 = vpop.f32.mrb[0].mxu0
    %v7142 = vadd.f32 %v7101, %v7141
    %v7143 = vpop.f32.mrb[0].mxu0
    %v7144 = vpop.f32.mrb[0].mxu0
    %7145 = vdwg.mxu0
    %7146 = vmatprep.subr.bf16.mxu0 %v4451
    %7147 = vmatpush1.bf16.msra.mxu0 %v4450
    %7148 = vmatprep.subr.bf16.mxu0 %v4467
    %7149 = vmatpush1.bf16.msra.mxu0 %v4466
    %7150 = vmatprep.subr.bf16.mxu0 %v4483
    %7151 = vmatpush1.bf16.msra.mxu0 %v4482
    %7152 = vmatprep.subr.bf16.mxu0 %v4499
    %7153 = vmatpush1.bf16.msra.mxu0 %v4498
    %7154 = vmatprep.subr.bf16.mxu0 %v4515
    %7155 = vmatpush1.bf16.msra.mxu0 %v4514
    %7156 = vmatprep.subr.bf16.mxu0 %v4531
    %7157 = vmatpush1.bf16.msra.mxu0 %v4530
    %7158 = vmatprep.subr.bf16.mxu0 %v4547
    %7159 = vmatpush1.bf16.msra.mxu0 %v4546
    %7160 = vmatprep.subr.bf16.mxu0 %v4563
    %7161 = vmatpush1.bf16.msra.mxu0 %v4562
    %7162 = vmatprep.subr.bf16.mxu0 %v4579
    %7163 = vmatpush1.bf16.msra.mxu0 %v4578
    %7164 = vmatprep.subr.bf16.mxu0 %v4595
    %7165 = vmatpush1.bf16.msra.mxu0 %v4594
    %7166 = vmatprep.subr.bf16.mxu0 %v4611
    %7167 = vmatpush1.bf16.msra.mxu0 %v4610
    %7168 = vmatprep.subr.bf16.mxu0 %v4627
    %7169 = vmatpush1.bf16.msra.mxu0 %v4626
    %7170 = vmatprep.subr.bf16.mxu0 %v4643
    %7171 = vmatpush1.bf16.msra.mxu0 %v4642
    %7172 = vmatprep.subr.bf16.mxu0 %v4659
    %7173 = vmatpush1.bf16.msra.mxu0 %v4658
    %7174 = vmatprep.subr.bf16.mxu0 %v4675
    %7175 = vmatpush1.bf16.msra.mxu0 %v4674
    %7176 = vmatprep.subr.bf16.mxu0 %v4691
    %7177 = vmatpush1.bf16.msra.mxu0 %v4690
    %7178 = vmatprep.mubr.bf16.mxu0 %v1355
    %7179 = vmatmul.mubr.bf16.gmra.mrb[0].mxu0 %v1354
    %v7180 = vpop.f32.mrb[0].mxu0
    %v7181 = vadd.f32 %v1297, %v7180
    %v7182 = vpop.f32.mrb[0].mxu0
    %v7183 = vadd.f32 %v1301, %v7182
    %v7184 = vpop.f32.mrb[0].mxu0
    %v7185 = vpop.f32.mrb[0].mxu0
    %7186 = vdwg.mxu0
    %7187 = vmatprep.subr.bf16.mxu0 %v4707
    %7188 = vmatpush1.bf16.msra.mxu0 %v4706
    %7189 = vmatprep.subr.bf16.mxu0 %v4723
    %7190 = vmatpush1.bf16.msra.mxu0 %v4722
    %7191 = vmatprep.subr.bf16.mxu0 %v4739
    %7192 = vmatpush1.bf16.msra.mxu0 %v4738
    %7193 = vmatprep.subr.bf16.mxu0 %v4755
    %7194 = vmatpush1.bf16.msra.mxu0 %v4754
    %7195 = vmatprep.subr.bf16.mxu0 %v4771
    %7196 = vmatpush1.bf16.msra.mxu0 %v4770
    %7197 = vmatprep.subr.bf16.mxu0 %v4787
    %7198 = vmatpush1.bf16.msra.mxu0 %v4786
    %7199 = vmatprep.subr.bf16.mxu0 %v4803
    %7200 = vmatpush1.bf16.msra.mxu0 %v4802
    %7201 = vmatprep.subr.bf16.mxu0 %v4819
    %7202 = vmatpush1.bf16.msra.mxu0 %v4818
    %7203 = vmatprep.subr.bf16.mxu0 %v4835
    %7204 = vmatpush1.bf16.msra.mxu0 %v4834
    %7205 = vmatprep.subr.bf16.mxu0 %v4851
    %7206 = vmatpush1.bf16.msra.mxu0 %v4850
    %7207 = vmatprep.subr.bf16.mxu0 %v4867
    %7208 = vmatpush1.bf16.msra.mxu0 %v4866
    %7209 = vmatprep.subr.bf16.mxu0 %v4883
    %7210 = vmatpush1.bf16.msra.mxu0 %v4882
    %7211 = vmatprep.subr.bf16.mxu0 %v4899
    %7212 = vmatpush1.bf16.msra.mxu0 %v4898
    %7213 = vmatprep.subr.bf16.mxu0 %v4915
    %7214 = vmatpush1.bf16.msra.mxu0 %v4914
    %7215 = vmatprep.subr.bf16.mxu0 %v4931
    %7216 = vmatpush1.bf16.msra.mxu0 %v4930
    %7217 = vmatprep.subr.bf16.mxu0 %v4947
    %7218 = vmatpush1.bf16.msra.mxu0 %v4946
    %7219 = vmatprep.mubr.bf16.mxu0 %v1357
    %7220 = vmatmul.mubr.bf16.gmra.mrb[0].mxu0 %v1356
    %v7221 = vpop.f32.mrb[0].mxu0
    %v7222 = vadd.f32 %v7181, %v7221
    %v7223 = vpop.f32.mrb[0].mxu0
    %v7224 = vadd.f32 %v7183, %v7223
    %v7225 = vpop.f32.mrb[0].mxu0
    %v7226 = vpop.f32.mrb[0].mxu0
    %7227 = vdwg.mxu0
    %7228 = vmatprep.subr.bf16.mxu0 %v4963
    %7229 = vmatpush1.bf16.msra.mxu0 %v4962
    %7230 = vmatprep.subr.bf16.mxu0 %v4979
    %7231 = vmatpush1.bf16.msra.mxu0 %v4978
    %7232 = vmatprep.subr.bf16.mxu0 %v4995
    %7233 = vmatpush1.bf16.msra.mxu0 %v4994
    %7234 = vmatprep.subr.bf16.mxu0 %v5011
    %7235 = vmatpush1.bf16.msra.mxu0 %v5010
    %7236 = vmatprep.subr.bf16.mxu0 %v5027
    %7237 = vmatpush1.bf16.msra.mxu0 %v5026
    %7238 = vmatprep.subr.bf16.mxu0 %v5043
    %7239 = vmatpush1.bf16.msra.mxu0 %v5042
    %7240 = vmatprep.subr.bf16.mxu0 %v5059
    %7241 = vmatpush1.bf16.msra.mxu0 %v5058
    %7242 = vmatprep.subr.bf16.mxu0 %v5075
    %7243 = vmatpush1.bf16.msra.mxu0 %v5074
    %7244 = vmatprep.subr.bf16.mxu0 %v5091
    %7245 = vmatpush1.bf16.msra.mxu0 %v5090
    %7246 = vmatprep.subr.bf16.mxu0 %v5107
    %7247 = vmatpush1.bf16.msra.mxu0 %v5106
    %7248 = vmatprep.subr.bf16.mxu0 %v5123
    %7249 = vmatpush1.bf16.msra.mxu0 %v5122
    %7250 = vmatprep.subr.bf16.mxu0 %v5139
    %7251 = vmatpush1.bf16.msra.mxu0 %v5138
    %7252 = vmatprep.subr.bf16.mxu0 %v5155
    %7253 = vmatpush1.bf16.msra.mxu0 %v5154
    %7254 = vmatprep.subr.bf16.mxu0 %v5171
    %7255 = vmatpush1.bf16.msra.mxu0 %v5170
    %7256 = vmatprep.subr.bf16.mxu0 %v5187
    %7257 = vmatpush1.bf16.msra.mxu0 %v5186
    %7258 = vmatprep.subr.bf16.mxu0 %v5203
    %7259 = vmatpush1.bf16.msra.mxu0 %v5202
    %7260 = vmatprep.mubr.bf16.mxu0 %v1359
    %7261 = vmatmul.mubr.bf16.gmra.mrb[0].mxu0 %v1358
    %v7262 = vpop.f32.mrb[0].mxu0
    %v7263 = vadd.f32 %v7222, %v7262
    %v7264 = vpop.f32.mrb[0].mxu0
    %v7265 = vadd.f32 %v7224, %v7264
    %v7266 = vpop.f32.mrb[0].mxu0
    %v7267 = vpop.f32.mrb[0].mxu0
    %7268 = vdwg.mxu0
    %7269 = vmatprep.subr.bf16.mxu0 %v5219
    %7270 = vmatpush1.bf16.msra.mxu0 %v5218
    %7271 = vmatprep.subr.bf16.mxu0 %v5235
    %7272 = vmatpush1.bf16.msra.mxu0 %v5234
    %7273 = vmatprep.subr.bf16.mxu0 %v5251
    %7274 = vmatpush1.bf16.msra.mxu0 %v5250
    %7275 = vmatprep.subr.bf16.mxu0 %v5267
    %7276 = vmatpush1.bf16.msra.mxu0 %v5266
    %7277 = vmatprep.subr.bf16.mxu0 %v5283
    %7278 = vmatpush1.bf16.msra.mxu0 %v5282
    %7279 = vmatprep.subr.bf16.mxu0 %v5299
    %7280 = vmatpush1.bf16.msra.mxu0 %v5298
    %7281 = vmatprep.subr.bf16.mxu0 %v5315
    %7282 = vmatpush1.bf16.msra.mxu0 %v5314
    %7283 = vmatprep.subr.bf16.mxu0 %v5331
    %7284 = vmatpush1.bf16.msra.mxu0 %v5330
    %7285 = vmatprep.subr.bf16.mxu0 %v5347
    %7286 = vmatpush1.bf16.msra.mxu0 %v5346
    %7287 = vmatprep.subr.bf16.mxu0 %v5363
    %7288 = vmatpush1.bf16.msra.mxu0 %v5362
    %7289 = vmatprep.subr.bf16.mxu0 %v5379
    %7290 = vmatpush1.bf16.msra.mxu0 %v5378
    %7291 = vmatprep.subr.bf16.mxu0 %v5395
    %7292 = vmatpush1.bf16.msra.mxu0 %v5394
    %7293 = vmatprep.subr.bf16.mxu0 %v5411
    %7294 = vmatpush1.bf16.msra.mxu0 %v5410
    %7295 = vmatprep.subr.bf16.mxu0 %v5427
    %7296 = vmatpush1.bf16.msra.mxu0 %v5426
    %7297 = vmatprep.subr.bf16.mxu0 %v5443
    %7298 = vmatpush1.bf16.msra.mxu0 %v5442
    %7299 = vmatprep.subr.bf16.mxu0 %v5459
    %7300 = vmatpush1.bf16.msra.mxu0 %v5458
    %7301 = vmatprep.mubr.bf16.mxu0 %v1361
    %7302 = vmatmul.mubr.bf16.gmra.mrb[0].mxu0 %v1360
    %v7303 = vpop.f32.mrb[0].mxu0
    %v7304 = vadd.f32 %v7263, %v7303
    %v7305 = vpop.f32.mrb[0].mxu0
    %v7306 = vadd.f32 %v7265, %v7305
    %v7307 = vpop.f32.mrb[0].mxu0
    %v7308 = vpop.f32.mrb[0].mxu0
    %7309 = vdwg.mxu0
    %7310 = vmatprep.subr.bf16.mxu0 %v4453
    %7311 = vmatpush1.bf16.msra.mxu0 %v4452
    %7312 = vmatprep.subr.bf16.mxu0 %v4469
    %7313 = vmatpush1.bf16.msra.mxu0 %v4468
    %7314 = vmatprep.subr.bf16.mxu0 %v4485
    %7315 = vmatpush1.bf16.msra.mxu0 %v4484
    %7316 = vmatprep.subr.bf16.mxu0 %v4501
    %7317 = vmatpush1.bf16.msra.mxu0 %v4500
    %7318 = vmatprep.subr.bf16.mxu0 %v4517
    %7319 = vmatpush1.bf16.msra.mxu0 %v4516
    %7320 = vmatprep.subr.bf16.mxu0 %v4533
    %7321 = vmatpush1.bf16.msra.mxu0 %v4532
    %7322 = vmatprep.subr.bf16.mxu0 %v4549
    %7323 = vmatpush1.bf16.msra.mxu0 %v4548
    %7324 = vmatprep.subr.bf16.mxu0 %v4565
    %7325 = vmatpush1.bf16.msra.mxu0 %v4564
    %7326 = vmatprep.subr.bf16.mxu0 %v4581
    %7327 = vmatpush1.bf16.msra.mxu0 %v4580
    %7328 = vmatprep.subr.bf16.mxu0 %v4597
    %7329 = vmatpush1.bf16.msra.mxu0 %v4596
    %7330 = vmatprep.subr.bf16.mxu0 %v4613
    %7331 = vmatpush1.bf16.msra.mxu0 %v4612
    %7332 = vmatprep.subr.bf16.mxu0 %v4629
    %7333 = vmatpush1.bf16.msra.mxu0 %v4628
    %7334 = vmatprep.subr.bf16.mxu0 %v4645
    %7335 = vmatpush1.bf16.msra.mxu0 %v4644
    %7336 = vmatprep.subr.bf16.mxu0 %v4661
    %7337 = vmatpush1.bf16.msra.mxu0 %v4660
    %7338 = vmatprep.subr.bf16.mxu0 %v4677
    %7339 = vmatpush1.bf16.msra.mxu0 %v4676
    %7340 = vmatprep.subr.bf16.mxu0 %v4693
    %7341 = vmatpush1.bf16.msra.mxu0 %v4692
    %7342 = vmatprep.mubr.bf16.mxu0 %v1355
    %7343 = vmatmul.mubr.bf16.gmra.mrb[0].mxu0 %v1354
    %v7344 = vpop.f32.mrb[0].mxu0
    %v7345 = vadd.f32 %v1305, %v7344
    %v7346 = vpop.f32.mrb[0].mxu0
    %v7347 = vadd.f32 %v1309, %v7346
    %v7348 = vpop.f32.mrb[0].mxu0
    %v7349 = vpop.f32.mrb[0].mxu0
    %7350 = vdwg.mxu0
    %7351 = vmatprep.subr.bf16.mxu0 %v4709
    %7352 = vmatpush1.bf16.msra.mxu0 %v4708
    %7353 = vmatprep.subr.bf16.mxu0 %v4725
    %7354 = vmatpush1.bf16.msra.mxu0 %v4724
    %7355 = vmatprep.subr.bf16.mxu0 %v4741
    %7356 = vmatpush1.bf16.msra.mxu0 %v4740
    %7357 = vmatprep.subr.bf16.mxu0 %v4757
    %7358 = vmatpush1.bf16.msra.mxu0 %v4756
    %7359 = vmatprep.subr.bf16.mxu0 %v4773
    %7360 = vmatpush1.bf16.msra.mxu0 %v4772
    %7361 = vmatprep.subr.bf16.mxu0 %v4789
    %7362 = vmatpush1.bf16.msra.mxu0 %v4788
    %7363 = vmatprep.subr.bf16.mxu0 %v4805
    %7364 = vmatpush1.bf16.msra.mxu0 %v4804
    %7365 = vmatprep.subr.bf16.mxu0 %v4821
    %7366 = vmatpush1.bf16.msra.mxu0 %v4820
    %7367 = vmatprep.subr.bf16.mxu0 %v4837
    %7368 = vmatpush1.bf16.msra.mxu0 %v4836
    %7369 = vmatprep.subr.bf16.mxu0 %v4853
    %7370 = vmatpush1.bf16.msra.mxu0 %v4852
    %7371 = vmatprep.subr.bf16.mxu0 %v4869
    %7372 = vmatpush1.bf16.msra.mxu0 %v4868
    %7373 = vmatprep.subr.bf16.mxu0 %v4885
    %7374 = vmatpush1.bf16.msra.mxu0 %v4884
    %7375 = vmatprep.subr.bf16.mxu0 %v4901
    %7376 = vmatpush1.bf16.msra.mxu0 %v4900
    %7377 = vmatprep.subr.bf16.mxu0 %v4917
    %7378 = vmatpush1.bf16.msra.mxu0 %v4916
    %7379 = vmatprep.subr.bf16.mxu0 %v4933
    %7380 = vmatpush1.bf16.msra.mxu0 %v4932
    %7381 = vmatprep.subr.bf16.mxu0 %v4949
    %7382 = vmatpush1.bf16.msra.mxu0 %v4948
    %7383 = vmatprep.mubr.bf16.mxu0 %v1357
    %7384 = vmatmul.mubr.bf16.gmra.mrb[0].mxu0 %v1356
    %v7385 = vpop.f32.mrb[0].mxu0
    %v7386 = vadd.f32 %v7345, %v7385
    %v7387 = vpop.f32.mrb[0].mxu0
    %v7388 = vadd.f32 %v7347, %v7387
    %v7389 = vpop.f32.mrb[0].mxu0
    %v7390 = vpop.f32.mrb[0].mxu0
    %7391 = vdwg.mxu0
    %7392 = vmatprep.subr.bf16.mxu0 %v4965
    %7393 = vmatpush1.bf16.msra.mxu0 %v4964
    %7394 = vmatprep.subr.bf16.mxu0 %v4981
    %7395 = vmatpush1.bf16.msra.mxu0 %v4980
    %7396 = vmatprep.subr.bf16.mxu0 %v4997
    %7397 = vmatpush1.bf16.msra.mxu0 %v4996
    %7398 = vmatprep.subr.bf16.mxu0 %v5013
    %7399 = vmatpush1.bf16.msra.mxu0 %v5012
    %7400 = vmatprep.subr.bf16.mxu0 %v5029
    %7401 = vmatpush1.bf16.msra.mxu0 %v5028
    %7402 = vmatprep.subr.bf16.mxu0 %v5045
    %7403 = vmatpush1.bf16.msra.mxu0 %v5044
    %7404 = vmatprep.subr.bf16.mxu0 %v5061
    %7405 = vmatpush1.bf16.msra.mxu0 %v5060
    %7406 = vmatprep.subr.bf16.mxu0 %v5077
    %7407 = vmatpush1.bf16.msra.mxu0 %v5076
    %7408 = vmatprep.subr.bf16.mxu0 %v5093
    %7409 = vmatpush1.bf16.msra.mxu0 %v5092
    %7410 = vmatprep.subr.bf16.mxu0 %v5109
    %7411 = vmatpush1.bf16.msra.mxu0 %v5108
    %7412 = vmatprep.subr.bf16.mxu0 %v5125
    %7413 = vmatpush1.bf16.msra.mxu0 %v5124
    %7414 = vmatprep.subr.bf16.mxu0 %v5141
    %7415 = vmatpush1.bf16.msra.mxu0 %v5140
    %7416 = vmatprep.subr.bf16.mxu0 %v5157
    %7417 = vmatpush1.bf16.msra.mxu0 %v5156
    %7418 = vmatprep.subr.bf16.mxu0 %v5173
    %7419 = vmatpush1.bf16.msra.mxu0 %v5172
    %7420 = vmatprep.subr.bf16.mxu0 %v5189
    %7421 = vmatpush1.bf16.msra.mxu0 %v5188
    %7422 = vmatprep.subr.bf16.mxu0 %v5205
    %7423 = vmatpush1.bf16.msra.mxu0 %v5204
    %7424 = vmatprep.mubr.bf16.mxu0 %v1359
    %7425 = vmatmul.mubr.bf16.gmra.mrb[0].mxu0 %v1358
    %v7426 = vpop.f32.mrb[0].mxu0
    %v7427 = vadd.f32 %v7386, %v7426
    %v7428 = vpop.f32.mrb[0].mxu0
    %v7429 = vadd.f32 %v7388, %v7428
    %v7430 = vpop.f32.mrb[0].mxu0
    %v7431 = vpop.f32.mrb[0].mxu0
    %7432 = vdwg.mxu0
    %7433 = vmatprep.subr.bf16.mxu0 %v5221
    %7434 = vmatpush1.bf16.msra.mxu0 %v5220
    %7435 = vmatprep.subr.bf16.mxu0 %v5237
    %7436 = vmatpush1.bf16.msra.mxu0 %v5236
    %7437 = vmatprep.subr.bf16.mxu0 %v5253
    %7438 = vmatpush1.bf16.msra.mxu0 %v5252
    %7439 = vmatprep.subr.bf16.mxu0 %v5269
    %7440 = vmatpush1.bf16.msra.mxu0 %v5268
    %7441 = vmatprep.subr.bf16.mxu0 %v5285
    %7442 = vmatpush1.bf16.msra.mxu0 %v5284
    %7443 = vmatprep.subr.bf16.mxu0 %v5301
    %7444 = vmatpush1.bf16.msra.mxu0 %v5300
    %7445 = vmatprep.subr.bf16.mxu0 %v5317
    %7446 = vmatpush1.bf16.msra.mxu0 %v5316
    %7447 = vmatprep.subr.bf16.mxu0 %v5333
    %7448 = vmatpush1.bf16.msra.mxu0 %v5332
    %7449 = vmatprep.subr.bf16.mxu0 %v5349
    %7450 = vmatpush1.bf16.msra.mxu0 %v5348
    %7451 = vmatprep.subr.bf16.mxu0 %v5365
    %7452 = vmatpush1.bf16.msra.mxu0 %v5364
    %7453 = vmatprep.subr.bf16.mxu0 %v5381
    %7454 = vmatpush1.bf16.msra.mxu0 %v5380
    %7455 = vmatprep.subr.bf16.mxu0 %v5397
    %7456 = vmatpush1.bf16.msra.mxu0 %v5396
    %7457 = vmatprep.subr.bf16.mxu0 %v5413
    %7458 = vmatpush1.bf16.msra.mxu0 %v5412
    %7459 = vmatprep.subr.bf16.mxu0 %v5429
    %7460 = vmatpush1.bf16.msra.mxu0 %v5428
    %7461 = vmatprep.subr.bf16.mxu0 %v5445
    %7462 = vmatpush1.bf16.msra.mxu0 %v5444
    %7463 = vmatprep.subr.bf16.mxu0 %v5461
    %7464 = vmatpush1.bf16.msra.mxu0 %v5460
    %7465 = vmatprep.mubr.bf16.mxu0 %v1361
    %7466 = vmatmul.mubr.bf16.gmra.mrb[0].mxu0 %v1360
    %v7467 = vpop.f32.mrb[0].mxu0
    %v7468 = vadd.f32 %v7427, %v7467
    %v7469 = vpop.f32.mrb[0].mxu0
    %v7470 = vadd.f32 %v7429, %v7469
    %v7471 = vpop.f32.mrb[0].mxu0
    %v7472 = vpop.f32.mrb[0].mxu0
    %7473 = vdwg.mxu0
    %7474 = vmatprep.subr.bf16.mxu0 %v4455
    %7475 = vmatpush1.bf16.msra.mxu0 %v4454
    %7476 = vmatprep.subr.bf16.mxu0 %v4471
    %7477 = vmatpush1.bf16.msra.mxu0 %v4470
    %7478 = vmatprep.subr.bf16.mxu0 %v4487
    %7479 = vmatpush1.bf16.msra.mxu0 %v4486
    %7480 = vmatprep.subr.bf16.mxu0 %v4503
    %7481 = vmatpush1.bf16.msra.mxu0 %v4502
    %7482 = vmatprep.subr.bf16.mxu0 %v4519
    %7483 = vmatpush1.bf16.msra.mxu0 %v4518
    %7484 = vmatprep.subr.bf16.mxu0 %v4535
    %7485 = vmatpush1.bf16.msra.mxu0 %v4534
    %7486 = vmatprep.subr.bf16.mxu0 %v4551
    %7487 = vmatpush1.bf16.msra.mxu0 %v4550
    %7488 = vmatprep.subr.bf16.mxu0 %v4567
    %7489 = vmatpush1.bf16.msra.mxu0 %v4566
    %7490 = vmatprep.subr.bf16.mxu0 %v4583
    %7491 = vmatpush1.bf16.msra.mxu0 %v4582
    %7492 = vmatprep.subr.bf16.mxu0 %v4599
    %7493 = vmatpush1.bf16.msra.mxu0 %v4598
    %7494 = vmatprep.subr.bf16.mxu0 %v4615
    %7495 = vmatpush1.bf16.msra.mxu0 %v4614
    %7496 = vmatprep.subr.bf16.mxu0 %v4631
    %7497 = vmatpush1.bf16.msra.mxu0 %v4630
    %7498 = vmatprep.subr.bf16.mxu0 %v4647
    %7499 = vmatpush1.bf16.msra.mxu0 %v4646
    %7500 = vmatprep.subr.bf16.mxu0 %v4663
    %7501 = vmatpush1.bf16.msra.mxu0 %v4662
    %7502 = vmatprep.subr.bf16.mxu0 %v4679
    %7503 = vmatpush1.bf16.msra.mxu0 %v4678
    %7504 = vmatprep.subr.bf16.mxu0 %v4695
    %7505 = vmatpush1.bf16.msra.mxu0 %v4694
    %7506 = vmatprep.mubr.bf16.mxu0 %v1355
    %7507 = vmatmul.mubr.bf16.gmra.mrb[0].mxu0 %v1354
    %v7508 = vpop.f32.mrb[0].mxu0
    %v7509 = vadd.f32 %v1313, %v7508
    %v7510 = vpop.f32.mrb[0].mxu0
    %v7511 = vadd.f32 %v1317, %v7510
    %v7512 = vpop.f32.mrb[0].mxu0
    %v7513 = vpop.f32.mrb[0].mxu0
    %7514 = vdwg.mxu0
    %7515 = vmatprep.subr.bf16.mxu0 %v4711
    %7516 = vmatpush1.bf16.msra.mxu0 %v4710
    %7517 = vmatprep.subr.bf16.mxu0 %v4727
    %7518 = vmatpush1.bf16.msra.mxu0 %v4726
    %7519 = vmatprep.subr.bf16.mxu0 %v4743
    %7520 = vmatpush1.bf16.msra.mxu0 %v4742
    %7521 = vmatprep.subr.bf16.mxu0 %v4759
    %7522 = vmatpush1.bf16.msra.mxu0 %v4758
    %7523 = vmatprep.subr.bf16.mxu0 %v4775
    %7524 = vmatpush1.bf16.msra.mxu0 %v4774
    %7525 = vmatprep.subr.bf16.mxu0 %v4791
    %7526 = vmatpush1.bf16.msra.mxu0 %v4790
    %7527 = vmatprep.subr.bf16.mxu0 %v4807
    %7528 = vmatpush1.bf16.msra.mxu0 %v4806
    %7529 = vmatprep.subr.bf16.mxu0 %v4823
    %7530 = vmatpush1.bf16.msra.mxu0 %v4822
    %7531 = vmatprep.subr.bf16.mxu0 %v4839
    %7532 = vmatpush1.bf16.msra.mxu0 %v4838
    %7533 = vmatprep.subr.bf16.mxu0 %v4855
    %7534 = vmatpush1.bf16.msra.mxu0 %v4854
    %7535 = vmatprep.subr.bf16.mxu0 %v4871
    %7536 = vmatpush1.bf16.msra.mxu0 %v4870
    %7537 = vmatprep.subr.bf16.mxu0 %v4887
    %7538 = vmatpush1.bf16.msra.mxu0 %v4886
    %7539 = vmatprep.subr.bf16.mxu0 %v4903
    %7540 = vmatpush1.bf16.msra.mxu0 %v4902
    %7541 = vmatprep.subr.bf16.mxu0 %v4919
    %7542 = vmatpush1.bf16.msra.mxu0 %v4918
    %7543 = vmatprep.subr.bf16.mxu0 %v4935
    %7544 = vmatpush1.bf16.msra.mxu0 %v4934
    %7545 = vmatprep.subr.bf16.mxu0 %v4951
    %7546 = vmatpush1.bf16.msra.mxu0 %v4950
    %7547 = vmatprep.mubr.bf16.mxu0 %v1357
    %7548 = vmatmul.mubr.bf16.gmra.mrb[0].mxu0 %v1356
    %v7549 = vpop.f32.mrb[0].mxu0
    %v7550 = vadd.f32 %v7509, %v7549
    %v7551 = vpop.f32.mrb[0].mxu0
    %v7552 = vadd.f32 %v7511, %v7551
    %v7553 = vpop.f32.mrb[0].mxu0
    %v7554 = vpop.f32.mrb[0].mxu0
    %7555 = vdwg.mxu0
    %7556 = vmatprep.subr.bf16.mxu0 %v4967
    %7557 = vmatpush1.bf16.msra.mxu0 %v4966
    %7558 = vmatprep.subr.bf16.mxu0 %v4983
    %7559 = vmatpush1.bf16.msra.mxu0 %v4982
    %7560 = vmatprep.subr.bf16.mxu0 %v4999
    %7561 = vmatpush1.bf16.msra.mxu0 %v4998
    %7562 = vmatprep.subr.bf16.mxu0 %v5015
    %7563 = vmatpush1.bf16.msra.mxu0 %v5014
    %7564 = vmatprep.subr.bf16.mxu0 %v5031
    %7565 = vmatpush1.bf16.msra.mxu0 %v5030
    %7566 = vmatprep.subr.bf16.mxu0 %v5047
    %7567 = vmatpush1.bf16.msra.mxu0 %v5046
    %7568 = vmatprep.subr.bf16.mxu0 %v5063
    %7569 = vmatpush1.bf16.msra.mxu0 %v5062
    %7570 = vmatprep.subr.bf16.mxu0 %v5079
    %7571 = vmatpush1.bf16.msra.mxu0 %v5078
    %7572 = vmatprep.subr.bf16.mxu0 %v5095
    %7573 = vmatpush1.bf16.msra.mxu0 %v5094
    %7574 = vmatprep.subr.bf16.mxu0 %v5111
    %7575 = vmatpush1.bf16.msra.mxu0 %v5110
    %7576 = vmatprep.subr.bf16.mxu0 %v5127
    %7577 = vmatpush1.bf16.msra.mxu0 %v5126
    %7578 = vmatprep.subr.bf16.mxu0 %v5143
    %7579 = vmatpush1.bf16.msra.mxu0 %v5142
    %7580 = vmatprep.subr.bf16.mxu0 %v5159
    %7581 = vmatpush1.bf16.msra.mxu0 %v5158
    %7582 = vmatprep.subr.bf16.mxu0 %v5175
    %7583 = vmatpush1.bf16.msra.mxu0 %v5174
    %7584 = vmatprep.subr.bf16.mxu0 %v5191
    %7585 = vmatpush1.bf16.msra.mxu0 %v5190
    %7586 = vmatprep.subr.bf16.mxu0 %v5207
    %7587 = vmatpush1.bf16.msra.mxu0 %v5206
    %7588 = vmatprep.mubr.bf16.mxu0 %v1359
    %7589 = vmatmul.mubr.bf16.gmra.mrb[0].mxu0 %v1358
    %v7590 = vpop.f32.mrb[0].mxu0
    %v7591 = vadd.f32 %v7550, %v7590
    %v7592 = vpop.f32.mrb[0].mxu0
    %v7593 = vadd.f32 %v7552, %v7592
    %v7594 = vpop.f32.mrb[0].mxu0
    %v7595 = vpop.f32.mrb[0].mxu0
    %7596 = vdwg.mxu0
    %7597 = vmatprep.subr.bf16.mxu0 %v5223
    %7598 = vmatpush1.bf16.msra.mxu0 %v5222
    %7599 = vmatprep.subr.bf16.mxu0 %v5239
    %7600 = vmatpush1.bf16.msra.mxu0 %v5238
    %7601 = vmatprep.subr.bf16.mxu0 %v5255
    %7602 = vmatpush1.bf16.msra.mxu0 %v5254
    %7603 = vmatprep.subr.bf16.mxu0 %v5271
    %7604 = vmatpush1.bf16.msra.mxu0 %v5270
    %7605 = vmatprep.subr.bf16.mxu0 %v5287
    %7606 = vmatpush1.bf16.msra.mxu0 %v5286
    %7607 = vmatprep.subr.bf16.mxu0 %v5303
    %7608 = vmatpush1.bf16.msra.mxu0 %v5302
    %7609 = vmatprep.subr.bf16.mxu0 %v5319
    %7610 = vmatpush1.bf16.msra.mxu0 %v5318
    %7611 = vmatprep.subr.bf16.mxu0 %v5335
    %7612 = vmatpush1.bf16.msra.mxu0 %v5334
    %7613 = vmatprep.subr.bf16.mxu0 %v5351
    %7614 = vmatpush1.bf16.msra.mxu0 %v5350
    %7615 = vmatprep.subr.bf16.mxu0 %v5367
    %7616 = vmatpush1.bf16.msra.mxu0 %v5366
    %7617 = vmatprep.subr.bf16.mxu0 %v5383
    %7618 = vmatpush1.bf16.msra.mxu0 %v5382
    %7619 = vmatprep.subr.bf16.mxu0 %v5399
    %7620 = vmatpush1.bf16.msra.mxu0 %v5398
    %7621 = vmatprep.subr.bf16.mxu0 %v5415
    %7622 = vmatpush1.bf16.msra.mxu0 %v5414
    %7623 = vmatprep.subr.bf16.mxu0 %v5431
    %7624 = vmatpush1.bf16.msra.mxu0 %v5430
    %7625 = vmatprep.subr.bf16.mxu0 %v5447
    %7626 = vmatpush1.bf16.msra.mxu0 %v5446
    %7627 = vmatprep.subr.bf16.mxu0 %v5463
    %7628 = vmatpush1.bf16.msra.mxu0 %v5462
    %7629 = vmatprep.mubr.bf16.mxu0 %v1361
    %7630 = vmatmul.mubr.bf16.gmra.mrb[0].mxu0 %v1360
    %v7631 = vpop.f32.mrb[0].mxu0
    %v7632 = vadd.f32 %v7591, %v7631
    %v7633 = vpop.f32.mrb[0].mxu0
    %v7634 = vadd.f32 %v7593, %v7633
    %v7635 = vpop.f32.mrb[0].mxu0
    %v7636 = vpop.f32.mrb[0].mxu0
    %7637 = vdwg.mxu0
    %7638 = vmatprep.subr.bf16.mxu0 %v4457
    %7639 = vmatpush1.bf16.msra.mxu0 %v4456
    %7640 = vmatprep.subr.bf16.mxu0 %v4473
    %7641 = vmatpush1.bf16.msra.mxu0 %v4472
    %7642 = vmatprep.subr.bf16.mxu0 %v4489
    %7643 = vmatpush1.bf16.msra.mxu0 %v4488
    %7644 = vmatprep.subr.bf16.mxu0 %v4505
    %7645 = vmatpush1.bf16.msra.mxu0 %v4504
    %7646 = vmatprep.subr.bf16.mxu0 %v4521
    %7647 = vmatpush1.bf16.msra.mxu0 %v4520
    %7648 = vmatprep.subr.bf16.mxu0 %v4537
    %7649 = vmatpush1.bf16.msra.mxu0 %v4536
    %7650 = vmatprep.subr.bf16.mxu0 %v4553
    %7651 = vmatpush1.bf16.msra.mxu0 %v4552
    %7652 = vmatprep.subr.bf16.mxu0 %v4569
    %7653 = vmatpush1.bf16.msra.mxu0 %v4568
    %7654 = vmatprep.subr.bf16.mxu0 %v4585
    %7655 = vmatpush1.bf16.msra.mxu0 %v4584
    %7656 = vmatprep.subr.bf16.mxu0 %v4601
    %7657 = vmatpush1.bf16.msra.mxu0 %v4600
    %7658 = vmatprep.subr.bf16.mxu0 %v4617
    %7659 = vmatpush1.bf16.msra.mxu0 %v4616
    %7660 = vmatprep.subr.bf16.mxu0 %v4633
    %7661 = vmatpush1.bf16.msra.mxu0 %v4632
    %7662 = vmatprep.subr.bf16.mxu0 %v4649
    %7663 = vmatpush1.bf16.msra.mxu0 %v4648
    %7664 = vmatprep.subr.bf16.mxu0 %v4665
    %7665 = vmatpush1.bf16.msra.mxu0 %v4664
    %7666 = vmatprep.subr.bf16.mxu0 %v4681
    %7667 = vmatpush1.bf16.msra.mxu0 %v4680
    %7668 = vmatprep.subr.bf16.mxu0 %v4697
    %7669 = vmatpush1.bf16.msra.mxu0 %v4696
    %7670 = vmatprep.mubr.bf16.mxu0 %v1355
    %7671 = vmatmul.mubr.bf16.gmra.mrb[0].mxu0 %v1354
    %v7672 = vpop.f32.mrb[0].mxu0
    %v7673 = vadd.f32 %v1321, %v7672
    %v7674 = vpop.f32.mrb[0].mxu0
    %v7675 = vadd.f32 %v1325, %v7674
    %v7676 = vpop.f32.mrb[0].mxu0
    %v7677 = vpop.f32.mrb[0].mxu0
    %7678 = vdwg.mxu0
    %7679 = vmatprep.subr.bf16.mxu0 %v4713
    %7680 = vmatpush1.bf16.msra.mxu0 %v4712
    %7681 = vmatprep.subr.bf16.mxu0 %v4729
    %7682 = vmatpush1.bf16.msra.mxu0 %v4728
    %7683 = vmatprep.subr.bf16.mxu0 %v4745
    %7684 = vmatpush1.bf16.msra.mxu0 %v4744
    %7685 = vmatprep.subr.bf16.mxu0 %v4761
    %7686 = vmatpush1.bf16.msra.mxu0 %v4760
    %7687 = vmatprep.subr.bf16.mxu0 %v4777
    %7688 = vmatpush1.bf16.msra.mxu0 %v4776
    %7689 = vmatprep.subr.bf16.mxu0 %v4793
    %7690 = vmatpush1.bf16.msra.mxu0 %v4792
    %7691 = vmatprep.subr.bf16.mxu0 %v4809
    %7692 = vmatpush1.bf16.msra.mxu0 %v4808
    %7693 = vmatprep.subr.bf16.mxu0 %v4825
    %7694 = vmatpush1.bf16.msra.mxu0 %v4824
    %7695 = vmatprep.subr.bf16.mxu0 %v4841
    %7696 = vmatpush1.bf16.msra.mxu0 %v4840
    %7697 = vmatprep.subr.bf16.mxu0 %v4857
    %7698 = vmatpush1.bf16.msra.mxu0 %v4856
    %7699 = vmatprep.subr.bf16.mxu0 %v4873
    %7700 = vmatpush1.bf16.msra.mxu0 %v4872
    %7701 = vmatprep.subr.bf16.mxu0 %v4889
    %7702 = vmatpush1.bf16.msra.mxu0 %v4888
    %7703 = vmatprep.subr.bf16.mxu0 %v4905
    %7704 = vmatpush1.bf16.msra.mxu0 %v4904
    %7705 = vmatprep.subr.bf16.mxu0 %v4921
    %7706 = vmatpush1.bf16.msra.mxu0 %v4920
    %7707 = vmatprep.subr.bf16.mxu0 %v4937
    %7708 = vmatpush1.bf16.msra.mxu0 %v4936
    %7709 = vmatprep.subr.bf16.mxu0 %v4953
    %7710 = vmatpush1.bf16.msra.mxu0 %v4952
    %7711 = vmatprep.mubr.bf16.mxu0 %v1357
    %7712 = vmatmul.mubr.bf16.gmra.mrb[0].mxu0 %v1356
    %v7713 = vpop.f32.mrb[0].mxu0
    %v7714 = vadd.f32 %v7673, %v7713
    %v7715 = vpop.f32.mrb[0].mxu0
    %v7716 = vadd.f32 %v7675, %v7715
    %v7717 = vpop.f32.mrb[0].mxu0
    %v7718 = vpop.f32.mrb[0].mxu0
    %7719 = vdwg.mxu0
    %7720 = vmatprep.subr.bf16.mxu0 %v4969
    %7721 = vmatpush1.bf16.msra.mxu0 %v4968
    %7722 = vmatprep.subr.bf16.mxu0 %v4985
    %7723 = vmatpush1.bf16.msra.mxu0 %v4984
    %7724 = vmatprep.subr.bf16.mxu0 %v5001
    %7725 = vmatpush1.bf16.msra.mxu0 %v5000
    %7726 = vmatprep.subr.bf16.mxu0 %v5017
    %7727 = vmatpush1.bf16.msra.mxu0 %v5016
    %7728 = vmatprep.subr.bf16.mxu0 %v5033
    %7729 = vmatpush1.bf16.msra.mxu0 %v5032
    %7730 = vmatprep.subr.bf16.mxu0 %v5049
    %7731 = vmatpush1.bf16.msra.mxu0 %v5048
    %7732 = vmatprep.subr.bf16.mxu0 %v5065
    %7733 = vmatpush1.bf16.msra.mxu0 %v5064
    %7734 = vmatprep.subr.bf16.mxu0 %v5081
    %7735 = vmatpush1.bf16.msra.mxu0 %v5080
    %7736 = vmatprep.subr.bf16.mxu0 %v5097
    %7737 = vmatpush1.bf16.msra.mxu0 %v5096
    %7738 = vmatprep.subr.bf16.mxu0 %v5113
    %7739 = vmatpush1.bf16.msra.mxu0 %v5112
    %7740 = vmatprep.subr.bf16.mxu0 %v5129
    %7741 = vmatpush1.bf16.msra.mxu0 %v5128
    %7742 = vmatprep.subr.bf16.mxu0 %v5145
    %7743 = vmatpush1.bf16.msra.mxu0 %v5144
    %7744 = vmatprep.subr.bf16.mxu0 %v5161
    %7745 = vmatpush1.bf16.msra.mxu0 %v5160
    %7746 = vmatprep.subr.bf16.mxu0 %v5177
    %7747 = vmatpush1.bf16.msra.mxu0 %v5176
    %7748 = vmatprep.subr.bf16.mxu0 %v5193
    %7749 = vmatpush1.bf16.msra.mxu0 %v5192
    %7750 = vmatprep.subr.bf16.mxu0 %v5209
    %7751 = vmatpush1.bf16.msra.mxu0 %v5208
    %7752 = vmatprep.mubr.bf16.mxu0 %v1359
    %7753 = vmatmul.mubr.bf16.gmra.mrb[0].mxu0 %v1358
    %v7754 = vpop.f32.mrb[0].mxu0
    %v7755 = vadd.f32 %v7714, %v7754
    %v7756 = vpop.f32.mrb[0].mxu0
    %v7757 = vadd.f32 %v7716, %v7756
    %v7758 = vpop.f32.mrb[0].mxu0
    %v7759 = vpop.f32.mrb[0].mxu0
    %7760 = vdwg.mxu0
    %7761 = vmatprep.subr.bf16.mxu0 %v5225
    %7762 = vmatpush1.bf16.msra.mxu0 %v5224
    %7763 = vmatprep.subr.bf16.mxu0 %v5241
    %7764 = vmatpush1.bf16.msra.mxu0 %v5240
    %7765 = vmatprep.subr.bf16.mxu0 %v5257
    %7766 = vmatpush1.bf16.msra.mxu0 %v5256
    %7767 = vmatprep.subr.bf16.mxu0 %v5273
    %7768 = vmatpush1.bf16.msra.mxu0 %v5272
    %7769 = vmatprep.subr.bf16.mxu0 %v5289
    %7770 = vmatpush1.bf16.msra.mxu0 %v5288
    %7771 = vmatprep.subr.bf16.mxu0 %v5305
    %7772 = vmatpush1.bf16.msra.mxu0 %v5304
    %7773 = vmatprep.subr.bf16.mxu0 %v5321
    %7774 = vmatpush1.bf16.msra.mxu0 %v5320
    %7775 = vmatprep.subr.bf16.mxu0 %v5337
    %7776 = vmatpush1.bf16.msra.mxu0 %v5336
    %7777 = vmatprep.subr.bf16.mxu0 %v5353
    %7778 = vmatpush1.bf16.msra.mxu0 %v5352
    %7779 = vmatprep.subr.bf16.mxu0 %v5369
    %7780 = vmatpush1.bf16.msra.mxu0 %v5368
    %7781 = vmatprep.subr.bf16.mxu0 %v5385
    %7782 = vmatpush1.bf16.msra.mxu0 %v5384
    %7783 = vmatprep.subr.bf16.mxu0 %v5401
    %7784 = vmatpush1.bf16.msra.mxu0 %v5400
    %7785 = vmatprep.subr.bf16.mxu0 %v5417
    %7786 = vmatpush1.bf16.msra.mxu0 %v5416
    %7787 = vmatprep.subr.bf16.mxu0 %v5433
    %7788 = vmatpush1.bf16.msra.mxu0 %v5432
    %7789 = vmatprep.subr.bf16.mxu0 %v5449
    %7790 = vmatpush1.bf16.msra.mxu0 %v5448
    %7791 = vmatprep.subr.bf16.mxu0 %v5465
    %7792 = vmatpush1.bf16.msra.mxu0 %v5464
    %7793 = vmatprep.mubr.bf16.mxu0 %v1361
    %7794 = vmatmul.mubr.bf16.gmra.mrb[0].mxu0 %v1360
    %v7795 = vpop.f32.mrb[0].mxu0
    %v7796 = vadd.f32 %v7755, %v7795
    %v7797 = vpop.f32.mrb[0].mxu0
    %v7798 = vadd.f32 %v7757, %v7797
    %v7799 = vpop.f32.mrb[0].mxu0
    %v7800 = vpop.f32.mrb[0].mxu0
    %7801 = vdwg.mxu0
    %v7802 = vmax.f32 %v6648, 0.0
    %v7803 = vmax.f32 %v6650, 0.0
    %v7804 = vmax.f32 %v6812, 0.0
    %v7805 = vmax.f32 %v6814, 0.0
    %v7806 = vmax.f32 %v6976, 0.0
    %v7807 = vmax.f32 %v6978, 0.0
    %v7808 = vmax.f32 %v7140, 0.0
    %v7809 = vmax.f32 %v7142, 0.0
    %v7810 = vmax.f32 %v7304, 0.0
    %v7811 = vmax.f32 %v7306, 0.0
    %v7812 = vmax.f32 %v7468, 0.0
    %v7813 = vmax.f32 %v7470, 0.0
    %v7814 = vmax.f32 %v7632, 0.0
    %v7815 = vmax.f32 %v7634, 0.0
    %v7816 = vmax.f32 %v7796, 0.0
    %v7817 = vmax.f32 %v7798, 0.0
    %v7818 = vpack.c.bf16 %v7802, %v7802
    %v7819 = vpack.c.bf16 %v7803, %v7803
    %v7820 = vpack.c.bf16 %v7804, %v7804
    %v7821 = vpack.c.bf16 %v7805, %v7805
    %v7822 = vpack.c.bf16 %v7806, %v7806
    %v7823 = vpack.c.bf16 %v7807, %v7807
    %v7824 = vpack.c.bf16 %v7808, %v7808
    %v7825 = vpack.c.bf16 %v7809, %v7809
    %v7826 = vpack.c.bf16 %v7810, %v7810
    %v7827 = vpack.c.bf16 %v7811, %v7811
    %v7828 = vpack.c.bf16 %v7812, %v7812
    %v7829 = vpack.c.bf16 %v7813, %v7813
    %v7830 = vpack.c.bf16 %v7814, %v7814
    %v7831 = vpack.c.bf16 %v7815, %v7815
    %v7832 = vpack.c.bf16 %v7816, %v7816
    %v7833 = vpack.c.bf16 %v7817, %v7817
    %v7834 = vld [vmem:[#allocation6] sm:$0xff]
    %v7835 = vld [vmem:[#allocation6 + $0x8] sm:$0xff]
    %v7836 = vld [vmem:[#allocation6 + $0x10] sm:$0xff]
    %v7837 = vld [vmem:[#allocation6 + $0x18] sm:$0xff]
    %v7838 = vld [vmem:[#allocation6 + $0x20] sm:$0xff]
    %v7839 = vld [vmem:[#allocation6 + $0x28] sm:$0xff]
    %v7840 = vld [vmem:[#allocation6 + $0x30] sm:$0xff]
    %v7841 = vld [vmem:[#allocation6 + $0x38] sm:$0xff]
    %v7842 = vld [vmem:[#allocation6 + $0x40] sm:$0xff]
    %v7843 = vld [vmem:[#allocation6 + $0x48] sm:$0xff]
    %v7844 = vld [vmem:[#allocation6 + $0x50] sm:$0xff]
    %v7845 = vld [vmem:[#allocation6 + $0x58] sm:$0xff]
    %v7846 = vld [vmem:[#allocation6 + $0x60] sm:$0xff]
    %v7847 = vld [vmem:[#allocation6 + $0x68] sm:$0xff]
    %v7848 = vld [vmem:[#allocation6 + $0x70] sm:$0xff]
    %v7849 = vld [vmem:[#allocation6 + $0x78] sm:$0xff]
    %v7850 = vld [vmem:[#allocation6 + $0x80] sm:$0xff]
    %v7851 = vld [vmem:[#allocation6 + $0x88] sm:$0xff]
    %v7852 = vld [vmem:[#allocation6 + $0x90] sm:$0xff]
    %v7853 = vld [vmem:[#allocation6 + $0x98] sm:$0xff]
    %v7854 = vld [vmem:[#allocation6 + $0xa0] sm:$0xff]
    %v7855 = vld [vmem:[#allocation6 + $0xa8] sm:$0xff]
    %v7856 = vld [vmem:[#allocation6 + $0xb0] sm:$0xff]
    %v7857 = vld [vmem:[#allocation6 + $0xb8] sm:$0xff]
    %v7858 = vld [vmem:[#allocation6 + $0xc0] sm:$0xff]
    %v7859 = vld [vmem:[#allocation6 + $0xc8] sm:$0xff]
    %v7860 = vld [vmem:[#allocation6 + $0xd0] sm:$0xff]
    %v7861 = vld [vmem:[#allocation6 + $0xd8] sm:$0xff]
    %v7862 = vld [vmem:[#allocation6 + $0xe0] sm:$0xff]
    %v7863 = vld [vmem:[#allocation6 + $0xe8] sm:$0xff]
    %v7864 = vld [vmem:[#allocation6 + $0xf0] sm:$0xff]
    %v7865 = vld [vmem:[#allocation6 + $0xf8] sm:$0xff]
    %v7866 = vld [vmem:[#allocation6 + $0x100] sm:$0xff]
    %v7867 = vld [vmem:[#allocation6 + $0x108] sm:$0xff]
    %v7868 = vld [vmem:[#allocation6 + $0x110] sm:$0xff]
    %v7869 = vld [vmem:[#allocation6 + $0x118] sm:$0xff]
    %v7870 = vld [vmem:[#allocation6 + $0x120] sm:$0xff]
    %v7871 = vld [vmem:[#allocation6 + $0x128] sm:$0xff]
    %v7872 = vld [vmem:[#allocation6 + $0x130] sm:$0xff]
    %v7873 = vld [vmem:[#allocation6 + $0x138] sm:$0xff]
    %v7874 = vld [vmem:[#allocation6 + $0x140] sm:$0xff]
    %v7875 = vld [vmem:[#allocation6 + $0x148] sm:$0xff]
    %v7876 = vld [vmem:[#allocation6 + $0x150] sm:$0xff]
    %v7877 = vld [vmem:[#allocation6 + $0x158] sm:$0xff]
    %v7878 = vld [vmem:[#allocation6 + $0x160] sm:$0xff]
    %v7879 = vld [vmem:[#allocation6 + $0x168] sm:$0xff]
    %v7880 = vld [vmem:[#allocation6 + $0x170] sm:$0xff]
    %v7881 = vld [vmem:[#allocation6 + $0x178] sm:$0xff]
    %v7882 = vld [vmem:[#allocation6 + $0x180] sm:$0xff]
    %v7883 = vld [vmem:[#allocation6 + $0x188] sm:$0xff]
    %v7884 = vld [vmem:[#allocation6 + $0x190] sm:$0xff]
    %v7885 = vld [vmem:[#allocation6 + $0x198] sm:$0xff]
    %v7886 = vld [vmem:[#allocation6 + $0x1a0] sm:$0xff]
    %v7887 = vld [vmem:[#allocation6 + $0x1a8] sm:$0xff]
    %v7888 = vld [vmem:[#allocation6 + $0x1b0] sm:$0xff]
    %v7889 = vld [vmem:[#allocation6 + $0x1b8] sm:$0xff]
    %v7890 = vld [vmem:[#allocation6 + $0x1c0] sm:$0xff]
    %v7891 = vld [vmem:[#allocation6 + $0x1c8] sm:$0xff]
    %v7892 = vld [vmem:[#allocation6 + $0x1d0] sm:$0xff]
    %v7893 = vld [vmem:[#allocation6 + $0x1d8] sm:$0xff]
    %v7894 = vld [vmem:[#allocation6 + $0x1e0] sm:$0xff]
    %v7895 = vld [vmem:[#allocation6 + $0x1e8] sm:$0xff]
    %v7896 = vld [vmem:[#allocation6 + $0x1f0] sm:$0xff]
    %v7897 = vld [vmem:[#allocation6 + $0x1f8] sm:$0xff]
    %v7898 = vld [vmem:[#allocation6 + $0x200] sm:$0xff]
    %v7899 = vld [vmem:[#allocation6 + $0x208] sm:$0xff]
    %v7900 = vld [vmem:[#allocation6 + $0x210] sm:$0xff]
    %v7901 = vld [vmem:[#allocation6 + $0x218] sm:$0xff]
    %v7902 = vld [vmem:[#allocation6 + $0x220] sm:$0xff]
    %v7903 = vld [vmem:[#allocation6 + $0x228] sm:$0xff]
    %v7904 = vld [vmem:[#allocation6 + $0x230] sm:$0xff]
    %v7905 = vld [vmem:[#allocation6 + $0x238] sm:$0xff]
    %v7906 = vld [vmem:[#allocation6 + $0x240] sm:$0xff]
    %v7907 = vld [vmem:[#allocation6 + $0x248] sm:$0xff]
    %v7908 = vld [vmem:[#allocation6 + $0x250] sm:$0xff]
    %v7909 = vld [vmem:[#allocation6 + $0x258] sm:$0xff]
    %v7910 = vld [vmem:[#allocation6 + $0x260] sm:$0xff]
    %v7911 = vld [vmem:[#allocation6 + $0x268] sm:$0xff]
    %v7912 = vld [vmem:[#allocation6 + $0x270] sm:$0xff]
    %v7913 = vld [vmem:[#allocation6 + $0x278] sm:$0xff]
    %v7914 = vld [vmem:[#allocation6 + $0x280] sm:$0xff]
    %v7915 = vld [vmem:[#allocation6 + $0x288] sm:$0xff]
    %v7916 = vld [vmem:[#allocation6 + $0x290] sm:$0xff]
    %v7917 = vld [vmem:[#allocation6 + $0x298] sm:$0xff]
    %v7918 = vld [vmem:[#allocation6 + $0x2a0] sm:$0xff]
    %v7919 = vld [vmem:[#allocation6 + $0x2a8] sm:$0xff]
    %v7920 = vld [vmem:[#allocation6 + $0x2b0] sm:$0xff]
    %v7921 = vld [vmem:[#allocation6 + $0x2b8] sm:$0xff]
    %v7922 = vld [vmem:[#allocation6 + $0x2c0] sm:$0xff]
    %v7923 = vld [vmem:[#allocation6 + $0x2c8] sm:$0xff]
    %v7924 = vld [vmem:[#allocation6 + $0x2d0] sm:$0xff]
    %v7925 = vld [vmem:[#allocation6 + $0x2d8] sm:$0xff]
    %v7926 = vld [vmem:[#allocation6 + $0x2e0] sm:$0xff]
    %v7927 = vld [vmem:[#allocation6 + $0x2e8] sm:$0xff]
    %v7928 = vld [vmem:[#allocation6 + $0x2f0] sm:$0xff]
    %v7929 = vld [vmem:[#allocation6 + $0x2f8] sm:$0xff]
    %v7930 = vld [vmem:[#allocation6 + $0x300] sm:$0xff]
    %v7931 = vld [vmem:[#allocation6 + $0x308] sm:$0xff]
    %v7932 = vld [vmem:[#allocation6 + $0x310] sm:$0xff]
    %v7933 = vld [vmem:[#allocation6 + $0x318] sm:$0xff]
    %v7934 = vld [vmem:[#allocation6 + $0x320] sm:$0xff]
    %v7935 = vld [vmem:[#allocation6 + $0x328] sm:$0xff]
    %v7936 = vld [vmem:[#allocation6 + $0x330] sm:$0xff]
    %v7937 = vld [vmem:[#allocation6 + $0x338] sm:$0xff]
    %v7938 = vld [vmem:[#allocation6 + $0x340] sm:$0xff]
    %v7939 = vld [vmem:[#allocation6 + $0x348] sm:$0xff]
    %v7940 = vld [vmem:[#allocation6 + $0x350] sm:$0xff]
    %v7941 = vld [vmem:[#allocation6 + $0x358] sm:$0xff]
    %v7942 = vld [vmem:[#allocation6 + $0x360] sm:$0xff]
    %v7943 = vld [vmem:[#allocation6 + $0x368] sm:$0xff]
    %v7944 = vld [vmem:[#allocation6 + $0x370] sm:$0xff]
    %v7945 = vld [vmem:[#allocation6 + $0x378] sm:$0xff]
    %v7946 = vld [vmem:[#allocation6 + $0x380] sm:$0xff]
    %v7947 = vld [vmem:[#allocation6 + $0x388] sm:$0xff]
    %v7948 = vld [vmem:[#allocation6 + $0x390] sm:$0xff]
    %v7949 = vld [vmem:[#allocation6 + $0x398] sm:$0xff]
    %v7950 = vld [vmem:[#allocation6 + $0x3a0] sm:$0xff]
    %v7951 = vld [vmem:[#allocation6 + $0x3a8] sm:$0xff]
    %v7952 = vld [vmem:[#allocation6 + $0x3b0] sm:$0xff]
    %v7953 = vld [vmem:[#allocation6 + $0x3b8] sm:$0xff]
    %v7954 = vld [vmem:[#allocation6 + $0x3c0] sm:$0xff]
    %v7955 = vld [vmem:[#allocation6 + $0x3c8] sm:$0xff]
    %v7956 = vld [vmem:[#allocation6 + $0x3d0] sm:$0xff]
    %v7957 = vld [vmem:[#allocation6 + $0x3d8] sm:$0xff]
    %v7958 = vld [vmem:[#allocation6 + $0x3e0] sm:$0xff]
    %v7959 = vld [vmem:[#allocation6 + $0x3e8] sm:$0xff]
    %v7960 = vld [vmem:[#allocation6 + $0x3f0] sm:$0xff]
    %v7961 = vld [vmem:[#allocation6 + $0x3f8] sm:$0xff]
    %v7962 = vld [vmem:[#allocation6 + $0x400] sm:$0xff]
    %v7963 = vld [vmem:[#allocation6 + $0x408] sm:$0xff]
    %v7964 = vld [vmem:[#allocation6 + $0x410] sm:$0xff]
    %v7965 = vld [vmem:[#allocation6 + $0x418] sm:$0xff]
    %v7966 = vld [vmem:[#allocation6 + $0x420] sm:$0xff]
    %v7967 = vld [vmem:[#allocation6 + $0x428] sm:$0xff]
    %v7968 = vld [vmem:[#allocation6 + $0x430] sm:$0xff]
    %v7969 = vld [vmem:[#allocation6 + $0x438] sm:$0xff]
    %v7970 = vld [vmem:[#allocation6 + $0x440] sm:$0xff]
    %v7971 = vld [vmem:[#allocation6 + $0x448] sm:$0xff]
    %v7972 = vld [vmem:[#allocation6 + $0x450] sm:$0xff]
    %v7973 = vld [vmem:[#allocation6 + $0x458] sm:$0xff]
    %v7974 = vld [vmem:[#allocation6 + $0x460] sm:$0xff]
    %v7975 = vld [vmem:[#allocation6 + $0x468] sm:$0xff]
    %v7976 = vld [vmem:[#allocation6 + $0x470] sm:$0xff]
    %v7977 = vld [vmem:[#allocation6 + $0x478] sm:$0xff]
    %v7978 = vld [vmem:[#allocation6 + $0x480] sm:$0xff]
    %v7979 = vld [vmem:[#allocation6 + $0x488] sm:$0xff]
    %v7980 = vld [vmem:[#allocation6 + $0x490] sm:$0xff]
    %v7981 = vld [vmem:[#allocation6 + $0x498] sm:$0xff]
    %v7982 = vld [vmem:[#allocation6 + $0x4a0] sm:$0xff]
    %v7983 = vld [vmem:[#allocation6 + $0x4a8] sm:$0xff]
    %v7984 = vld [vmem:[#allocation6 + $0x4b0] sm:$0xff]
    %v7985 = vld [vmem:[#allocation6 + $0x4b8] sm:$0xff]
    %v7986 = vld [vmem:[#allocation6 + $0x4c0] sm:$0xff]
    %v7987 = vld [vmem:[#allocation6 + $0x4c8] sm:$0xff]
    %v7988 = vld [vmem:[#allocation6 + $0x4d0] sm:$0xff]
    %v7989 = vld [vmem:[#allocation6 + $0x4d8] sm:$0xff]
    %v7990 = vld [vmem:[#allocation6 + $0x4e0] sm:$0xff]
    %v7991 = vld [vmem:[#allocation6 + $0x4e8] sm:$0xff]
    %v7992 = vld [vmem:[#allocation6 + $0x4f0] sm:$0xff]
    %v7993 = vld [vmem:[#allocation6 + $0x4f8] sm:$0xff]
    %v7994 = vld [vmem:[#allocation6 + $0x500] sm:$0xff]
    %v7995 = vld [vmem:[#allocation6 + $0x508] sm:$0xff]
    %v7996 = vld [vmem:[#allocation6 + $0x510] sm:$0xff]
    %v7997 = vld [vmem:[#allocation6 + $0x518] sm:$0xff]
    %v7998 = vld [vmem:[#allocation6 + $0x520] sm:$0xff]
    %v7999 = vld [vmem:[#allocation6 + $0x528] sm:$0xff]
    %v8000 = vld [vmem:[#allocation6 + $0x530] sm:$0xff]
    %v8001 = vld [vmem:[#allocation6 + $0x538] sm:$0xff]
    %v8002 = vld [vmem:[#allocation6 + $0x540] sm:$0xff]
    %v8003 = vld [vmem:[#allocation6 + $0x548] sm:$0xff]
    %v8004 = vld [vmem:[#allocation6 + $0x550] sm:$0xff]
    %v8005 = vld [vmem:[#allocation6 + $0x558] sm:$0xff]
    %v8006 = vld [vmem:[#allocation6 + $0x560] sm:$0xff]
    %v8007 = vld [vmem:[#allocation6 + $0x568] sm:$0xff]
    %v8008 = vld [vmem:[#allocation6 + $0x570] sm:$0xff]
    %v8009 = vld [vmem:[#allocation6 + $0x578] sm:$0xff]
    %v8010 = vld [vmem:[#allocation6 + $0x580] sm:$0xff]
    %v8011 = vld [vmem:[#allocation6 + $0x588] sm:$0xff]
    %v8012 = vld [vmem:[#allocation6 + $0x590] sm:$0xff]
    %v8013 = vld [vmem:[#allocation6 + $0x598] sm:$0xff]
    %v8014 = vld [vmem:[#allocation6 + $0x5a0] sm:$0xff]
    %v8015 = vld [vmem:[#allocation6 + $0x5a8] sm:$0xff]
    %v8016 = vld [vmem:[#allocation6 + $0x5b0] sm:$0xff]
    %v8017 = vld [vmem:[#allocation6 + $0x5b8] sm:$0xff]
    %v8018 = vld [vmem:[#allocation6 + $0x5c0] sm:$0xff]
    %v8019 = vld [vmem:[#allocation6 + $0x5c8] sm:$0xff]
    %v8020 = vld [vmem:[#allocation6 + $0x5d0] sm:$0xff]
    %v8021 = vld [vmem:[#allocation6 + $0x5d8] sm:$0xff]
    %v8022 = vld [vmem:[#allocation6 + $0x5e0] sm:$0xff]
    %v8023 = vld [vmem:[#allocation6 + $0x5e8] sm:$0xff]
    %v8024 = vld [vmem:[#allocation6 + $0x5f0] sm:$0xff]
    %v8025 = vld [vmem:[#allocation6 + $0x5f8] sm:$0xff]
    %v8026 = vld [vmem:[#allocation6 + $0x600] sm:$0xff]
    %v8027 = vld [vmem:[#allocation6 + $0x608] sm:$0xff]
    %v8028 = vld [vmem:[#allocation6 + $0x610] sm:$0xff]
    %v8029 = vld [vmem:[#allocation6 + $0x618] sm:$0xff]
    %v8030 = vld [vmem:[#allocation6 + $0x620] sm:$0xff]
    %v8031 = vld [vmem:[#allocation6 + $0x628] sm:$0xff]
    %v8032 = vld [vmem:[#allocation6 + $0x630] sm:$0xff]
    %v8033 = vld [vmem:[#allocation6 + $0x638] sm:$0xff]
    %v8034 = vld [vmem:[#allocation6 + $0x640] sm:$0xff]
    %v8035 = vld [vmem:[#allocation6 + $0x648] sm:$0xff]
    %v8036 = vld [vmem:[#allocation6 + $0x650] sm:$0xff]
    %v8037 = vld [vmem:[#allocation6 + $0x658] sm:$0xff]
    %v8038 = vld [vmem:[#allocation6 + $0x660] sm:$0xff]
    %v8039 = vld [vmem:[#allocation6 + $0x668] sm:$0xff]
    %v8040 = vld [vmem:[#allocation6 + $0x670] sm:$0xff]
    %v8041 = vld [vmem:[#allocation6 + $0x678] sm:$0xff]
    %v8042 = vld [vmem:[#allocation6 + $0x680] sm:$0xff]
    %v8043 = vld [vmem:[#allocation6 + $0x688] sm:$0xff]
    %v8044 = vld [vmem:[#allocation6 + $0x690] sm:$0xff]
    %v8045 = vld [vmem:[#allocation6 + $0x698] sm:$0xff]
    %v8046 = vld [vmem:[#allocation6 + $0x6a0] sm:$0xff]
    %v8047 = vld [vmem:[#allocation6 + $0x6a8] sm:$0xff]
    %v8048 = vld [vmem:[#allocation6 + $0x6b0] sm:$0xff]
    %v8049 = vld [vmem:[#allocation6 + $0x6b8] sm:$0xff]
    %v8050 = vld [vmem:[#allocation6 + $0x6c0] sm:$0xff]
    %v8051 = vld [vmem:[#allocation6 + $0x6c8] sm:$0xff]
    %v8052 = vld [vmem:[#allocation6 + $0x6d0] sm:$0xff]
    %v8053 = vld [vmem:[#allocation6 + $0x6d8] sm:$0xff]
    %v8054 = vld [vmem:[#allocation6 + $0x6e0] sm:$0xff]
    %v8055 = vld [vmem:[#allocation6 + $0x6e8] sm:$0xff]
    %v8056 = vld [vmem:[#allocation6 + $0x6f0] sm:$0xff]
    %v8057 = vld [vmem:[#allocation6 + $0x6f8] sm:$0xff]
    %v8058 = vld [vmem:[#allocation6 + $0x700] sm:$0xff]
    %v8059 = vld [vmem:[#allocation6 + $0x708] sm:$0xff]
    %v8060 = vld [vmem:[#allocation6 + $0x710] sm:$0xff]
    %v8061 = vld [vmem:[#allocation6 + $0x718] sm:$0xff]
    %v8062 = vld [vmem:[#allocation6 + $0x720] sm:$0xff]
    %v8063 = vld [vmem:[#allocation6 + $0x728] sm:$0xff]
    %v8064 = vld [vmem:[#allocation6 + $0x730] sm:$0xff]
    %v8065 = vld [vmem:[#allocation6 + $0x738] sm:$0xff]
    %v8066 = vld [vmem:[#allocation6 + $0x740] sm:$0xff]
    %v8067 = vld [vmem:[#allocation6 + $0x748] sm:$0xff]
    %v8068 = vld [vmem:[#allocation6 + $0x750] sm:$0xff]
    %v8069 = vld [vmem:[#allocation6 + $0x758] sm:$0xff]
    %v8070 = vld [vmem:[#allocation6 + $0x760] sm:$0xff]
    %v8071 = vld [vmem:[#allocation6 + $0x768] sm:$0xff]
    %v8072 = vld [vmem:[#allocation6 + $0x770] sm:$0xff]
    %v8073 = vld [vmem:[#allocation6 + $0x778] sm:$0xff]
    %v8074 = vld [vmem:[#allocation6 + $0x780] sm:$0xff]
    %v8075 = vld [vmem:[#allocation6 + $0x788] sm:$0xff]
    %v8076 = vld [vmem:[#allocation6 + $0x790] sm:$0xff]
    %v8077 = vld [vmem:[#allocation6 + $0x798] sm:$0xff]
    %v8078 = vld [vmem:[#allocation6 + $0x7a0] sm:$0xff]
    %v8079 = vld [vmem:[#allocation6 + $0x7a8] sm:$0xff]
    %v8080 = vld [vmem:[#allocation6 + $0x7b0] sm:$0xff]
    %v8081 = vld [vmem:[#allocation6 + $0x7b8] sm:$0xff]
    %v8082 = vld [vmem:[#allocation6 + $0x7c0] sm:$0xff]
    %v8083 = vld [vmem:[#allocation6 + $0x7c8] sm:$0xff]
    %v8084 = vld [vmem:[#allocation6 + $0x7d0] sm:$0xff]
    %v8085 = vld [vmem:[#allocation6 + $0x7d8] sm:$0xff]
    %v8086 = vld [vmem:[#allocation6 + $0x7e0] sm:$0xff]
    %v8087 = vld [vmem:[#allocation6 + $0x7e8] sm:$0xff]
    %v8088 = vld [vmem:[#allocation6 + $0x7f0] sm:$0xff]
    %v8089 = vld [vmem:[#allocation6 + $0x7f8] sm:$0xff]
    %v8090 = vld [vmem:[#allocation7] sm:$0x3]
    %v8092 = vlaneseq
    %v8093 = vshrl.u32 %v8092, 7
    %v8094 = vsub.s32 0, %v8093
    %v8095 = vrot.slane %v8090, %v8094
    %v8096 = vlaneseq
    %v8097 = vshrl.u32 %v8096, 7
    %v8098 = vsub.s32 1, %v8097
    %v8099 = vrot.slane %v8090, %v8098
    %v8358 = vunpack.c.l.b16 %v7834
    %v8359 = vunpack.c.h.b16 %v7834
    %v8360 = vunpack.c.l.b16 %v7835
    %v8361 = vunpack.c.h.b16 %v7835
    %v8362 = vunpack.c.l.b16 %v7836
    %v8363 = vunpack.c.h.b16 %v7836
    %v8364 = vunpack.c.l.b16 %v7837
    %v8365 = vunpack.c.h.b16 %v7837
    %v8366 = vunpack.c.l.b16 %v7838
    %v8367 = vunpack.c.h.b16 %v7838
    %v8368 = vunpack.c.l.b16 %v7839
    %v8369 = vunpack.c.h.b16 %v7839
    %v8370 = vunpack.c.l.b16 %v7840
    %v8371 = vunpack.c.h.b16 %v7840
    %v8372 = vunpack.c.l.b16 %v7841
    %v8373 = vunpack.c.h.b16 %v7841
    %v8374 = vunpack.c.l.b16 %v7842
    %v8375 = vunpack.c.h.b16 %v7842
    %v8376 = vunpack.c.l.b16 %v7843
    %v8377 = vunpack.c.h.b16 %v7843
    %v8378 = vunpack.c.l.b16 %v7844
    %v8379 = vunpack.c.h.b16 %v7844
    %v8380 = vunpack.c.l.b16 %v7845
    %v8381 = vunpack.c.h.b16 %v7845
    %v8382 = vunpack.c.l.b16 %v7846
    %v8383 = vunpack.c.h.b16 %v7846
    %v8384 = vunpack.c.l.b16 %v7847
    %v8385 = vunpack.c.h.b16 %v7847
    %v8386 = vunpack.c.l.b16 %v7848
    %v8387 = vunpack.c.h.b16 %v7848
    %v8388 = vunpack.c.l.b16 %v7849
    %v8389 = vunpack.c.h.b16 %v7849
    %v8390 = vunpack.c.l.b16 %v7850
    %v8391 = vunpack.c.h.b16 %v7850
    %v8392 = vunpack.c.l.b16 %v7851
    %v8393 = vunpack.c.h.b16 %v7851
    %v8394 = vunpack.c.l.b16 %v7852
    %v8395 = vunpack.c.h.b16 %v7852
    %v8396 = vunpack.c.l.b16 %v7853
    %v8397 = vunpack.c.h.b16 %v7853
    %v8398 = vunpack.c.l.b16 %v7854
    %v8399 = vunpack.c.h.b16 %v7854
    %v8400 = vunpack.c.l.b16 %v7855
    %v8401 = vunpack.c.h.b16 %v7855
    %v8402 = vunpack.c.l.b16 %v7856
    %v8403 = vunpack.c.h.b16 %v7856
    %v8404 = vunpack.c.l.b16 %v7857
    %v8405 = vunpack.c.h.b16 %v7857
    %v8406 = vunpack.c.l.b16 %v7858
    %v8407 = vunpack.c.h.b16 %v7858
    %v8408 = vunpack.c.l.b16 %v7859
    %v8409 = vunpack.c.h.b16 %v7859
    %v8410 = vunpack.c.l.b16 %v7860
    %v8411 = vunpack.c.h.b16 %v7860
    %v8412 = vunpack.c.l.b16 %v7861
    %v8413 = vunpack.c.h.b16 %v7861
    %v8414 = vunpack.c.l.b16 %v7862
    %v8415 = vunpack.c.h.b16 %v7862
    %v8416 = vunpack.c.l.b16 %v7863
    %v8417 = vunpack.c.h.b16 %v7863
    %v8418 = vunpack.c.l.b16 %v7864
    %v8419 = vunpack.c.h.b16 %v7864
    %v8420 = vunpack.c.l.b16 %v7865
    %v8421 = vunpack.c.h.b16 %v7865
    %v8422 = vunpack.c.l.b16 %v7866
    %v8423 = vunpack.c.h.b16 %v7866
    %v8424 = vunpack.c.l.b16 %v7867
    %v8425 = vunpack.c.h.b16 %v7867
    %v8426 = vunpack.c.l.b16 %v7868
    %v8427 = vunpack.c.h.b16 %v7868
    %v8428 = vunpack.c.l.b16 %v7869
    %v8429 = vunpack.c.h.b16 %v7869
    %v8430 = vunpack.c.l.b16 %v7870
    %v8431 = vunpack.c.h.b16 %v7870
    %v8432 = vunpack.c.l.b16 %v7871
    %v8433 = vunpack.c.h.b16 %v7871
    %v8434 = vunpack.c.l.b16 %v7872
    %v8435 = vunpack.c.h.b16 %v7872
    %v8436 = vunpack.c.l.b16 %v7873
    %v8437 = vunpack.c.h.b16 %v7873
    %v8438 = vunpack.c.l.b16 %v7874
    %v8439 = vunpack.c.h.b16 %v7874
    %v8440 = vunpack.c.l.b16 %v7875
    %v8441 = vunpack.c.h.b16 %v7875
    %v8442 = vunpack.c.l.b16 %v7876
    %v8443 = vunpack.c.h.b16 %v7876
    %v8444 = vunpack.c.l.b16 %v7877
    %v8445 = vunpack.c.h.b16 %v7877
    %v8446 = vunpack.c.l.b16 %v7878
    %v8447 = vunpack.c.h.b16 %v7878
    %v8448 = vunpack.c.l.b16 %v7879
    %v8449 = vunpack.c.h.b16 %v7879
    %v8450 = vunpack.c.l.b16 %v7880
    %v8451 = vunpack.c.h.b16 %v7880
    %v8452 = vunpack.c.l.b16 %v7881
    %v8453 = vunpack.c.h.b16 %v7881
    %v8454 = vunpack.c.l.b16 %v7882
    %v8455 = vunpack.c.h.b16 %v7882
    %v8456 = vunpack.c.l.b16 %v7883
    %v8457 = vunpack.c.h.b16 %v7883
    %v8458 = vunpack.c.l.b16 %v7884
    %v8459 = vunpack.c.h.b16 %v7884
    %v8460 = vunpack.c.l.b16 %v7885
    %v8461 = vunpack.c.h.b16 %v7885
    %v8462 = vunpack.c.l.b16 %v7886
    %v8463 = vunpack.c.h.b16 %v7886
    %v8464 = vunpack.c.l.b16 %v7887
    %v8465 = vunpack.c.h.b16 %v7887
    %v8466 = vunpack.c.l.b16 %v7888
    %v8467 = vunpack.c.h.b16 %v7888
    %v8468 = vunpack.c.l.b16 %v7889
    %v8469 = vunpack.c.h.b16 %v7889
    %v8470 = vunpack.c.l.b16 %v7890
    %v8471 = vunpack.c.h.b16 %v7890
    %v8472 = vunpack.c.l.b16 %v7891
    %v8473 = vunpack.c.h.b16 %v7891
    %v8474 = vunpack.c.l.b16 %v7892
    %v8475 = vunpack.c.h.b16 %v7892
    %v8476 = vunpack.c.l.b16 %v7893
    %v8477 = vunpack.c.h.b16 %v7893
    %v8478 = vunpack.c.l.b16 %v7894
    %v8479 = vunpack.c.h.b16 %v7894
    %v8480 = vunpack.c.l.b16 %v7895
    %v8481 = vunpack.c.h.b16 %v7895
    %v8482 = vunpack.c.l.b16 %v7896
    %v8483 = vunpack.c.h.b16 %v7896
    %v8484 = vunpack.c.l.b16 %v7897
    %v8485 = vunpack.c.h.b16 %v7897
    %v8486 = vunpack.c.l.b16 %v7898
    %v8487 = vunpack.c.h.b16 %v7898
    %v8488 = vunpack.c.l.b16 %v7899
    %v8489 = vunpack.c.h.b16 %v7899
    %v8490 = vunpack.c.l.b16 %v7900
    %v8491 = vunpack.c.h.b16 %v7900
    %v8492 = vunpack.c.l.b16 %v7901
    %v8493 = vunpack.c.h.b16 %v7901
    %v8494 = vunpack.c.l.b16 %v7902
    %v8495 = vunpack.c.h.b16 %v7902
    %v8496 = vunpack.c.l.b16 %v7903
    %v8497 = vunpack.c.h.b16 %v7903
    %v8498 = vunpack.c.l.b16 %v7904
    %v8499 = vunpack.c.h.b16 %v7904
    %v8500 = vunpack.c.l.b16 %v7905
    %v8501 = vunpack.c.h.b16 %v7905
    %v8502 = vunpack.c.l.b16 %v7906
    %v8503 = vunpack.c.h.b16 %v7906
    %v8504 = vunpack.c.l.b16 %v7907
    %v8505 = vunpack.c.h.b16 %v7907
    %v8506 = vunpack.c.l.b16 %v7908
    %v8507 = vunpack.c.h.b16 %v7908
    %v8508 = vunpack.c.l.b16 %v7909
    %v8509 = vunpack.c.h.b16 %v7909
    %v8510 = vunpack.c.l.b16 %v7910
    %v8511 = vunpack.c.h.b16 %v7910
    %v8512 = vunpack.c.l.b16 %v7911
    %v8513 = vunpack.c.h.b16 %v7911
    %v8514 = vunpack.c.l.b16 %v7912
    %v8515 = vunpack.c.h.b16 %v7912
    %v8516 = vunpack.c.l.b16 %v7913
    %v8517 = vunpack.c.h.b16 %v7913
    %v8518 = vunpack.c.l.b16 %v7914
    %v8519 = vunpack.c.h.b16 %v7914
    %v8520 = vunpack.c.l.b16 %v7915
    %v8521 = vunpack.c.h.b16 %v7915
    %v8522 = vunpack.c.l.b16 %v7916
    %v8523 = vunpack.c.h.b16 %v7916
    %v8524 = vunpack.c.l.b16 %v7917
    %v8525 = vunpack.c.h.b16 %v7917
    %v8526 = vunpack.c.l.b16 %v7918
    %v8527 = vunpack.c.h.b16 %v7918
    %v8528 = vunpack.c.l.b16 %v7919
    %v8529 = vunpack.c.h.b16 %v7919
    %v8530 = vunpack.c.l.b16 %v7920
    %v8531 = vunpack.c.h.b16 %v7920
    %v8532 = vunpack.c.l.b16 %v7921
    %v8533 = vunpack.c.h.b16 %v7921
    %v8534 = vunpack.c.l.b16 %v7922
    %v8535 = vunpack.c.h.b16 %v7922
    %v8536 = vunpack.c.l.b16 %v7923
    %v8537 = vunpack.c.h.b16 %v7923
    %v8538 = vunpack.c.l.b16 %v7924
    %v8539 = vunpack.c.h.b16 %v7924
    %v8540 = vunpack.c.l.b16 %v7925
    %v8541 = vunpack.c.h.b16 %v7925
    %v8542 = vunpack.c.l.b16 %v7926
    %v8543 = vunpack.c.h.b16 %v7926
    %v8544 = vunpack.c.l.b16 %v7927
    %v8545 = vunpack.c.h.b16 %v7927
    %v8546 = vunpack.c.l.b16 %v7928
    %v8547 = vunpack.c.h.b16 %v7928
    %v8548 = vunpack.c.l.b16 %v7929
    %v8549 = vunpack.c.h.b16 %v7929
    %v8550 = vunpack.c.l.b16 %v7930
    %v8551 = vunpack.c.h.b16 %v7930
    %v8552 = vunpack.c.l.b16 %v7931
    %v8553 = vunpack.c.h.b16 %v7931
    %v8554 = vunpack.c.l.b16 %v7932
    %v8555 = vunpack.c.h.b16 %v7932
    %v8556 = vunpack.c.l.b16 %v7933
    %v8557 = vunpack.c.h.b16 %v7933
    %v8558 = vunpack.c.l.b16 %v7934
    %v8559 = vunpack.c.h.b16 %v7934
    %v8560 = vunpack.c.l.b16 %v7935
    %v8561 = vunpack.c.h.b16 %v7935
    %v8562 = vunpack.c.l.b16 %v7936
    %v8563 = vunpack.c.h.b16 %v7936
    %v8564 = vunpack.c.l.b16 %v7937
    %v8565 = vunpack.c.h.b16 %v7937
    %v8566 = vunpack.c.l.b16 %v7938
    %v8567 = vunpack.c.h.b16 %v7938
    %v8568 = vunpack.c.l.b16 %v7939
    %v8569 = vunpack.c.h.b16 %v7939
    %v8570 = vunpack.c.l.b16 %v7940
    %v8571 = vunpack.c.h.b16 %v7940
    %v8572 = vunpack.c.l.b16 %v7941
    %v8573 = vunpack.c.h.b16 %v7941
    %v8574 = vunpack.c.l.b16 %v7942
    %v8575 = vunpack.c.h.b16 %v7942
    %v8576 = vunpack.c.l.b16 %v7943
    %v8577 = vunpack.c.h.b16 %v7943
    %v8578 = vunpack.c.l.b16 %v7944
    %v8579 = vunpack.c.h.b16 %v7944
    %v8580 = vunpack.c.l.b16 %v7945
    %v8581 = vunpack.c.h.b16 %v7945
    %v8582 = vunpack.c.l.b16 %v7946
    %v8583 = vunpack.c.h.b16 %v7946
    %v8584 = vunpack.c.l.b16 %v7947
    %v8585 = vunpack.c.h.b16 %v7947
    %v8586 = vunpack.c.l.b16 %v7948
    %v8587 = vunpack.c.h.b16 %v7948
    %v8588 = vunpack.c.l.b16 %v7949
    %v8589 = vunpack.c.h.b16 %v7949
    %v8590 = vunpack.c.l.b16 %v7950
    %v8591 = vunpack.c.h.b16 %v7950
    %v8592 = vunpack.c.l.b16 %v7951
    %v8593 = vunpack.c.h.b16 %v7951
    %v8594 = vunpack.c.l.b16 %v7952
    %v8595 = vunpack.c.h.b16 %v7952
    %v8596 = vunpack.c.l.b16 %v7953
    %v8597 = vunpack.c.h.b16 %v7953
    %v8598 = vunpack.c.l.b16 %v7954
    %v8599 = vunpack.c.h.b16 %v7954
    %v8600 = vunpack.c.l.b16 %v7955
    %v8601 = vunpack.c.h.b16 %v7955
    %v8602 = vunpack.c.l.b16 %v7956
    %v8603 = vunpack.c.h.b16 %v7956
    %v8604 = vunpack.c.l.b16 %v7957
    %v8605 = vunpack.c.h.b16 %v7957
    %v8606 = vunpack.c.l.b16 %v7958
    %v8607 = vunpack.c.h.b16 %v7958
    %v8608 = vunpack.c.l.b16 %v7959
    %v8609 = vunpack.c.h.b16 %v7959
    %v8610 = vunpack.c.l.b16 %v7960
    %v8611 = vunpack.c.h.b16 %v7960
    %v8612 = vunpack.c.l.b16 %v7961
    %v8613 = vunpack.c.h.b16 %v7961
    %v8614 = vunpack.c.l.b16 %v7962
    %v8615 = vunpack.c.h.b16 %v7962
    %v8616 = vunpack.c.l.b16 %v7963
    %v8617 = vunpack.c.h.b16 %v7963
    %v8618 = vunpack.c.l.b16 %v7964
    %v8619 = vunpack.c.h.b16 %v7964
    %v8620 = vunpack.c.l.b16 %v7965
    %v8621 = vunpack.c.h.b16 %v7965
    %v8622 = vunpack.c.l.b16 %v7966
    %v8623 = vunpack.c.h.b16 %v7966
    %v8624 = vunpack.c.l.b16 %v7967
    %v8625 = vunpack.c.h.b16 %v7967
    %v8626 = vunpack.c.l.b16 %v7968
    %v8627 = vunpack.c.h.b16 %v7968
    %v8628 = vunpack.c.l.b16 %v7969
    %v8629 = vunpack.c.h.b16 %v7969
    %v8630 = vunpack.c.l.b16 %v7970
    %v8631 = vunpack.c.h.b16 %v7970
    %v8632 = vunpack.c.l.b16 %v7971
    %v8633 = vunpack.c.h.b16 %v7971
    %v8634 = vunpack.c.l.b16 %v7972
    %v8635 = vunpack.c.h.b16 %v7972
    %v8636 = vunpack.c.l.b16 %v7973
    %v8637 = vunpack.c.h.b16 %v7973
    %v8638 = vunpack.c.l.b16 %v7974
    %v8639 = vunpack.c.h.b16 %v7974
    %v8640 = vunpack.c.l.b16 %v7975
    %v8641 = vunpack.c.h.b16 %v7975
    %v8642 = vunpack.c.l.b16 %v7976
    %v8643 = vunpack.c.h.b16 %v7976
    %v8644 = vunpack.c.l.b16 %v7977
    %v8645 = vunpack.c.h.b16 %v7977
    %v8646 = vunpack.c.l.b16 %v7978
    %v8647 = vunpack.c.h.b16 %v7978
    %v8648 = vunpack.c.l.b16 %v7979
    %v8649 = vunpack.c.h.b16 %v7979
    %v8650 = vunpack.c.l.b16 %v7980
    %v8651 = vunpack.c.h.b16 %v7980
    %v8652 = vunpack.c.l.b16 %v7981
    %v8653 = vunpack.c.h.b16 %v7981
    %v8654 = vunpack.c.l.b16 %v7982
    %v8655 = vunpack.c.h.b16 %v7982
    %v8656 = vunpack.c.l.b16 %v7983
    %v8657 = vunpack.c.h.b16 %v7983
    %v8658 = vunpack.c.l.b16 %v7984
    %v8659 = vunpack.c.h.b16 %v7984
    %v8660 = vunpack.c.l.b16 %v7985
    %v8661 = vunpack.c.h.b16 %v7985
    %v8662 = vunpack.c.l.b16 %v7986
    %v8663 = vunpack.c.h.b16 %v7986
    %v8664 = vunpack.c.l.b16 %v7987
    %v8665 = vunpack.c.h.b16 %v7987
    %v8666 = vunpack.c.l.b16 %v7988
    %v8667 = vunpack.c.h.b16 %v7988
    %v8668 = vunpack.c.l.b16 %v7989
    %v8669 = vunpack.c.h.b16 %v7989
    %v8670 = vunpack.c.l.b16 %v7990
    %v8671 = vunpack.c.h.b16 %v7990
    %v8672 = vunpack.c.l.b16 %v7991
    %v8673 = vunpack.c.h.b16 %v7991
    %v8674 = vunpack.c.l.b16 %v7992
    %v8675 = vunpack.c.h.b16 %v7992
    %v8676 = vunpack.c.l.b16 %v7993
    %v8677 = vunpack.c.h.b16 %v7993
    %v8678 = vunpack.c.l.b16 %v7994
    %v8679 = vunpack.c.h.b16 %v7994
    %v8680 = vunpack.c.l.b16 %v7995
    %v8681 = vunpack.c.h.b16 %v7995
    %v8682 = vunpack.c.l.b16 %v7996
    %v8683 = vunpack.c.h.b16 %v7996
    %v8684 = vunpack.c.l.b16 %v7997
    %v8685 = vunpack.c.h.b16 %v7997
    %v8686 = vunpack.c.l.b16 %v7998
    %v8687 = vunpack.c.h.b16 %v7998
    %v8688 = vunpack.c.l.b16 %v7999
    %v8689 = vunpack.c.h.b16 %v7999
    %v8690 = vunpack.c.l.b16 %v8000
    %v8691 = vunpack.c.h.b16 %v8000
    %v8692 = vunpack.c.l.b16 %v8001
    %v8693 = vunpack.c.h.b16 %v8001
    %v8694 = vunpack.c.l.b16 %v8002
    %v8695 = vunpack.c.h.b16 %v8002
    %v8696 = vunpack.c.l.b16 %v8003
    %v8697 = vunpack.c.h.b16 %v8003
    %v8698 = vunpack.c.l.b16 %v8004
    %v8699 = vunpack.c.h.b16 %v8004
    %v8700 = vunpack.c.l.b16 %v8005
    %v8701 = vunpack.c.h.b16 %v8005
    %v8702 = vunpack.c.l.b16 %v8006
    %v8703 = vunpack.c.h.b16 %v8006
    %v8704 = vunpack.c.l.b16 %v8007
    %v8705 = vunpack.c.h.b16 %v8007
    %v8706 = vunpack.c.l.b16 %v8008
    %v8707 = vunpack.c.h.b16 %v8008
    %v8708 = vunpack.c.l.b16 %v8009
    %v8709 = vunpack.c.h.b16 %v8009
    %v8710 = vunpack.c.l.b16 %v8010
    %v8711 = vunpack.c.h.b16 %v8010
    %v8712 = vunpack.c.l.b16 %v8011
    %v8713 = vunpack.c.h.b16 %v8011
    %v8714 = vunpack.c.l.b16 %v8012
    %v8715 = vunpack.c.h.b16 %v8012
    %v8716 = vunpack.c.l.b16 %v8013
    %v8717 = vunpack.c.h.b16 %v8013
    %v8718 = vunpack.c.l.b16 %v8014
    %v8719 = vunpack.c.h.b16 %v8014
    %v8720 = vunpack.c.l.b16 %v8015
    %v8721 = vunpack.c.h.b16 %v8015
    %v8722 = vunpack.c.l.b16 %v8016
    %v8723 = vunpack.c.h.b16 %v8016
    %v8724 = vunpack.c.l.b16 %v8017
    %v8725 = vunpack.c.h.b16 %v8017
    %v8726 = vunpack.c.l.b16 %v8018
    %v8727 = vunpack.c.h.b16 %v8018
    %v8728 = vunpack.c.l.b16 %v8019
    %v8729 = vunpack.c.h.b16 %v8019
    %v8730 = vunpack.c.l.b16 %v8020
    %v8731 = vunpack.c.h.b16 %v8020
    %v8732 = vunpack.c.l.b16 %v8021
    %v8733 = vunpack.c.h.b16 %v8021
    %v8734 = vunpack.c.l.b16 %v8022
    %v8735 = vunpack.c.h.b16 %v8022
    %v8736 = vunpack.c.l.b16 %v8023
    %v8737 = vunpack.c.h.b16 %v8023
    %v8738 = vunpack.c.l.b16 %v8024
    %v8739 = vunpack.c.h.b16 %v8024
    %v8740 = vunpack.c.l.b16 %v8025
    %v8741 = vunpack.c.h.b16 %v8025
    %v8742 = vunpack.c.l.b16 %v8026
    %v8743 = vunpack.c.h.b16 %v8026
    %v8744 = vunpack.c.l.b16 %v8027
    %v8745 = vunpack.c.h.b16 %v8027
    %v8746 = vunpack.c.l.b16 %v8028
    %v8747 = vunpack.c.h.b16 %v8028
    %v8748 = vunpack.c.l.b16 %v8029
    %v8749 = vunpack.c.h.b16 %v8029
    %v8750 = vunpack.c.l.b16 %v8030
    %v8751 = vunpack.c.h.b16 %v8030
    %v8752 = vunpack.c.l.b16 %v8031
    %v8753 = vunpack.c.h.b16 %v8031
    %v8754 = vunpack.c.l.b16 %v8032
    %v8755 = vunpack.c.h.b16 %v8032
    %v8756 = vunpack.c.l.b16 %v8033
    %v8757 = vunpack.c.h.b16 %v8033
    %v8758 = vunpack.c.l.b16 %v8034
    %v8759 = vunpack.c.h.b16 %v8034
    %v8760 = vunpack.c.l.b16 %v8035
    %v8761 = vunpack.c.h.b16 %v8035
    %v8762 = vunpack.c.l.b16 %v8036
    %v8763 = vunpack.c.h.b16 %v8036
    %v8764 = vunpack.c.l.b16 %v8037
    %v8765 = vunpack.c.h.b16 %v8037
    %v8766 = vunpack.c.l.b16 %v8038
    %v8767 = vunpack.c.h.b16 %v8038
    %v8768 = vunpack.c.l.b16 %v8039
    %v8769 = vunpack.c.h.b16 %v8039
    %v8770 = vunpack.c.l.b16 %v8040
    %v8771 = vunpack.c.h.b16 %v8040
    %v8772 = vunpack.c.l.b16 %v8041
    %v8773 = vunpack.c.h.b16 %v8041
    %v8774 = vunpack.c.l.b16 %v8042
    %v8775 = vunpack.c.h.b16 %v8042
    %v8776 = vunpack.c.l.b16 %v8043
    %v8777 = vunpack.c.h.b16 %v8043
    %v8778 = vunpack.c.l.b16 %v8044
    %v8779 = vunpack.c.h.b16 %v8044
    %v8780 = vunpack.c.l.b16 %v8045
    %v8781 = vunpack.c.h.b16 %v8045
    %v8782 = vunpack.c.l.b16 %v8046
    %v8783 = vunpack.c.h.b16 %v8046
    %v8784 = vunpack.c.l.b16 %v8047
    %v8785 = vunpack.c.h.b16 %v8047
    %v8786 = vunpack.c.l.b16 %v8048
    %v8787 = vunpack.c.h.b16 %v8048
    %v8788 = vunpack.c.l.b16 %v8049
    %v8789 = vunpack.c.h.b16 %v8049
    %v8790 = vunpack.c.l.b16 %v8050
    %v8791 = vunpack.c.h.b16 %v8050
    %v8792 = vunpack.c.l.b16 %v8051
    %v8793 = vunpack.c.h.b16 %v8051
    %v8794 = vunpack.c.l.b16 %v8052
    %v8795 = vunpack.c.h.b16 %v8052
    %v8796 = vunpack.c.l.b16 %v8053
    %v8797 = vunpack.c.h.b16 %v8053
    %v8798 = vunpack.c.l.b16 %v8054
    %v8799 = vunpack.c.h.b16 %v8054
    %v8800 = vunpack.c.l.b16 %v8055
    %v8801 = vunpack.c.h.b16 %v8055
    %v8802 = vunpack.c.l.b16 %v8056
    %v8803 = vunpack.c.h.b16 %v8056
    %v8804 = vunpack.c.l.b16 %v8057
    %v8805 = vunpack.c.h.b16 %v8057
    %v8806 = vunpack.c.l.b16 %v8058
    %v8807 = vunpack.c.h.b16 %v8058
    %v8808 = vunpack.c.l.b16 %v8059
    %v8809 = vunpack.c.h.b16 %v8059
    %v8810 = vunpack.c.l.b16 %v8060
    %v8811 = vunpack.c.h.b16 %v8060
    %v8812 = vunpack.c.l.b16 %v8061
    %v8813 = vunpack.c.h.b16 %v8061
    %v8814 = vunpack.c.l.b16 %v8062
    %v8815 = vunpack.c.h.b16 %v8062
    %v8816 = vunpack.c.l.b16 %v8063
    %v8817 = vunpack.c.h.b16 %v8063
    %v8818 = vunpack.c.l.b16 %v8064
    %v8819 = vunpack.c.h.b16 %v8064
    %v8820 = vunpack.c.l.b16 %v8065
    %v8821 = vunpack.c.h.b16 %v8065
    %v8822 = vunpack.c.l.b16 %v8066
    %v8823 = vunpack.c.h.b16 %v8066
    %v8824 = vunpack.c.l.b16 %v8067
    %v8825 = vunpack.c.h.b16 %v8067
    %v8826 = vunpack.c.l.b16 %v8068
    %v8827 = vunpack.c.h.b16 %v8068
    %v8828 = vunpack.c.l.b16 %v8069
    %v8829 = vunpack.c.h.b16 %v8069
    %v8830 = vunpack.c.l.b16 %v8070
    %v8831 = vunpack.c.h.b16 %v8070
    %v8832 = vunpack.c.l.b16 %v8071
    %v8833 = vunpack.c.h.b16 %v8071
    %v8834 = vunpack.c.l.b16 %v8072
    %v8835 = vunpack.c.h.b16 %v8072
    %v8836 = vunpack.c.l.b16 %v8073
    %v8837 = vunpack.c.h.b16 %v8073
    %v8838 = vunpack.c.l.b16 %v8074
    %v8839 = vunpack.c.h.b16 %v8074
    %v8840 = vunpack.c.l.b16 %v8075
    %v8841 = vunpack.c.h.b16 %v8075
    %v8842 = vunpack.c.l.b16 %v8076
    %v8843 = vunpack.c.h.b16 %v8076
    %v8844 = vunpack.c.l.b16 %v8077
    %v8845 = vunpack.c.h.b16 %v8077
    %v8846 = vunpack.c.l.b16 %v8078
    %v8847 = vunpack.c.h.b16 %v8078
    %v8848 = vunpack.c.l.b16 %v8079
    %v8849 = vunpack.c.h.b16 %v8079
    %v8850 = vunpack.c.l.b16 %v8080
    %v8851 = vunpack.c.h.b16 %v8080
    %v8852 = vunpack.c.l.b16 %v8081
    %v8853 = vunpack.c.h.b16 %v8081
    %v8854 = vunpack.c.l.b16 %v8082
    %v8855 = vunpack.c.h.b16 %v8082
    %v8856 = vunpack.c.l.b16 %v8083
    %v8857 = vunpack.c.h.b16 %v8083
    %v8858 = vunpack.c.l.b16 %v8084
    %v8859 = vunpack.c.h.b16 %v8084
    %v8860 = vunpack.c.l.b16 %v8085
    %v8861 = vunpack.c.h.b16 %v8085
    %v8862 = vunpack.c.l.b16 %v8086
    %v8863 = vunpack.c.h.b16 %v8086
    %v8864 = vunpack.c.l.b16 %v8087
    %v8865 = vunpack.c.h.b16 %v8087
    %v8866 = vunpack.c.l.b16 %v8088
    %v8867 = vunpack.c.h.b16 %v8088
    %v8868 = vunpack.c.l.b16 %v8089
    %v8869 = vunpack.c.h.b16 %v8089
    %v8870 = vpack.c.b16 %v8360, %v8358
    %v8871 = vpack.c.b16 %v8361, %v8359
    %v8872 = vpack.c.b16 %v8364, %v8362
    %v8873 = vpack.c.b16 %v8365, %v8363
    %v8874 = vpack.c.b16 %v8368, %v8366
    %v8875 = vpack.c.b16 %v8369, %v8367
    %v8876 = vpack.c.b16 %v8372, %v8370
    %v8877 = vpack.c.b16 %v8373, %v8371
    %v8878 = vpack.c.b16 %v8376, %v8374
    %v8879 = vpack.c.b16 %v8377, %v8375
    %v8880 = vpack.c.b16 %v8380, %v8378
    %v8881 = vpack.c.b16 %v8381, %v8379
    %v8882 = vpack.c.b16 %v8384, %v8382
    %v8883 = vpack.c.b16 %v8385, %v8383
    %v8884 = vpack.c.b16 %v8388, %v8386
    %v8885 = vpack.c.b16 %v8389, %v8387
    %v8886 = vpack.c.b16 %v8392, %v8390
    %v8887 = vpack.c.b16 %v8393, %v8391
    %v8888 = vpack.c.b16 %v8396, %v8394
    %v8889 = vpack.c.b16 %v8397, %v8395
    %v8890 = vpack.c.b16 %v8400, %v8398
    %v8891 = vpack.c.b16 %v8401, %v8399
    %v8892 = vpack.c.b16 %v8404, %v8402
    %v8893 = vpack.c.b16 %v8405, %v8403
    %v8894 = vpack.c.b16 %v8408, %v8406
    %v8895 = vpack.c.b16 %v8409, %v8407
    %v8896 = vpack.c.b16 %v8412, %v8410
    %v8897 = vpack.c.b16 %v8413, %v8411
    %v8898 = vpack.c.b16 %v8416, %v8414
    %v8899 = vpack.c.b16 %v8417, %v8415
    %v8900 = vpack.c.b16 %v8420, %v8418
    %v8901 = vpack.c.b16 %v8421, %v8419
    %v8902 = vpack.c.b16 %v8424, %v8422
    %v8903 = vpack.c.b16 %v8425, %v8423
    %v8904 = vpack.c.b16 %v8428, %v8426
    %v8905 = vpack.c.b16 %v8429, %v8427
    %v8906 = vpack.c.b16 %v8432, %v8430
    %v8907 = vpack.c.b16 %v8433, %v8431
    %v8908 = vpack.c.b16 %v8436, %v8434
    %v8909 = vpack.c.b16 %v8437, %v8435
    %v8910 = vpack.c.b16 %v8440, %v8438
    %v8911 = vpack.c.b16 %v8441, %v8439
    %v8912 = vpack.c.b16 %v8444, %v8442
    %v8913 = vpack.c.b16 %v8445, %v8443
    %v8914 = vpack.c.b16 %v8448, %v8446
    %v8915 = vpack.c.b16 %v8449, %v8447
    %v8916 = vpack.c.b16 %v8452, %v8450
    %v8917 = vpack.c.b16 %v8453, %v8451
    %v8918 = vpack.c.b16 %v8456, %v8454
    %v8919 = vpack.c.b16 %v8457, %v8455
    %v8920 = vpack.c.b16 %v8460, %v8458
    %v8921 = vpack.c.b16 %v8461, %v8459
    %v8922 = vpack.c.b16 %v8464, %v8462
    %v8923 = vpack.c.b16 %v8465, %v8463
    %v8924 = vpack.c.b16 %v8468, %v8466
    %v8925 = vpack.c.b16 %v8469, %v8467
    %v8926 = vpack.c.b16 %v8472, %v8470
    %v8927 = vpack.c.b16 %v8473, %v8471
    %v8928 = vpack.c.b16 %v8476, %v8474
    %v8929 = vpack.c.b16 %v8477, %v8475
    %v8930 = vpack.c.b16 %v8480, %v8478
    %v8931 = vpack.c.b16 %v8481, %v8479
    %v8932 = vpack.c.b16 %v8484, %v8482
    %v8933 = vpack.c.b16 %v8485, %v8483
    %v8934 = vpack.c.b16 %v8488, %v8486
    %v8935 = vpack.c.b16 %v8489, %v8487
    %v8936 = vpack.c.b16 %v8492, %v8490
    %v8937 = vpack.c.b16 %v8493, %v8491
    %v8938 = vpack.c.b16 %v8496, %v8494
    %v8939 = vpack.c.b16 %v8497, %v8495
    %v8940 = vpack.c.b16 %v8500, %v8498
    %v8941 = vpack.c.b16 %v8501, %v8499
    %v8942 = vpack.c.b16 %v8504, %v8502
    %v8943 = vpack.c.b16 %v8505, %v8503
    %v8944 = vpack.c.b16 %v8508, %v8506
    %v8945 = vpack.c.b16 %v8509, %v8507
    %v8946 = vpack.c.b16 %v8512, %v8510
    %v8947 = vpack.c.b16 %v8513, %v8511
    %v8948 = vpack.c.b16 %v8516, %v8514
    %v8949 = vpack.c.b16 %v8517, %v8515
    %v8950 = vpack.c.b16 %v8520, %v8518
    %v8951 = vpack.c.b16 %v8521, %v8519
    %v8952 = vpack.c.b16 %v8524, %v8522
    %v8953 = vpack.c.b16 %v8525, %v8523
    %v8954 = vpack.c.b16 %v8528, %v8526
    %v8955 = vpack.c.b16 %v8529, %v8527
    %v8956 = vpack.c.b16 %v8532, %v8530
    %v8957 = vpack.c.b16 %v8533, %v8531
    %v8958 = vpack.c.b16 %v8536, %v8534
    %v8959 = vpack.c.b16 %v8537, %v8535
    %v8960 = vpack.c.b16 %v8540, %v8538
    %v8961 = vpack.c.b16 %v8541, %v8539
    %v8962 = vpack.c.b16 %v8544, %v8542
    %v8963 = vpack.c.b16 %v8545, %v8543
    %v8964 = vpack.c.b16 %v8548, %v8546
    %v8965 = vpack.c.b16 %v8549, %v8547
    %v8966 = vpack.c.b16 %v8552, %v8550
    %v8967 = vpack.c.b16 %v8553, %v8551
    %v8968 = vpack.c.b16 %v8556, %v8554
    %v8969 = vpack.c.b16 %v8557, %v8555
    %v8970 = vpack.c.b16 %v8560, %v8558
    %v8971 = vpack.c.b16 %v8561, %v8559
    %v8972 = vpack.c.b16 %v8564, %v8562
    %v8973 = vpack.c.b16 %v8565, %v8563
    %v8974 = vpack.c.b16 %v8568, %v8566
    %v8975 = vpack.c.b16 %v8569, %v8567
    %v8976 = vpack.c.b16 %v8572, %v8570
    %v8977 = vpack.c.b16 %v8573, %v8571
    %v8978 = vpack.c.b16 %v8576, %v8574
    %v8979 = vpack.c.b16 %v8577, %v8575
    %v8980 = vpack.c.b16 %v8580, %v8578
    %v8981 = vpack.c.b16 %v8581, %v8579
    %v8982 = vpack.c.b16 %v8584, %v8582
    %v8983 = vpack.c.b16 %v8585, %v8583
    %v8984 = vpack.c.b16 %v8588, %v8586
    %v8985 = vpack.c.b16 %v8589, %v8587
    %v8986 = vpack.c.b16 %v8592, %v8590
    %v8987 = vpack.c.b16 %v8593, %v8591
    %v8988 = vpack.c.b16 %v8596, %v8594
    %v8989 = vpack.c.b16 %v8597, %v8595
    %v8990 = vpack.c.b16 %v8600, %v8598
    %v8991 = vpack.c.b16 %v8601, %v8599
    %v8992 = vpack.c.b16 %v8604, %v8602
    %v8993 = vpack.c.b16 %v8605, %v8603
    %v8994 = vpack.c.b16 %v8608, %v8606
    %v8995 = vpack.c.b16 %v8609, %v8607
    %v8996 = vpack.c.b16 %v8612, %v8610
    %v8997 = vpack.c.b16 %v8613, %v8611
    %v8998 = vpack.c.b16 %v8616, %v8614
    %v8999 = vpack.c.b16 %v8617, %v8615
    %v9000 = vpack.c.b16 %v8620, %v8618
    %v9001 = vpack.c.b16 %v8621, %v8619
    %v9002 = vpack.c.b16 %v8624, %v8622
    %v9003 = vpack.c.b16 %v8625, %v8623
    %v9004 = vpack.c.b16 %v8628, %v8626
    %v9005 = vpack.c.b16 %v8629, %v8627
    %v9006 = vpack.c.b16 %v8632, %v8630
    %v9007 = vpack.c.b16 %v8633, %v8631
    %v9008 = vpack.c.b16 %v8636, %v8634
    %v9009 = vpack.c.b16 %v8637, %v8635
    %v9010 = vpack.c.b16 %v8640, %v8638
    %v9011 = vpack.c.b16 %v8641, %v8639
    %v9012 = vpack.c.b16 %v8644, %v8642
    %v9013 = vpack.c.b16 %v8645, %v8643
    %v9014 = vpack.c.b16 %v8648, %v8646
    %v9015 = vpack.c.b16 %v8649, %v8647
    %v9016 = vpack.c.b16 %v8652, %v8650
    %v9017 = vpack.c.b16 %v8653, %v8651
    %v9018 = vpack.c.b16 %v8656, %v8654
    %v9019 = vpack.c.b16 %v8657, %v8655
    %v9020 = vpack.c.b16 %v8660, %v8658
    %v9021 = vpack.c.b16 %v8661, %v8659
    %v9022 = vpack.c.b16 %v8664, %v8662
    %v9023 = vpack.c.b16 %v8665, %v8663
    %v9024 = vpack.c.b16 %v8668, %v8666
    %v9025 = vpack.c.b16 %v8669, %v8667
    %v9026 = vpack.c.b16 %v8672, %v8670
    %v9027 = vpack.c.b16 %v8673, %v8671
    %v9028 = vpack.c.b16 %v8676, %v8674
    %v9029 = vpack.c.b16 %v8677, %v8675
    %v9030 = vpack.c.b16 %v8680, %v8678
    %v9031 = vpack.c.b16 %v8681, %v8679
    %v9032 = vpack.c.b16 %v8684, %v8682
    %v9033 = vpack.c.b16 %v8685, %v8683
    %v9034 = vpack.c.b16 %v8688, %v8686
    %v9035 = vpack.c.b16 %v8689, %v8687
    %v9036 = vpack.c.b16 %v8692, %v8690
    %v9037 = vpack.c.b16 %v8693, %v8691
    %v9038 = vpack.c.b16 %v8696, %v8694
    %v9039 = vpack.c.b16 %v8697, %v8695
    %v9040 = vpack.c.b16 %v8700, %v8698
    %v9041 = vpack.c.b16 %v8701, %v8699
    %v9042 = vpack.c.b16 %v8704, %v8702
    %v9043 = vpack.c.b16 %v8705, %v8703
    %v9044 = vpack.c.b16 %v8708, %v8706
    %v9045 = vpack.c.b16 %v8709, %v8707
    %v9046 = vpack.c.b16 %v8712, %v8710
    %v9047 = vpack.c.b16 %v8713, %v8711
    %v9048 = vpack.c.b16 %v8716, %v8714
    %v9049 = vpack.c.b16 %v8717, %v8715
    %v9050 = vpack.c.b16 %v8720, %v8718
    %v9051 = vpack.c.b16 %v8721, %v8719
    %v9052 = vpack.c.b16 %v8724, %v8722
    %v9053 = vpack.c.b16 %v8725, %v8723
    %v9054 = vpack.c.b16 %v8728, %v8726
    %v9055 = vpack.c.b16 %v8729, %v8727
    %v9056 = vpack.c.b16 %v8732, %v8730
    %v9057 = vpack.c.b16 %v8733, %v8731
    %v9058 = vpack.c.b16 %v8736, %v8734
    %v9059 = vpack.c.b16 %v8737, %v8735
    %v9060 = vpack.c.b16 %v8740, %v8738
    %v9061 = vpack.c.b16 %v8741, %v8739
    %v9062 = vpack.c.b16 %v8744, %v8742
    %v9063 = vpack.c.b16 %v8745, %v8743
    %v9064 = vpack.c.b16 %v8748, %v8746
    %v9065 = vpack.c.b16 %v8749, %v8747
    %v9066 = vpack.c.b16 %v8752, %v8750
    %v9067 = vpack.c.b16 %v8753, %v8751
    %v9068 = vpack.c.b16 %v8756, %v8754
    %v9069 = vpack.c.b16 %v8757, %v8755
    %v9070 = vpack.c.b16 %v8760, %v8758
    %v9071 = vpack.c.b16 %v8761, %v8759
    %v9072 = vpack.c.b16 %v8764, %v8762
    %v9073 = vpack.c.b16 %v8765, %v8763
    %v9074 = vpack.c.b16 %v8768, %v8766
    %v9075 = vpack.c.b16 %v8769, %v8767
    %v9076 = vpack.c.b16 %v8772, %v8770
    %v9077 = vpack.c.b16 %v8773, %v8771
    %v9078 = vpack.c.b16 %v8776, %v8774
    %v9079 = vpack.c.b16 %v8777, %v8775
    %v9080 = vpack.c.b16 %v8780, %v8778
    %v9081 = vpack.c.b16 %v8781, %v8779
    %v9082 = vpack.c.b16 %v8784, %v8782
    %v9083 = vpack.c.b16 %v8785, %v8783
    %v9084 = vpack.c.b16 %v8788, %v8786
    %v9085 = vpack.c.b16 %v8789, %v8787
    %v9086 = vpack.c.b16 %v8792, %v8790
    %v9087 = vpack.c.b16 %v8793, %v8791
    %v9088 = vpack.c.b16 %v8796, %v8794
    %v9089 = vpack.c.b16 %v8797, %v8795
    %v9090 = vpack.c.b16 %v8800, %v8798
    %v9091 = vpack.c.b16 %v8801, %v8799
    %v9092 = vpack.c.b16 %v8804, %v8802
    %v9093 = vpack.c.b16 %v8805, %v8803
    %v9094 = vpack.c.b16 %v8808, %v8806
    %v9095 = vpack.c.b16 %v8809, %v8807
    %v9096 = vpack.c.b16 %v8812, %v8810
    %v9097 = vpack.c.b16 %v8813, %v8811
    %v9098 = vpack.c.b16 %v8816, %v8814
    %v9099 = vpack.c.b16 %v8817, %v8815
    %v9100 = vpack.c.b16 %v8820, %v8818
    %v9101 = vpack.c.b16 %v8821, %v8819
    %v9102 = vpack.c.b16 %v8824, %v8822
    %v9103 = vpack.c.b16 %v8825, %v8823
    %v9104 = vpack.c.b16 %v8828, %v8826
    %v9105 = vpack.c.b16 %v8829, %v8827
    %v9106 = vpack.c.b16 %v8832, %v8830
    %v9107 = vpack.c.b16 %v8833, %v8831
    %v9108 = vpack.c.b16 %v8836, %v8834
    %v9109 = vpack.c.b16 %v8837, %v8835
    %v9110 = vpack.c.b16 %v8840, %v8838
    %v9111 = vpack.c.b16 %v8841, %v8839
    %v9112 = vpack.c.b16 %v8844, %v8842
    %v9113 = vpack.c.b16 %v8845, %v8843
    %v9114 = vpack.c.b16 %v8848, %v8846
    %v9115 = vpack.c.b16 %v8849, %v8847
    %v9116 = vpack.c.b16 %v8852, %v8850
    %v9117 = vpack.c.b16 %v8853, %v8851
    %v9118 = vpack.c.b16 %v8856, %v8854
    %v9119 = vpack.c.b16 %v8857, %v8855
    %v9120 = vpack.c.b16 %v8860, %v8858
    %v9121 = vpack.c.b16 %v8861, %v8859
    %v9122 = vpack.c.b16 %v8864, %v8862
    %v9123 = vpack.c.b16 %v8865, %v8863
    %v9124 = vpack.c.b16 %v8868, %v8866
    %v9125 = vpack.c.b16 %v8869, %v8867
    %9382 = vmatprep.subr.bf16.mxu0 %v8871
    %9383 = vmatpush1.bf16.msra.mxu0 %v8870
    %9384 = vmatprep.subr.bf16.mxu0 %v8873
    %9385 = vmatpush1.bf16.msra.mxu0 %v8872
    %9386 = vmatprep.subr.bf16.mxu0 %v8875
    %9387 = vmatpush1.bf16.msra.mxu0 %v8874
    %9388 = vmatprep.subr.bf16.mxu0 %v8877
    %9389 = vmatpush1.bf16.msra.mxu0 %v8876
    %9390 = vmatprep.subr.bf16.mxu0 %v8879
    %9391 = vmatpush1.bf16.msra.mxu0 %v8878
    %9392 = vmatprep.subr.bf16.mxu0 %v8881
    %9393 = vmatpush1.bf16.msra.mxu0 %v8880
    %9394 = vmatprep.subr.bf16.mxu0 %v8883
    %9395 = vmatpush1.bf16.msra.mxu0 %v8882
    %9396 = vmatprep.subr.bf16.mxu0 %v8885
    %9397 = vmatpush1.bf16.msra.mxu0 %v8884
    %9398 = vmatprep.subr.bf16.mxu0 %v8887
    %9399 = vmatpush1.bf16.msra.mxu0 %v8886
    %9400 = vmatprep.subr.bf16.mxu0 %v8889
    %9401 = vmatpush1.bf16.msra.mxu0 %v8888
    %9402 = vmatprep.subr.bf16.mxu0 %v8891
    %9403 = vmatpush1.bf16.msra.mxu0 %v8890
    %9404 = vmatprep.subr.bf16.mxu0 %v8893
    %9405 = vmatpush1.bf16.msra.mxu0 %v8892
    %9406 = vmatprep.subr.bf16.mxu0 %v8895
    %9407 = vmatpush1.bf16.msra.mxu0 %v8894
    %9408 = vmatprep.subr.bf16.mxu0 %v8897
    %9409 = vmatpush1.bf16.msra.mxu0 %v8896
    %9410 = vmatprep.subr.bf16.mxu0 %v8899
    %9411 = vmatpush1.bf16.msra.mxu0 %v8898
    %9412 = vmatprep.subr.bf16.mxu0 %v8901
    %9413 = vmatpush1.bf16.msra.mxu0 %v8900
    %9414 = vmatprep.mubr.bf16.mxu0 %v7819
    %9415 = vmatmul.mubr.bf16.gmra.mrb[0].mxu0 %v7818
    %v9416 = vpop.f32.mrb[0].mxu0
    %v9417 = vadd.f32 %v8095, %v9416
    %v9418 = vpop.f32.mrb[0].mxu0
    %v9419 = vadd.f32 %v8099, %v9418
    %v9420 = vpop.f32.mrb[0].mxu0
    %v9421 = vpop.f32.mrb[0].mxu0
    %9422 = vdwg.mxu0
    %9423 = vmatprep.subr.bf16.mxu0 %v8903
    %9424 = vmatpush1.bf16.msra.mxu0 %v8902
    %9425 = vmatprep.subr.bf16.mxu0 %v8905
    %9426 = vmatpush1.bf16.msra.mxu0 %v8904
    %9427 = vmatprep.subr.bf16.mxu0 %v8907
    %9428 = vmatpush1.bf16.msra.mxu0 %v8906
    %9429 = vmatprep.subr.bf16.mxu0 %v8909
    %9430 = vmatpush1.bf16.msra.mxu0 %v8908
    %9431 = vmatprep.subr.bf16.mxu0 %v8911
    %9432 = vmatpush1.bf16.msra.mxu0 %v8910
    %9433 = vmatprep.subr.bf16.mxu0 %v8913
    %9434 = vmatpush1.bf16.msra.mxu0 %v8912
    %9435 = vmatprep.subr.bf16.mxu0 %v8915
    %9436 = vmatpush1.bf16.msra.mxu0 %v8914
    %9437 = vmatprep.subr.bf16.mxu0 %v8917
    %9438 = vmatpush1.bf16.msra.mxu0 %v8916
    %9439 = vmatprep.subr.bf16.mxu0 %v8919
    %9440 = vmatpush1.bf16.msra.mxu0 %v8918
    %9441 = vmatprep.subr.bf16.mxu0 %v8921
    %9442 = vmatpush1.bf16.msra.mxu0 %v8920
    %9443 = vmatprep.subr.bf16.mxu0 %v8923
    %9444 = vmatpush1.bf16.msra.mxu0 %v8922
    %9445 = vmatprep.subr.bf16.mxu0 %v8925
    %9446 = vmatpush1.bf16.msra.mxu0 %v8924
    %9447 = vmatprep.subr.bf16.mxu0 %v8927
    %9448 = vmatpush1.bf16.msra.mxu0 %v8926
    %9449 = vmatprep.subr.bf16.mxu0 %v8929
    %9450 = vmatpush1.bf16.msra.mxu0 %v8928
    %9451 = vmatprep.subr.bf16.mxu0 %v8931
    %9452 = vmatpush1.bf16.msra.mxu0 %v8930
    %9453 = vmatprep.subr.bf16.mxu0 %v8933
    %9454 = vmatpush1.bf16.msra.mxu0 %v8932
    %9455 = vmatprep.mubr.bf16.mxu0 %v7821
    %9456 = vmatmul.mubr.bf16.gmra.mrb[0].mxu0 %v7820
    %v9457 = vpop.f32.mrb[0].mxu0
    %v9458 = vadd.f32 %v9417, %v9457
    %v9459 = vpop.f32.mrb[0].mxu0
    %v9460 = vadd.f32 %v9419, %v9459
    %v9461 = vpop.f32.mrb[0].mxu0
    %v9462 = vpop.f32.mrb[0].mxu0
    %9463 = vdwg.mxu0
    %9464 = vmatprep.subr.bf16.mxu0 %v8935
    %9465 = vmatpush1.bf16.msra.mxu0 %v8934
    %9466 = vmatprep.subr.bf16.mxu0 %v8937
    %9467 = vmatpush1.bf16.msra.mxu0 %v8936
    %9468 = vmatprep.subr.bf16.mxu0 %v8939
    %9469 = vmatpush1.bf16.msra.mxu0 %v8938
    %9470 = vmatprep.subr.bf16.mxu0 %v8941
    %9471 = vmatpush1.bf16.msra.mxu0 %v8940
    %9472 = vmatprep.subr.bf16.mxu0 %v8943
    %9473 = vmatpush1.bf16.msra.mxu0 %v8942
    %9474 = vmatprep.subr.bf16.mxu0 %v8945
    %9475 = vmatpush1.bf16.msra.mxu0 %v8944
    %9476 = vmatprep.subr.bf16.mxu0 %v8947
    %9477 = vmatpush1.bf16.msra.mxu0 %v8946
    %9478 = vmatprep.subr.bf16.mxu0 %v8949
    %9479 = vmatpush1.bf16.msra.mxu0 %v8948
    %9480 = vmatprep.subr.bf16.mxu0 %v8951
    %9481 = vmatpush1.bf16.msra.mxu0 %v8950
    %9482 = vmatprep.subr.bf16.mxu0 %v8953
    %9483 = vmatpush1.bf16.msra.mxu0 %v8952
    %9484 = vmatprep.subr.bf16.mxu0 %v8955
    %9485 = vmatpush1.bf16.msra.mxu0 %v8954
    %9486 = vmatprep.subr.bf16.mxu0 %v8957
    %9487 = vmatpush1.bf16.msra.mxu0 %v8956
    %9488 = vmatprep.subr.bf16.mxu0 %v8959
    %9489 = vmatpush1.bf16.msra.mxu0 %v8958
    %9490 = vmatprep.subr.bf16.mxu0 %v8961
    %9491 = vmatpush1.bf16.msra.mxu0 %v8960
    %9492 = vmatprep.subr.bf16.mxu0 %v8963
    %9493 = vmatpush1.bf16.msra.mxu0 %v8962
    %9494 = vmatprep.subr.bf16.mxu0 %v8965
    %9495 = vmatpush1.bf16.msra.mxu0 %v8964
    %9496 = vmatprep.mubr.bf16.mxu0 %v7823
    %9497 = vmatmul.mubr.bf16.gmra.mrb[0].mxu0 %v7822
    %v9498 = vpop.f32.mrb[0].mxu0
    %v9499 = vadd.f32 %v9458, %v9498
    %v9500 = vpop.f32.mrb[0].mxu0
    %v9501 = vadd.f32 %v9460, %v9500
    %v9502 = vpop.f32.mrb[0].mxu0
    %v9503 = vpop.f32.mrb[0].mxu0
    %9504 = vdwg.mxu0
    %9505 = vmatprep.subr.bf16.mxu0 %v8967
    %9506 = vmatpush1.bf16.msra.mxu0 %v8966
    %9507 = vmatprep.subr.bf16.mxu0 %v8969
    %9508 = vmatpush1.bf16.msra.mxu0 %v8968
    %9509 = vmatprep.subr.bf16.mxu0 %v8971
    %9510 = vmatpush1.bf16.msra.mxu0 %v8970
    %9511 = vmatprep.subr.bf16.mxu0 %v8973
    %9512 = vmatpush1.bf16.msra.mxu0 %v8972
    %9513 = vmatprep.subr.bf16.mxu0 %v8975
    %9514 = vmatpush1.bf16.msra.mxu0 %v8974
    %9515 = vmatprep.subr.bf16.mxu0 %v8977
    %9516 = vmatpush1.bf16.msra.mxu0 %v8976
    %9517 = vmatprep.subr.bf16.mxu0 %v8979
    %9518 = vmatpush1.bf16.msra.mxu0 %v8978
    %9519 = vmatprep.subr.bf16.mxu0 %v8981
    %9520 = vmatpush1.bf16.msra.mxu0 %v8980
    %9521 = vmatprep.subr.bf16.mxu0 %v8983
    %9522 = vmatpush1.bf16.msra.mxu0 %v8982
    %9523 = vmatprep.subr.bf16.mxu0 %v8985
    %9524 = vmatpush1.bf16.msra.mxu0 %v8984
    %9525 = vmatprep.subr.bf16.mxu0 %v8987
    %9526 = vmatpush1.bf16.msra.mxu0 %v8986
    %9527 = vmatprep.subr.bf16.mxu0 %v8989
    %9528 = vmatpush1.bf16.msra.mxu0 %v8988
    %9529 = vmatprep.subr.bf16.mxu0 %v8991
    %9530 = vmatpush1.bf16.msra.mxu0 %v8990
    %9531 = vmatprep.subr.bf16.mxu0 %v8993
    %9532 = vmatpush1.bf16.msra.mxu0 %v8992
    %9533 = vmatprep.subr.bf16.mxu0 %v8995
    %9534 = vmatpush1.bf16.msra.mxu0 %v8994
    %9535 = vmatprep.subr.bf16.mxu0 %v8997
    %9536 = vmatpush1.bf16.msra.mxu0 %v8996
    %9537 = vmatprep.mubr.bf16.mxu0 %v7825
    %9538 = vmatmul.mubr.bf16.gmra.mrb[0].mxu0 %v7824
    %v9539 = vpop.f32.mrb[0].mxu0
    %v9540 = vadd.f32 %v9499, %v9539
    %v9541 = vpop.f32.mrb[0].mxu0
    %v9542 = vadd.f32 %v9501, %v9541
    %v9543 = vpop.f32.mrb[0].mxu0
    %v9544 = vpop.f32.mrb[0].mxu0
    %9545 = vdwg.mxu0
    %9546 = vmatprep.subr.bf16.mxu0 %v8999
    %9547 = vmatpush1.bf16.msra.mxu0 %v8998
    %9548 = vmatprep.subr.bf16.mxu0 %v9001
    %9549 = vmatpush1.bf16.msra.mxu0 %v9000
    %9550 = vmatprep.subr.bf16.mxu0 %v9003
    %9551 = vmatpush1.bf16.msra.mxu0 %v9002
    %9552 = vmatprep.subr.bf16.mxu0 %v9005
    %9553 = vmatpush1.bf16.msra.mxu0 %v9004
    %9554 = vmatprep.subr.bf16.mxu0 %v9007
    %9555 = vmatpush1.bf16.msra.mxu0 %v9006
    %9556 = vmatprep.subr.bf16.mxu0 %v9009
    %9557 = vmatpush1.bf16.msra.mxu0 %v9008
    %9558 = vmatprep.subr.bf16.mxu0 %v9011
    %9559 = vmatpush1.bf16.msra.mxu0 %v9010
    %9560 = vmatprep.subr.bf16.mxu0 %v9013
    %9561 = vmatpush1.bf16.msra.mxu0 %v9012
    %9562 = vmatprep.subr.bf16.mxu0 %v9015
    %9563 = vmatpush1.bf16.msra.mxu0 %v9014
    %9564 = vmatprep.subr.bf16.mxu0 %v9017
    %9565 = vmatpush1.bf16.msra.mxu0 %v9016
    %9566 = vmatprep.subr.bf16.mxu0 %v9019
    %9567 = vmatpush1.bf16.msra.mxu0 %v9018
    %9568 = vmatprep.subr.bf16.mxu0 %v9021
    %9569 = vmatpush1.bf16.msra.mxu0 %v9020
    %9570 = vmatprep.subr.bf16.mxu0 %v9023
    %9571 = vmatpush1.bf16.msra.mxu0 %v9022
    %9572 = vmatprep.subr.bf16.mxu0 %v9025
    %9573 = vmatpush1.bf16.msra.mxu0 %v9024
    %9574 = vmatprep.subr.bf16.mxu0 %v9027
    %9575 = vmatpush1.bf16.msra.mxu0 %v9026
    %9576 = vmatprep.subr.bf16.mxu0 %v9029
    %9577 = vmatpush1.bf16.msra.mxu0 %v9028
    %9578 = vmatprep.mubr.bf16.mxu0 %v7827
    %9579 = vmatmul.mubr.bf16.gmra.mrb[0].mxu0 %v7826
    %v9580 = vpop.f32.mrb[0].mxu0
    %v9581 = vadd.f32 %v9540, %v9580
    %v9582 = vpop.f32.mrb[0].mxu0
    %v9583 = vadd.f32 %v9542, %v9582
    %v9584 = vpop.f32.mrb[0].mxu0
    %v9585 = vpop.f32.mrb[0].mxu0
    %9586 = vdwg.mxu0
    %9587 = vmatprep.subr.bf16.mxu0 %v9031
    %9588 = vmatpush1.bf16.msra.mxu0 %v9030
    %9589 = vmatprep.subr.bf16.mxu0 %v9033
    %9590 = vmatpush1.bf16.msra.mxu0 %v9032
    %9591 = vmatprep.subr.bf16.mxu0 %v9035
    %9592 = vmatpush1.bf16.msra.mxu0 %v9034
    %9593 = vmatprep.subr.bf16.mxu0 %v9037
    %9594 = vmatpush1.bf16.msra.mxu0 %v9036
    %9595 = vmatprep.subr.bf16.mxu0 %v9039
    %9596 = vmatpush1.bf16.msra.mxu0 %v9038
    %9597 = vmatprep.subr.bf16.mxu0 %v9041
    %9598 = vmatpush1.bf16.msra.mxu0 %v9040
    %9599 = vmatprep.subr.bf16.mxu0 %v9043
    %9600 = vmatpush1.bf16.msra.mxu0 %v9042
    %9601 = vmatprep.subr.bf16.mxu0 %v9045
    %9602 = vmatpush1.bf16.msra.mxu0 %v9044
    %9603 = vmatprep.subr.bf16.mxu0 %v9047
    %9604 = vmatpush1.bf16.msra.mxu0 %v9046
    %9605 = vmatprep.subr.bf16.mxu0 %v9049
    %9606 = vmatpush1.bf16.msra.mxu0 %v9048
    %9607 = vmatprep.subr.bf16.mxu0 %v9051
    %9608 = vmatpush1.bf16.msra.mxu0 %v9050
    %9609 = vmatprep.subr.bf16.mxu0 %v9053
    %9610 = vmatpush1.bf16.msra.mxu0 %v9052
    %9611 = vmatprep.subr.bf16.mxu0 %v9055
    %9612 = vmatpush1.bf16.msra.mxu0 %v9054
    %9613 = vmatprep.subr.bf16.mxu0 %v9057
    %9614 = vmatpush1.bf16.msra.mxu0 %v9056
    %9615 = vmatprep.subr.bf16.mxu0 %v9059
    %9616 = vmatpush1.bf16.msra.mxu0 %v9058
    %9617 = vmatprep.subr.bf16.mxu0 %v9061
    %9618 = vmatpush1.bf16.msra.mxu0 %v9060
    %9619 = vmatprep.mubr.bf16.mxu0 %v7829
    %9620 = vmatmul.mubr.bf16.gmra.mrb[0].mxu0 %v7828
    %v9621 = vpop.f32.mrb[0].mxu0
    %v9622 = vadd.f32 %v9581, %v9621
    %v9623 = vpop.f32.mrb[0].mxu0
    %v9624 = vadd.f32 %v9583, %v9623
    %v9625 = vpop.f32.mrb[0].mxu0
    %v9626 = vpop.f32.mrb[0].mxu0
    %9627 = vdwg.mxu0
    %9628 = vmatprep.subr.bf16.mxu0 %v9063
    %9629 = vmatpush1.bf16.msra.mxu0 %v9062
    %9630 = vmatprep.subr.bf16.mxu0 %v9065
    %9631 = vmatpush1.bf16.msra.mxu0 %v9064
    %9632 = vmatprep.subr.bf16.mxu0 %v9067
    %9633 = vmatpush1.bf16.msra.mxu0 %v9066
    %9634 = vmatprep.subr.bf16.mxu0 %v9069
    %9635 = vmatpush1.bf16.msra.mxu0 %v9068
    %9636 = vmatprep.subr.bf16.mxu0 %v9071
    %9637 = vmatpush1.bf16.msra.mxu0 %v9070
    %9638 = vmatprep.subr.bf16.mxu0 %v9073
    %9639 = vmatpush1.bf16.msra.mxu0 %v9072
    %9640 = vmatprep.subr.bf16.mxu0 %v9075
    %9641 = vmatpush1.bf16.msra.mxu0 %v9074
    %9642 = vmatprep.subr.bf16.mxu0 %v9077
    %9643 = vmatpush1.bf16.msra.mxu0 %v9076
    %9644 = vmatprep.subr.bf16.mxu0 %v9079
    %9645 = vmatpush1.bf16.msra.mxu0 %v9078
    %9646 = vmatprep.subr.bf16.mxu0 %v9081
    %9647 = vmatpush1.bf16.msra.mxu0 %v9080
    %9648 = vmatprep.subr.bf16.mxu0 %v9083
    %9649 = vmatpush1.bf16.msra.mxu0 %v9082
    %9650 = vmatprep.subr.bf16.mxu0 %v9085
    %9651 = vmatpush1.bf16.msra.mxu0 %v9084
    %9652 = vmatprep.subr.bf16.mxu0 %v9087
    %9653 = vmatpush1.bf16.msra.mxu0 %v9086
    %9654 = vmatprep.subr.bf16.mxu0 %v9089
    %9655 = vmatpush1.bf16.msra.mxu0 %v9088
    %9656 = vmatprep.subr.bf16.mxu0 %v9091
    %9657 = vmatpush1.bf16.msra.mxu0 %v9090
    %9658 = vmatprep.subr.bf16.mxu0 %v9093
    %9659 = vmatpush1.bf16.msra.mxu0 %v9092
    %9660 = vmatprep.mubr.bf16.mxu0 %v7831
    %9661 = vmatmul.mubr.bf16.gmra.mrb[0].mxu0 %v7830
    %v9662 = vpop.f32.mrb[0].mxu0
    %v9663 = vadd.f32 %v9622, %v9662
    %v9664 = vpop.f32.mrb[0].mxu0
    %v9665 = vadd.f32 %v9624, %v9664
    %v9666 = vpop.f32.mrb[0].mxu0
    %v9667 = vpop.f32.mrb[0].mxu0
    %9668 = vdwg.mxu0
    %9669 = vmatprep.subr.bf16.mxu0 %v9095
    %9670 = vmatpush1.bf16.msra.mxu0 %v9094
    %9671 = vmatprep.subr.bf16.mxu0 %v9097
    %9672 = vmatpush1.bf16.msra.mxu0 %v9096
    %9673 = vmatprep.subr.bf16.mxu0 %v9099
    %9674 = vmatpush1.bf16.msra.mxu0 %v9098
    %9675 = vmatprep.subr.bf16.mxu0 %v9101
    %9676 = vmatpush1.bf16.msra.mxu0 %v9100
    %9677 = vmatprep.subr.bf16.mxu0 %v9103
    %9678 = vmatpush1.bf16.msra.mxu0 %v9102
    %9679 = vmatprep.subr.bf16.mxu0 %v9105
    %9680 = vmatpush1.bf16.msra.mxu0 %v9104
    %9681 = vmatprep.subr.bf16.mxu0 %v9107
    %9682 = vmatpush1.bf16.msra.mxu0 %v9106
    %9683 = vmatprep.subr.bf16.mxu0 %v9109
    %9684 = vmatpush1.bf16.msra.mxu0 %v9108
    %9685 = vmatprep.subr.bf16.mxu0 %v9111
    %9686 = vmatpush1.bf16.msra.mxu0 %v9110
    %9687 = vmatprep.subr.bf16.mxu0 %v9113
    %9688 = vmatpush1.bf16.msra.mxu0 %v9112
    %9689 = vmatprep.subr.bf16.mxu0 %v9115
    %9690 = vmatpush1.bf16.msra.mxu0 %v9114
    %9691 = vmatprep.subr.bf16.mxu0 %v9117
    %9692 = vmatpush1.bf16.msra.mxu0 %v9116
    %9693 = vmatprep.subr.bf16.mxu0 %v9119
    %9694 = vmatpush1.bf16.msra.mxu0 %v9118
    %9695 = vmatprep.subr.bf16.mxu0 %v9121
    %9696 = vmatpush1.bf16.msra.mxu0 %v9120
    %9697 = vmatprep.subr.bf16.mxu0 %v9123
    %9698 = vmatpush1.bf16.msra.mxu0 %v9122
    %9699 = vmatprep.subr.bf16.mxu0 %v9125
    %9700 = vmatpush1.bf16.msra.mxu0 %v9124
    %9701 = vmatprep.mubr.bf16.mxu0 %v7833
    %9702 = vmatmul.mubr.bf16.gmra.mrb[0].mxu0 %v7832
    %v9703 = vpop.f32.mrb[0].mxu0
    %v9704 = vadd.f32 %v9663, %v9703
    %v9705 = vpop.f32.mrb[0].mxu0
    %v9706 = vadd.f32 %v9665, %v9705
    %v9707 = vpop.f32.mrb[0].mxu0
    %v9708 = vpop.f32.mrb[0].mxu0
    %9709 = vdwg.mxu0
    %v9710 = vld [vmem:[%s1] sm:$0xff]
    %v9711 = vld [vmem:[%s1 + $0x8] sm:$0xff]
    %v9712 = vld [vmem:[%s1 + $0x10] sm:$0xff]
    %v9713 = vld [vmem:[%s1 + $0x18] sm:$0xff]
    %v9714 = vld [vmem:[%s1 + $0x20] sm:$0xff]
    %v9715 = vld [vmem:[%s1 + $0x28] sm:$0xff]
    %v9716 = vld [vmem:[%s1 + $0x30] sm:$0xff]
    %v9717 = vld [vmem:[%s1 + $0x38] sm:$0xff]
    %v9718 = vpack.c.bf16 %v9711, %v9710
    %v9719 = vpack.c.bf16 %v9713, %v9712
    %v9720 = vpack.c.bf16 %v9715, %v9714
    %v9721 = vpack.c.bf16 %v9717, %v9716
    %v9722 = vld [vmem:[#allocation9] sm:$0x7]
    %vm9723 = vcmask 39936
    %v9725 = vsel %vm9723, %v9718, 0
    %v9728 = vsel %vm9723, %v9719, 0
    %v9731 = vsel %vm9723, %v9720, 0
    %v9734 = vsel %vm9723, %v9721, 0
    %vm9736 = vcmask 1041408
    %vm9737 = vcmask 1042432
    %v9738 = vsel %vm9736, 4294967295, 65535
    %v9739 = vsel %vm9737, %v9738, 0
    %v9741 = vand.u32 %v9722, %v9739
    %9743 = vmatprep.subr.bf16.mxu0 0
    %9744 = vmatpush1.bf16.msra.mxu0 %v9741
    %9745 = vmatprep.subr.bf16.mxu0 0
    %9746 = vmatpush1.bf16.msra.mxu0 0
    %9747 = vmatprep.subr.bf16.mxu0 0
    %9748 = vmatpush1.bf16.msra.mxu0 0
    %9749 = vmatprep.subr.bf16.mxu0 0
    %9750 = vmatpush1.bf16.msra.mxu0 0
    %9751 = vmatprep.subr.bf16.mxu0 0
    %9752 = vmatpush1.bf16.msra.mxu0 0
    %9753 = vmatprep.subr.bf16.mxu0 0
    %9754 = vmatpush1.bf16.msra.mxu0 0
    %9755 = vmatprep.subr.bf16.mxu0 0
    %9756 = vmatpush1.bf16.msra.mxu0 0
    %9757 = vmatprep.subr.bf16.mxu0 0
    %9758 = vmatpush1.bf16.msra.mxu0 0
    %9759 = vmatprep.subr.bf16.mxu0 0
    %9760 = vmatpush1.bf16.msra.mxu0 0
    %9761 = vmatprep.subr.bf16.mxu0 0
    %9762 = vmatpush1.bf16.msra.mxu0 0
    %9763 = vmatprep.subr.bf16.mxu0 0
    %9764 = vmatpush1.bf16.msra.mxu0 0
    %9765 = vmatprep.subr.bf16.mxu0 0
    %9766 = vmatpush1.bf16.msra.mxu0 0
    %9767 = vmatprep.subr.bf16.mxu0 0
    %9768 = vmatpush1.bf16.msra.mxu0 0
    %9769 = vmatprep.subr.bf16.mxu0 0
    %9770 = vmatpush1.bf16.msra.mxu0 0
    %9771 = vmatprep.subr.bf16.mxu0 0
    %9772 = vmatpush1.bf16.msra.mxu0 0
    %9773 = vmatprep.subr.bf16.mxu0 0
    %9774 = vmatpush1.bf16.msra.mxu0 0
    %9775 = vmatprep.mubr.bf16.mxu0 0
    %9776 = vmatmul.mubr.bf16.gmra.mrb[0].mxu0 %v9725
    %v9777 = vpop.f32.mrb[0].mxu0
    %v9778 = vadd.f32 0.0, %v9777
    %v9779 = vpop.f32.mrb[0].mxu0
    %v9780 = vpop.f32.mrb[0].mxu0
    %v9781 = vadd.f32 0.0, %v9780
    %v9782 = vpop.f32.mrb[0].mxu0
    %9783 = vmatprep.mubr.bf16.mxu0 0
    %9784 = vmatmul.mubr.bf16.gmra.mrb[0].mxu0 %v9728
    %v9785 = vpop.f32.mrb[0].mxu0
    %v9786 = vadd.f32 0.0, %v9785
    %v9787 = vpop.f32.mrb[0].mxu0
    %v9788 = vpop.f32.mrb[0].mxu0
    %v9789 = vadd.f32 0.0, %v9788
    %v9790 = vpop.f32.mrb[0].mxu0
    %9791 = vmatprep.mubr.bf16.mxu0 0
    %9792 = vmatmul.mubr.bf16.gmra.mrb[0].mxu0 %v9731
    %v9793 = vpop.f32.mrb[0].mxu0
    %v9794 = vadd.f32 0.0, %v9793
    %v9795 = vpop.f32.mrb[0].mxu0
    %v9796 = vpop.f32.mrb[0].mxu0
    %v9797 = vadd.f32 0.0, %v9796
    %v9798 = vpop.f32.mrb[0].mxu0
    %9799 = vmatprep.mubr.bf16.mxu0 0
    %9800 = vmatmul.mubr.bf16.gmra.mrb[0].mxu0 %v9734
    %v9801 = vpop.f32.mrb[0].mxu0
    %v9802 = vadd.f32 0.0, %v9801
    %v9803 = vpop.f32.mrb[0].mxu0
    %v9804 = vpop.f32.mrb[0].mxu0
    %v9805 = vadd.f32 0.0, %v9804
    %v9806 = vpop.f32.mrb[0].mxu0
    %9807 = vdwg.mxu0
    %v9808 = vld [vmem:[#allocation10] sm:$0xf]
    %v9809 = vld [vmem:[#allocation10 + $0x4] sm:$0xf]
    %v9810 = vld [vmem:[#allocation10 + $0x8] sm:$0xf]
    %v9811 = vld [vmem:[#allocation10 + $0xc] sm:$0xf]
    %v9812 = vld [vmem:[#allocation12] sm:$0x1]
    %v9817 = vunpack.c.l.b16 %v9808
    %v9818 = vunpack.c.l.b16 %v9809
    %v9819 = vunpack.c.l.b16 %v9810
    %v9820 = vunpack.c.l.b16 %v9811
    %v9821 = vpack.c.b16 %v9818, %v9817
    %v9822 = vpack.c.b16 %v9820, %v9819
    %vm9825 = vcmask 261120
    %v9827 = vsel %vm9825, 0, 0
    %9829 = vmatprep.subr.bf16.mxu0 0
    %9830 = vmatpush1.bf16.msra.mxu0 %v9821
    %9831 = vmatprep.subr.bf16.mxu0 0
    %9832 = vmatpush1.bf16.msra.mxu0 %v9822
    %9833 = vmatprep.subr.bf16.mxu0 0
    %9834 = vmatpush1.bf16.msra.mxu0 0
    %9835 = vmatprep.subr.bf16.mxu0 0
    %9836 = vmatpush1.bf16.msra.mxu0 0
    %9837 = vmatprep.subr.bf16.mxu0 0
    %9838 = vmatpush1.bf16.msra.mxu0 0
    %9839 = vmatprep.subr.bf16.mxu0 0
    %9840 = vmatpush1.bf16.msra.mxu0 0
    %9841 = vmatprep.subr.bf16.mxu0 0
    %9842 = vmatpush1.bf16.msra.mxu0 0
    %9843 = vmatprep.subr.bf16.mxu0 0
    %9844 = vmatpush1.bf16.msra.mxu0 0
    %9845 = vmatprep.subr.bf16.mxu0 0
    %9846 = vmatpush1.bf16.msra.mxu0 0
    %9847 = vmatprep.subr.bf16.mxu0 0
    %9848 = vmatpush1.bf16.msra.mxu0 0
    %9849 = vmatprep.subr.bf16.mxu0 0
    %9850 = vmatpush1.bf16.msra.mxu0 0
    %9851 = vmatprep.subr.bf16.mxu0 0
    %9852 = vmatpush1.bf16.msra.mxu0 0
    %9853 = vmatprep.subr.bf16.mxu0 0
    %9854 = vmatpush1.bf16.msra.mxu0 0
    %9855 = vmatprep.subr.bf16.mxu0 0
    %9856 = vmatpush1.bf16.msra.mxu0 0
    %9857 = vmatprep.subr.bf16.mxu0 0
    %9858 = vmatpush1.bf16.msra.mxu0 0
    %9859 = vmatprep.subr.bf16.mxu0 0
    %9860 = vmatpush1.bf16.msra.mxu0 0
    %9861 = vmatprep.mubr.bf16.mxu0 0
    %9862 = vmatmul.mubr.bf16.gmra.mrb[0].mxu0 %v9827
    %v9863 = vpop.f32.mrb[0].mxu0
    %v9864 = vadd.f32 0.0, %v9863
    %v9865 = vpop.f32.mrb[0].mxu0
    %v9866 = vpop.f32.mrb[0].mxu0
    %v9867 = vpop.f32.mrb[0].mxu0
    %9868 = vdwg.mxu0
    %v9869 = vadd.f32 %v9778, %v9864
    %v9871 = vlaneseq
    %v9872 = vshrl.u32 %v9871, 7
    %v9873 = vsub.s32 0, %v9872
    %v9874 = vrot.slane %v9812, %v9873
    %v9876 = vadd.f32 %v9869, %v9874
    %v9877 = vxor.u32 %v9876, 2147483648
    %v9878 = vmul.f32 %v9877, 1.442695
    %v9879 = vpow.pop %v9878
    %v9880 = vadd.f32 %v9879, 1.0
    %v9881 = vrcp.pop %v9880
    %v9882 = vmul.f32 1.0, %v9881
    %v9883 = vtanh.pop %v9876
    %v9884 = vmul.f32 %v9882, 0.0
    %9886 = vrot.lane.b32.xlu0 %v9883, 64
    %v9887 = vpop.permute.xlu0 %9886
    %v9889 = vmul.f32 %v9882, %v9887
    %9891 = vrot.lane.b32.xlu0 %v9889, 32
    %v9892 = vpop.permute.xlu0 %9891
    %v9894 = vadd.f32 %v9884, %v9892
    %v9895 = vtanh.pop %v9894
    %9897 = vrot.lane.b32.xlu0 %v9895, 64
    %v9898 = vpop.permute.xlu0 %9897
    %v9900 = vmul.f32 %v9882, %v9898
    %v9901 = vpack.c.bf16 %v9900, %v9900
    %9903 = vrot.lane.b32.xlu0 %v9901, 32
    %v9904 = vpop.permute.xlu0 %9903
    %v9906 = vsel %vm9825, %v9904, 0
    %9908 = vmatprep.subr.bf16.mxu0 0
    %9909 = vmatpush1.bf16.msra.mxu0 %v9821
    %9910 = vmatprep.subr.bf16.mxu0 0
    %9911 = vmatpush1.bf16.msra.mxu0 %v9822
    %9912 = vmatprep.subr.bf16.mxu0 0
    %9913 = vmatpush1.bf16.msra.mxu0 0
    %9914 = vmatprep.subr.bf16.mxu0 0
    %9915 = vmatpush1.bf16.msra.mxu0 0
    %9916 = vmatprep.subr.bf16.mxu0 0
    %9917 = vmatpush1.bf16.msra.mxu0 0
    %9918 = vmatprep.subr.bf16.mxu0 0
    %9919 = vmatpush1.bf16.msra.mxu0 0
    %9920 = vmatprep.subr.bf16.mxu0 0
    %9921 = vmatpush1.bf16.msra.mxu0 0
    %9922 = vmatprep.subr.bf16.mxu0 0
    %9923 = vmatpush1.bf16.msra.mxu0 0
    %9924 = vmatprep.subr.bf16.mxu0 0
    %9925 = vmatpush1.bf16.msra.mxu0 0
    %9926 = vmatprep.subr.bf16.mxu0 0
    %9927 = vmatpush1.bf16.msra.mxu0 0
    %9928 = vmatprep.subr.bf16.mxu0 0
    %9929 = vmatpush1.bf16.msra.mxu0 0
    %9930 = vmatprep.subr.bf16.mxu0 0
    %9931 = vmatpush1.bf16.msra.mxu0 0
    %9932 = vmatprep.subr.bf16.mxu0 0
    %9933 = vmatpush1.bf16.msra.mxu0 0
    %9934 = vmatprep.subr.bf16.mxu0 0
    %9935 = vmatpush1.bf16.msra.mxu0 0
    %9936 = vmatprep.subr.bf16.mxu0 0
    %9937 = vmatpush1.bf16.msra.mxu0 0
    %9938 = vmatprep.subr.bf16.mxu0 0
    %9939 = vmatpush1.bf16.msra.mxu0 0
    %9940 = vmatprep.mubr.bf16.mxu0 0
    %9941 = vmatmul.mubr.bf16.gmra.mrb[0].mxu0 %v9906
    %v9942 = vpop.f32.mrb[0].mxu0
    %v9943 = vadd.f32 0.0, %v9942
    %v9944 = vpop.f32.mrb[0].mxu0
    %v9945 = vpop.f32.mrb[0].mxu0
    %v9946 = vpop.f32.mrb[0].mxu0
    %9947 = vdwg.mxu0
    %v9948 = vadd.f32 %v9781, %v9943
    %v9949 = vadd.f32 %v9948, %v9874
    %v9950 = vxor.u32 %v9949, 2147483648
    %v9951 = vmul.f32 %v9950, 1.442695
    %v9952 = vpow.pop %v9951
    %v9953 = vadd.f32 %v9952, 1.0
    %v9954 = vrcp.pop %v9953
    %v9955 = vmul.f32 1.0, %v9954
    %v9956 = vtanh.pop %v9949
    %v9957 = vmul.f32 %v9955, %v9894
    %9959 = vrot.lane.b32.xlu0 %v9956, 64
    %v9960 = vpop.permute.xlu0 %9959
    %v9962 = vmul.f32 %v9955, %v9960
    %9964 = vrot.lane.b32.xlu0 %v9962, 32
    %v9965 = vpop.permute.xlu0 %9964
    %v9967 = vadd.f32 %v9957, %v9965
    %v9968 = vtanh.pop %v9967
    %9970 = vrot.lane.b32.xlu0 %v9968, 64
    %v9971 = vpop.permute.xlu0 %9970
    %v9973 = vmul.f32 %v9955, %v9971
    %v9974 = vpack.c.bf16 %v9973, %v9973
    %9976 = vrot.lane.b32.xlu0 %v9974, 32
    %v9977 = vpop.permute.xlu0 %9976
    %v9979 = vsel %vm9825, %v9977, 0
    %9981 = vmatprep.subr.bf16.mxu0 0
    %9982 = vmatpush1.bf16.msra.mxu0 %v9821
    %9983 = vmatprep.subr.bf16.mxu0 0
    %9984 = vmatpush1.bf16.msra.mxu0 %v9822
    %9985 = vmatprep.subr.bf16.mxu0 0
    %9986 = vmatpush1.bf16.msra.mxu0 0
    %9987 = vmatprep.subr.bf16.mxu0 0
    %9988 = vmatpush1.bf16.msra.mxu0 0
    %9989 = vmatprep.subr.bf16.mxu0 0
    %9990 = vmatpush1.bf16.msra.mxu0 0
    %9991 = vmatprep.subr.bf16.mxu0 0
    %9992 = vmatpush1.bf16.msra.mxu0 0
    %9993 = vmatprep.subr.bf16.mxu0 0
    %9994 = vmatpush1.bf16.msra.mxu0 0
    %9995 = vmatprep.subr.bf16.mxu0 0
    %9996 = vmatpush1.bf16.msra.mxu0 0
    %9997 = vmatprep.subr.bf16.mxu0 0
    %9998 = vmatpush1.bf16.msra.mxu0 0
    %9999 = vmatprep.subr.bf16.mxu0 0
    %10000 = vmatpush1.bf16.msra.mxu0 0
    %10001 = vmatprep.subr.bf16.mxu0 0
    %10002 = vmatpush1.bf16.msra.mxu0 0
    %10003 = vmatprep.subr.bf16.mxu0 0
    %10004 = vmatpush1.bf16.msra.mxu0 0
    %10005 = vmatprep.subr.bf16.mxu0 0
    %10006 = vmatpush1.bf16.msra.mxu0 0
    %10007 = vmatprep.subr.bf16.mxu0 0
    %10008 = vmatpush1.bf16.msra.mxu0 0
    %10009 = vmatprep.subr.bf16.mxu0 0
    %10010 = vmatpush1.bf16.msra.mxu0 0
    %10011 = vmatprep.subr.bf16.mxu0 0
    %10012 = vmatpush1.bf16.msra.mxu0 0
    %10013 = vmatprep.mubr.bf16.mxu0 0
    %10014 = vmatmul.mubr.bf16.gmra.mrb[0].mxu0 %v9979
    %v10015 = vpop.f32.mrb[0].mxu0
    %v10016 = vadd.f32 0.0, %v10015
    %v10017 = vpop.f32.mrb[0].mxu0
    %v10018 = vpop.f32.mrb[0].mxu0
    %v10019 = vpop.f32.mrb[0].mxu0
    %10020 = vdwg.mxu0
    %v10021 = vadd.f32 %v9786, %v10016
    %v10022 = vadd.f32 %v10021, %v9874
    %v10023 = vxor.u32 %v10022, 2147483648
    %v10024 = vmul.f32 %v10023, 1.442695
    %v10025 = vpow.pop %v10024
    %v10026 = vadd.f32 %v10025, 1.0
    %v10027 = vrcp.pop %v10026
    %v10028 = vmul.f32 1.0, %v10027
    %v10029 = vtanh.pop %v10022
    %v10030 = vmul.f32 %v10028, %v9967
    %10032 = vrot.lane.b32.xlu0 %v10029, 64
    %v10033 = vpop.permute.xlu0 %10032
    %v10035 = vmul.f32 %v10028, %v10033
    %10037 = vrot.lane.b32.xlu0 %v10035, 32
    %v10038 = vpop.permute.xlu0 %10037
    %v10040 = vadd.f32 %v10030, %v10038
    %v10041 = vtanh.pop %v10040
    %10043 = vrot.lane.b32.xlu0 %v10041, 64
    %v10044 = vpop.permute.xlu0 %10043
    %v10046 = vmul.f32 %v10028, %v10044
    %v10047 = vpack.c.bf16 %v10046, %v10046
    %10049 = vrot.lane.b32.xlu0 %v10047, 32
    %v10050 = vpop.permute.xlu0 %10049
    %v10052 = vsel %vm9825, %v10050, 0
    %10054 = vmatprep.subr.bf16.mxu0 0
    %10055 = vmatpush1.bf16.msra.mxu0 %v9821
    %10056 = vmatprep.subr.bf16.mxu0 0
    %10057 = vmatpush1.bf16.msra.mxu0 %v9822
    %10058 = vmatprep.subr.bf16.mxu0 0
    %10059 = vmatpush1.bf16.msra.mxu0 0
    %10060 = vmatprep.subr.bf16.mxu0 0
    %10061 = vmatpush1.bf16.msra.mxu0 0
    %10062 = vmatprep.subr.bf16.mxu0 0
    %10063 = vmatpush1.bf16.msra.mxu0 0
    %10064 = vmatprep.subr.bf16.mxu0 0
    %10065 = vmatpush1.bf16.msra.mxu0 0
    %10066 = vmatprep.subr.bf16.mxu0 0
    %10067 = vmatpush1.bf16.msra.mxu0 0
    %10068 = vmatprep.subr.bf16.mxu0 0
    %10069 = vmatpush1.bf16.msra.mxu0 0
    %10070 = vmatprep.subr.bf16.mxu0 0
    %10071 = vmatpush1.bf16.msra.mxu0 0
    %10072 = vmatprep.subr.bf16.mxu0 0
    %10073 = vmatpush1.bf16.msra.mxu0 0
    %10074 = vmatprep.subr.bf16.mxu0 0
    %10075 = vmatpush1.bf16.msra.mxu0 0
    %10076 = vmatprep.subr.bf16.mxu0 0
    %10077 = vmatpush1.bf16.msra.mxu0 0
    %10078 = vmatprep.subr.bf16.mxu0 0
    %10079 = vmatpush1.bf16.msra.mxu0 0
    %10080 = vmatprep.subr.bf16.mxu0 0
    %10081 = vmatpush1.bf16.msra.mxu0 0
    %10082 = vmatprep.subr.bf16.mxu0 0
    %10083 = vmatpush1.bf16.msra.mxu0 0
    %10084 = vmatprep.subr.bf16.mxu0 0
    %10085 = vmatpush1.bf16.msra.mxu0 0
    %10086 = vmatprep.mubr.bf16.mxu0 0
    %10087 = vmatmul.mubr.bf16.gmra.mrb[0].mxu0 %v10052
    %v10088 = vpop.f32.mrb[0].mxu0
    %v10089 = vadd.f32 0.0, %v10088
    %v10090 = vpop.f32.mrb[0].mxu0
    %v10091 = vpop.f32.mrb[0].mxu0
    %v10092 = vpop.f32.mrb[0].mxu0
    %10093 = vdwg.mxu0
    %v10094 = vadd.f32 %v9789, %v10089
    %v10095 = vadd.f32 %v10094, %v9874
    %v10096 = vxor.u32 %v10095, 2147483648
    %v10097 = vmul.f32 %v10096, 1.442695
    %v10098 = vpow.pop %v10097
    %v10099 = vadd.f32 %v10098, 1.0
    %v10100 = vrcp.pop %v10099
    %v10101 = vmul.f32 1.0, %v10100
    %v10102 = vtanh.pop %v10095
    %v10103 = vmul.f32 %v10101, %v10040
    %10105 = vrot.lane.b32.xlu0 %v10102, 64
    %v10106 = vpop.permute.xlu0 %10105
    %v10108 = vmul.f32 %v10101, %v10106
    %10110 = vrot.lane.b32.xlu0 %v10108, 32
    %v10111 = vpop.permute.xlu0 %10110
    %v10113 = vadd.f32 %v10103, %v10111
    %v10114 = vtanh.pop %v10113
    %10116 = vrot.lane.b32.xlu0 %v10114, 64
    %v10117 = vpop.permute.xlu0 %10116
    %v10119 = vmul.f32 %v10101, %v10117
    %v10120 = vpack.c.bf16 %v10119, %v10119
    %10122 = vrot.lane.b32.xlu0 %v10120, 32
    %v10123 = vpop.permute.xlu0 %10122
    %v10125 = vsel %vm9825, %v10123, 0
    %10127 = vmatprep.subr.bf16.mxu0 0
    %10128 = vmatpush1.bf16.msra.mxu0 %v9821
    %10129 = vmatprep.subr.bf16.mxu0 0
    %10130 = vmatpush1.bf16.msra.mxu0 %v9822
    %10131 = vmatprep.subr.bf16.mxu0 0
    %10132 = vmatpush1.bf16.msra.mxu0 0
    %10133 = vmatprep.subr.bf16.mxu0 0
    %10134 = vmatpush1.bf16.msra.mxu0 0
    %10135 = vmatprep.subr.bf16.mxu0 0
    %10136 = vmatpush1.bf16.msra.mxu0 0
    %10137 = vmatprep.subr.bf16.mxu0 0
    %10138 = vmatpush1.bf16.msra.mxu0 0
    %10139 = vmatprep.subr.bf16.mxu0 0
    %10140 = vmatpush1.bf16.msra.mxu0 0
    %10141 = vmatprep.subr.bf16.mxu0 0
    %10142 = vmatpush1.bf16.msra.mxu0 0
    %10143 = vmatprep.subr.bf16.mxu0 0
    %10144 = vmatpush1.bf16.msra.mxu0 0
    %10145 = vmatprep.subr.bf16.mxu0 0
    %10146 = vmatpush1.bf16.msra.mxu0 0
    %10147 = vmatprep.subr.bf16.mxu0 0
    %10148 = vmatpush1.bf16.msra.mxu0 0
    %10149 = vmatprep.subr.bf16.mxu0 0
    %10150 = vmatpush1.bf16.msra.mxu0 0
    %10151 = vmatprep.subr.bf16.mxu0 0
    %10152 = vmatpush1.bf16.msra.mxu0 0
    %10153 = vmatprep.subr.bf16.mxu0 0
    %10154 = vmatpush1.bf16.msra.mxu0 0
    %10155 = vmatprep.subr.bf16.mxu0 0
    %10156 = vmatpush1.bf16.msra.mxu0 0
    %10157 = vmatprep.subr.bf16.mxu0 0
    %10158 = vmatpush1.bf16.msra.mxu0 0
    %10159 = vmatprep.mubr.bf16.mxu0 0
    %10160 = vmatmul.mubr.bf16.gmra.mrb[0].mxu0 %v10125
    %v10161 = vpop.f32.mrb[0].mxu0
    %v10162 = vadd.f32 0.0, %v10161
    %v10163 = vpop.f32.mrb[0].mxu0
    %v10164 = vpop.f32.mrb[0].mxu0
    %v10165 = vpop.f32.mrb[0].mxu0
    %10166 = vdwg.mxu0
    %v10167 = vadd.f32 %v9794, %v10162
    %v10168 = vadd.f32 %v10167, %v9874
    %v10169 = vxor.u32 %v10168, 2147483648
    %v10170 = vmul.f32 %v10169, 1.442695
    %v10171 = vpow.pop %v10170
    %v10172 = vadd.f32 %v10171, 1.0
    %v10173 = vrcp.pop %v10172
    %v10174 = vmul.f32 1.0, %v10173
    %v10175 = vtanh.pop %v10168
    %v10176 = vmul.f32 %v10174, %v10113
    %10178 = vrot.lane.b32.xlu0 %v10175, 64
    %v10179 = vpop.permute.xlu0 %10178
    %v10181 = vmul.f32 %v10174, %v10179
    %10183 = vrot.lane.b32.xlu0 %v10181, 32
    %v10184 = vpop.permute.xlu0 %10183
    %v10186 = vadd.f32 %v10176, %v10184
    %v10187 = vtanh.pop %v10186
    %10189 = vrot.lane.b32.xlu0 %v10187, 64
    %v10190 = vpop.permute.xlu0 %10189
    %v10192 = vmul.f32 %v10174, %v10190
    %v10193 = vpack.c.bf16 %v10192, %v10192
    %10195 = vrot.lane.b32.xlu0 %v10193, 32
    %v10196 = vpop.permute.xlu0 %10195
    %v10198 = vsel %vm9825, %v10196, 0
    %10200 = vmatprep.subr.bf16.mxu0 0
    %10201 = vmatpush1.bf16.msra.mxu0 %v9821
    %10202 = vmatprep.subr.bf16.mxu0 0
    %10203 = vmatpush1.bf16.msra.mxu0 %v9822
    %10204 = vmatprep.subr.bf16.mxu0 0
    %10205 = vmatpush1.bf16.msra.mxu0 0
    %10206 = vmatprep.subr.bf16.mxu0 0
    %10207 = vmatpush1.bf16.msra.mxu0 0
    %10208 = vmatprep.subr.bf16.mxu0 0
    %10209 = vmatpush1.bf16.msra.mxu0 0
    %10210 = vmatprep.subr.bf16.mxu0 0
    %10211 = vmatpush1.bf16.msra.mxu0 0
    %10212 = vmatprep.subr.bf16.mxu0 0
    %10213 = vmatpush1.bf16.msra.mxu0 0
    %10214 = vmatprep.subr.bf16.mxu0 0
    %10215 = vmatpush1.bf16.msra.mxu0 0
    %10216 = vmatprep.subr.bf16.mxu0 0
    %10217 = vmatpush1.bf16.msra.mxu0 0
    %10218 = vmatprep.subr.bf16.mxu0 0
    %10219 = vmatpush1.bf16.msra.mxu0 0
    %10220 = vmatprep.subr.bf16.mxu0 0
    %10221 = vmatpush1.bf16.msra.mxu0 0
    %10222 = vmatprep.subr.bf16.mxu0 0
    %10223 = vmatpush1.bf16.msra.mxu0 0
    %10224 = vmatprep.subr.bf16.mxu0 0
    %10225 = vmatpush1.bf16.msra.mxu0 0
    %10226 = vmatprep.subr.bf16.mxu0 0
    %10227 = vmatpush1.bf16.msra.mxu0 0
    %10228 = vmatprep.subr.bf16.mxu0 0
    %10229 = vmatpush1.bf16.msra.mxu0 0
    %10230 = vmatprep.subr.bf16.mxu0 0
    %10231 = vmatpush1.bf16.msra.mxu0 0
    %10232 = vmatprep.mubr.bf16.mxu0 0
    %10233 = vmatmul.mubr.bf16.gmra.mrb[0].mxu0 %v10198
    %v10234 = vpop.f32.mrb[0].mxu0
    %v10235 = vadd.f32 0.0, %v10234
    %v10236 = vpop.f32.mrb[0].mxu0
    %v10237 = vpop.f32.mrb[0].mxu0
    %v10238 = vpop.f32.mrb[0].mxu0
    %10239 = vdwg.mxu0
    %v10240 = vadd.f32 %v9797, %v10235
    %v10241 = vadd.f32 %v10240, %v9874
    %v10242 = vxor.u32 %v10241, 2147483648
    %v10243 = vmul.f32 %v10242, 1.442695
    %v10244 = vpow.pop %v10243
    %v10245 = vadd.f32 %v10244, 1.0
    %v10246 = vrcp.pop %v10245
    %v10247 = vmul.f32 1.0, %v10246
    %v10248 = vtanh.pop %v10241
    %v10249 = vmul.f32 %v10247, %v10186
    %10251 = vrot.lane.b32.xlu0 %v10248, 64
    %v10252 = vpop.permute.xlu0 %10251
    %v10254 = vmul.f32 %v10247, %v10252
    %10256 = vrot.lane.b32.xlu0 %v10254, 32
    %v10257 = vpop.permute.xlu0 %10256
    %v10259 = vadd.f32 %v10249, %v10257
    %v10260 = vtanh.pop %v10259
    %10262 = vrot.lane.b32.xlu0 %v10260, 64
    %v10263 = vpop.permute.xlu0 %10262
    %v10265 = vmul.f32 %v10247, %v10263
    %v10266 = vpack.c.bf16 %v10265, %v10265
    %10268 = vrot.lane.b32.xlu0 %v10266, 32
    %v10269 = vpop.permute.xlu0 %10268
    %v10271 = vsel %vm9825, %v10269, 0
    %10273 = vmatprep.subr.bf16.mxu0 0
    %10274 = vmatpush1.bf16.msra.mxu0 %v9821
    %10275 = vmatprep.subr.bf16.mxu0 0
    %10276 = vmatpush1.bf16.msra.mxu0 %v9822
    %10277 = vmatprep.subr.bf16.mxu0 0
    %10278 = vmatpush1.bf16.msra.mxu0 0
    %10279 = vmatprep.subr.bf16.mxu0 0
    %10280 = vmatpush1.bf16.msra.mxu0 0
    %10281 = vmatprep.subr.bf16.mxu0 0
    %10282 = vmatpush1.bf16.msra.mxu0 0
    %10283 = vmatprep.subr.bf16.mxu0 0
    %10284 = vmatpush1.bf16.msra.mxu0 0
    %10285 = vmatprep.subr.bf16.mxu0 0
    %10286 = vmatpush1.bf16.msra.mxu0 0
    %10287 = vmatprep.subr.bf16.mxu0 0
    %10288 = vmatpush1.bf16.msra.mxu0 0
    %10289 = vmatprep.subr.bf16.mxu0 0
    %10290 = vmatpush1.bf16.msra.mxu0 0
    %10291 = vmatprep.subr.bf16.mxu0 0
    %10292 = vmatpush1.bf16.msra.mxu0 0
    %10293 = vmatprep.subr.bf16.mxu0 0
    %10294 = vmatpush1.bf16.msra.mxu0 0
    %10295 = vmatprep.subr.bf16.mxu0 0
    %10296 = vmatpush1.bf16.msra.mxu0 0
    %10297 = vmatprep.subr.bf16.mxu0 0
    %10298 = vmatpush1.bf16.msra.mxu0 0
    %10299 = vmatprep.subr.bf16.mxu0 0
    %10300 = vmatpush1.bf16.msra.mxu0 0
    %10301 = vmatprep.subr.bf16.mxu0 0
    %10302 = vmatpush1.bf16.msra.mxu0 0
    %10303 = vmatprep.subr.bf16.mxu0 0
    %10304 = vmatpush1.bf16.msra.mxu0 0
    %10305 = vmatprep.mubr.bf16.mxu0 0
    %10306 = vmatmul.mubr.bf16.gmra.mrb[0].mxu0 %v10271
    %v10307 = vpop.f32.mrb[0].mxu0
    %v10308 = vadd.f32 0.0, %v10307
    %v10309 = vpop.f32.mrb[0].mxu0
    %v10310 = vpop.f32.mrb[0].mxu0
    %v10311 = vpop.f32.mrb[0].mxu0
    %10312 = vdwg.mxu0
    %v10313 = vadd.f32 %v9802, %v10308
    %v10314 = vadd.f32 %v10313, %v9874
    %v10315 = vxor.u32 %v10314, 2147483648
    %v10316 = vmul.f32 %v10315, 1.442695
    %v10317 = vpow.pop %v10316
    %v10318 = vadd.f32 %v10317, 1.0
    %v10319 = vrcp.pop %v10318
    %v10320 = vmul.f32 1.0, %v10319
    %v10321 = vtanh.pop %v10314
    %v10322 = vmul.f32 %v10320, %v10259
    %10324 = vrot.lane.b32.xlu0 %v10321, 64
    %v10325 = vpop.permute.xlu0 %10324
    %v10327 = vmul.f32 %v10320, %v10325
    %10329 = vrot.lane.b32.xlu0 %v10327, 32
    %v10330 = vpop.permute.xlu0 %10329
    %v10332 = vadd.f32 %v10322, %v10330
    %v10333 = vtanh.pop %v10332
    %10335 = vrot.lane.b32.xlu0 %v10333, 64
    %v10336 = vpop.permute.xlu0 %10335
    %v10338 = vmul.f32 %v10320, %v10336
    %v10339 = vpack.c.bf16 %v10338, %v10338
    %10341 = vrot.lane.b32.xlu0 %v10339, 32
    %v10342 = vpop.permute.xlu0 %10341
    %v10344 = vsel %vm9825, %v10342, 0
    %10346 = vmatprep.subr.bf16.mxu0 0
    %10347 = vmatpush1.bf16.msra.mxu0 %v9821
    %10348 = vmatprep.subr.bf16.mxu0 0
    %10349 = vmatpush1.bf16.msra.mxu0 %v9822
    %10350 = vmatprep.subr.bf16.mxu0 0
    %10351 = vmatpush1.bf16.msra.mxu0 0
    %10352 = vmatprep.subr.bf16.mxu0 0
    %10353 = vmatpush1.bf16.msra.mxu0 0
    %10354 = vmatprep.subr.bf16.mxu0 0
    %10355 = vmatpush1.bf16.msra.mxu0 0
    %10356 = vmatprep.subr.bf16.mxu0 0
    %10357 = vmatpush1.bf16.msra.mxu0 0
    %10358 = vmatprep.subr.bf16.mxu0 0
    %10359 = vmatpush1.bf16.msra.mxu0 0
    %10360 = vmatprep.subr.bf16.mxu0 0
    %10361 = vmatpush1.bf16.msra.mxu0 0
    %10362 = vmatprep.subr.bf16.mxu0 0
    %10363 = vmatpush1.bf16.msra.mxu0 0
    %10364 = vmatprep.subr.bf16.mxu0 0
    %10365 = vmatpush1.bf16.msra.mxu0 0
    %10366 = vmatprep.subr.bf16.mxu0 0
    %10367 = vmatpush1.bf16.msra.mxu0 0
    %10368 = vmatprep.subr.bf16.mxu0 0
    %10369 = vmatpush1.bf16.msra.mxu0 0
    %10370 = vmatprep.subr.bf16.mxu0 0
    %10371 = vmatpush1.bf16.msra.mxu0 0
    %10372 = vmatprep.subr.bf16.mxu0 0
    %10373 = vmatpush1.bf16.msra.mxu0 0
    %10374 = vmatprep.subr.bf16.mxu0 0
    %10375 = vmatpush1.bf16.msra.mxu0 0
    %10376 = vmatprep.subr.bf16.mxu0 0
    %10377 = vmatpush1.bf16.msra.mxu0 0
    %10378 = vmatprep.mubr.bf16.mxu0 0
    %10379 = vmatmul.mubr.bf16.gmra.mrb[0].mxu0 %v10344
    %v10380 = vpop.f32.mrb[0].mxu0
    %v10381 = vadd.f32 0.0, %v10380
    %v10382 = vpop.f32.mrb[0].mxu0
    %v10383 = vpop.f32.mrb[0].mxu0
    %v10384 = vpop.f32.mrb[0].mxu0
    %10385 = vdwg.mxu0
    %v10386 = vadd.f32 %v9805, %v10381
    %v10387 = vadd.f32 %v10386, %v9874
    %v10388 = vxor.u32 %v10387, 2147483648
    %v10389 = vmul.f32 %v10388, 1.442695
    %v10390 = vpow.pop %v10389
    %v10391 = vadd.f32 %v10390, 1.0
    %v10392 = vrcp.pop %v10391
    %v10393 = vmul.f32 1.0, %v10392
    %v10394 = vtanh.pop %v10387
    %v10395 = vmul.f32 %v10393, %v10332
    %10397 = vrot.lane.b32.xlu0 %v10394, 64
    %v10398 = vpop.permute.xlu0 %10397
    %v10400 = vmul.f32 %v10393, %v10398
    %10402 = vrot.lane.b32.xlu0 %v10400, 32
    %v10403 = vpop.permute.xlu0 %10402
    %v10405 = vadd.f32 %v10395, %v10403
    %v10406 = vtanh.pop %v10405
    %10408 = vrot.lane.b32.xlu0 %v10406, 64
    %v10409 = vpop.permute.xlu0 %10408
    %v10411 = vmul.f32 %v10393, %v10409
    %v10412 = vpack.c.bf16 %v9704, %v9704
    %v10413 = vpack.c.bf16 %v9706, %v9706
    %v10414 = vld [vmem:[#allocation13] sm:$0xf]
    %v10415 = vld [vmem:[#allocation13 + $0x4] sm:$0xf]
    %v10416 = vld [vmem:[#allocation13 + $0x8] sm:$0xf]
    %v10417 = vld [vmem:[#allocation13 + $0xc] sm:$0xf]
    %v10418 = vld [vmem:[#allocation13 + $0x10] sm:$0xf]
    %v10419 = vld [vmem:[#allocation13 + $0x14] sm:$0xf]
    %v10420 = vld [vmem:[#allocation13 + $0x18] sm:$0xf]
    %v10421 = vld [vmem:[#allocation13 + $0x1c] sm:$0xf]
    %v10422 = vld [vmem:[#allocation13 + $0x20] sm:$0xf]
    %v10423 = vld [vmem:[#allocation13 + $0x24] sm:$0xf]
    %v10424 = vld [vmem:[#allocation13 + $0x28] sm:$0xf]
    %v10425 = vld [vmem:[#allocation13 + $0x2c] sm:$0xf]
    %v10426 = vld [vmem:[#allocation13 + $0x30] sm:$0xf]
    %v10427 = vld [vmem:[#allocation13 + $0x34] sm:$0xf]
    %v10428 = vld [vmem:[#allocation13 + $0x38] sm:$0xf]
    %v10429 = vld [vmem:[#allocation13 + $0x3c] sm:$0xf]
    %v10430 = vld [vmem:[#allocation13 + $0x40] sm:$0xf]
    %v10431 = vld [vmem:[#allocation13 + $0x44] sm:$0xf]
    %v10432 = vld [vmem:[#allocation13 + $0x48] sm:$0xf]
    %v10433 = vld [vmem:[#allocation13 + $0x4c] sm:$0xf]
    %v10434 = vld [vmem:[#allocation13 + $0x50] sm:$0xf]
    %v10435 = vld [vmem:[#allocation13 + $0x54] sm:$0xf]
    %v10436 = vld [vmem:[#allocation13 + $0x58] sm:$0xf]
    %v10437 = vld [vmem:[#allocation13 + $0x5c] sm:$0xf]
    %v10438 = vld [vmem:[#allocation13 + $0x60] sm:$0xf]
    %v10439 = vld [vmem:[#allocation13 + $0x64] sm:$0xf]
    %v10440 = vld [vmem:[#allocation13 + $0x68] sm:$0xf]
    %v10441 = vld [vmem:[#allocation13 + $0x6c] sm:$0xf]
    %v10442 = vld [vmem:[#allocation13 + $0x70] sm:$0xf]
    %v10443 = vld [vmem:[#allocation13 + $0x74] sm:$0xf]
    %v10444 = vld [vmem:[#allocation13 + $0x78] sm:$0xf]
    %v10445 = vld [vmem:[#allocation13 + $0x7c] sm:$0xf]
    %v10446 = vpack.c.bf16 %v10411, %v10411
    %v10447 = vld [vmem:[#allocation13 + $0x80] sm:$0xf]
    %v10448 = vld [vmem:[#allocation13 + $0x84] sm:$0xf]
    %v10449 = vld [vmem:[#allocation13 + $0x88] sm:$0xf]
    %v10450 = vld [vmem:[#allocation13 + $0x8c] sm:$0xf]
    %10452 = vrot.lane.b32.xlu0 %v10446, 32
    %v10453 = vpop.permute.xlu0 %10452
    %v10458 = vunpack.c.l.b16 %v10447
    %v10459 = vunpack.c.l.b16 %v10448
    %v10460 = vunpack.c.l.b16 %v10449
    %v10461 = vunpack.c.l.b16 %v10450
    %v10462 = vpack.c.b16 %v10459, %v10458
    %v10463 = vpack.c.b16 %v10461, %v10460
    %v10467 = vsel %vm9825, %v10453, 0
    %10469 = vmatprep.subr.bf16.mxu0 0
    %10470 = vmatpush1.bf16.msra.mxu0 %v10462
    %10471 = vmatprep.subr.bf16.mxu0 0
    %10472 = vmatpush1.bf16.msra.mxu0 %v10463
    %10473 = vmatprep.subr.bf16.mxu0 0
    %10474 = vmatpush1.bf16.msra.mxu0 0
    %10475 = vmatprep.subr.bf16.mxu0 0
    %10476 = vmatpush1.bf16.msra.mxu0 0
    %10477 = vmatprep.subr.bf16.mxu0 0
    %10478 = vmatpush1.bf16.msra.mxu0 0
    %10479 = vmatprep.subr.bf16.mxu0 0
    %10480 = vmatpush1.bf16.msra.mxu0 0
    %10481 = vmatprep.subr.bf16.mxu0 0
    %10482 = vmatpush1.bf16.msra.mxu0 0
    %10483 = vmatprep.subr.bf16.mxu0 0
    %10484 = vmatpush1.bf16.msra.mxu0 0
    %10485 = vmatprep.subr.bf16.mxu0 0
    %10486 = vmatpush1.bf16.msra.mxu0 0
    %10487 = vmatprep.subr.bf16.mxu0 0
    %10488 = vmatpush1.bf16.msra.mxu0 0
    %10489 = vmatprep.subr.bf16.mxu0 0
    %10490 = vmatpush1.bf16.msra.mxu0 0
    %10491 = vmatprep.subr.bf16.mxu0 0
    %10492 = vmatpush1.bf16.msra.mxu0 0
    %10493 = vmatprep.subr.bf16.mxu0 0
    %10494 = vmatpush1.bf16.msra.mxu0 0
    %10495 = vmatprep.subr.bf16.mxu0 0
    %10496 = vmatpush1.bf16.msra.mxu0 0
    %10497 = vmatprep.subr.bf16.mxu0 0
    %10498 = vmatpush1.bf16.msra.mxu0 0
    %10499 = vmatprep.subr.bf16.mxu0 0
    %10500 = vmatpush1.bf16.msra.mxu0 0
    %10501 = vmatprep.mubr.bf16.mxu0 0
    %10502 = vmatmul.mubr.bf16.gmra.mrb[0].mxu0 %v10467
    %v10503 = vpop.f32.mrb[0].mxu0
    %v10504 = vadd.f32 0.0, %v10503
    %v10505 = vpop.f32.mrb[0].mxu0
    %v10506 = vpop.f32.mrb[0].mxu0
    %v10507 = vpop.f32.mrb[0].mxu0
    %10508 = vdwg.mxu0
    %v10541 = vunpack.c.l.b16 %v10414
    %v10542 = vunpack.c.l.b16 %v10415
    %v10543 = vunpack.c.l.b16 %v10416
    %v10544 = vunpack.c.l.b16 %v10417
    %v10545 = vunpack.c.l.b16 %v10418
    %v10546 = vunpack.c.l.b16 %v10419
    %v10547 = vunpack.c.l.b16 %v10420
    %v10548 = vunpack.c.l.b16 %v10421
    %v10549 = vunpack.c.l.b16 %v10422
    %v10550 = vunpack.c.l.b16 %v10423
    %v10551 = vunpack.c.l.b16 %v10424
    %v10552 = vunpack.c.l.b16 %v10425
    %v10553 = vunpack.c.l.b16 %v10426
    %v10554 = vunpack.c.l.b16 %v10427
    %v10555 = vunpack.c.l.b16 %v10428
    %v10556 = vunpack.c.l.b16 %v10429
    %v10557 = vunpack.c.l.b16 %v10430
    %v10558 = vunpack.c.l.b16 %v10431
    %v10559 = vunpack.c.l.b16 %v10432
    %v10560 = vunpack.c.l.b16 %v10433
    %v10561 = vunpack.c.l.b16 %v10434
    %v10562 = vunpack.c.l.b16 %v10435
    %v10563 = vunpack.c.l.b16 %v10436
    %v10564 = vunpack.c.l.b16 %v10437
    %v10565 = vunpack.c.l.b16 %v10438
    %v10566 = vunpack.c.l.b16 %v10439
    %v10567 = vunpack.c.l.b16 %v10440
    %v10568 = vunpack.c.l.b16 %v10441
    %v10569 = vunpack.c.l.b16 %v10442
    %v10570 = vunpack.c.l.b16 %v10443
    %v10571 = vunpack.c.l.b16 %v10444
    %v10572 = vunpack.c.l.b16 %v10445
    %v10573 = vpack.c.b16 %v10542, %v10541
    %v10574 = vpack.c.b16 %v10544, %v10543
    %v10575 = vpack.c.b16 %v10546, %v10545
    %v10576 = vpack.c.b16 %v10548, %v10547
    %v10577 = vpack.c.b16 %v10550, %v10549
    %v10578 = vpack.c.b16 %v10552, %v10551
    %v10579 = vpack.c.b16 %v10554, %v10553
    %v10580 = vpack.c.b16 %v10556, %v10555
    %v10581 = vpack.c.b16 %v10558, %v10557
    %v10582 = vpack.c.b16 %v10560, %v10559
    %v10583 = vpack.c.b16 %v10562, %v10561
    %v10584 = vpack.c.b16 %v10564, %v10563
    %v10585 = vpack.c.b16 %v10566, %v10565
    %v10586 = vpack.c.b16 %v10568, %v10567
    %v10587 = vpack.c.b16 %v10570, %v10569
    %v10588 = vpack.c.b16 %v10572, %v10571
    %10605 = vmatprep.subr.bf16.mxu0 0
    %10606 = vmatpush1.bf16.msra.mxu0 %v10573
    %10607 = vmatprep.subr.bf16.mxu0 0
    %10608 = vmatpush1.bf16.msra.mxu0 %v10574
    %10609 = vmatprep.subr.bf16.mxu0 0
    %10610 = vmatpush1.bf16.msra.mxu0 %v10575
    %10611 = vmatprep.subr.bf16.mxu0 0
    %10612 = vmatpush1.bf16.msra.mxu0 %v10576
    %10613 = vmatprep.subr.bf16.mxu0 0
    %10614 = vmatpush1.bf16.msra.mxu0 %v10577
    %10615 = vmatprep.subr.bf16.mxu0 0
    %10616 = vmatpush1.bf16.msra.mxu0 %v10578
    %10617 = vmatprep.subr.bf16.mxu0 0
    %10618 = vmatpush1.bf16.msra.mxu0 %v10579
    %10619 = vmatprep.subr.bf16.mxu0 0
    %10620 = vmatpush1.bf16.msra.mxu0 %v10580
    %10621 = vmatprep.subr.bf16.mxu0 0
    %10622 = vmatpush1.bf16.msra.mxu0 %v10581
    %10623 = vmatprep.subr.bf16.mxu0 0
    %10624 = vmatpush1.bf16.msra.mxu0 %v10582
    %10625 = vmatprep.subr.bf16.mxu0 0
    %10626 = vmatpush1.bf16.msra.mxu0 %v10583
    %10627 = vmatprep.subr.bf16.mxu0 0
    %10628 = vmatpush1.bf16.msra.mxu0 %v10584
    %10629 = vmatprep.subr.bf16.mxu0 0
    %10630 = vmatpush1.bf16.msra.mxu0 %v10585
    %10631 = vmatprep.subr.bf16.mxu0 0
    %10632 = vmatpush1.bf16.msra.mxu0 %v10586
    %10633 = vmatprep.subr.bf16.mxu0 0
    %10634 = vmatpush1.bf16.msra.mxu0 %v10587
    %10635 = vmatprep.subr.bf16.mxu0 0
    %10636 = vmatpush1.bf16.msra.mxu0 %v10588
    %10637 = vmatprep.mubr.bf16.mxu0 %v10413
    %10638 = vmatmul.mubr.bf16.gmra.mrb[0].mxu0 %v10412
    %v10639 = vpop.f32.mrb[0].mxu0
    %v10640 = vadd.f32 %v10504, %v10639
    %v10641 = vpop.f32.mrb[0].mxu0
    %v10642 = vpop.f32.mrb[0].mxu0
    %v10643 = vpop.f32.mrb[0].mxu0
    %10644 = vdwg.mxu0
    %v10645 = vld [vmem:[#allocation15] sm:$0x1]
    %v10647 = vlaneseq
    %v10648 = vshrl.u32 %v10647, 7
    %v10649 = vsub.s32 0, %v10648
    %v10650 = vrot.slane %v10645, %v10649
    %v10652 = vadd.f32 %v10640, %v10650
    %v10653 = vmax.f32 %v10652, 0.0
    %v10654 = vld [vmem:[#allocation16] sm:$0xff]
    %v10655 = vld [vmem:[#allocation16 + $0x8] sm:$0xff]
    %v10656 = vld [vmem:[#allocation16 + $0x10] sm:$0xff]
    %v10657 = vld [vmem:[#allocation16 + $0x18] sm:$0xff]
    %v10658 = vld [vmem:[#allocation16 + $0x20] sm:$0xff]
    %v10659 = vld [vmem:[#allocation16 + $0x28] sm:$0xff]
    %v10660 = vld [vmem:[#allocation16 + $0x30] sm:$0xff]
    %v10661 = vld [vmem:[#allocation16 + $0x38] sm:$0xff]
    %v10662 = vld [vmem:[#allocation16 + $0x40] sm:$0xff]
    %v10663 = vld [vmem:[#allocation16 + $0x48] sm:$0xff]
    %v10664 = vld [vmem:[#allocation16 + $0x50] sm:$0xff]
    %v10665 = vld [vmem:[#allocation16 + $0x58] sm:$0xff]
    %v10666 = vld [vmem:[#allocation16 + $0x60] sm:$0xff]
    %v10667 = vld [vmem:[#allocation16 + $0x68] sm:$0xff]
    %v10668 = vld [vmem:[#allocation16 + $0x70] sm:$0xff]
    %v10669 = vld [vmem:[#allocation16 + $0x78] sm:$0xff]
    %v10670 = vld [vmem:[#allocation16 + $0x80] sm:$0xff]
    %v10671 = vld [vmem:[#allocation16 + $0x88] sm:$0xff]
    %v10672 = vld [vmem:[#allocation16 + $0x90] sm:$0xff]
    %v10673 = vld [vmem:[#allocation16 + $0x98] sm:$0xff]
    %v10674 = vld [vmem:[#allocation16 + $0xa0] sm:$0xff]
    %v10675 = vld [vmem:[#allocation16 + $0xa8] sm:$0xff]
    %v10676 = vld [vmem:[#allocation16 + $0xb0] sm:$0xff]
    %v10677 = vld [vmem:[#allocation16 + $0xb8] sm:$0xff]
    %v10678 = vld [vmem:[#allocation16 + $0xc0] sm:$0xff]
    %v10679 = vld [vmem:[#allocation16 + $0xc8] sm:$0xff]
    %v10680 = vld [vmem:[#allocation16 + $0xd0] sm:$0xff]
    %v10681 = vld [vmem:[#allocation16 + $0xd8] sm:$0xff]
    %v10682 = vld [vmem:[#allocation16 + $0xe0] sm:$0xff]
    %v10683 = vld [vmem:[#allocation16 + $0xe8] sm:$0xff]
    %v10684 = vld [vmem:[#allocation16 + $0xf0] sm:$0xff]
    %v10685 = vld [vmem:[#allocation16 + $0xf8] sm:$0xff]
    %v10686 = vld [vmem:[#allocation18] sm:$0xff]
    %v10687 = vld [vmem:[#allocation18 + $0x8] sm:$0xff]
    %v10688 = vld [vmem:[#allocation18 + $0x10] sm:$0xff]
    %v10689 = vld [vmem:[#allocation18 + $0x18] sm:$0xff]
    %v10690 = vld [vmem:[#allocation18 + $0x20] sm:$0xff]
    %v10691 = vld [vmem:[#allocation18 + $0x28] sm:$0xff]
    %v10692 = vld [vmem:[#allocation18 + $0x30] sm:$0xff]
    %v10693 = vld [vmem:[#allocation18 + $0x38] sm:$0xff]
    %v10694 = vld [vmem:[#allocation18 + $0x40] sm:$0xff]
    %v10695 = vld [vmem:[#allocation18 + $0x48] sm:$0xff]
    %v10696 = vld [vmem:[#allocation18 + $0x50] sm:$0xff]
    %v10697 = vld [vmem:[#allocation18 + $0x58] sm:$0xff]
    %v10698 = vld [vmem:[#allocation18 + $0x60] sm:$0xff]
    %v10699 = vld [vmem:[#allocation18 + $0x68] sm:$0xff]
    %v10700 = vld [vmem:[#allocation18 + $0x70] sm:$0xff]
    %v10701 = vld [vmem:[#allocation18 + $0x78] sm:$0xff]
    %v10702 = vld [vmem:[#allocation18 + $0x80] sm:$0xff]
    %v10703 = vld [vmem:[#allocation18 + $0x88] sm:$0xff]
    %v10704 = vld [vmem:[#allocation18 + $0x90] sm:$0xff]
    %v10705 = vld [vmem:[#allocation18 + $0x98] sm:$0xff]
    %v10706 = vld [vmem:[#allocation18 + $0xa0] sm:$0xff]
    %v10707 = vld [vmem:[#allocation18 + $0xa8] sm:$0xff]
    %v10708 = vld [vmem:[#allocation18 + $0xb0] sm:$0xff]
    %v10709 = vld [vmem:[#allocation18 + $0xb8] sm:$0xff]
    %v10710 = vld [vmem:[#allocation18 + $0xc0] sm:$0xff]
    %v10711 = vld [vmem:[#allocation18 + $0xc8] sm:$0xff]
    %v10712 = vld [vmem:[#allocation18 + $0xd0] sm:$0xff]
    %v10713 = vld [vmem:[#allocation18 + $0xd8] sm:$0xff]
    %v10714 = vld [vmem:[#allocation18 + $0xe0] sm:$0xff]
    %v10715 = vld [vmem:[#allocation18 + $0xe8] sm:$0xff]
    %v10716 = vld [vmem:[#allocation18 + $0xf0] sm:$0xff]
    %v10717 = vld [vmem:[#allocation18 + $0xf8] sm:$0xff]
    %v10718 = vld [vmem:[#allocation19] sm:$0xf]
    %v10719 = vpack.c.bf16 %v10653, %v10653
    %v10721 = vlaneseq
    %v10722 = vshrl.u32 %v10721, 7
    %v10723 = vsub.s32 0, %v10722
    %v10724 = vrot.slane %v10718, %v10723
    %v10725 = vlaneseq
    %v10726 = vshrl.u32 %v10725, 7
    %v10727 = vsub.s32 1, %v10726
    %v10728 = vrot.slane %v10718, %v10727
    %v10729 = vlaneseq
    %v10730 = vshrl.u32 %v10729, 7
    %v10731 = vsub.s32 2, %v10730
    %v10732 = vrot.slane %v10718, %v10731
    %v10733 = vlaneseq
    %v10734 = vshrl.u32 %v10733, 7
    %v10735 = vsub.s32 3, %v10734
    %v10736 = vrot.slane %v10718, %v10735
    %v10773 = vunpack.c.l.b16 %v10654
    %v10774 = vunpack.c.h.b16 %v10654
    %v10775 = vunpack.c.l.b16 %v10655
    %v10776 = vunpack.c.h.b16 %v10655
    %v10777 = vunpack.c.l.b16 %v10656
    %v10778 = vunpack.c.h.b16 %v10656
    %v10779 = vunpack.c.l.b16 %v10657
    %v10780 = vunpack.c.h.b16 %v10657
    %v10781 = vunpack.c.l.b16 %v10658
    %v10782 = vunpack.c.h.b16 %v10658
    %v10783 = vunpack.c.l.b16 %v10659
    %v10784 = vunpack.c.h.b16 %v10659
    %v10785 = vunpack.c.l.b16 %v10660
    %v10786 = vunpack.c.h.b16 %v10660
    %v10787 = vunpack.c.l.b16 %v10661
    %v10788 = vunpack.c.h.b16 %v10661
    %v10789 = vunpack.c.l.b16 %v10662
    %v10790 = vunpack.c.h.b16 %v10662
    %v10791 = vunpack.c.l.b16 %v10663
    %v10792 = vunpack.c.h.b16 %v10663
    %v10793 = vunpack.c.l.b16 %v10664
    %v10794 = vunpack.c.h.b16 %v10664
    %v10795 = vunpack.c.l.b16 %v10665
    %v10796 = vunpack.c.h.b16 %v10665
    %v10797 = vunpack.c.l.b16 %v10666
    %v10798 = vunpack.c.h.b16 %v10666
    %v10799 = vunpack.c.l.b16 %v10667
    %v10800 = vunpack.c.h.b16 %v10667
    %v10801 = vunpack.c.l.b16 %v10668
    %v10802 = vunpack.c.h.b16 %v10668
    %v10803 = vunpack.c.l.b16 %v10669
    %v10804 = vunpack.c.h.b16 %v10669
    %v10805 = vunpack.c.l.b16 %v10670
    %v10806 = vunpack.c.h.b16 %v10670
    %v10807 = vunpack.c.l.b16 %v10671
    %v10808 = vunpack.c.h.b16 %v10671
    %v10809 = vunpack.c.l.b16 %v10672
    %v10810 = vunpack.c.h.b16 %v10672
    %v10811 = vunpack.c.l.b16 %v10673
    %v10812 = vunpack.c.h.b16 %v10673
    %v10813 = vunpack.c.l.b16 %v10674
    %v10814 = vunpack.c.h.b16 %v10674
    %v10815 = vunpack.c.l.b16 %v10675
    %v10816 = vunpack.c.h.b16 %v10675
    %v10817 = vunpack.c.l.b16 %v10676
    %v10818 = vunpack.c.h.b16 %v10676
    %v10819 = vunpack.c.l.b16 %v10677
    %v10820 = vunpack.c.h.b16 %v10677
    %v10821 = vunpack.c.l.b16 %v10678
    %v10822 = vunpack.c.h.b16 %v10678
    %v10823 = vunpack.c.l.b16 %v10679
    %v10824 = vunpack.c.h.b16 %v10679
    %v10825 = vunpack.c.l.b16 %v10680
    %v10826 = vunpack.c.h.b16 %v10680
    %v10827 = vunpack.c.l.b16 %v10681
    %v10828 = vunpack.c.h.b16 %v10681
    %v10829 = vunpack.c.l.b16 %v10682
    %v10830 = vunpack.c.h.b16 %v10682
    %v10831 = vunpack.c.l.b16 %v10683
    %v10832 = vunpack.c.h.b16 %v10683
    %v10833 = vunpack.c.l.b16 %v10684
    %v10834 = vunpack.c.h.b16 %v10684
    %v10835 = vunpack.c.l.b16 %v10685
    %v10836 = vunpack.c.h.b16 %v10685
    %v10837 = vpack.c.b16 %v10777, %v10773
    %v10838 = vpack.c.b16 %v10778, %v10774
    %v10839 = vpack.c.b16 %v10779, %v10775
    %v10840 = vpack.c.b16 %v10780, %v10776
    %v10841 = vpack.c.b16 %v10785, %v10781
    %v10842 = vpack.c.b16 %v10786, %v10782
    %v10843 = vpack.c.b16 %v10787, %v10783
    %v10844 = vpack.c.b16 %v10788, %v10784
    %v10845 = vpack.c.b16 %v10793, %v10789
    %v10846 = vpack.c.b16 %v10794, %v10790
    %v10847 = vpack.c.b16 %v10795, %v10791
    %v10848 = vpack.c.b16 %v10796, %v10792
    %v10849 = vpack.c.b16 %v10801, %v10797
    %v10850 = vpack.c.b16 %v10802, %v10798
    %v10851 = vpack.c.b16 %v10803, %v10799
    %v10852 = vpack.c.b16 %v10804, %v10800
    %v10853 = vpack.c.b16 %v10809, %v10805
    %v10854 = vpack.c.b16 %v10810, %v10806
    %v10855 = vpack.c.b16 %v10811, %v10807
    %v10856 = vpack.c.b16 %v10812, %v10808
    %v10857 = vpack.c.b16 %v10817, %v10813
    %v10858 = vpack.c.b16 %v10818, %v10814
    %v10859 = vpack.c.b16 %v10819, %v10815
    %v10860 = vpack.c.b16 %v10820, %v10816
    %v10861 = vpack.c.b16 %v10825, %v10821
    %v10862 = vpack.c.b16 %v10826, %v10822
    %v10863 = vpack.c.b16 %v10827, %v10823
    %v10864 = vpack.c.b16 %v10828, %v10824
    %v10865 = vpack.c.b16 %v10833, %v10829
    %v10866 = vpack.c.b16 %v10834, %v10830
    %v10867 = vpack.c.b16 %v10835, %v10831
    %v10868 = vpack.c.b16 %v10836, %v10832
    %10901 = vmatprep.subr.bf16.mxu0 %v10838
    %10902 = vmatpush1.bf16.msra.mxu0 %v10837
    %10903 = vmatprep.subr.bf16.mxu0 %v10842
    %10904 = vmatpush1.bf16.msra.mxu0 %v10841
    %10905 = vmatprep.subr.bf16.mxu0 %v10846
    %10906 = vmatpush1.bf16.msra.mxu0 %v10845
    %10907 = vmatprep.subr.bf16.mxu0 %v10850
    %10908 = vmatpush1.bf16.msra.mxu0 %v10849
    %10909 = vmatprep.subr.bf16.mxu0 %v10854
    %10910 = vmatpush1.bf16.msra.mxu0 %v10853
    %10911 = vmatprep.subr.bf16.mxu0 %v10858
    %10912 = vmatpush1.bf16.msra.mxu0 %v10857
    %10913 = vmatprep.subr.bf16.mxu0 %v10862
    %10914 = vmatpush1.bf16.msra.mxu0 %v10861
    %10915 = vmatprep.subr.bf16.mxu0 %v10866
    %10916 = vmatpush1.bf16.msra.mxu0 %v10865
    %10917 = vmatprep.subr.bf16.mxu0 0
    %10918 = vmatpush1.bf16.msra.mxu0 0
    %10919 = vmatprep.subr.bf16.mxu0 0
    %10920 = vmatpush1.bf16.msra.mxu0 0
    %10921 = vmatprep.subr.bf16.mxu0 0
    %10922 = vmatpush1.bf16.msra.mxu0 0
    %10923 = vmatprep.subr.bf16.mxu0 0
    %10924 = vmatpush1.bf16.msra.mxu0 0
    %10925 = vmatprep.subr.bf16.mxu0 0
    %10926 = vmatpush1.bf16.msra.mxu0 0
    %10927 = vmatprep.subr.bf16.mxu0 0
    %10928 = vmatpush1.bf16.msra.mxu0 0
    %10929 = vmatprep.subr.bf16.mxu0 0
    %10930 = vmatpush1.bf16.msra.mxu0 0
    %10931 = vmatprep.subr.bf16.mxu0 0
    %10932 = vmatpush1.bf16.msra.mxu0 0
    %10933 = vmatprep.mubr.bf16.mxu0 0
    %10934 = vmatmul.mubr.bf16.gmra.mrb[0].mxu0 %v10719
    %v10935 = vpop.f32.mrb[0].mxu0
    %v10936 = vadd.f32 %v10724, %v10935
    %v10937 = vpop.f32.mrb[0].mxu0
    %v10938 = vadd.f32 %v10728, %v10937
    %v10939 = vpop.f32.mrb[0].mxu0
    %v10940 = vpop.f32.mrb[0].mxu0
    %10941 = vdwg.mxu0
    %10942 = vmatprep.subr.bf16.mxu0 %v10840
    %10943 = vmatpush1.bf16.msra.mxu0 %v10839
    %10944 = vmatprep.subr.bf16.mxu0 %v10844
    %10945 = vmatpush1.bf16.msra.mxu0 %v10843
    %10946 = vmatprep.subr.bf16.mxu0 %v10848
    %10947 = vmatpush1.bf16.msra.mxu0 %v10847
    %10948 = vmatprep.subr.bf16.mxu0 %v10852
    %10949 = vmatpush1.bf16.msra.mxu0 %v10851
    %10950 = vmatprep.subr.bf16.mxu0 %v10856
    %10951 = vmatpush1.bf16.msra.mxu0 %v10855
    %10952 = vmatprep.subr.bf16.mxu0 %v10860
    %10953 = vmatpush1.bf16.msra.mxu0 %v10859
    %10954 = vmatprep.subr.bf16.mxu0 %v10864
    %10955 = vmatpush1.bf16.msra.mxu0 %v10863
    %10956 = vmatprep.subr.bf16.mxu0 %v10868
    %10957 = vmatpush1.bf16.msra.mxu0 %v10867
    %10958 = vmatprep.subr.bf16.mxu0 0
    %10959 = vmatpush1.bf16.msra.mxu0 0
    %10960 = vmatprep.subr.bf16.mxu0 0
    %10961 = vmatpush1.bf16.msra.mxu0 0
    %10962 = vmatprep.subr.bf16.mxu0 0
    %10963 = vmatpush1.bf16.msra.mxu0 0
    %10964 = vmatprep.subr.bf16.mxu0 0
    %10965 = vmatpush1.bf16.msra.mxu0 0
    %10966 = vmatprep.subr.bf16.mxu0 0
    %10967 = vmatpush1.bf16.msra.mxu0 0
    %10968 = vmatprep.subr.bf16.mxu0 0
    %10969 = vmatpush1.bf16.msra.mxu0 0
    %10970 = vmatprep.subr.bf16.mxu0 0
    %10971 = vmatpush1.bf16.msra.mxu0 0
    %10972 = vmatprep.subr.bf16.mxu0 0
    %10973 = vmatpush1.bf16.msra.mxu0 0
    %10974 = vmatprep.mubr.bf16.mxu0 0
    %10975 = vmatmul.mubr.bf16.gmra.mrb[0].mxu0 %v10719
    %v10976 = vpop.f32.mrb[0].mxu0
    %v10977 = vadd.f32 %v10732, %v10976
    %v10978 = vpop.f32.mrb[0].mxu0
    %v10979 = vadd.f32 %v10736, %v10978
    %v10980 = vpop.f32.mrb[0].mxu0
    %v10981 = vpop.f32.mrb[0].mxu0
    %10982 = vdwg.mxu0
    %v10983 = vxor.u32 %v10936, 2147483648
    %v10984 = vmul.f32 %v10983, 1.442695
    %v10985 = vpow.pop %v10984
    %v10986 = vadd.f32 %v10985, 1.0
    %v10987 = vrcp.pop %v10986
    %v10988 = vmul.f32 1.0, %v10987
    %v10989 = vxor.u32 %v10938, 2147483648
    %v10990 = vmul.f32 %v10989, 1.442695
    %v10991 = vpow.pop %v10990
    %v10992 = vadd.f32 %v10991, 1.0
    %v10993 = vrcp.pop %v10992
    %v10994 = vmul.f32 1.0, %v10993
    %v10995 = vtanh.pop %v10977
    %v10996 = vxor.u32 %v10979, 2147483648
    %v10997 = vmul.f32 %v10996, 1.442695
    %v10998 = vpow.pop %v10997
    %v10999 = vadd.f32 %v10998, 1.0
    %v11000 = vrcp.pop %v10999
    %v11001 = vmul.f32 1.0, %v11000
    %v11002 = vmul.f32 %v10994, 0.0
    %v11003 = vmul.f32 %v10988, %v10995
    %v11004 = vadd.f32 %v11002, %v11003
    %v11005 = vtanh.pop %v11004
    %v11006 = vmul.f32 %v11001, %v11005
    %v11007 = vpack.c.bf16 %v11006, %v11006
    %v11040 = vunpack.c.l.b16 %v10686
    %v11041 = vunpack.c.h.b16 %v10686
    %v11042 = vunpack.c.l.b16 %v10687
    %v11043 = vunpack.c.h.b16 %v10687
    %v11044 = vunpack.c.l.b16 %v10688
    %v11045 = vunpack.c.h.b16 %v10688
    %v11046 = vunpack.c.l.b16 %v10689
    %v11047 = vunpack.c.h.b16 %v10689
    %v11048 = vunpack.c.l.b16 %v10690
    %v11049 = vunpack.c.h.b16 %v10690
    %v11050 = vunpack.c.l.b16 %v10691
    %v11051 = vunpack.c.h.b16 %v10691
    %v11052 = vunpack.c.l.b16 %v10692
    %v11053 = vunpack.c.h.b16 %v10692
    %v11054 = vunpack.c.l.b16 %v10693
    %v11055 = vunpack.c.h.b16 %v10693
    %v11056 = vunpack.c.l.b16 %v10694
    %v11057 = vunpack.c.h.b16 %v10694
    %v11058 = vunpack.c.l.b16 %v10695
    %v11059 = vunpack.c.h.b16 %v10695
    %v11060 = vunpack.c.l.b16 %v10696
    %v11061 = vunpack.c.h.b16 %v10696
    %v11062 = vunpack.c.l.b16 %v10697
    %v11063 = vunpack.c.h.b16 %v10697
    %v11064 = vunpack.c.l.b16 %v10698
    %v11065 = vunpack.c.h.b16 %v10698
    %v11066 = vunpack.c.l.b16 %v10699
    %v11067 = vunpack.c.h.b16 %v10699
    %v11068 = vunpack.c.l.b16 %v10700
    %v11069 = vunpack.c.h.b16 %v10700
    %v11070 = vunpack.c.l.b16 %v10701
    %v11071 = vunpack.c.h.b16 %v10701
    %v11072 = vunpack.c.l.b16 %v10702
    %v11073 = vunpack.c.h.b16 %v10702
    %v11074 = vunpack.c.l.b16 %v10703
    %v11075 = vunpack.c.h.b16 %v10703
    %v11076 = vunpack.c.l.b16 %v10704
    %v11077 = vunpack.c.h.b16 %v10704
    %v11078 = vunpack.c.l.b16 %v10705
    %v11079 = vunpack.c.h.b16 %v10705
    %v11080 = vunpack.c.l.b16 %v10706
    %v11081 = vunpack.c.h.b16 %v10706
    %v11082 = vunpack.c.l.b16 %v10707
    %v11083 = vunpack.c.h.b16 %v10707
    %v11084 = vunpack.c.l.b16 %v10708
    %v11085 = vunpack.c.h.b16 %v10708
    %v11086 = vunpack.c.l.b16 %v10709
    %v11087 = vunpack.c.h.b16 %v10709
    %v11088 = vunpack.c.l.b16 %v10710
    %v11089 = vunpack.c.h.b16 %v10710
    %v11090 = vunpack.c.l.b16 %v10711
    %v11091 = vunpack.c.h.b16 %v10711
    %v11092 = vunpack.c.l.b16 %v10712
    %v11093 = vunpack.c.h.b16 %v10712
    %v11094 = vunpack.c.l.b16 %v10713
    %v11095 = vunpack.c.h.b16 %v10713
    %v11096 = vunpack.c.l.b16 %v10714
    %v11097 = vunpack.c.h.b16 %v10714
    %v11098 = vunpack.c.l.b16 %v10715
    %v11099 = vunpack.c.h.b16 %v10715
    %v11100 = vunpack.c.l.b16 %v10716
    %v11101 = vunpack.c.h.b16 %v10716
    %v11102 = vunpack.c.l.b16 %v10717
    %v11103 = vunpack.c.h.b16 %v10717
    %v11104 = vpack.c.b16 %v11044, %v11040
    %v11105 = vpack.c.b16 %v11045, %v11041
    %v11106 = vpack.c.b16 %v11046, %v11042
    %v11107 = vpack.c.b16 %v11047, %v11043
    %v11108 = vpack.c.b16 %v11052, %v11048
    %v11109 = vpack.c.b16 %v11053, %v11049
    %v11110 = vpack.c.b16 %v11054, %v11050
    %v11111 = vpack.c.b16 %v11055, %v11051
    %v11112 = vpack.c.b16 %v11060, %v11056
    %v11113 = vpack.c.b16 %v11061, %v11057
    %v11114 = vpack.c.b16 %v11062, %v11058
    %v11115 = vpack.c.b16 %v11063, %v11059
    %v11116 = vpack.c.b16 %v11068, %v11064
    %v11117 = vpack.c.b16 %v11069, %v11065
    %v11118 = vpack.c.b16 %v11070, %v11066
    %v11119 = vpack.c.b16 %v11071, %v11067
    %v11120 = vpack.c.b16 %v11076, %v11072
    %v11121 = vpack.c.b16 %v11077, %v11073
    %v11122 = vpack.c.b16 %v11078, %v11074
    %v11123 = vpack.c.b16 %v11079, %v11075
    %v11124 = vpack.c.b16 %v11084, %v11080
    %v11125 = vpack.c.b16 %v11085, %v11081
    %v11126 = vpack.c.b16 %v11086, %v11082
    %v11127 = vpack.c.b16 %v11087, %v11083
    %v11128 = vpack.c.b16 %v11092, %v11088
    %v11129 = vpack.c.b16 %v11093, %v11089
    %v11130 = vpack.c.b16 %v11094, %v11090
    %v11131 = vpack.c.b16 %v11095, %v11091
    %v11132 = vpack.c.b16 %v11100, %v11096
    %v11133 = vpack.c.b16 %v11101, %v11097
    %v11134 = vpack.c.b16 %v11102, %v11098
    %v11135 = vpack.c.b16 %v11103, %v11099
    %11168 = vmatprep.subr.bf16.mxu0 %v11105
    %11169 = vmatpush1.bf16.msra.mxu0 %v11104
    %11170 = vmatprep.subr.bf16.mxu0 %v11109
    %11171 = vmatpush1.bf16.msra.mxu0 %v11108
    %11172 = vmatprep.subr.bf16.mxu0 %v11113
    %11173 = vmatpush1.bf16.msra.mxu0 %v11112
    %11174 = vmatprep.subr.bf16.mxu0 %v11117
    %11175 = vmatpush1.bf16.msra.mxu0 %v11116
    %11176 = vmatprep.subr.bf16.mxu0 %v11121
    %11177 = vmatpush1.bf16.msra.mxu0 %v11120
    %11178 = vmatprep.subr.bf16.mxu0 %v11125
    %11179 = vmatpush1.bf16.msra.mxu0 %v11124
    %11180 = vmatprep.subr.bf16.mxu0 %v11129
    %11181 = vmatpush1.bf16.msra.mxu0 %v11128
    %11182 = vmatprep.subr.bf16.mxu0 %v11133
    %11183 = vmatpush1.bf16.msra.mxu0 %v11132
    %11184 = vmatprep.subr.bf16.mxu0 0
    %11185 = vmatpush1.bf16.msra.mxu0 0
    %11186 = vmatprep.subr.bf16.mxu0 0
    %11187 = vmatpush1.bf16.msra.mxu0 0
    %11188 = vmatprep.subr.bf16.mxu0 0
    %11189 = vmatpush1.bf16.msra.mxu0 0
    %11190 = vmatprep.subr.bf16.mxu0 0
    %11191 = vmatpush1.bf16.msra.mxu0 0
    %11192 = vmatprep.subr.bf16.mxu0 0
    %11193 = vmatpush1.bf16.msra.mxu0 0
    %11194 = vmatprep.subr.bf16.mxu0 0
    %11195 = vmatpush1.bf16.msra.mxu0 0
    %11196 = vmatprep.subr.bf16.mxu0 0
    %11197 = vmatpush1.bf16.msra.mxu0 0
    %11198 = vmatprep.subr.bf16.mxu0 0
    %11199 = vmatpush1.bf16.msra.mxu0 0
    %11200 = vmatprep.mubr.bf16.mxu0 0
    %11201 = vmatmul.mubr.bf16.gmra.mrb[0].mxu0 %v11007
    %v11202 = vpop.f32.mrb[0].mxu0
    %v11203 = vadd.f32 %v10724, %v11202
    %v11204 = vpop.f32.mrb[0].mxu0
    %v11205 = vadd.f32 %v10728, %v11204
    %v11206 = vpop.f32.mrb[0].mxu0
    %v11207 = vpop.f32.mrb[0].mxu0
    %11208 = vdwg.mxu0
    %11209 = vmatprep.subr.bf16.mxu0 %v11107
    %11210 = vmatpush1.bf16.msra.mxu0 %v11106
    %11211 = vmatprep.subr.bf16.mxu0 %v11111
    %11212 = vmatpush1.bf16.msra.mxu0 %v11110
    %11213 = vmatprep.subr.bf16.mxu0 %v11115
    %11214 = vmatpush1.bf16.msra.mxu0 %v11114
    %11215 = vmatprep.subr.bf16.mxu0 %v11119
    %11216 = vmatpush1.bf16.msra.mxu0 %v11118
    %11217 = vmatprep.subr.bf16.mxu0 %v11123
    %11218 = vmatpush1.bf16.msra.mxu0 %v11122
    %11219 = vmatprep.subr.bf16.mxu0 %v11127
    %11220 = vmatpush1.bf16.msra.mxu0 %v11126
    %11221 = vmatprep.subr.bf16.mxu0 %v11131
    %11222 = vmatpush1.bf16.msra.mxu0 %v11130
    %11223 = vmatprep.subr.bf16.mxu0 %v11135
    %11224 = vmatpush1.bf16.msra.mxu0 %v11134
    %11225 = vmatprep.subr.bf16.mxu0 0
    %11226 = vmatpush1.bf16.msra.mxu0 0
    %11227 = vmatprep.subr.bf16.mxu0 0
    %11228 = vmatpush1.bf16.msra.mxu0 0
    %11229 = vmatprep.subr.bf16.mxu0 0
    %11230 = vmatpush1.bf16.msra.mxu0 0
    %11231 = vmatprep.subr.bf16.mxu0 0
    %11232 = vmatpush1.bf16.msra.mxu0 0
    %11233 = vmatprep.subr.bf16.mxu0 0
    %11234 = vmatpush1.bf16.msra.mxu0 0
    %11235 = vmatprep.subr.bf16.mxu0 0
    %11236 = vmatpush1.bf16.msra.mxu0 0
    %11237 = vmatprep.subr.bf16.mxu0 0
    %11238 = vmatpush1.bf16.msra.mxu0 0
    %11239 = vmatprep.subr.bf16.mxu0 0
    %11240 = vmatpush1.bf16.msra.mxu0 0
    %11241 = vmatprep.mubr.bf16.mxu0 0
    %11242 = vmatmul.mubr.bf16.gmra.mrb[0].mxu0 %v11007
    %v11243 = vpop.f32.mrb[0].mxu0
    %v11244 = vadd.f32 %v10732, %v11243
    %v11245 = vpop.f32.mrb[0].mxu0
    %v11246 = vadd.f32 %v10736, %v11245
    %v11247 = vpop.f32.mrb[0].mxu0
    %v11248 = vpop.f32.mrb[0].mxu0
    %11249 = vdwg.mxu0
    %v11250 = vxor.u32 %v11203, 2147483648
    %v11251 = vmul.f32 %v11250, 1.442695
    %v11252 = vpow.pop %v11251
    %v11253 = vadd.f32 %v11252, 1.0
    %v11254 = vrcp.pop %v11253
    %v11255 = vmul.f32 1.0, %v11254
    %v11256 = vxor.u32 %v11205, 2147483648
    %v11257 = vmul.f32 %v11256, 1.442695
    %v11258 = vpow.pop %v11257
    %v11259 = vadd.f32 %v11258, 1.0
    %v11260 = vrcp.pop %v11259
    %v11261 = vmul.f32 1.0, %v11260
    %v11262 = vtanh.pop %v11244
    %v11263 = vxor.u32 %v11246, 2147483648
    %v11264 = vmul.f32 %v11263, 1.442695
    %v11265 = vpow.pop %v11264
    %v11266 = vadd.f32 %v11265, 1.0
    %v11267 = vrcp.pop %v11266
    %v11268 = vmul.f32 1.0, %v11267
    %v11269 = vmul.f32 %v11261, %v11004
    %v11270 = vmul.f32 %v11255, %v11262
    %v11271 = vadd.f32 %v11269, %v11270
    %v11272 = vtanh.pop %v11271
    %v11273 = vmul.f32 %v11268, %v11272
    %v11274 = vpack.c.bf16 %v11273, %v11273
    %11275 = vmatprep.subr.bf16.mxu0 %v11105
    %11276 = vmatpush1.bf16.msra.mxu0 %v11104
    %11277 = vmatprep.subr.bf16.mxu0 %v11109
    %11278 = vmatpush1.bf16.msra.mxu0 %v11108
    %11279 = vmatprep.subr.bf16.mxu0 %v11113
    %11280 = vmatpush1.bf16.msra.mxu0 %v11112
    %11281 = vmatprep.subr.bf16.mxu0 %v11117
    %11282 = vmatpush1.bf16.msra.mxu0 %v11116
    %11283 = vmatprep.subr.bf16.mxu0 %v11121
    %11284 = vmatpush1.bf16.msra.mxu0 %v11120
    %11285 = vmatprep.subr.bf16.mxu0 %v11125
    %11286 = vmatpush1.bf16.msra.mxu0 %v11124
    %11287 = vmatprep.subr.bf16.mxu0 %v11129
    %11288 = vmatpush1.bf16.msra.mxu0 %v11128
    %11289 = vmatprep.subr.bf16.mxu0 %v11133
    %11290 = vmatpush1.bf16.msra.mxu0 %v11132
    %11291 = vmatprep.subr.bf16.mxu0 0
    %11292 = vmatpush1.bf16.msra.mxu0 0
    %11293 = vmatprep.subr.bf16.mxu0 0
    %11294 = vmatpush1.bf16.msra.mxu0 0
    %11295 = vmatprep.subr.bf16.mxu0 0
    %11296 = vmatpush1.bf16.msra.mxu0 0
    %11297 = vmatprep.subr.bf16.mxu0 0
    %11298 = vmatpush1.bf16.msra.mxu0 0
    %11299 = vmatprep.subr.bf16.mxu0 0
    %11300 = vmatpush1.bf16.msra.mxu0 0
    %11301 = vmatprep.subr.bf16.mxu0 0
    %11302 = vmatpush1.bf16.msra.mxu0 0
    %11303 = vmatprep.subr.bf16.mxu0 0
    %11304 = vmatpush1.bf16.msra.mxu0 0
    %11305 = vmatprep.subr.bf16.mxu0 0
    %11306 = vmatpush1.bf16.msra.mxu0 0
    %11307 = vmatprep.mubr.bf16.mxu0 0
    %11308 = vmatmul.mubr.bf16.gmra.mrb[0].mxu0 %v11274
    %v11309 = vpop.f32.mrb[0].mxu0
    %v11310 = vadd.f32 %v10724, %v11309
    %v11311 = vpop.f32.mrb[0].mxu0
    %v11312 = vadd.f32 %v10728, %v11311
    %v11313 = vpop.f32.mrb[0].mxu0
    %v11314 = vpop.f32.mrb[0].mxu0
    %11315 = vdwg.mxu0
    %11316 = vmatprep.subr.bf16.mxu0 %v11107
    %11317 = vmatpush1.bf16.msra.mxu0 %v11106
    %11318 = vmatprep.subr.bf16.mxu0 %v11111
    %11319 = vmatpush1.bf16.msra.mxu0 %v11110
    %11320 = vmatprep.subr.bf16.mxu0 %v11115
    %11321 = vmatpush1.bf16.msra.mxu0 %v11114
    %11322 = vmatprep.subr.bf16.mxu0 %v11119
    %11323 = vmatpush1.bf16.msra.mxu0 %v11118
    %11324 = vmatprep.subr.bf16.mxu0 %v11123
    %11325 = vmatpush1.bf16.msra.mxu0 %v11122
    %11326 = vmatprep.subr.bf16.mxu0 %v11127
    %11327 = vmatpush1.bf16.msra.mxu0 %v11126
    %11328 = vmatprep.subr.bf16.mxu0 %v11131
    %11329 = vmatpush1.bf16.msra.mxu0 %v11130
    %11330 = vmatprep.subr.bf16.mxu0 %v11135
    %11331 = vmatpush1.bf16.msra.mxu0 %v11134
    %11332 = vmatprep.subr.bf16.mxu0 0
    %11333 = vmatpush1.bf16.msra.mxu0 0
    %11334 = vmatprep.subr.bf16.mxu0 0
    %11335 = vmatpush1.bf16.msra.mxu0 0
    %11336 = vmatprep.subr.bf16.mxu0 0
    %11337 = vmatpush1.bf16.msra.mxu0 0
    %11338 = vmatprep.subr.bf16.mxu0 0
    %11339 = vmatpush1.bf16.msra.mxu0 0
    %11340 = vmatprep.subr.bf16.mxu0 0
    %11341 = vmatpush1.bf16.msra.mxu0 0
    %11342 = vmatprep.subr.bf16.mxu0 0
    %11343 = vmatpush1.bf16.msra.mxu0 0
    %11344 = vmatprep.subr.bf16.mxu0 0
    %11345 = vmatpush1.bf16.msra.mxu0 0
    %11346 = vmatprep.subr.bf16.mxu0 0
    %11347 = vmatpush1.bf16.msra.mxu0 0
    %11348 = vmatprep.mubr.bf16.mxu0 0
    %11349 = vmatmul.mubr.bf16.gmra.mrb[0].mxu0 %v11274
    %v11350 = vpop.f32.mrb[0].mxu0
    %v11351 = vadd.f32 %v10732, %v11350
    %v11352 = vpop.f32.mrb[0].mxu0
    %v11353 = vadd.f32 %v10736, %v11352
    %v11354 = vpop.f32.mrb[0].mxu0
    %v11355 = vpop.f32.mrb[0].mxu0
    %11356 = vdwg.mxu0
    %v11357 = vxor.u32 %v11310, 2147483648
    %v11358 = vmul.f32 %v11357, 1.442695
    %v11359 = vpow.pop %v11358
    %v11360 = vadd.f32 %v11359, 1.0
    %v11361 = vrcp.pop %v11360
    %v11362 = vmul.f32 1.0, %v11361
    %v11363 = vxor.u32 %v11312, 2147483648
    %v11364 = vmul.f32 %v11363, 1.442695
    %v11365 = vpow.pop %v11364
    %v11366 = vadd.f32 %v11365, 1.0
    %v11367 = vrcp.pop %v11366
    %v11368 = vmul.f32 1.0, %v11367
    %v11369 = vtanh.pop %v11351
    %v11370 = vxor.u32 %v11353, 2147483648
    %v11371 = vmul.f32 %v11370, 1.442695
    %v11372 = vpow.pop %v11371
    %v11373 = vadd.f32 %v11372, 1.0
    %v11374 = vrcp.pop %v11373
    %v11375 = vmul.f32 1.0, %v11374
    %v11376 = vmul.f32 %v11368, %v11271
    %v11377 = vmul.f32 %v11362, %v11369
    %v11378 = vadd.f32 %v11376, %v11377
    %v11379 = vtanh.pop %v11378
    %v11380 = vmul.f32 %v11375, %v11379
    %v11381 = vpack.c.bf16 %v11380, %v11380
    %11382 = vmatprep.subr.bf16.mxu0 %v11105
    %11383 = vmatpush1.bf16.msra.mxu0 %v11104
    %11384 = vmatprep.subr.bf16.mxu0 %v11109
    %11385 = vmatpush1.bf16.msra.mxu0 %v11108
    %11386 = vmatprep.subr.bf16.mxu0 %v11113
    %11387 = vmatpush1.bf16.msra.mxu0 %v11112
    %11388 = vmatprep.subr.bf16.mxu0 %v11117
    %11389 = vmatpush1.bf16.msra.mxu0 %v11116
    %11390 = vmatprep.subr.bf16.mxu0 %v11121
    %11391 = vmatpush1.bf16.msra.mxu0 %v11120
    %11392 = vmatprep.subr.bf16.mxu0 %v11125
    %11393 = vmatpush1.bf16.msra.mxu0 %v11124
    %11394 = vmatprep.subr.bf16.mxu0 %v11129
    %11395 = vmatpush1.bf16.msra.mxu0 %v11128
    %11396 = vmatprep.subr.bf16.mxu0 %v11133
    %11397 = vmatpush1.bf16.msra.mxu0 %v11132
    %11398 = vmatprep.subr.bf16.mxu0 0
    %11399 = vmatpush1.bf16.msra.mxu0 0
    %11400 = vmatprep.subr.bf16.mxu0 0
    %11401 = vmatpush1.bf16.msra.mxu0 0
    %11402 = vmatprep.subr.bf16.mxu0 0
    %11403 = vmatpush1.bf16.msra.mxu0 0
    %11404 = vmatprep.subr.bf16.mxu0 0
    %11405 = vmatpush1.bf16.msra.mxu0 0
    %11406 = vmatprep.subr.bf16.mxu0 0
    %11407 = vmatpush1.bf16.msra.mxu0 0
    %11408 = vmatprep.subr.bf16.mxu0 0
    %11409 = vmatpush1.bf16.msra.mxu0 0
    %11410 = vmatprep.subr.bf16.mxu0 0
    %11411 = vmatpush1.bf16.msra.mxu0 0
    %11412 = vmatprep.subr.bf16.mxu0 0
    %11413 = vmatpush1.bf16.msra.mxu0 0
    %11414 = vmatprep.mubr.bf16.mxu0 0
    %11415 = vmatmul.mubr.bf16.gmra.mrb[0].mxu0 %v11381
    %v11416 = vpop.f32.mrb[0].mxu0
    %v11417 = vadd.f32 %v10724, %v11416
    %v11418 = vpop.f32.mrb[0].mxu0
    %v11419 = vadd.f32 %v10728, %v11418
    %v11420 = vpop.f32.mrb[0].mxu0
    %v11421 = vpop.f32.mrb[0].mxu0
    %11422 = vdwg.mxu0
    %11423 = vmatprep.subr.bf16.mxu0 %v11107
    %11424 = vmatpush1.bf16.msra.mxu0 %v11106
    %11425 = vmatprep.subr.bf16.mxu0 %v11111
    %11426 = vmatpush1.bf16.msra.mxu0 %v11110
    %11427 = vmatprep.subr.bf16.mxu0 %v11115
    %11428 = vmatpush1.bf16.msra.mxu0 %v11114
    %11429 = vmatprep.subr.bf16.mxu0 %v11119
    %11430 = vmatpush1.bf16.msra.mxu0 %v11118
    %11431 = vmatprep.subr.bf16.mxu0 %v11123
    %11432 = vmatpush1.bf16.msra.mxu0 %v11122
    %11433 = vmatprep.subr.bf16.mxu0 %v11127
    %11434 = vmatpush1.bf16.msra.mxu0 %v11126
    %11435 = vmatprep.subr.bf16.mxu0 %v11131
    %11436 = vmatpush1.bf16.msra.mxu0 %v11130
    %11437 = vmatprep.subr.bf16.mxu0 %v11135
    %11438 = vmatpush1.bf16.msra.mxu0 %v11134
    %11439 = vmatprep.subr.bf16.mxu0 0
    %11440 = vmatpush1.bf16.msra.mxu0 0
    %11441 = vmatprep.subr.bf16.mxu0 0
    %11442 = vmatpush1.bf16.msra.mxu0 0
    %11443 = vmatprep.subr.bf16.mxu0 0
    %11444 = vmatpush1.bf16.msra.mxu0 0
    %11445 = vmatprep.subr.bf16.mxu0 0
    %11446 = vmatpush1.bf16.msra.mxu0 0
    %11447 = vmatprep.subr.bf16.mxu0 0
    %11448 = vmatpush1.bf16.msra.mxu0 0
    %11449 = vmatprep.subr.bf16.mxu0 0
    %11450 = vmatpush1.bf16.msra.mxu0 0
    %11451 = vmatprep.subr.bf16.mxu0 0
    %11452 = vmatpush1.bf16.msra.mxu0 0
    %11453 = vmatprep.subr.bf16.mxu0 0
    %11454 = vmatpush1.bf16.msra.mxu0 0
    %11455 = vmatprep.mubr.bf16.mxu0 0
    %11456 = vmatmul.mubr.bf16.gmra.mrb[0].mxu0 %v11381
    %v11457 = vpop.f32.mrb[0].mxu0
    %v11458 = vadd.f32 %v10732, %v11457
    %v11459 = vpop.f32.mrb[0].mxu0
    %v11460 = vadd.f32 %v10736, %v11459
    %v11461 = vpop.f32.mrb[0].mxu0
    %v11462 = vpop.f32.mrb[0].mxu0
    %11463 = vdwg.mxu0
    %v11464 = vxor.u32 %v11417, 2147483648
    %v11465 = vmul.f32 %v11464, 1.442695
    %v11466 = vpow.pop %v11465
    %v11467 = vadd.f32 %v11466, 1.0
    %v11468 = vrcp.pop %v11467
    %v11469 = vmul.f32 1.0, %v11468
    %v11470 = vxor.u32 %v11419, 2147483648
    %v11471 = vmul.f32 %v11470, 1.442695
    %v11472 = vpow.pop %v11471
    %v11473 = vadd.f32 %v11472, 1.0
    %v11474 = vrcp.pop %v11473
    %v11475 = vmul.f32 1.0, %v11474
    %v11476 = vtanh.pop %v11458
    %v11477 = vxor.u32 %v11460, 2147483648
    %v11478 = vmul.f32 %v11477, 1.442695
    %v11479 = vpow.pop %v11478
    %v11480 = vadd.f32 %v11479, 1.0
    %v11481 = vrcp.pop %v11480
    %v11482 = vmul.f32 1.0, %v11481
    %v11483 = vmul.f32 %v11475, %v11378
    %v11484 = vmul.f32 %v11469, %v11476
    %v11485 = vadd.f32 %v11483, %v11484
    %v11486 = vtanh.pop %v11485
    %v11487 = vmul.f32 %v11482, %v11486
    %v11488 = vpack.c.bf16 %v11487, %v11487
    %11489 = vmatprep.subr.bf16.mxu0 %v11105
    %11490 = vmatpush1.bf16.msra.mxu0 %v11104
    %11491 = vmatprep.subr.bf16.mxu0 %v11109
    %11492 = vmatpush1.bf16.msra.mxu0 %v11108
    %11493 = vmatprep.subr.bf16.mxu0 %v11113
    %11494 = vmatpush1.bf16.msra.mxu0 %v11112
    %11495 = vmatprep.subr.bf16.mxu0 %v11117
    %11496 = vmatpush1.bf16.msra.mxu0 %v11116
    %11497 = vmatprep.subr.bf16.mxu0 %v11121
    %11498 = vmatpush1.bf16.msra.mxu0 %v11120
    %11499 = vmatprep.subr.bf16.mxu0 %v11125
    %11500 = vmatpush1.bf16.msra.mxu0 %v11124
    %11501 = vmatprep.subr.bf16.mxu0 %v11129
    %11502 = vmatpush1.bf16.msra.mxu0 %v11128
    %11503 = vmatprep.subr.bf16.mxu0 %v11133
    %11504 = vmatpush1.bf16.msra.mxu0 %v11132
    %11505 = vmatprep.subr.bf16.mxu0 0
    %11506 = vmatpush1.bf16.msra.mxu0 0
    %11507 = vmatprep.subr.bf16.mxu0 0
    %11508 = vmatpush1.bf16.msra.mxu0 0
    %11509 = vmatprep.subr.bf16.mxu0 0
    %11510 = vmatpush1.bf16.msra.mxu0 0
    %11511 = vmatprep.subr.bf16.mxu0 0
    %11512 = vmatpush1.bf16.msra.mxu0 0
    %11513 = vmatprep.subr.bf16.mxu0 0
    %11514 = vmatpush1.bf16.msra.mxu0 0
    %11515 = vmatprep.subr.bf16.mxu0 0
    %11516 = vmatpush1.bf16.msra.mxu0 0
    %11517 = vmatprep.subr.bf16.mxu0 0
    %11518 = vmatpush1.bf16.msra.mxu0 0
    %11519 = vmatprep.subr.bf16.mxu0 0
    %11520 = vmatpush1.bf16.msra.mxu0 0
    %11521 = vmatprep.mubr.bf16.mxu0 0
    %11522 = vmatmul.mubr.bf16.gmra.mrb[0].mxu0 %v11488
    %v11523 = vpop.f32.mrb[0].mxu0
    %v11524 = vadd.f32 %v10724, %v11523
    %v11525 = vpop.f32.mrb[0].mxu0
    %v11526 = vadd.f32 %v10728, %v11525
    %v11527 = vpop.f32.mrb[0].mxu0
    %v11528 = vpop.f32.mrb[0].mxu0
    %11529 = vdwg.mxu0
    %11530 = vmatprep.subr.bf16.mxu0 %v11107
    %11531 = vmatpush1.bf16.msra.mxu0 %v11106
    %11532 = vmatprep.subr.bf16.mxu0 %v11111
    %11533 = vmatpush1.bf16.msra.mxu0 %v11110
    %11534 = vmatprep.subr.bf16.mxu0 %v11115
    %11535 = vmatpush1.bf16.msra.mxu0 %v11114
    %11536 = vmatprep.subr.bf16.mxu0 %v11119
    %11537 = vmatpush1.bf16.msra.mxu0 %v11118
    %11538 = vmatprep.subr.bf16.mxu0 %v11123
    %11539 = vmatpush1.bf16.msra.mxu0 %v11122
    %11540 = vmatprep.subr.bf16.mxu0 %v11127
    %11541 = vmatpush1.bf16.msra.mxu0 %v11126
    %11542 = vmatprep.subr.bf16.mxu0 %v11131
    %11543 = vmatpush1.bf16.msra.mxu0 %v11130
    %11544 = vmatprep.subr.bf16.mxu0 %v11135
    %11545 = vmatpush1.bf16.msra.mxu0 %v11134
    %11546 = vmatprep.subr.bf16.mxu0 0
    %11547 = vmatpush1.bf16.msra.mxu0 0
    %11548 = vmatprep.subr.bf16.mxu0 0
    %11549 = vmatpush1.bf16.msra.mxu0 0
    %11550 = vmatprep.subr.bf16.mxu0 0
    %11551 = vmatpush1.bf16.msra.mxu0 0
    %11552 = vmatprep.subr.bf16.mxu0 0
    %11553 = vmatpush1.bf16.msra.mxu0 0
    %11554 = vmatprep.subr.bf16.mxu0 0
    %11555 = vmatpush1.bf16.msra.mxu0 0
    %11556 = vmatprep.subr.bf16.mxu0 0
    %11557 = vmatpush1.bf16.msra.mxu0 0
    %11558 = vmatprep.subr.bf16.mxu0 0
    %11559 = vmatpush1.bf16.msra.mxu0 0
    %11560 = vmatprep.subr.bf16.mxu0 0
    %11561 = vmatpush1.bf16.msra.mxu0 0
    %11562 = vmatprep.mubr.bf16.mxu0 0
    %11563 = vmatmul.mubr.bf16.gmra.mrb[0].mxu0 %v11488
    %v11564 = vpop.f32.mrb[0].mxu0
    %v11565 = vadd.f32 %v10732, %v11564
    %v11566 = vpop.f32.mrb[0].mxu0
    %v11567 = vadd.f32 %v10736, %v11566
    %v11568 = vpop.f32.mrb[0].mxu0
    %v11569 = vpop.f32.mrb[0].mxu0
    %11570 = vdwg.mxu0
    %v11571 = vxor.u32 %v11524, 2147483648
    %v11572 = vmul.f32 %v11571, 1.442695
    %v11573 = vpow.pop %v11572
    %v11574 = vadd.f32 %v11573, 1.0
    %v11575 = vrcp.pop %v11574
    %v11576 = vmul.f32 1.0, %v11575
    %v11577 = vxor.u32 %v11526, 2147483648
    %v11578 = vmul.f32 %v11577, 1.442695
    %v11579 = vpow.pop %v11578
    %v11580 = vadd.f32 %v11579, 1.0
    %v11581 = vrcp.pop %v11580
    %v11582 = vmul.f32 1.0, %v11581
    %v11583 = vtanh.pop %v11565
    %v11584 = vxor.u32 %v11567, 2147483648
    %v11585 = vmul.f32 %v11584, 1.442695
    %v11586 = vpow.pop %v11585
    %v11587 = vadd.f32 %v11586, 1.0
    %v11588 = vrcp.pop %v11587
    %v11589 = vmul.f32 1.0, %v11588
    %v11590 = vmul.f32 %v11582, %v11485
    %v11591 = vmul.f32 %v11576, %v11583
    %v11592 = vadd.f32 %v11590, %v11591
    %v11593 = vtanh.pop %v11592
    %v11594 = vmul.f32 %v11589, %v11593
    %v11595 = vpack.c.bf16 %v11594, %v11594
    %11596 = vmatprep.subr.bf16.mxu0 %v11105
    %11597 = vmatpush1.bf16.msra.mxu0 %v11104
    %11598 = vmatprep.subr.bf16.mxu0 %v11109
    %11599 = vmatpush1.bf16.msra.mxu0 %v11108
    %11600 = vmatprep.subr.bf16.mxu0 %v11113
    %11601 = vmatpush1.bf16.msra.mxu0 %v11112
    %11602 = vmatprep.subr.bf16.mxu0 %v11117
    %11603 = vmatpush1.bf16.msra.mxu0 %v11116
    %11604 = vmatprep.subr.bf16.mxu0 %v11121
    %11605 = vmatpush1.bf16.msra.mxu0 %v11120
    %11606 = vmatprep.subr.bf16.mxu0 %v11125
    %11607 = vmatpush1.bf16.msra.mxu0 %v11124
    %11608 = vmatprep.subr.bf16.mxu0 %v11129
    %11609 = vmatpush1.bf16.msra.mxu0 %v11128
    %11610 = vmatprep.subr.bf16.mxu0 %v11133
    %11611 = vmatpush1.bf16.msra.mxu0 %v11132
    %11612 = vmatprep.subr.bf16.mxu0 0
    %11613 = vmatpush1.bf16.msra.mxu0 0
    %11614 = vmatprep.subr.bf16.mxu0 0
    %11615 = vmatpush1.bf16.msra.mxu0 0
    %11616 = vmatprep.subr.bf16.mxu0 0
    %11617 = vmatpush1.bf16.msra.mxu0 0
    %11618 = vmatprep.subr.bf16.mxu0 0
    %11619 = vmatpush1.bf16.msra.mxu0 0
    %11620 = vmatprep.subr.bf16.mxu0 0
    %11621 = vmatpush1.bf16.msra.mxu0 0
    %11622 = vmatprep.subr.bf16.mxu0 0
    %11623 = vmatpush1.bf16.msra.mxu0 0
    %11624 = vmatprep.subr.bf16.mxu0 0
    %11625 = vmatpush1.bf16.msra.mxu0 0
    %11626 = vmatprep.subr.bf16.mxu0 0
    %11627 = vmatpush1.bf16.msra.mxu0 0
    %11628 = vmatprep.mubr.bf16.mxu0 0
    %11629 = vmatmul.mubr.bf16.gmra.mrb[0].mxu0 %v11595
    %v11630 = vpop.f32.mrb[0].mxu0
    %v11631 = vadd.f32 %v10724, %v11630
    %v11632 = vpop.f32.mrb[0].mxu0
    %v11633 = vadd.f32 %v10728, %v11632
    %v11634 = vpop.f32.mrb[0].mxu0
    %v11635 = vpop.f32.mrb[0].mxu0
    %11636 = vdwg.mxu0
    %11637 = vmatprep.subr.bf16.mxu0 %v11107
    %11638 = vmatpush1.bf16.msra.mxu0 %v11106
    %11639 = vmatprep.subr.bf16.mxu0 %v11111
    %11640 = vmatpush1.bf16.msra.mxu0 %v11110
    %11641 = vmatprep.subr.bf16.mxu0 %v11115
    %11642 = vmatpush1.bf16.msra.mxu0 %v11114
    %11643 = vmatprep.subr.bf16.mxu0 %v11119
    %11644 = vmatpush1.bf16.msra.mxu0 %v11118
    %11645 = vmatprep.subr.bf16.mxu0 %v11123
    %11646 = vmatpush1.bf16.msra.mxu0 %v11122
    %11647 = vmatprep.subr.bf16.mxu0 %v11127
    %11648 = vmatpush1.bf16.msra.mxu0 %v11126
    %11649 = vmatprep.subr.bf16.mxu0 %v11131
    %11650 = vmatpush1.bf16.msra.mxu0 %v11130
    %11651 = vmatprep.subr.bf16.mxu0 %v11135
    %11652 = vmatpush1.bf16.msra.mxu0 %v11134
    %11653 = vmatprep.subr.bf16.mxu0 0
    %11654 = vmatpush1.bf16.msra.mxu0 0
    %11655 = vmatprep.subr.bf16.mxu0 0
    %11656 = vmatpush1.bf16.msra.mxu0 0
    %11657 = vmatprep.subr.bf16.mxu0 0
    %11658 = vmatpush1.bf16.msra.mxu0 0
    %11659 = vmatprep.subr.bf16.mxu0 0
    %11660 = vmatpush1.bf16.msra.mxu0 0
    %11661 = vmatprep.subr.bf16.mxu0 0
    %11662 = vmatpush1.bf16.msra.mxu0 0
    %11663 = vmatprep.subr.bf16.mxu0 0
    %11664 = vmatpush1.bf16.msra.mxu0 0
    %11665 = vmatprep.subr.bf16.mxu0 0
    %11666 = vmatpush1.bf16.msra.mxu0 0
    %11667 = vmatprep.subr.bf16.mxu0 0
    %11668 = vmatpush1.bf16.msra.mxu0 0
    %11669 = vmatprep.mubr.bf16.mxu0 0
    %11670 = vmatmul.mubr.bf16.gmra.mrb[0].mxu0 %v11595
    %v11671 = vpop.f32.mrb[0].mxu0
    %v11672 = vadd.f32 %v10732, %v11671
    %v11673 = vpop.f32.mrb[0].mxu0
    %v11674 = vadd.f32 %v10736, %v11673
    %v11675 = vpop.f32.mrb[0].mxu0
    %v11676 = vpop.f32.mrb[0].mxu0
    %11677 = vdwg.mxu0
    %v11678 = vxor.u32 %v11631, 2147483648
    %v11679 = vmul.f32 %v11678, 1.442695
    %v11680 = vpow.pop %v11679
    %v11681 = vadd.f32 %v11680, 1.0
    %v11682 = vrcp.pop %v11681
    %v11683 = vmul.f32 1.0, %v11682
    %v11684 = vxor.u32 %v11633, 2147483648
    %v11685 = vmul.f32 %v11684, 1.442695
    %v11686 = vpow.pop %v11685
    %v11687 = vadd.f32 %v11686, 1.0
    %v11688 = vrcp.pop %v11687
    %v11689 = vmul.f32 1.0, %v11688
    %v11690 = vtanh.pop %v11672
    %v11691 = vxor.u32 %v11674, 2147483648
    %v11692 = vmul.f32 %v11691, 1.442695
    %v11693 = vpow.pop %v11692
    %v11694 = vadd.f32 %v11693, 1.0
    %v11695 = vrcp.pop %v11694
    %v11696 = vmul.f32 1.0, %v11695
    %v11697 = vmul.f32 %v11689, %v11592
    %v11698 = vmul.f32 %v11683, %v11690
    %v11699 = vadd.f32 %v11697, %v11698
    %v11700 = vtanh.pop %v11699
    %v11701 = vmul.f32 %v11696, %v11700
    %v11702 = vpack.c.bf16 %v11701, %v11701
    %v11703 = vld [vmem:[#allocation21] sm:$0xf]
    %v11704 = vld [vmem:[#allocation21 + $0x4] sm:$0xf]
    %v11705 = vld [vmem:[#allocation21 + $0x8] sm:$0xf]
    %v11706 = vld [vmem:[#allocation21 + $0xc] sm:$0xf]
    %v11707 = vld [vmem:[#allocation21 + $0x10] sm:$0xf]
    %v11708 = vld [vmem:[#allocation21 + $0x14] sm:$0xf]
    %v11709 = vld [vmem:[#allocation21 + $0x18] sm:$0xf]
    %v11710 = vld [vmem:[#allocation21 + $0x1c] sm:$0xf]
    %v11711 = vld [vmem:[#allocation21 + $0x20] sm:$0xf]
    %v11712 = vld [vmem:[#allocation21 + $0x24] sm:$0xf]
    %v11713 = vld [vmem:[#allocation21 + $0x28] sm:$0xf]
    %v11714 = vld [vmem:[#allocation21 + $0x2c] sm:$0xf]
    %v11715 = vld [vmem:[#allocation21 + $0x30] sm:$0xf]
    %v11716 = vld [vmem:[#allocation21 + $0x34] sm:$0xf]
    %v11717 = vld [vmem:[#allocation21 + $0x38] sm:$0xf]
    %v11718 = vld [vmem:[#allocation21 + $0x3c] sm:$0xf]
    %v11719 = vld [vmem:[#allocation21 + $0x40] sm:$0xf]
    %v11720 = vld [vmem:[#allocation21 + $0x44] sm:$0xf]
    %v11721 = vld [vmem:[#allocation21 + $0x48] sm:$0xf]
    %v11722 = vld [vmem:[#allocation21 + $0x4c] sm:$0xf]
    %v11723 = vld [vmem:[#allocation21 + $0x50] sm:$0xf]
    %v11724 = vld [vmem:[#allocation21 + $0x54] sm:$0xf]
    %v11725 = vld [vmem:[#allocation21 + $0x58] sm:$0xf]
    %v11726 = vld [vmem:[#allocation21 + $0x5c] sm:$0xf]
    %v11727 = vld [vmem:[#allocation21 + $0x60] sm:$0xf]
    %v11728 = vld [vmem:[#allocation21 + $0x64] sm:$0xf]
    %v11729 = vld [vmem:[#allocation21 + $0x68] sm:$0xf]
    %v11730 = vld [vmem:[#allocation21 + $0x6c] sm:$0xf]
    %v11731 = vld [vmem:[#allocation21 + $0x70] sm:$0xf]
    %v11732 = vld [vmem:[#allocation21 + $0x74] sm:$0xf]
    %v11733 = vld [vmem:[#allocation21 + $0x78] sm:$0xf]
    %v11734 = vld [vmem:[#allocation21 + $0x7c] sm:$0xf]
    %v11735 = vld [vmem:[#allocation21 + $0x80] sm:$0xf]
    %v11736 = vld [vmem:[#allocation21 + $0x84] sm:$0xf]
    %v11737 = vld [vmem:[#allocation21 + $0x88] sm:$0xf]
    %v11738 = vld [vmem:[#allocation21 + $0x8c] sm:$0xf]
    %v11739 = vld [vmem:[#allocation21 + $0x90] sm:$0xf]
    %v11740 = vld [vmem:[#allocation21 + $0x94] sm:$0xf]
    %v11741 = vld [vmem:[#allocation21 + $0x98] sm:$0xf]
    %v11742 = vld [vmem:[#allocation21 + $0x9c] sm:$0xf]
    %v11743 = vld [vmem:[#allocation21 + $0xa0] sm:$0xf]
    %v11744 = vld [vmem:[#allocation21 + $0xa4] sm:$0xf]
    %v11745 = vld [vmem:[#allocation21 + $0xa8] sm:$0xf]
    %v11746 = vld [vmem:[#allocation21 + $0xac] sm:$0xf]
    %v11747 = vld [vmem:[#allocation21 + $0xb0] sm:$0xf]
    %v11748 = vld [vmem:[#allocation21 + $0xb4] sm:$0xf]
    %v11749 = vld [vmem:[#allocation21 + $0xb8] sm:$0xf]
    %v11750 = vld [vmem:[#allocation21 + $0xbc] sm:$0xf]
    %v11751 = vld [vmem:[#allocation21 + $0xc0] sm:$0xf]
    %v11752 = vld [vmem:[#allocation21 + $0xc4] sm:$0xf]
    %v11753 = vld [vmem:[#allocation21 + $0xc8] sm:$0xf]
    %v11754 = vld [vmem:[#allocation21 + $0xcc] sm:$0xf]
    %v11755 = vld [vmem:[#allocation21 + $0xd0] sm:$0xf]
    %v11756 = vld [vmem:[#allocation21 + $0xd4] sm:$0xf]
    %v11757 = vld [vmem:[#allocation21 + $0xd8] sm:$0xf]
    %v11758 = vld [vmem:[#allocation21 + $0xdc] sm:$0xf]
    %v11759 = vld [vmem:[#allocation21 + $0xe0] sm:$0xf]
    %v11760 = vld [vmem:[#allocation21 + $0xe4] sm:$0xf]
    %v11761 = vld [vmem:[#allocation21 + $0xe8] sm:$0xf]
    %v11762 = vld [vmem:[#allocation21 + $0xec] sm:$0xf]
    %v11763 = vld [vmem:[#allocation21 + $0xf0] sm:$0xf]
    %v11764 = vld [vmem:[#allocation21 + $0xf4] sm:$0xf]
    %v11765 = vld [vmem:[#allocation21 + $0xf8] sm:$0xf]
    %v11766 = vld [vmem:[#allocation21 + $0xfc] sm:$0xf]
    %v11767 = vld [vmem:[#allocation21 + $0x100] sm:$0xf]
    %v11768 = vld [vmem:[#allocation21 + $0x104] sm:$0xf]
    %v11769 = vld [vmem:[#allocation21 + $0x108] sm:$0xf]
    %v11770 = vld [vmem:[#allocation21 + $0x10c] sm:$0xf]
    %v11771 = vld [vmem:[#allocation21 + $0x110] sm:$0xf]
    %v11772 = vld [vmem:[#allocation21 + $0x114] sm:$0xf]
    %v11773 = vld [vmem:[#allocation21 + $0x118] sm:$0xf]
    %v11774 = vld [vmem:[#allocation21 + $0x11c] sm:$0xf]
    %v11775 = vld [vmem:[#allocation21 + $0x120] sm:$0xf]
    %v11776 = vld [vmem:[#allocation21 + $0x124] sm:$0xf]
    %v11777 = vld [vmem:[#allocation21 + $0x128] sm:$0xf]
    %v11778 = vld [vmem:[#allocation21 + $0x12c] sm:$0xf]
    %v11779 = vld [vmem:[#allocation21 + $0x130] sm:$0xf]
    %v11780 = vld [vmem:[#allocation21 + $0x134] sm:$0xf]
    %v11781 = vld [vmem:[#allocation21 + $0x138] sm:$0xf]
    %v11782 = vld [vmem:[#allocation21 + $0x13c] sm:$0xf]
    %v11783 = vld [vmem:[#allocation21 + $0x140] sm:$0xf]
    %v11784 = vld [vmem:[#allocation21 + $0x144] sm:$0xf]
    %v11785 = vld [vmem:[#allocation21 + $0x148] sm:$0xf]
    %v11786 = vld [vmem:[#allocation21 + $0x14c] sm:$0xf]
    %v11787 = vld [vmem:[#allocation21 + $0x150] sm:$0xf]
    %v11788 = vld [vmem:[#allocation21 + $0x154] sm:$0xf]
    %v11789 = vld [vmem:[#allocation21 + $0x158] sm:$0xf]
    %v11790 = vld [vmem:[#allocation21 + $0x15c] sm:$0xf]
    %v11791 = vld [vmem:[#allocation21 + $0x160] sm:$0xf]
    %v11792 = vld [vmem:[#allocation21 + $0x164] sm:$0xf]
    %v11793 = vld [vmem:[#allocation21 + $0x168] sm:$0xf]
    %v11794 = vld [vmem:[#allocation21 + $0x16c] sm:$0xf]
    %v11795 = vld [vmem:[#allocation21 + $0x170] sm:$0xf]
    %v11796 = vld [vmem:[#allocation21 + $0x174] sm:$0xf]
    %v11797 = vld [vmem:[#allocation21 + $0x178] sm:$0xf]
    %v11798 = vld [vmem:[#allocation21 + $0x17c] sm:$0xf]
    %v11799 = vld [vmem:[#allocation22] sm:$0x1]
    %v11801 = vlaneseq
    %v11802 = vshrl.u32 %v11801, 7
    %v11803 = vsub.s32 0, %v11802
    %v11804 = vrot.slane %v11799, %v11803
    %v11902 = vunpack.c.l.b16 %v11703
    %v11903 = vunpack.c.l.b16 %v11704
    %v11904 = vunpack.c.l.b16 %v11705
    %v11905 = vunpack.c.l.b16 %v11706
    %v11906 = vunpack.c.l.b16 %v11707
    %v11907 = vunpack.c.l.b16 %v11708
    %v11908 = vunpack.c.l.b16 %v11709
    %v11909 = vunpack.c.l.b16 %v11710
    %v11910 = vunpack.c.l.b16 %v11711
    %v11911 = vunpack.c.l.b16 %v11712
    %v11912 = vunpack.c.l.b16 %v11713
    %v11913 = vunpack.c.l.b16 %v11714
    %v11914 = vunpack.c.l.b16 %v11715
    %v11915 = vunpack.c.l.b16 %v11716
    %v11916 = vunpack.c.l.b16 %v11717
    %v11917 = vunpack.c.l.b16 %v11718
    %v11918 = vunpack.c.l.b16 %v11719
    %v11919 = vunpack.c.l.b16 %v11720
    %v11920 = vunpack.c.l.b16 %v11721
    %v11921 = vunpack.c.l.b16 %v11722
    %v11922 = vunpack.c.l.b16 %v11723
    %v11923 = vunpack.c.l.b16 %v11724
    %v11924 = vunpack.c.l.b16 %v11725
    %v11925 = vunpack.c.l.b16 %v11726
    %v11926 = vunpack.c.l.b16 %v11727
    %v11927 = vunpack.c.l.b16 %v11728
    %v11928 = vunpack.c.l.b16 %v11729
    %v11929 = vunpack.c.l.b16 %v11730
    %v11930 = vunpack.c.l.b16 %v11731
    %v11931 = vunpack.c.l.b16 %v11732
    %v11932 = vunpack.c.l.b16 %v11733
    %v11933 = vunpack.c.l.b16 %v11734
    %v11934 = vunpack.c.l.b16 %v11735
    %v11935 = vunpack.c.l.b16 %v11736
    %v11936 = vunpack.c.l.b16 %v11737
    %v11937 = vunpack.c.l.b16 %v11738
    %v11938 = vunpack.c.l.b16 %v11739
    %v11939 = vunpack.c.l.b16 %v11740
    %v11940 = vunpack.c.l.b16 %v11741
    %v11941 = vunpack.c.l.b16 %v11742
    %v11942 = vunpack.c.l.b16 %v11743
    %v11943 = vunpack.c.l.b16 %v11744
    %v11944 = vunpack.c.l.b16 %v11745
    %v11945 = vunpack.c.l.b16 %v11746
    %v11946 = vunpack.c.l.b16 %v11747
    %v11947 = vunpack.c.l.b16 %v11748
    %v11948 = vunpack.c.l.b16 %v11749
    %v11949 = vunpack.c.l.b16 %v11750
    %v11950 = vunpack.c.l.b16 %v11751
    %v11951 = vunpack.c.l.b16 %v11752
    %v11952 = vunpack.c.l.b16 %v11753
    %v11953 = vunpack.c.l.b16 %v11754
    %v11954 = vunpack.c.l.b16 %v11755
    %v11955 = vunpack.c.l.b16 %v11756
    %v11956 = vunpack.c.l.b16 %v11757
    %v11957 = vunpack.c.l.b16 %v11758
    %v11958 = vunpack.c.l.b16 %v11759
    %v11959 = vunpack.c.l.b16 %v11760
    %v11960 = vunpack.c.l.b16 %v11761
    %v11961 = vunpack.c.l.b16 %v11762
    %v11962 = vunpack.c.l.b16 %v11763
    %v11963 = vunpack.c.l.b16 %v11764
    %v11964 = vunpack.c.l.b16 %v11765
    %v11965 = vunpack.c.l.b16 %v11766
    %v11966 = vunpack.c.l.b16 %v11767
    %v11967 = vunpack.c.l.b16 %v11768
    %v11968 = vunpack.c.l.b16 %v11769
    %v11969 = vunpack.c.l.b16 %v11770
    %v11970 = vunpack.c.l.b16 %v11771
    %v11971 = vunpack.c.l.b16 %v11772
    %v11972 = vunpack.c.l.b16 %v11773
    %v11973 = vunpack.c.l.b16 %v11774
    %v11974 = vunpack.c.l.b16 %v11775
    %v11975 = vunpack.c.l.b16 %v11776
    %v11976 = vunpack.c.l.b16 %v11777
    %v11977 = vunpack.c.l.b16 %v11778
    %v11978 = vunpack.c.l.b16 %v11779
    %v11979 = vunpack.c.l.b16 %v11780
    %v11980 = vunpack.c.l.b16 %v11781
    %v11981 = vunpack.c.l.b16 %v11782
    %v11982 = vunpack.c.l.b16 %v11783
    %v11983 = vunpack.c.l.b16 %v11784
    %v11984 = vunpack.c.l.b16 %v11785
    %v11985 = vunpack.c.l.b16 %v11786
    %v11986 = vunpack.c.l.b16 %v11787
    %v11987 = vunpack.c.l.b16 %v11788
    %v11988 = vunpack.c.l.b16 %v11789
    %v11989 = vunpack.c.l.b16 %v11790
    %v11990 = vunpack.c.l.b16 %v11791
    %v11991 = vunpack.c.l.b16 %v11792
    %v11992 = vunpack.c.l.b16 %v11793
    %v11993 = vunpack.c.l.b16 %v11794
    %v11994 = vunpack.c.l.b16 %v11795
    %v11995 = vunpack.c.l.b16 %v11796
    %v11996 = vunpack.c.l.b16 %v11797
    %v11997 = vunpack.c.l.b16 %v11798
    %v11998 = vpack.c.b16 %v11903, %v11902
    %v11999 = vpack.c.b16 %v11905, %v11904
    %v12000 = vpack.c.b16 %v11907, %v11906
    %v12001 = vpack.c.b16 %v11909, %v11908
    %v12002 = vpack.c.b16 %v11911, %v11910
    %v12003 = vpack.c.b16 %v11913, %v11912
    %v12004 = vpack.c.b16 %v11915, %v11914
    %v12005 = vpack.c.b16 %v11917, %v11916
    %v12006 = vpack.c.b16 %v11919, %v11918
    %v12007 = vpack.c.b16 %v11921, %v11920
    %v12008 = vpack.c.b16 %v11923, %v11922
    %v12009 = vpack.c.b16 %v11925, %v11924
    %v12010 = vpack.c.b16 %v11927, %v11926
    %v12011 = vpack.c.b16 %v11929, %v11928
    %v12012 = vpack.c.b16 %v11931, %v11930
    %v12013 = vpack.c.b16 %v11933, %v11932
    %v12014 = vpack.c.b16 %v11935, %v11934
    %v12015 = vpack.c.b16 %v11937, %v11936
    %v12016 = vpack.c.b16 %v11939, %v11938
    %v12017 = vpack.c.b16 %v11941, %v11940
    %v12018 = vpack.c.b16 %v11943, %v11942
    %v12019 = vpack.c.b16 %v11945, %v11944
    %v12020 = vpack.c.b16 %v11947, %v11946
    %v12021 = vpack.c.b16 %v11949, %v11948
    %v12022 = vpack.c.b16 %v11951, %v11950
    %v12023 = vpack.c.b16 %v11953, %v11952
    %v12024 = vpack.c.b16 %v11955, %v11954
    %v12025 = vpack.c.b16 %v11957, %v11956
    %v12026 = vpack.c.b16 %v11959, %v11958
    %v12027 = vpack.c.b16 %v11961, %v11960
    %v12028 = vpack.c.b16 %v11963, %v11962
    %v12029 = vpack.c.b16 %v11965, %v11964
    %v12030 = vpack.c.b16 %v11967, %v11966
    %v12031 = vpack.c.b16 %v11969, %v11968
    %v12032 = vpack.c.b16 %v11971, %v11970
    %v12033 = vpack.c.b16 %v11973, %v11972
    %v12034 = vpack.c.b16 %v11975, %v11974
    %v12035 = vpack.c.b16 %v11977, %v11976
    %v12036 = vpack.c.b16 %v11979, %v11978
    %v12037 = vpack.c.b16 %v11981, %v11980
    %v12038 = vpack.c.b16 %v11983, %v11982
    %v12039 = vpack.c.b16 %v11985, %v11984
    %v12040 = vpack.c.b16 %v11987, %v11986
    %v12041 = vpack.c.b16 %v11989, %v11988
    %v12042 = vpack.c.b16 %v11991, %v11990
    %v12043 = vpack.c.b16 %v11993, %v11992
    %v12044 = vpack.c.b16 %v11995, %v11994
    %v12045 = vpack.c.b16 %v11997, %v11996
    %12094 = vmatprep.subr.bf16.mxu0 0
    %12095 = vmatpush1.bf16.msra.mxu0 %v11998
    %12096 = vmatprep.subr.bf16.mxu0 0
    %12097 = vmatpush1.bf16.msra.mxu0 %v11999
    %12098 = vmatprep.subr.bf16.mxu0 0
    %12099 = vmatpush1.bf16.msra.mxu0 %v12000
    %12100 = vmatprep.subr.bf16.mxu0 0
    %12101 = vmatpush1.bf16.msra.mxu0 %v12001
    %12102 = vmatprep.subr.bf16.mxu0 0
    %12103 = vmatpush1.bf16.msra.mxu0 %v12002
    %12104 = vmatprep.subr.bf16.mxu0 0
    %12105 = vmatpush1.bf16.msra.mxu0 %v12003
    %12106 = vmatprep.subr.bf16.mxu0 0
    %12107 = vmatpush1.bf16.msra.mxu0 %v12004
    %12108 = vmatprep.subr.bf16.mxu0 0
    %12109 = vmatpush1.bf16.msra.mxu0 %v12005
    %12110 = vmatprep.subr.bf16.mxu0 0
    %12111 = vmatpush1.bf16.msra.mxu0 %v12006
    %12112 = vmatprep.subr.bf16.mxu0 0
    %12113 = vmatpush1.bf16.msra.mxu0 %v12007
    %12114 = vmatprep.subr.bf16.mxu0 0
    %12115 = vmatpush1.bf16.msra.mxu0 %v12008
    %12116 = vmatprep.subr.bf16.mxu0 0
    %12117 = vmatpush1.bf16.msra.mxu0 %v12009
    %12118 = vmatprep.subr.bf16.mxu0 0
    %12119 = vmatpush1.bf16.msra.mxu0 %v12010
    %12120 = vmatprep.subr.bf16.mxu0 0
    %12121 = vmatpush1.bf16.msra.mxu0 %v12011
    %12122 = vmatprep.subr.bf16.mxu0 0
    %12123 = vmatpush1.bf16.msra.mxu0 %v12012
    %12124 = vmatprep.subr.bf16.mxu0 0
    %12125 = vmatpush1.bf16.msra.mxu0 %v12013
    %12126 = vmatprep.mubr.bf16.mxu0 %v11274
    %12127 = vmatmul.mubr.bf16.gmra.mrb[0].mxu0 %v11007
    %v12128 = vpop.f32.mrb[0].mxu0
    %v12129 = vadd.f32 %v11804, %v12128
    %v12130 = vpop.f32.mrb[0].mxu0
    %v12131 = vpop.f32.mrb[0].mxu0
    %v12132 = vpop.f32.mrb[0].mxu0
    %12133 = vdwg.mxu0
    %12134 = vmatprep.subr.bf16.mxu0 0
    %12135 = vmatpush1.bf16.msra.mxu0 %v12014
    %12136 = vmatprep.subr.bf16.mxu0 0
    %12137 = vmatpush1.bf16.msra.mxu0 %v12015
    %12138 = vmatprep.subr.bf16.mxu0 0
    %12139 = vmatpush1.bf16.msra.mxu0 %v12016
    %12140 = vmatprep.subr.bf16.mxu0 0
    %12141 = vmatpush1.bf16.msra.mxu0 %v12017
    %12142 = vmatprep.subr.bf16.mxu0 0
    %12143 = vmatpush1.bf16.msra.mxu0 %v12018
    %12144 = vmatprep.subr.bf16.mxu0 0
    %12145 = vmatpush1.bf16.msra.mxu0 %v12019
    %12146 = vmatprep.subr.bf16.mxu0 0
    %12147 = vmatpush1.bf16.msra.mxu0 %v12020
    %12148 = vmatprep.subr.bf16.mxu0 0
    %12149 = vmatpush1.bf16.msra.mxu0 %v12021
    %12150 = vmatprep.subr.bf16.mxu0 0
    %12151 = vmatpush1.bf16.msra.mxu0 %v12022
    %12152 = vmatprep.subr.bf16.mxu0 0
    %12153 = vmatpush1.bf16.msra.mxu0 %v12023
    %12154 = vmatprep.subr.bf16.mxu0 0
    %12155 = vmatpush1.bf16.msra.mxu0 %v12024
    %12156 = vmatprep.subr.bf16.mxu0 0
    %12157 = vmatpush1.bf16.msra.mxu0 %v12025
    %12158 = vmatprep.subr.bf16.mxu0 0
    %12159 = vmatpush1.bf16.msra.mxu0 %v12026
    %12160 = vmatprep.subr.bf16.mxu0 0
    %12161 = vmatpush1.bf16.msra.mxu0 %v12027
    %12162 = vmatprep.subr.bf16.mxu0 0
    %12163 = vmatpush1.bf16.msra.mxu0 %v12028
    %12164 = vmatprep.subr.bf16.mxu0 0
    %12165 = vmatpush1.bf16.msra.mxu0 %v12029
    %12166 = vmatprep.mubr.bf16.mxu0 %v11488
    %12167 = vmatmul.mubr.bf16.gmra.mrb[0].mxu0 %v11381
    %v12168 = vpop.f32.mrb[0].mxu0
    %v12169 = vadd.f32 %v12129, %v12168
    %v12170 = vpop.f32.mrb[0].mxu0
    %v12171 = vpop.f32.mrb[0].mxu0
    %v12172 = vpop.f32.mrb[0].mxu0
    %12173 = vdwg.mxu0
    %12174 = vmatprep.subr.bf16.mxu0 0
    %12175 = vmatpush1.bf16.msra.mxu0 %v12030
    %12176 = vmatprep.subr.bf16.mxu0 0
    %12177 = vmatpush1.bf16.msra.mxu0 %v12031
    %12178 = vmatprep.subr.bf16.mxu0 0
    %12179 = vmatpush1.bf16.msra.mxu0 %v12032
    %12180 = vmatprep.subr.bf16.mxu0 0
    %12181 = vmatpush1.bf16.msra.mxu0 %v12033
    %12182 = vmatprep.subr.bf16.mxu0 0
    %12183 = vmatpush1.bf16.msra.mxu0 %v12034
    %12184 = vmatprep.subr.bf16.mxu0 0
    %12185 = vmatpush1.bf16.msra.mxu0 %v12035
    %12186 = vmatprep.subr.bf16.mxu0 0
    %12187 = vmatpush1.bf16.msra.mxu0 %v12036
    %12188 = vmatprep.subr.bf16.mxu0 0
    %12189 = vmatpush1.bf16.msra.mxu0 %v12037
    %12190 = vmatprep.subr.bf16.mxu0 0
    %12191 = vmatpush1.bf16.msra.mxu0 %v12038
    %12192 = vmatprep.subr.bf16.mxu0 0
    %12193 = vmatpush1.bf16.msra.mxu0 %v12039
    %12194 = vmatprep.subr.bf16.mxu0 0
    %12195 = vmatpush1.bf16.msra.mxu0 %v12040
    %12196 = vmatprep.subr.bf16.mxu0 0
    %12197 = vmatpush1.bf16.msra.mxu0 %v12041
    %12198 = vmatprep.subr.bf16.mxu0 0
    %12199 = vmatpush1.bf16.msra.mxu0 %v12042
    %12200 = vmatprep.subr.bf16.mxu0 0
    %12201 = vmatpush1.bf16.msra.mxu0 %v12043
    %12202 = vmatprep.subr.bf16.mxu0 0
    %12203 = vmatpush1.bf16.msra.mxu0 %v12044
    %12204 = vmatprep.subr.bf16.mxu0 0
    %12205 = vmatpush1.bf16.msra.mxu0 %v12045
    %12206 = vmatprep.mubr.bf16.mxu0 %v11702
    %12207 = vmatmul.mubr.bf16.gmra.mrb[0].mxu0 %v11595
    %v12208 = vpop.f32.mrb[0].mxu0
    %v12209 = vadd.f32 %v12169, %v12208
    %v12210 = vpop.f32.mrb[0].mxu0
    %v12211 = vpop.f32.mrb[0].mxu0
    %v12212 = vpop.f32.mrb[0].mxu0
    %12213 = vdwg.mxu0
    %12214 = vst [vmem:[%s16] sm:$0xff] %v12209
    // Predicated region
    $region122: #{mocast6_forward.1} parent=1 // pred_check
      _
    $region123: #{mocast6_forward.1} parent=1 // pred_check_branch
      %12216 = sbr.rel (0) target = $region125
    $region124: #{mocast6_forward.1} parent=1 // pred_region
      _
    $region125: #{mocast6_forward.1} parent=1 // pred_fallthru
      _
    // Predicated region
    $region126: #{mocast6_forward.1} parent=1 // pred_check
      _
    $region127: #{mocast6_forward.1} parent=1 // pred_check_branch
      %12218 = sbr.rel (0) target = $region129
    $region128: #{mocast6_forward.1} parent=1 // pred_region
      _
    $region129: #{mocast6_forward.1} parent=1 // pred_fallthru
      _
    %12219 = vsyncpa [#allocation3], 1
    %12220 = vsyncpa [#allocation5], 1
    %12221 = vsyncpa [#allocation8], 1
    %12222 = vsyncpa [#allocation11], 1
    %12223 = vsyncpa [#allocation14], 1
    %12224 = vsyncpa [#allocation17], 1
    %12225 = vsyncpa [#allocation20], 1
    %12226 = vsyncpa [#allocation23], 1

</llo_original>
